<compile_context>
chip_gen: v5e
topology: v5e:2x2
jax: 0.10.0
libtpu: 0.0.40
codegen_flags: <defaults>
</compile_context>

<pallas_src>
import functools

import numpy as np
import jax
import jax.numpy as jnp
from jax.experimental import pallas as pl
from jax.experimental.pallas import tpu as pltpu

NUM_CLASSES = 19
H_IN = W_IN = 16
HW_IN = H_IN * W_IN

# Cityscapes train-id colormap (19 classes), used by Cityscapes.decode_target.
CITYSCAPES_TRAIN_COLORS = np.array(
    [
        [128, 64, 128], [244, 35, 232], [70, 70, 70], [102, 102, 156],
        [190, 153, 153], [153, 153, 153], [250, 170, 30], [220, 220, 0],
        [107, 142, 35], [152, 251, 152], [70, 130, 180], [220, 20, 60],
        [255, 0, 0], [0, 0, 142], [0, 0, 70], [0, 60, 100],
        [0, 80, 100], [0, 0, 230], [119, 11, 32],
    ],
    dtype=np.float32,
)

MEAN = np.array([0.485, 0.456, 0.406], np.float32)
STD = np.array([0.229, 0.224, 0.225], np.float32)


# --------------------------- fused Pallas kernel -----------------------------

def _dlv3p_fused_kernel(
    x_ref,
    s1_ref, w1_ref, b1_ref,
    s2_ref, w2_ref, b2_ref,
    s3_ref, w3_ref, b3_ref,
    wb0_ref, bb0_ref, wpool_ref, bpool_ref,
    wproj_a_ref, wproj_b_ref, bproj_ref,
    wlow_ref, blow_ref, u2_ref,
    s4_ref, w4_ref, b4_ref,
    wcls_ref, bcls_ref, cmap_ref, u4_ref,
    mask_ref, rgb_ref,
):
    f32 = jnp.float32
    bf16 = jnp.bfloat16

    def conv3x3(act, w_ref, s_ref, bias, cout):
        # act: (Cin, HWin) f32. w_ref: (9*Cout, Cin) bf16, rows t*Cout:(t+1)*Cout = W_t^T.
        # s_ref: (9, HWin, HWout) bf16 0/1 selection matrices (zero rows = zero padding).
        # Gather-first: col_t = act @ S_t (Cin, HWout) then W_t^T @ col_t (Cout, HWout).
        actb = act.astype(bf16)
        acc = None
        for t in range(9):                                   # static unroll, MXU work
            col = jnp.dot(actb, s_ref[t], preferred_element_type=f32)   # (Cin, HWout)
            wt = w_ref[t * cout:(t + 1) * cout, :]                      # aligned slice
            pt = jnp.dot(wt, col.astype(bf16), preferred_element_type=f32)
            acc = pt if acc is None else acc + pt
        return jnp.maximum(acc + bias, 0.0)

    def conv1x1(act, w_ref, b_ref, relu=True):
        y = jnp.dot(w_ref[...], act.astype(bf16), preferred_element_type=f32) + b_ref[...]
        return jnp.maximum(y, 0.0) if relu else y

    # T.Normalize folded into stem1 (weights scaled by 1/std, per-position bias map).
    x = x_ref[0].astype(f32)                                   # (3, 256) raw pixels

    # Backbone stub (output_stride = 8).
    f1 = conv3x3(x, w1_ref, s1_ref, b1_ref[...], 16)           # (16, 64)  8x8
    low = conv3x3(f1, w2_ref, s2_ref, b2_ref[...], 32)         # (32, 16)  4x4
    high = conv3x3(low, w3_ref, s3_ref, b3_ref[...], 64)       # (64, 4)   2x2

    # ASPP: 1x1 branch + fused image-pooling branch + (split) projection.
    b0 = conv1x1(high, wb0_ref, bb0_ref)                       # (32, 4)
    pooled = jnp.mean(high, axis=1, keepdims=True)             # (64, 1) global avg pool
    pooled = conv1x1(pooled, wpool_ref, bpool_ref)             # (32, 1)
    aspp = jnp.maximum(
        jnp.dot(wproj_a_ref[...], b0.astype(bf16), preferred_element_type=f32)
        + jnp.dot(wproj_b_ref[...], pooled.astype(bf16), preferred_element_type=f32)
        + bproj_ref[...],
        0.0)                                                   # (32, 4)

    # Decoder.
    low_p = conv1x1(low, wlow_ref, blow_ref)                   # (8, 16)
    up = jnp.dot(aspp.astype(bf16), u2_ref[...],
                 preferred_element_type=f32)                   # nearest x2 -> (32, 16)
    fused = jnp.concatenate([up, low_p], axis=0)               # (40, 16), 8-aligned rows
    dec = conv3x3(fused, w4_ref, s4_ref, b4_ref[...], 32)      # (32, 16)
    logits = conv1x1(dec, wcls_ref, bcls_ref, relu=False)      # (19, 16)

    # pred_mask.max(1)[1]: argmax over classes at the native 4x4 resolution
    # (argmax commutes with the nearest-neighbour logits upsample of the reference).
    cls_iota = jax.lax.broadcasted_iota(jnp.int32, logits.shape, 0).astype(f32)  # (19,16)
    mmax = jnp.max(logits, axis=0, keepdims=True)                                # (1, 16)
    mask4 = jnp.min(jnp.where(logits == mmax, cls_iota, float(NUM_CLASSES)),
                    axis=0, keepdims=True)                                       # (1, 16)

    # Cityscapes.decode_target: one-hot select against the (3, 19) colormap.
    onehot = (cls_iota == mask4).astype(bf16)                                    # (19, 16)
    rgb4 = jnp.dot(cmap_ref[...], onehot, preferred_element_type=f32)            # (3, 16)

    # Nearest x4 upsample of mask / rgb to full 16x16; outputs are lane-dense (256 lanes).
    mask_ref[0] = (jnp.dot(mask4.astype(bf16), u4_ref[...],
                           preferred_element_type=f32) + 0.5).astype(jnp.int32)  # (1, 256)
    rgb_ref[0] = jnp.dot(rgb4.astype(bf16), u4_ref[...],
                         preferred_element_type=f32)                             # (3, 256)


# --------------------------- constant / weight preparation -------------------

def _conv_selectors(h, w, ksize, stride, pad):
    """0/1 matrices S_t of shape (9, H*W, HO*WO); zero rows encode zero padding."""
    ho = (h + 2 * pad - ksize) // stride + 1
    wo = (w + 2 * pad - ksize) // stride + 1
    s = np.zeros((ksize * ksize, h * w, ho * wo), np.float32)
    for di in range(ksize):
        for dj in range(ksize):
            t = di * ksize + dj
            for oi in range(ho):
                for oj in range(wo):
                    ii = oi * stride + di - pad
                    jj = oj * stride + dj - pad
                    if 0 <= ii < h and 0 <= jj < w:
                        s[t, ii * w + jj, oi * wo + oj] = 1.0
    return s


def _upsample_matrix(hs, ws, f):
    """0/1 matrix (hs*ws, hs*f*ws*f) implementing nearest-neighbour upsample by f."""
    u = np.zeros((hs * ws, hs * f * ws * f), np.float32)
    for i in range(hs * f):
        for j in range(ws * f):
            u[(i // f) * ws + (j // f), i * (ws * f) + j] = 1.0
    return u


def _prepare_constants(params):
    inv_std = (1.0 / STD).astype(np.float32)

    s1 = _conv_selectors(16, 16, 3, 2, 1)    # (9, 256, 64)
    s2 = _conv_selectors(8, 8, 3, 2, 1)      # (9, 64, 16)
    s3 = _conv_selectors(4, 4, 3, 2, 1)      # (9, 16, 4)
    s4 = _conv_selectors(4, 4, 3, 1, 1)      # (9, 16, 16)
    u2 = _upsample_matrix(2, 2, 2)           # (4, 16)
    u4 = _upsample_matrix(4, 4, 4)           # (16, 256)

    # stem1: fold T.Normalize into weights + an exact per-output-position bias map.
    w1, b1 = params["stem1"]                 # (27, 16), (16,)
    w1_t = jnp.asarray(w1).reshape(9, 3, 16)
    w1cat = ((w1_t * jnp.asarray(inv_std)[None, :, None])
             .transpose(0, 2, 1).reshape(9 * 16, 3).astype(jnp.bfloat16))
    corr = -jnp.einsum("c,tco->to", jnp.asarray(MEAN * inv_std), w1_t)     # (9, 16)
    inb = jnp.asarray(s1.sum(axis=1))                                      # (9, 64)
    b1map = (jnp.asarray(b1)[:, None] + corr.T @ inb).astype(jnp.float32)  # (16, 64)

    def c3(name, cin, cout):
        w, b = params[name]
        wcat = (jnp.asarray(w).reshape(9, cin, cout).transpose(0, 2, 1)
                .reshape(9 * cout, cin).astype(jnp.bfloat16))
        return wcat, jnp.asarray(b).reshape(cout, 1).astype(jnp.float32)

    def c1(name):
        w, b = params[name]
        return (jnp.asarray(w).T.astype(jnp.bfloat16),
                jnp.asarray(b).reshape(-1, 1).astype(jnp.float32))

    w2cat, b2 = c3("stem2", 16, 32)
    w3cat, b3 = c3("stem3", 32, 64)
    w4cat, b4 = c3("dec_fuse", 40, 32)
    wb0, bb0 = c1("aspp_b0")
    wpool, bpool = c1("aspp_pool")
    wproj, bproj = c1("aspp_proj")
    wproj_a, wproj_b = wproj[:, :32], wproj[:, 32:]   # split: 1x1-branch vs pooled-branch
    wlow, blow = c1("dec_low")
    wcls, bcls = c1("classifier")

    return [
        jnp.asarray(s1, jnp.bfloat16), w1cat, b1map,
        jnp.asarray(s2, jnp.bfloat16), w2cat, b2,
        jnp.asarray(s3, jnp.bfloat16), w3cat, b3,
        wb0, bb0, wpool, bpool, wproj_a, wproj_b, bproj,
        wlow, blow, jnp.asarray(u2, jnp.bfloat16),
        jnp.asarray(s4, jnp.bfloat16), w4cat, b4,
        wcls, bcls,
        jnp.asarray(CITYSCAPES_TRAIN_COLORS.T, jnp.bfloat16),   # (3, 19), exact in bf16
        jnp.asarray(u4, jnp.bfloat16),
    ]


# --------------------------- parameters (deterministic, synthetic) -----------

def init_params(key):
    def dense(k, fan_in, fan_out):
        kw, kb = jax.random.split(k)
        w = jax.random.normal(kw, (fan_in, fan_out), jnp.float32) / jnp.sqrt(float(fan_in))
        b = 0.01 * jax.random.normal(kb, (fan_out,), jnp.float32)
        return w, b

    keys = jax.random.split(key, 9)
    return {
        "stem1":      dense(keys[0], 9 * 3, 16),    # 3x3 s2:  3 -> 16
        "stem2":      dense(keys[1], 9 * 16, 32),   # 3x3 s2: 16 -> 32 (low-level feat)
        "stem3":      dense(keys[2], 9 * 32, 64),   # 3x3 s2: 32 -> 64 (high-level feat)
        "aspp_b0":    dense(keys[3], 64, 32),       # ASPP 1x1 branch
        "aspp_pool":  dense(keys[4], 64, 32),       # ASPP image-pooling branch
        "aspp_proj":  dense(keys[5], 64, 32),       # ASPP projection
        "dec_low":    dense(keys[6], 32, 8),        # decoder low-level projection
        "dec_fuse":   dense(keys[7], 9 * 40, 32),   # decoder 3x3 fuse conv
        "classifier": dense(keys[8], 32, NUM_CLASSES),
    }


# --------------------------- forward ------------------------------------------

def dlv3p_forward(params, img_nchw):
    n = img_nchw.shape[0]
    consts = _prepare_constants(params)

    # NCHW -> (N, C=3 on sublanes, flattened HW=256 on the 128-lane axis).
    x3 = img_nchw.astype(jnp.float32).reshape(n, 3, HW_IN)

    def const_spec(a):
        zeros = (0,) * a.ndim
        return pl.BlockSpec(a.shape, lambda b, z=zeros: z)   # fetched once, reused

    in_specs = [pl.BlockSpec((1, 3, HW_IN), lambda b: (b, 0, 0))]
    in_specs += [const_spec(a) for a in consts]

    mask_out, rgb_out = pl.pallas_call(
        _dlv3p_fused_kernel,
        out_shape=(jax.ShapeDtypeStruct((n, 1, HW_IN), jnp.int32),
                   jax.ShapeDtypeStruct((n, 3, HW_IN), jnp.float32)),
        grid=(n,),
        in_specs=in_specs,
        out_specs=(pl.BlockSpec((1, 1, HW_IN), lambda b: (b, 0, 0)),
                   pl.BlockSpec((1, 3, HW_IN), lambda b: (b, 0, 0))),
        compiler_params=pltpu.CompilerParams(
            dimension_semantics=("parallel",)),   # batch across both TCs on v7x
    )(x3, *consts)

    mask = mask_out.reshape(n, H_IN, W_IN)                       # pred_mask.max(1)[1]
    rgb0 = jnp.transpose(rgb_out[0].reshape(3, H_IN, W_IN), (1, 2, 0))
    colorized = jnp.round(rgb0).astype(jnp.uint8)                # decode_target(mask[0])
    return mask, colorized


# --------------------------- main --------------------------------------------

if __name__ == "__main__":
    key = jax.random.PRNGKey(0)
    kp, kx = jax.random.split(key)
    params = init_params(kp)
    img = jax.random.uniform(kx, (2, 3, 16, 16), jnp.float32)    # [0,1] RGB image, NCHW

    fwd = jax.jit(functools.partial(dlv3p_forward, params))
    mask, colorized = fwd(img)
    jax.block_until_ready((mask, colorized))

    assert mask.shape == (2, 16, 16) and mask.dtype == jnp.int32
    assert colorized.shape == (16, 16, 3) and colorized.dtype == jnp.uint8
    assert int(jnp.max(mask)) < NUM_CLASSES and int(jnp.min(mask)) >= 0
    print("KERNEL_OK")
</pallas_src>

<mosaic_0001>
module attributes {stable_mosaic.version = 11 : i64} {
  func.func @_dlv3p_fused_kernel(%arg0: i32, %arg1: memref<1x3x256xf32, #tpu.memory_space<vmem>>, %arg2: memref<9x256x64xbf16, #tpu.memory_space<vmem>>, %arg3: memref<144x3xbf16, #tpu.memory_space<vmem>>, %arg4: memref<16x64xf32, #tpu.memory_space<vmem>>, %arg5: memref<9x64x16xbf16, #tpu.memory_space<vmem>>, %arg6: memref<288x16xbf16, #tpu.memory_space<vmem>>, %arg7: memref<32x1xf32, #tpu.memory_space<vmem>>, %arg8: memref<9x16x4xbf16, #tpu.memory_space<vmem>>, %arg9: memref<576x32xbf16, #tpu.memory_space<vmem>>, %arg10: memref<64x1xf32, #tpu.memory_space<vmem>>, %arg11: memref<32x64xbf16, #tpu.memory_space<vmem>>, %arg12: memref<32x1xf32, #tpu.memory_space<vmem>>, %arg13: memref<32x64xbf16, #tpu.memory_space<vmem>>, %arg14: memref<32x1xf32, #tpu.memory_space<vmem>>, %arg15: memref<32x32xbf16, #tpu.memory_space<vmem>>, %arg16: memref<32x32xbf16, #tpu.memory_space<vmem>>, %arg17: memref<32x1xf32, #tpu.memory_space<vmem>>, %arg18: memref<8x32xbf16, #tpu.memory_space<vmem>>, %arg19: memref<8x1xf32, #tpu.memory_space<vmem>>, %arg20: memref<4x16xbf16, #tpu.memory_space<vmem>>, %arg21: memref<9x16x16xbf16, #tpu.memory_space<vmem>>, %arg22: memref<288x40xbf16, #tpu.memory_space<vmem>>, %arg23: memref<32x1xf32, #tpu.memory_space<vmem>>, %arg24: memref<19x32xbf16, #tpu.memory_space<vmem>>, %arg25: memref<19x1xf32, #tpu.memory_space<vmem>>, %arg26: memref<3x19xbf16, #tpu.memory_space<vmem>>, %arg27: memref<16x256xbf16, #tpu.memory_space<vmem>>, %arg28: memref<1x1x256xi32, #tpu.memory_space<vmem>>, %arg29: memref<1x3x256xf32, #tpu.memory_space<vmem>>) attributes {dimension_semantics = [#tpu.dimension_semantics<parallel>], iteration_bounds = array<i64: 2>, scalar_prefetch = 0 : i64, scratch_operands = 0 : i64, tpu.core_type = #tpu.core_type<tc>, window_params = [{transform_indices = @transform_0, window_bounds = array<i64: 1, 3, 256>}, {pipeline_mode = #tpu.pipeline_mode<synchronous>, transform_indices = @transform_1, window_bounds = array<i64: 9, 256, 64>}, {pipeline_mode = #tpu.pipeline_mode<synchronous>, transform_indices = @transform_2, window_bounds = array<i64: 144, 3>}, {pipeline_mode = #tpu.pipeline_mode<synchronous>, transform_indices = @transform_3, window_bounds = array<i64: 16, 64>}, {pipeline_mode = #tpu.pipeline_mode<synchronous>, transform_indices = @transform_4, window_bounds = array<i64: 9, 64, 16>}, {pipeline_mode = #tpu.pipeline_mode<synchronous>, transform_indices = @transform_5, window_bounds = array<i64: 288, 16>}, {pipeline_mode = #tpu.pipeline_mode<synchronous>, transform_indices = @transform_6, window_bounds = array<i64: 32, 1>}, {pipeline_mode = #tpu.pipeline_mode<synchronous>, transform_indices = @transform_7, window_bounds = array<i64: 9, 16, 4>}, {pipeline_mode = #tpu.pipeline_mode<synchronous>, transform_indices = @transform_8, window_bounds = array<i64: 576, 32>}, {pipeline_mode = #tpu.pipeline_mode<synchronous>, transform_indices = @transform_9, window_bounds = array<i64: 64, 1>}, {pipeline_mode = #tpu.pipeline_mode<synchronous>, transform_indices = @transform_10, window_bounds = array<i64: 32, 64>}, {pipeline_mode = #tpu.pipeline_mode<synchronous>, transform_indices = @transform_11, window_bounds = array<i64: 32, 1>}, {pipeline_mode = #tpu.pipeline_mode<synchronous>, transform_indices = @transform_12, window_bounds = array<i64: 32, 64>}, {pipeline_mode = #tpu.pipeline_mode<synchronous>, transform_indices = @transform_13, window_bounds = array<i64: 32, 1>}, {pipeline_mode = #tpu.pipeline_mode<synchronous>, transform_indices = @transform_14, window_bounds = array<i64: 32, 32>}, {pipeline_mode = #tpu.pipeline_mode<synchronous>, transform_indices = @transform_15, window_bounds = array<i64: 32, 32>}, {pipeline_mode = #tpu.pipeline_mode<synchronous>, transform_indices = @transform_16, window_bounds = array<i64: 32, 1>}, {pipeline_mode = #tpu.pipeline_mode<synchronous>, transform_indices = @transform_17, window_bounds = array<i64: 8, 32>}, {pipeline_mode = #tpu.pipeline_mode<synchronous>, transform_indices = @transform_18, window_bounds = array<i64: 8, 1>}, {pipeline_mode = #tpu.pipeline_mode<synchronous>, transform_indices = @transform_19, window_bounds = array<i64: 4, 16>}, {pipeline_mode = #tpu.pipeline_mode<synchronous>, transform_indices = @transform_20, window_bounds = array<i64: 9, 16, 16>}, {pipeline_mode = #tpu.pipeline_mode<synchronous>, transform_indices = @transform_21, window_bounds = array<i64: 288, 40>}, {pipeline_mode = #tpu.pipeline_mode<synchronous>, transform_indices = @transform_22, window_bounds = array<i64: 32, 1>}, {pipeline_mode = #tpu.pipeline_mode<synchronous>, transform_indices = @transform_23, window_bounds = array<i64: 19, 32>}, {pipeline_mode = #tpu.pipeline_mode<synchronous>, transform_indices = @transform_24, window_bounds = array<i64: 19, 1>}, {pipeline_mode = #tpu.pipeline_mode<synchronous>, transform_indices = @transform_25, window_bounds = array<i64: 3, 19>}, {pipeline_mode = #tpu.pipeline_mode<synchronous>, transform_indices = @transform_26, window_bounds = array<i64: 16, 256>}, {transform_indices = @transform_27, window_bounds = array<i64: 1, 1, 256>}, {transform_indices = @transform_28, window_bounds = array<i64: 1, 3, 256>}]} {
    %c0 = arith.constant 0 : index
    %c0_0 = arith.constant 0 : index
    %c0_1 = arith.constant 0 : index
    %0 = vector.load %arg1[%c0, %c0_0, %c0_1] : memref<1x3x256xf32, #tpu.memory_space<vmem>>, vector<1x3x256xf32>
    %1 = vector.shape_cast %0 : vector<1x3x256xf32> to vector<3x256xf32>
    %c0_2 = arith.constant 0 : index
    %c0_3 = arith.constant 0 : index
    %2 = vector.load %arg4[%c0_2, %c0_3] : memref<16x64xf32, #tpu.memory_space<vmem>>, vector<16x64xf32>
    %3 = arith.truncf %1 : vector<3x256xf32> to vector<3x256xbf16>
    %c0_4 = arith.constant 0 : index
    %c0_5 = arith.constant 0 : index
    %c0_6 = arith.constant 0 : index
    %4 = vector.load %arg2[%c0_4, %c0_5, %c0_6] : memref<9x256x64xbf16, #tpu.memory_space<vmem>>, vector<1x256x64xbf16>
    %5 = vector.shape_cast %4 : vector<1x256x64xbf16> to vector<256x64xbf16>
    %cst = arith.constant dense<0.000000e+00> : vector<3x64xf32>
    %6 = tpu.matmul %3, %5, %cst {dimension_numbers = #tpu.dot_dimension_numbers<[1], [0], [0], [1], [0, 0, 1, 1], [], []>} : vector<3x256xbf16>, vector<256x64xbf16>, vector<3x64xf32> -> vector<3x64xf32>
    %c0_7 = arith.constant 0 : index
    %c0_8 = arith.constant 0 : index
    %7 = vector.load %arg3[%c0_7, %c0_8] : memref<144x3xbf16, #tpu.memory_space<vmem>>, vector<16x3xbf16>
    %8 = arith.truncf %6 : vector<3x64xf32> to vector<3x64xbf16>
    %cst_9 = arith.constant dense<0.000000e+00> : vector<16x64xf32>
    %9 = tpu.matmul %7, %8, %cst_9 {dimension_numbers = #tpu.dot_dimension_numbers<[1], [0], [0], [1], [0, 0, 1, 1], [], []>} : vector<16x3xbf16>, vector<3x64xbf16>, vector<16x64xf32> -> vector<16x64xf32>
    %c1 = arith.constant 1 : index
    %c0_10 = arith.constant 0 : index
    %c0_11 = arith.constant 0 : index
    %10 = vector.load %arg2[%c1, %c0_10, %c0_11] : memref<9x256x64xbf16, #tpu.memory_space<vmem>>, vector<1x256x64xbf16>
    %11 = vector.shape_cast %10 : vector<1x256x64xbf16> to vector<256x64xbf16>
    %cst_12 = arith.constant dense<0.000000e+00> : vector<3x64xf32>
    %12 = tpu.matmul %3, %11, %cst_12 {dimension_numbers = #tpu.dot_dimension_numbers<[1], [0], [0], [1], [0, 0, 1, 1], [], []>} : vector<3x256xbf16>, vector<256x64xbf16>, vector<3x64xf32> -> vector<3x64xf32>
    %c16 = arith.constant 16 : index
    %c0_13 = arith.constant 0 : index
    %13 = vector.load %arg3[%c16, %c0_13] : memref<144x3xbf16, #tpu.memory_space<vmem>>, vector<16x3xbf16>
    %14 = arith.truncf %12 : vector<3x64xf32> to vector<3x64xbf16>
    %cst_14 = arith.constant dense<0.000000e+00> : vector<16x64xf32>
    %15 = tpu.matmul %13, %14, %cst_14 {dimension_numbers = #tpu.dot_dimension_numbers<[1], [0], [0], [1], [0, 0, 1, 1], [], []>} : vector<16x3xbf16>, vector<3x64xbf16>, vector<16x64xf32> -> vector<16x64xf32>
    %16 = arith.addf %9, %15 : vector<16x64xf32>
    %c2 = arith.constant 2 : index
    %c0_15 = arith.constant 0 : index
    %c0_16 = arith.constant 0 : index
    %17 = vector.load %arg2[%c2, %c0_15, %c0_16] : memref<9x256x64xbf16, #tpu.memory_space<vmem>>, vector<1x256x64xbf16>
    %18 = vector.shape_cast %17 : vector<1x256x64xbf16> to vector<256x64xbf16>
    %cst_17 = arith.constant dense<0.000000e+00> : vector<3x64xf32>
    %19 = tpu.matmul %3, %18, %cst_17 {dimension_numbers = #tpu.dot_dimension_numbers<[1], [0], [0], [1], [0, 0, 1, 1], [], []>} : vector<3x256xbf16>, vector<256x64xbf16>, vector<3x64xf32> -> vector<3x64xf32>
    %c32 = arith.constant 32 : index
    %c0_18 = arith.constant 0 : index
    %20 = vector.load %arg3[%c32, %c0_18] : memref<144x3xbf16, #tpu.memory_space<vmem>>, vector<16x3xbf16>
    %21 = arith.truncf %19 : vector<3x64xf32> to vector<3x64xbf16>
    %cst_19 = arith.constant dense<0.000000e+00> : vector<16x64xf32>
    %22 = tpu.matmul %20, %21, %cst_19 {dimension_numbers = #tpu.dot_dimension_numbers<[1], [0], [0], [1], [0, 0, 1, 1], [], []>} : vector<16x3xbf16>, vector<3x64xbf16>, vector<16x64xf32> -> vector<16x64xf32>
    %23 = arith.addf %16, %22 : vector<16x64xf32>
    %c3 = arith.constant 3 : index
    %c0_20 = arith.constant 0 : index
    %c0_21 = arith.constant 0 : index
    %24 = vector.load %arg2[%c3, %c0_20, %c0_21] : memref<9x256x64xbf16, #tpu.memory_space<vmem>>, vector<1x256x64xbf16>
    %25 = vector.shape_cast %24 : vector<1x256x64xbf16> to vector<256x64xbf16>
    %cst_22 = arith.constant dense<0.000000e+00> : vector<3x64xf32>
    %26 = tpu.matmul %3, %25, %cst_22 {dimension_numbers = #tpu.dot_dimension_numbers<[1], [0], [0], [1], [0, 0, 1, 1], [], []>} : vector<3x256xbf16>, vector<256x64xbf16>, vector<3x64xf32> -> vector<3x64xf32>
    %c48 = arith.constant 48 : index
    %c0_23 = arith.constant 0 : index
    %27 = vector.load %arg3[%c48, %c0_23] : memref<144x3xbf16, #tpu.memory_space<vmem>>, vector<16x3xbf16>
    %28 = arith.truncf %26 : vector<3x64xf32> to vector<3x64xbf16>
    %cst_24 = arith.constant dense<0.000000e+00> : vector<16x64xf32>
    %29 = tpu.matmul %27, %28, %cst_24 {dimension_numbers = #tpu.dot_dimension_numbers<[1], [0], [0], [1], [0, 0, 1, 1], [], []>} : vector<16x3xbf16>, vector<3x64xbf16>, vector<16x64xf32> -> vector<16x64xf32>
    %30 = arith.addf %23, %29 : vector<16x64xf32>
    %c4 = arith.constant 4 : index
    %c0_25 = arith.constant 0 : index
    %c0_26 = arith.constant 0 : index
    %31 = vector.load %arg2[%c4, %c0_25, %c0_26] : memref<9x256x64xbf16, #tpu.memory_space<vmem>>, vector<1x256x64xbf16>
    %32 = vector.shape_cast %31 : vector<1x256x64xbf16> to vector<256x64xbf16>
    %cst_27 = arith.constant dense<0.000000e+00> : vector<3x64xf32>
    %33 = tpu.matmul %3, %32, %cst_27 {dimension_numbers = #tpu.dot_dimension_numbers<[1], [0], [0], [1], [0, 0, 1, 1], [], []>} : vector<3x256xbf16>, vector<256x64xbf16>, vector<3x64xf32> -> vector<3x64xf32>
    %c64 = arith.constant 64 : index
    %c0_28 = arith.constant 0 : index
    %34 = vector.load %arg3[%c64, %c0_28] : memref<144x3xbf16, #tpu.memory_space<vmem>>, vector<16x3xbf16>
    %35 = arith.truncf %33 : vector<3x64xf32> to vector<3x64xbf16>
    %cst_29 = arith.constant dense<0.000000e+00> : vector<16x64xf32>
    %36 = tpu.matmul %34, %35, %cst_29 {dimension_numbers = #tpu.dot_dimension_numbers<[1], [0], [0], [1], [0, 0, 1, 1], [], []>} : vector<16x3xbf16>, vector<3x64xbf16>, vector<16x64xf32> -> vector<16x64xf32>
    %37 = arith.addf %30, %36 : vector<16x64xf32>
    %c5 = arith.constant 5 : index
    %c0_30 = arith.constant 0 : index
    %c0_31 = arith.constant 0 : index
    %38 = vector.load %arg2[%c5, %c0_30, %c0_31] : memref<9x256x64xbf16, #tpu.memory_space<vmem>>, vector<1x256x64xbf16>
    %39 = vector.shape_cast %38 : vector<1x256x64xbf16> to vector<256x64xbf16>
    %cst_32 = arith.constant dense<0.000000e+00> : vector<3x64xf32>
    %40 = tpu.matmul %3, %39, %cst_32 {dimension_numbers = #tpu.dot_dimension_numbers<[1], [0], [0], [1], [0, 0, 1, 1], [], []>} : vector<3x256xbf16>, vector<256x64xbf16>, vector<3x64xf32> -> vector<3x64xf32>
    %c80 = arith.constant 80 : index
    %c0_33 = arith.constant 0 : index
    %41 = vector.load %arg3[%c80, %c0_33] : memref<144x3xbf16, #tpu.memory_space<vmem>>, vector<16x3xbf16>
    %42 = arith.truncf %40 : vector<3x64xf32> to vector<3x64xbf16>
    %cst_34 = arith.constant dense<0.000000e+00> : vector<16x64xf32>
    %43 = tpu.matmul %41, %42, %cst_34 {dimension_numbers = #tpu.dot_dimension_numbers<[1], [0], [0], [1], [0, 0, 1, 1], [], []>} : vector<16x3xbf16>, vector<3x64xbf16>, vector<16x64xf32> -> vector<16x64xf32>
    %44 = arith.addf %37, %43 : vector<16x64xf32>
    %c6 = arith.constant 6 : index
    %c0_35 = arith.constant 0 : index
    %c0_36 = arith.constant 0 : index
    %45 = vector.load %arg2[%c6, %c0_35, %c0_36] : memref<9x256x64xbf16, #tpu.memory_space<vmem>>, vector<1x256x64xbf16>
    %46 = vector.shape_cast %45 : vector<1x256x64xbf16> to vector<256x64xbf16>
    %cst_37 = arith.constant dense<0.000000e+00> : vector<3x64xf32>
    %47 = tpu.matmul %3, %46, %cst_37 {dimension_numbers = #tpu.dot_dimension_numbers<[1], [0], [0], [1], [0, 0, 1, 1], [], []>} : vector<3x256xbf16>, vector<256x64xbf16>, vector<3x64xf32> -> vector<3x64xf32>
    %c96 = arith.constant 96 : index
    %c0_38 = arith.constant 0 : index
    %48 = vector.load %arg3[%c96, %c0_38] : memref<144x3xbf16, #tpu.memory_space<vmem>>, vector<16x3xbf16>
    %49 = arith.truncf %47 : vector<3x64xf32> to vector<3x64xbf16>
    %cst_39 = arith.constant dense<0.000000e+00> : vector<16x64xf32>
    %50 = tpu.matmul %48, %49, %cst_39 {dimension_numbers = #tpu.dot_dimension_numbers<[1], [0], [0], [1], [0, 0, 1, 1], [], []>} : vector<16x3xbf16>, vector<3x64xbf16>, vector<16x64xf32> -> vector<16x64xf32>
    %51 = arith.addf %44, %50 : vector<16x64xf32>
    %c7 = arith.constant 7 : index
    %c0_40 = arith.constant 0 : index
    %c0_41 = arith.constant 0 : index
    %52 = vector.load %arg2[%c7, %c0_40, %c0_41] : memref<9x256x64xbf16, #tpu.memory_space<vmem>>, vector<1x256x64xbf16>
    %53 = vector.shape_cast %52 : vector<1x256x64xbf16> to vector<256x64xbf16>
    %cst_42 = arith.constant dense<0.000000e+00> : vector<3x64xf32>
    %54 = tpu.matmul %3, %53, %cst_42 {dimension_numbers = #tpu.dot_dimension_numbers<[1], [0], [0], [1], [0, 0, 1, 1], [], []>} : vector<3x256xbf16>, vector<256x64xbf16>, vector<3x64xf32> -> vector<3x64xf32>
    %c112 = arith.constant 112 : index
    %c0_43 = arith.constant 0 : index
    %55 = vector.load %arg3[%c112, %c0_43] : memref<144x3xbf16, #tpu.memory_space<vmem>>, vector<16x3xbf16>
    %56 = arith.truncf %54 : vector<3x64xf32> to vector<3x64xbf16>
    %cst_44 = arith.constant dense<0.000000e+00> : vector<16x64xf32>
    %57 = tpu.matmul %55, %56, %cst_44 {dimension_numbers = #tpu.dot_dimension_numbers<[1], [0], [0], [1], [0, 0, 1, 1], [], []>} : vector<16x3xbf16>, vector<3x64xbf16>, vector<16x64xf32> -> vector<16x64xf32>
    %58 = arith.addf %51, %57 : vector<16x64xf32>
    %c8 = arith.constant 8 : index
    %c0_45 = arith.constant 0 : index
    %c0_46 = arith.constant 0 : index
    %59 = vector.load %arg2[%c8, %c0_45, %c0_46] : memref<9x256x64xbf16, #tpu.memory_space<vmem>>, vector<1x256x64xbf16>
    %60 = vector.shape_cast %59 : vector<1x256x64xbf16> to vector<256x64xbf16>
    %cst_47 = arith.constant dense<0.000000e+00> : vector<3x64xf32>
    %61 = tpu.matmul %3, %60, %cst_47 {dimension_numbers = #tpu.dot_dimension_numbers<[1], [0], [0], [1], [0, 0, 1, 1], [], []>} : vector<3x256xbf16>, vector<256x64xbf16>, vector<3x64xf32> -> vector<3x64xf32>
    %c128 = arith.constant 128 : index
    %c0_48 = arith.constant 0 : index
    %62 = vector.load %arg3[%c128, %c0_48] : memref<144x3xbf16, #tpu.memory_space<vmem>>, vector<16x3xbf16>
    %63 = arith.truncf %61 : vector<3x64xf32> to vector<3x64xbf16>
    %cst_49 = arith.constant dense<0.000000e+00> : vector<16x64xf32>
    %64 = tpu.matmul %62, %63, %cst_49 {dimension_numbers = #tpu.dot_dimension_numbers<[1], [0], [0], [1], [0, 0, 1, 1], [], []>} : vector<16x3xbf16>, vector<3x64xbf16>, vector<16x64xf32> -> vector<16x64xf32>
    %65 = arith.addf %58, %64 : vector<16x64xf32>
    %66 = arith.addf %65, %2 : vector<16x64xf32>
    %cst_50 = arith.constant 0.000000e+00 : f32
    %67 = vector.broadcast %cst_50 : f32 to vector<16x64xf32>
    %68 = arith.maximumf %66, %67 : vector<16x64xf32>
    %c0_51 = arith.constant 0 : index
    %c0_52 = arith.constant 0 : index
    %69 = vector.load %arg7[%c0_51, %c0_52] : memref<32x1xf32, #tpu.memory_space<vmem>>, vector<32x1xf32>
    %70 = arith.truncf %68 : vector<16x64xf32> to vector<16x64xbf16>
    %c0_53 = arith.constant 0 : index
    %c0_54 = arith.constant 0 : index
    %c0_55 = arith.constant 0 : index
    %71 = vector.load %arg5[%c0_53, %c0_54, %c0_55] : memref<9x64x16xbf16, #tpu.memory_space<vmem>>, vector<1x64x16xbf16>
    %72 = vector.shape_cast %71 : vector<1x64x16xbf16> to vector<64x16xbf16>
    %cst_56 = arith.constant dense<0.000000e+00> : vector<16x16xf32>
    %73 = tpu.matmul %70, %72, %cst_56 {dimension_numbers = #tpu.dot_dimension_numbers<[1], [0], [0], [1], [0, 0, 1, 1], [], []>} : vector<16x64xbf16>, vector<64x16xbf16>, vector<16x16xf32> -> vector<16x16xf32>
    %c0_57 = arith.constant 0 : index
    %c0_58 = arith.constant 0 : index
    %74 = vector.load %arg6[%c0_57, %c0_58] : memref<288x16xbf16, #tpu.memory_space<vmem>>, vector<32x16xbf16>
    %75 = arith.truncf %73 : vector<16x16xf32> to vector<16x16xbf16>
    %cst_59 = arith.constant dense<0.000000e+00> : vector<32x16xf32>
    %76 = tpu.matmul %74, %75, %cst_59 {dimension_numbers = #tpu.dot_dimension_numbers<[1], [0], [0], [1], [0, 0, 1, 1], [], []>} : vector<32x16xbf16>, vector<16x16xbf16>, vector<32x16xf32> -> vector<32x16xf32>
    %c1_60 = arith.constant 1 : index
    %c0_61 = arith.constant 0 : index
    %c0_62 = arith.constant 0 : index
    %77 = vector.load %arg5[%c1_60, %c0_61, %c0_62] : memref<9x64x16xbf16, #tpu.memory_space<vmem>>, vector<1x64x16xbf16>
    %78 = vector.shape_cast %77 : vector<1x64x16xbf16> to vector<64x16xbf16>
    %cst_63 = arith.constant dense<0.000000e+00> : vector<16x16xf32>
    %79 = tpu.matmul %70, %78, %cst_63 {dimension_numbers = #tpu.dot_dimension_numbers<[1], [0], [0], [1], [0, 0, 1, 1], [], []>} : vector<16x64xbf16>, vector<64x16xbf16>, vector<16x16xf32> -> vector<16x16xf32>
    %c32_64 = arith.constant 32 : index
    %c0_65 = arith.constant 0 : index
    %80 = vector.load %arg6[%c32_64, %c0_65] : memref<288x16xbf16, #tpu.memory_space<vmem>>, vector<32x16xbf16>
    %81 = arith.truncf %79 : vector<16x16xf32> to vector<16x16xbf16>
    %cst_66 = arith.constant dense<0.000000e+00> : vector<32x16xf32>
    %82 = tpu.matmul %80, %81, %cst_66 {dimension_numbers = #tpu.dot_dimension_numbers<[1], [0], [0], [1], [0, 0, 1, 1], [], []>} : vector<32x16xbf16>, vector<16x16xbf16>, vector<32x16xf32> -> vector<32x16xf32>
    %83 = arith.addf %76, %82 : vector<32x16xf32>
    %c2_67 = arith.constant 2 : index
    %c0_68 = arith.constant 0 : index
    %c0_69 = arith.constant 0 : index
    %84 = vector.load %arg5[%c2_67, %c0_68, %c0_69] : memref<9x64x16xbf16, #tpu.memory_space<vmem>>, vector<1x64x16xbf16>
    %85 = vector.shape_cast %84 : vector<1x64x16xbf16> to vector<64x16xbf16>
    %cst_70 = arith.constant dense<0.000000e+00> : vector<16x16xf32>
    %86 = tpu.matmul %70, %85, %cst_70 {dimension_numbers = #tpu.dot_dimension_numbers<[1], [0], [0], [1], [0, 0, 1, 1], [], []>} : vector<16x64xbf16>, vector<64x16xbf16>, vector<16x16xf32> -> vector<16x16xf32>
    %c64_71 = arith.constant 64 : index
    %c0_72 = arith.constant 0 : index
    %87 = vector.load %arg6[%c64_71, %c0_72] : memref<288x16xbf16, #tpu.memory_space<vmem>>, vector<32x16xbf16>
    %88 = arith.truncf %86 : vector<16x16xf32> to vector<16x16xbf16>
    %cst_73 = arith.constant dense<0.000000e+00> : vector<32x16xf32>
    %89 = tpu.matmul %87, %88, %cst_73 {dimension_numbers = #tpu.dot_dimension_numbers<[1], [0], [0], [1], [0, 0, 1, 1], [], []>} : vector<32x16xbf16>, vector<16x16xbf16>, vector<32x16xf32> -> vector<32x16xf32>
    %90 = arith.addf %83, %89 : vector<32x16xf32>
    %c3_74 = arith.constant 3 : index
    %c0_75 = arith.constant 0 : index
    %c0_76 = arith.constant 0 : index
    %91 = vector.load %arg5[%c3_74, %c0_75, %c0_76] : memref<9x64x16xbf16, #tpu.memory_space<vmem>>, vector<1x64x16xbf16>
    %92 = vector.shape_cast %91 : vector<1x64x16xbf16> to vector<64x16xbf16>
    %cst_77 = arith.constant dense<0.000000e+00> : vector<16x16xf32>
    %93 = tpu.matmul %70, %92, %cst_77 {dimension_numbers = #tpu.dot_dimension_numbers<[1], [0], [0], [1], [0, 0, 1, 1], [], []>} : vector<16x64xbf16>, vector<64x16xbf16>, vector<16x16xf32> -> vector<16x16xf32>
    %c96_78 = arith.constant 96 : index
    %c0_79 = arith.constant 0 : index
    %94 = vector.load %arg6[%c96_78, %c0_79] : memref<288x16xbf16, #tpu.memory_space<vmem>>, vector<32x16xbf16>
    %95 = arith.truncf %93 : vector<16x16xf32> to vector<16x16xbf16>
    %cst_80 = arith.constant dense<0.000000e+00> : vector<32x16xf32>
    %96 = tpu.matmul %94, %95, %cst_80 {dimension_numbers = #tpu.dot_dimension_numbers<[1], [0], [0], [1], [0, 0, 1, 1], [], []>} : vector<32x16xbf16>, vector<16x16xbf16>, vector<32x16xf32> -> vector<32x16xf32>
    %97 = arith.addf %90, %96 : vector<32x16xf32>
    %c4_81 = arith.constant 4 : index
    %c0_82 = arith.constant 0 : index
    %c0_83 = arith.constant 0 : index
    %98 = vector.load %arg5[%c4_81, %c0_82, %c0_83] : memref<9x64x16xbf16, #tpu.memory_space<vmem>>, vector<1x64x16xbf16>
    %99 = vector.shape_cast %98 : vector<1x64x16xbf16> to vector<64x16xbf16>
    %cst_84 = arith.constant dense<0.000000e+00> : vector<16x16xf32>
    %100 = tpu.matmul %70, %99, %cst_84 {dimension_numbers = #tpu.dot_dimension_numbers<[1], [0], [0], [1], [0, 0, 1, 1], [], []>} : vector<16x64xbf16>, vector<64x16xbf16>, vector<16x16xf32> -> vector<16x16xf32>
    %c128_85 = arith.constant 128 : index
    %c0_86 = arith.constant 0 : index
    %101 = vector.load %arg6[%c128_85, %c0_86] : memref<288x16xbf16, #tpu.memory_space<vmem>>, vector<32x16xbf16>
    %102 = arith.truncf %100 : vector<16x16xf32> to vector<16x16xbf16>
    %cst_87 = arith.constant dense<0.000000e+00> : vector<32x16xf32>
    %103 = tpu.matmul %101, %102, %cst_87 {dimension_numbers = #tpu.dot_dimension_numbers<[1], [0], [0], [1], [0, 0, 1, 1], [], []>} : vector<32x16xbf16>, vector<16x16xbf16>, vector<32x16xf32> -> vector<32x16xf32>
    %104 = arith.addf %97, %103 : vector<32x16xf32>
    %c5_88 = arith.constant 5 : index
    %c0_89 = arith.constant 0 : index
    %c0_90 = arith.constant 0 : index
    %105 = vector.load %arg5[%c5_88, %c0_89, %c0_90] : memref<9x64x16xbf16, #tpu.memory_space<vmem>>, vector<1x64x16xbf16>
    %106 = vector.shape_cast %105 : vector<1x64x16xbf16> to vector<64x16xbf16>
    %cst_91 = arith.constant dense<0.000000e+00> : vector<16x16xf32>
    %107 = tpu.matmul %70, %106, %cst_91 {dimension_numbers = #tpu.dot_dimension_numbers<[1], [0], [0], [1], [0, 0, 1, 1], [], []>} : vector<16x64xbf16>, vector<64x16xbf16>, vector<16x16xf32> -> vector<16x16xf32>
    %c160 = arith.constant 160 : index
    %c0_92 = arith.constant 0 : index
    %108 = vector.load %arg6[%c160, %c0_92] : memref<288x16xbf16, #tpu.memory_space<vmem>>, vector<32x16xbf16>
    %109 = arith.truncf %107 : vector<16x16xf32> to vector<16x16xbf16>
    %cst_93 = arith.constant dense<0.000000e+00> : vector<32x16xf32>
    %110 = tpu.matmul %108, %109, %cst_93 {dimension_numbers = #tpu.dot_dimension_numbers<[1], [0], [0], [1], [0, 0, 1, 1], [], []>} : vector<32x16xbf16>, vector<16x16xbf16>, vector<32x16xf32> -> vector<32x16xf32>
    %111 = arith.addf %104, %110 : vector<32x16xf32>
    %c6_94 = arith.constant 6 : index
    %c0_95 = arith.constant 0 : index
    %c0_96 = arith.constant 0 : index
    %112 = vector.load %arg5[%c6_94, %c0_95, %c0_96] : memref<9x64x16xbf16, #tpu.memory_space<vmem>>, vector<1x64x16xbf16>
    %113 = vector.shape_cast %112 : vector<1x64x16xbf16> to vector<64x16xbf16>
    %cst_97 = arith.constant dense<0.000000e+00> : vector<16x16xf32>
    %114 = tpu.matmul %70, %113, %cst_97 {dimension_numbers = #tpu.dot_dimension_numbers<[1], [0], [0], [1], [0, 0, 1, 1], [], []>} : vector<16x64xbf16>, vector<64x16xbf16>, vector<16x16xf32> -> vector<16x16xf32>
    %c192 = arith.constant 192 : index
    %c0_98 = arith.constant 0 : index
    %115 = vector.load %arg6[%c192, %c0_98] : memref<288x16xbf16, #tpu.memory_space<vmem>>, vector<32x16xbf16>
    %116 = arith.truncf %114 : vector<16x16xf32> to vector<16x16xbf16>
    %cst_99 = arith.constant dense<0.000000e+00> : vector<32x16xf32>
    %117 = tpu.matmul %115, %116, %cst_99 {dimension_numbers = #tpu.dot_dimension_numbers<[1], [0], [0], [1], [0, 0, 1, 1], [], []>} : vector<32x16xbf16>, vector<16x16xbf16>, vector<32x16xf32> -> vector<32x16xf32>
    %118 = arith.addf %111, %117 : vector<32x16xf32>
    %c7_100 = arith.constant 7 : index
    %c0_101 = arith.constant 0 : index
    %c0_102 = arith.constant 0 : index
    %119 = vector.load %arg5[%c7_100, %c0_101, %c0_102] : memref<9x64x16xbf16, #tpu.memory_space<vmem>>, vector<1x64x16xbf16>
    %120 = vector.shape_cast %119 : vector<1x64x16xbf16> to vector<64x16xbf16>
    %cst_103 = arith.constant dense<0.000000e+00> : vector<16x16xf32>
    %121 = tpu.matmul %70, %120, %cst_103 {dimension_numbers = #tpu.dot_dimension_numbers<[1], [0], [0], [1], [0, 0, 1, 1], [], []>} : vector<16x64xbf16>, vector<64x16xbf16>, vector<16x16xf32> -> vector<16x16xf32>
    %c224 = arith.constant 224 : index
    %c0_104 = arith.constant 0 : index
    %122 = vector.load %arg6[%c224, %c0_104] : memref<288x16xbf16, #tpu.memory_space<vmem>>, vector<32x16xbf16>
    %123 = arith.truncf %121 : vector<16x16xf32> to vector<16x16xbf16>
    %cst_105 = arith.constant dense<0.000000e+00> : vector<32x16xf32>
    %124 = tpu.matmul %122, %123, %cst_105 {dimension_numbers = #tpu.dot_dimension_numbers<[1], [0], [0], [1], [0, 0, 1, 1], [], []>} : vector<32x16xbf16>, vector<16x16xbf16>, vector<32x16xf32> -> vector<32x16xf32>
    %125 = arith.addf %118, %124 : vector<32x16xf32>
    %c8_106 = arith.constant 8 : index
    %c0_107 = arith.constant 0 : index
    %c0_108 = arith.constant 0 : index
    %126 = vector.load %arg5[%c8_106, %c0_107, %c0_108] : memref<9x64x16xbf16, #tpu.memory_space<vmem>>, vector<1x64x16xbf16>
    %127 = vector.shape_cast %126 : vector<1x64x16xbf16> to vector<64x16xbf16>
    %cst_109 = arith.constant dense<0.000000e+00> : vector<16x16xf32>
    %128 = tpu.matmul %70, %127, %cst_109 {dimension_numbers = #tpu.dot_dimension_numbers<[1], [0], [0], [1], [0, 0, 1, 1], [], []>} : vector<16x64xbf16>, vector<64x16xbf16>, vector<16x16xf32> -> vector<16x16xf32>
    %c256 = arith.constant 256 : index
    %c0_110 = arith.constant 0 : index
    %129 = vector.load %arg6[%c256, %c0_110] : memref<288x16xbf16, #tpu.memory_space<vmem>>, vector<32x16xbf16>
    %130 = arith.truncf %128 : vector<16x16xf32> to vector<16x16xbf16>
    %cst_111 = arith.constant dense<0.000000e+00> : vector<32x16xf32>
    %131 = tpu.matmul %129, %130, %cst_111 {dimension_numbers = #tpu.dot_dimension_numbers<[1], [0], [0], [1], [0, 0, 1, 1], [], []>} : vector<32x16xbf16>, vector<16x16xbf16>, vector<32x16xf32> -> vector<32x16xf32>
    %132 = arith.addf %125, %131 : vector<32x16xf32>
    %133 = vector.broadcast %69 : vector<32x1xf32> to vector<32x16xf32>
    %134 = arith.addf %132, %133 : vector<32x16xf32>
    %cst_112 = arith.constant 0.000000e+00 : f32
    %135 = vector.broadcast %cst_112 : f32 to vector<32x16xf32>
    %136 = arith.maximumf %134, %135 : vector<32x16xf32>
    %c0_113 = arith.constant 0 : index
    %c0_114 = arith.constant 0 : index
    %137 = vector.load %arg10[%c0_113, %c0_114] : memref<64x1xf32, #tpu.memory_space<vmem>>, vector<64x1xf32>
    %138 = arith.truncf %136 : vector<32x16xf32> to vector<32x16xbf16>
    %c0_115 = arith.constant 0 : index
    %c0_116 = arith.constant 0 : index
    %c0_117 = arith.constant 0 : index
    %139 = vector.load %arg8[%c0_115, %c0_116, %c0_117] : memref<9x16x4xbf16, #tpu.memory_space<vmem>>, vector<1x16x4xbf16>
    %140 = vector.shape_cast %139 : vector<1x16x4xbf16> to vector<16x4xbf16>
    %cst_118 = arith.constant dense<0.000000e+00> : vector<32x4xf32>
    %141 = tpu.matmul %138, %140, %cst_118 {dimension_numbers = #tpu.dot_dimension_numbers<[1], [0], [0], [1], [0, 0, 1, 1], [], []>} : vector<32x16xbf16>, vector<16x4xbf16>, vector<32x4xf32> -> vector<32x4xf32>
    %c0_119 = arith.constant 0 : index
    %c0_120 = arith.constant 0 : index
    %142 = vector.load %arg9[%c0_119, %c0_120] : memref<576x32xbf16, #tpu.memory_space<vmem>>, vector<64x32xbf16>
    %143 = arith.truncf %141 : vector<32x4xf32> to vector<32x4xbf16>
    %cst_121 = arith.constant dense<0.000000e+00> : vector<64x4xf32>
    %144 = tpu.matmul %142, %143, %cst_121 {dimension_numbers = #tpu.dot_dimension_numbers<[1], [0], [0], [1], [0, 0, 1, 1], [], []>} : vector<64x32xbf16>, vector<32x4xbf16>, vector<64x4xf32> -> vector<64x4xf32>
    %c1_122 = arith.constant 1 : index
    %c0_123 = arith.constant 0 : index
    %c0_124 = arith.constant 0 : index
    %145 = vector.load %arg8[%c1_122, %c0_123, %c0_124] : memref<9x16x4xbf16, #tpu.memory_space<vmem>>, vector<1x16x4xbf16>
    %146 = vector.shape_cast %145 : vector<1x16x4xbf16> to vector<16x4xbf16>
    %cst_125 = arith.constant dense<0.000000e+00> : vector<32x4xf32>
    %147 = tpu.matmul %138, %146, %cst_125 {dimension_numbers = #tpu.dot_dimension_numbers<[1], [0], [0], [1], [0, 0, 1, 1], [], []>} : vector<32x16xbf16>, vector<16x4xbf16>, vector<32x4xf32> -> vector<32x4xf32>
    %c64_126 = arith.constant 64 : index
    %c0_127 = arith.constant 0 : index
    %148 = vector.load %arg9[%c64_126, %c0_127] : memref<576x32xbf16, #tpu.memory_space<vmem>>, vector<64x32xbf16>
    %149 = arith.truncf %147 : vector<32x4xf32> to vector<32x4xbf16>
    %cst_128 = arith.constant dense<0.000000e+00> : vector<64x4xf32>
    %150 = tpu.matmul %148, %149, %cst_128 {dimension_numbers = #tpu.dot_dimension_numbers<[1], [0], [0], [1], [0, 0, 1, 1], [], []>} : vector<64x32xbf16>, vector<32x4xbf16>, vector<64x4xf32> -> vector<64x4xf32>
    %151 = arith.addf %144, %150 : vector<64x4xf32>
    %c2_129 = arith.constant 2 : index
    %c0_130 = arith.constant 0 : index
    %c0_131 = arith.constant 0 : index
    %152 = vector.load %arg8[%c2_129, %c0_130, %c0_131] : memref<9x16x4xbf16, #tpu.memory_space<vmem>>, vector<1x16x4xbf16>
    %153 = vector.shape_cast %152 : vector<1x16x4xbf16> to vector<16x4xbf16>
    %cst_132 = arith.constant dense<0.000000e+00> : vector<32x4xf32>
    %154 = tpu.matmul %138, %153, %cst_132 {dimension_numbers = #tpu.dot_dimension_numbers<[1], [0], [0], [1], [0, 0, 1, 1], [], []>} : vector<32x16xbf16>, vector<16x4xbf16>, vector<32x4xf32> -> vector<32x4xf32>
    %c128_133 = arith.constant 128 : index
    %c0_134 = arith.constant 0 : index
    %155 = vector.load %arg9[%c128_133, %c0_134] : memref<576x32xbf16, #tpu.memory_space<vmem>>, vector<64x32xbf16>
    %156 = arith.truncf %154 : vector<32x4xf32> to vector<32x4xbf16>
    %cst_135 = arith.constant dense<0.000000e+00> : vector<64x4xf32>
    %157 = tpu.matmul %155, %156, %cst_135 {dimension_numbers = #tpu.dot_dimension_numbers<[1], [0], [0], [1], [0, 0, 1, 1], [], []>} : vector<64x32xbf16>, vector<32x4xbf16>, vector<64x4xf32> -> vector<64x4xf32>
    %158 = arith.addf %151, %157 : vector<64x4xf32>
    %c3_136 = arith.constant 3 : index
    %c0_137 = arith.constant 0 : index
    %c0_138 = arith.constant 0 : index
    %159 = vector.load %arg8[%c3_136, %c0_137, %c0_138] : memref<9x16x4xbf16, #tpu.memory_space<vmem>>, vector<1x16x4xbf16>
    %160 = vector.shape_cast %159 : vector<1x16x4xbf16> to vector<16x4xbf16>
    %cst_139 = arith.constant dense<0.000000e+00> : vector<32x4xf32>
    %161 = tpu.matmul %138, %160, %cst_139 {dimension_numbers = #tpu.dot_dimension_numbers<[1], [0], [0], [1], [0, 0, 1, 1], [], []>} : vector<32x16xbf16>, vector<16x4xbf16>, vector<32x4xf32> -> vector<32x4xf32>
    %c192_140 = arith.constant 192 : index
    %c0_141 = arith.constant 0 : index
    %162 = vector.load %arg9[%c192_140, %c0_141] : memref<576x32xbf16, #tpu.memory_space<vmem>>, vector<64x32xbf16>
    %163 = arith.truncf %161 : vector<32x4xf32> to vector<32x4xbf16>
    %cst_142 = arith.constant dense<0.000000e+00> : vector<64x4xf32>
    %164 = tpu.matmul %162, %163, %cst_142 {dimension_numbers = #tpu.dot_dimension_numbers<[1], [0], [0], [1], [0, 0, 1, 1], [], []>} : vector<64x32xbf16>, vector<32x4xbf16>, vector<64x4xf32> -> vector<64x4xf32>
    %165 = arith.addf %158, %164 : vector<64x4xf32>
    %c4_143 = arith.constant 4 : index
    %c0_144 = arith.constant 0 : index
    %c0_145 = arith.constant 0 : index
    %166 = vector.load %arg8[%c4_143, %c0_144, %c0_145] : memref<9x16x4xbf16, #tpu.memory_space<vmem>>, vector<1x16x4xbf16>
    %167 = vector.shape_cast %166 : vector<1x16x4xbf16> to vector<16x4xbf16>
    %cst_146 = arith.constant dense<0.000000e+00> : vector<32x4xf32>
    %168 = tpu.matmul %138, %167, %cst_146 {dimension_numbers = #tpu.dot_dimension_numbers<[1], [0], [0], [1], [0, 0, 1, 1], [], []>} : vector<32x16xbf16>, vector<16x4xbf16>, vector<32x4xf32> -> vector<32x4xf32>
    %c256_147 = arith.constant 256 : index
    %c0_148 = arith.constant 0 : index
    %169 = vector.load %arg9[%c256_147, %c0_148] : memref<576x32xbf16, #tpu.memory_space<vmem>>, vector<64x32xbf16>
    %170 = arith.truncf %168 : vector<32x4xf32> to vector<32x4xbf16>
    %cst_149 = arith.constant dense<0.000000e+00> : vector<64x4xf32>
    %171 = tpu.matmul %169, %170, %cst_149 {dimension_numbers = #tpu.dot_dimension_numbers<[1], [0], [0], [1], [0, 0, 1, 1], [], []>} : vector<64x32xbf16>, vector<32x4xbf16>, vector<64x4xf32> -> vector<64x4xf32>
    %172 = arith.addf %165, %171 : vector<64x4xf32>
    %c5_150 = arith.constant 5 : index
    %c0_151 = arith.constant 0 : index
    %c0_152 = arith.constant 0 : index
    %173 = vector.load %arg8[%c5_150, %c0_151, %c0_152] : memref<9x16x4xbf16, #tpu.memory_space<vmem>>, vector<1x16x4xbf16>
    %174 = vector.shape_cast %173 : vector<1x16x4xbf16> to vector<16x4xbf16>
    %cst_153 = arith.constant dense<0.000000e+00> : vector<32x4xf32>
    %175 = tpu.matmul %138, %174, %cst_153 {dimension_numbers = #tpu.dot_dimension_numbers<[1], [0], [0], [1], [0, 0, 1, 1], [], []>} : vector<32x16xbf16>, vector<16x4xbf16>, vector<32x4xf32> -> vector<32x4xf32>
    %c320 = arith.constant 320 : index
    %c0_154 = arith.constant 0 : index
    %176 = vector.load %arg9[%c320, %c0_154] : memref<576x32xbf16, #tpu.memory_space<vmem>>, vector<64x32xbf16>
    %177 = arith.truncf %175 : vector<32x4xf32> to vector<32x4xbf16>
    %cst_155 = arith.constant dense<0.000000e+00> : vector<64x4xf32>
    %178 = tpu.matmul %176, %177, %cst_155 {dimension_numbers = #tpu.dot_dimension_numbers<[1], [0], [0], [1], [0, 0, 1, 1], [], []>} : vector<64x32xbf16>, vector<32x4xbf16>, vector<64x4xf32> -> vector<64x4xf32>
    %179 = arith.addf %172, %178 : vector<64x4xf32>
    %c6_156 = arith.constant 6 : index
    %c0_157 = arith.constant 0 : index
    %c0_158 = arith.constant 0 : index
    %180 = vector.load %arg8[%c6_156, %c0_157, %c0_158] : memref<9x16x4xbf16, #tpu.memory_space<vmem>>, vector<1x16x4xbf16>
    %181 = vector.shape_cast %180 : vector<1x16x4xbf16> to vector<16x4xbf16>
    %cst_159 = arith.constant dense<0.000000e+00> : vector<32x4xf32>
    %182 = tpu.matmul %138, %181, %cst_159 {dimension_numbers = #tpu.dot_dimension_numbers<[1], [0], [0], [1], [0, 0, 1, 1], [], []>} : vector<32x16xbf16>, vector<16x4xbf16>, vector<32x4xf32> -> vector<32x4xf32>
    %c384 = arith.constant 384 : index
    %c0_160 = arith.constant 0 : index
    %183 = vector.load %arg9[%c384, %c0_160] : memref<576x32xbf16, #tpu.memory_space<vmem>>, vector<64x32xbf16>
    %184 = arith.truncf %182 : vector<32x4xf32> to vector<32x4xbf16>
    %cst_161 = arith.constant dense<0.000000e+00> : vector<64x4xf32>
    %185 = tpu.matmul %183, %184, %cst_161 {dimension_numbers = #tpu.dot_dimension_numbers<[1], [0], [0], [1], [0, 0, 1, 1], [], []>} : vector<64x32xbf16>, vector<32x4xbf16>, vector<64x4xf32> -> vector<64x4xf32>
    %186 = arith.addf %179, %185 : vector<64x4xf32>
    %c7_162 = arith.constant 7 : index
    %c0_163 = arith.constant 0 : index
    %c0_164 = arith.constant 0 : index
    %187 = vector.load %arg8[%c7_162, %c0_163, %c0_164] : memref<9x16x4xbf16, #tpu.memory_space<vmem>>, vector<1x16x4xbf16>
    %188 = vector.shape_cast %187 : vector<1x16x4xbf16> to vector<16x4xbf16>
    %cst_165 = arith.constant dense<0.000000e+00> : vector<32x4xf32>
    %189 = tpu.matmul %138, %188, %cst_165 {dimension_numbers = #tpu.dot_dimension_numbers<[1], [0], [0], [1], [0, 0, 1, 1], [], []>} : vector<32x16xbf16>, vector<16x4xbf16>, vector<32x4xf32> -> vector<32x4xf32>
    %c448 = arith.constant 448 : index
    %c0_166 = arith.constant 0 : index
    %190 = vector.load %arg9[%c448, %c0_166] : memref<576x32xbf16, #tpu.memory_space<vmem>>, vector<64x32xbf16>
    %191 = arith.truncf %189 : vector<32x4xf32> to vector<32x4xbf16>
    %cst_167 = arith.constant dense<0.000000e+00> : vector<64x4xf32>
    %192 = tpu.matmul %190, %191, %cst_167 {dimension_numbers = #tpu.dot_dimension_numbers<[1], [0], [0], [1], [0, 0, 1, 1], [], []>} : vector<64x32xbf16>, vector<32x4xbf16>, vector<64x4xf32> -> vector<64x4xf32>
    %193 = arith.addf %186, %192 : vector<64x4xf32>
    %c8_168 = arith.constant 8 : index
    %c0_169 = arith.constant 0 : index
    %c0_170 = arith.constant 0 : index
    %194 = vector.load %arg8[%c8_168, %c0_169, %c0_170] : memref<9x16x4xbf16, #tpu.memory_space<vmem>>, vector<1x16x4xbf16>
    %195 = vector.shape_cast %194 : vector<1x16x4xbf16> to vector<16x4xbf16>
    %cst_171 = arith.constant dense<0.000000e+00> : vector<32x4xf32>
    %196 = tpu.matmul %138, %195, %cst_171 {dimension_numbers = #tpu.dot_dimension_numbers<[1], [0], [0], [1], [0, 0, 1, 1], [], []>} : vector<32x16xbf16>, vector<16x4xbf16>, vector<32x4xf32> -> vector<32x4xf32>
    %c512 = arith.constant 512 : index
    %c0_172 = arith.constant 0 : index
    %197 = vector.load %arg9[%c512, %c0_172] : memref<576x32xbf16, #tpu.memory_space<vmem>>, vector<64x32xbf16>
    %198 = arith.truncf %196 : vector<32x4xf32> to vector<32x4xbf16>
    %cst_173 = arith.constant dense<0.000000e+00> : vector<64x4xf32>
    %199 = tpu.matmul %197, %198, %cst_173 {dimension_numbers = #tpu.dot_dimension_numbers<[1], [0], [0], [1], [0, 0, 1, 1], [], []>} : vector<64x32xbf16>, vector<32x4xbf16>, vector<64x4xf32> -> vector<64x4xf32>
    %200 = arith.addf %193, %199 : vector<64x4xf32>
    %201 = vector.broadcast %137 : vector<64x1xf32> to vector<64x4xf32>
    %202 = arith.addf %200, %201 : vector<64x4xf32>
    %cst_174 = arith.constant 0.000000e+00 : f32
    %203 = vector.broadcast %cst_174 : f32 to vector<64x4xf32>
    %204 = arith.maximumf %202, %203 : vector<64x4xf32>
    %c0_175 = arith.constant 0 : index
    %c0_176 = arith.constant 0 : index
    %205 = vector.load %arg11[%c0_175, %c0_176] : memref<32x64xbf16, #tpu.memory_space<vmem>>, vector<32x64xbf16>
    %206 = arith.truncf %204 : vector<64x4xf32> to vector<64x4xbf16>
    %cst_177 = arith.constant dense<0.000000e+00> : vector<32x4xf32>
    %207 = tpu.matmul %205, %206, %cst_177 {dimension_numbers = #tpu.dot_dimension_numbers<[1], [0], [0], [1], [0, 0, 1, 1], [], []>} : vector<32x64xbf16>, vector<64x4xbf16>, vector<32x4xf32> -> vector<32x4xf32>
    %c0_178 = arith.constant 0 : index
    %c0_179 = arith.constant 0 : index
    %208 = vector.load %arg12[%c0_178, %c0_179] : memref<32x1xf32, #tpu.memory_space<vmem>>, vector<32x1xf32>
    %209 = vector.broadcast %208 : vector<32x1xf32> to vector<32x4xf32>
    %210 = arith.addf %207, %209 : vector<32x4xf32>
    %cst_180 = arith.constant 0.000000e+00 : f32
    %211 = vector.broadcast %cst_180 : f32 to vector<32x4xf32>
    %212 = arith.maximumf %210, %211 : vector<32x4xf32>
    %cst_181 = arith.constant dense<0.000000e+00> : vector<64xf32>
    %213 = vector.multi_reduction <add>, %204, %cst_181 [1] : vector<64x4xf32> to vector<64xf32>
    %214 = vector.shape_cast %213 : vector<64xf32> to vector<64x1xf32>
    %cst_182 = arith.constant 4.000000e+00 : f32
    %215 = vector.broadcast %cst_182 : f32 to vector<64x1xf32>
    %216 = arith.divf %214, %215 : vector<64x1xf32>
    %c0_183 = arith.constant 0 : index
    %c0_184 = arith.constant 0 : index
    %217 = vector.load %arg13[%c0_183, %c0_184] : memref<32x64xbf16, #tpu.memory_space<vmem>>, vector<32x64xbf16>
    %218 = arith.truncf %216 : vector<64x1xf32> to vector<64x1xbf16>
    %cst_185 = arith.constant dense<0.000000e+00> : vector<32x1xf32>
    %219 = tpu.matmul %217, %218, %cst_185 {dimension_numbers = #tpu.dot_dimension_numbers<[1], [0], [0], [1], [0, 0, 1, 1], [], []>} : vector<32x64xbf16>, vector<64x1xbf16>, vector<32x1xf32> -> vector<32x1xf32>
    %c0_186 = arith.constant 0 : index
    %c0_187 = arith.constant 0 : index
    %220 = vector.load %arg14[%c0_186, %c0_187] : memref<32x1xf32, #tpu.memory_space<vmem>>, vector<32x1xf32>
    %221 = arith.addf %219, %220 : vector<32x1xf32>
    %cst_188 = arith.constant 0.000000e+00 : f32
    %222 = vector.broadcast %cst_188 : f32 to vector<32x1xf32>
    %223 = arith.maximumf %221, %222 : vector<32x1xf32>
    %c0_189 = arith.constant 0 : index
    %c0_190 = arith.constant 0 : index
    %224 = vector.load %arg15[%c0_189, %c0_190] : memref<32x32xbf16, #tpu.memory_space<vmem>>, vector<32x32xbf16>
    %225 = arith.truncf %212 : vector<32x4xf32> to vector<32x4xbf16>
    %cst_191 = arith.constant dense<0.000000e+00> : vector<32x4xf32>
    %226 = tpu.matmul %224, %225, %cst_191 {dimension_numbers = #tpu.dot_dimension_numbers<[1], [0], [0], [1], [0, 0, 1, 1], [], []>} : vector<32x32xbf16>, vector<32x4xbf16>, vector<32x4xf32> -> vector<32x4xf32>
    %c0_192 = arith.constant 0 : index
    %c0_193 = arith.constant 0 : index
    %227 = vector.load %arg16[%c0_192, %c0_193] : memref<32x32xbf16, #tpu.memory_space<vmem>>, vector<32x32xbf16>
    %228 = arith.truncf %223 : vector<32x1xf32> to vector<32x1xbf16>
    %cst_194 = arith.constant dense<0.000000e+00> : vector<32x1xf32>
    %229 = tpu.matmul %227, %228, %cst_194 {dimension_numbers = #tpu.dot_dimension_numbers<[1], [0], [0], [1], [0, 0, 1, 1], [], []>} : vector<32x32xbf16>, vector<32x1xbf16>, vector<32x1xf32> -> vector<32x1xf32>
    %230 = vector.broadcast %229 : vector<32x1xf32> to vector<32x4xf32>
    %231 = arith.addf %226, %230 : vector<32x4xf32>
    %c0_195 = arith.constant 0 : index
    %c0_196 = arith.constant 0 : index
    %232 = vector.load %arg17[%c0_195, %c0_196] : memref<32x1xf32, #tpu.memory_space<vmem>>, vector<32x1xf32>
    %233 = vector.broadcast %232 : vector<32x1xf32> to vector<32x4xf32>
    %234 = arith.addf %231, %233 : vector<32x4xf32>
    %cst_197 = arith.constant 0.000000e+00 : f32
    %235 = vector.broadcast %cst_197 : f32 to vector<32x4xf32>
    %236 = arith.maximumf %234, %235 : vector<32x4xf32>
    %c0_198 = arith.constant 0 : index
    %c0_199 = arith.constant 0 : index
    %237 = vector.load %arg18[%c0_198, %c0_199] : memref<8x32xbf16, #tpu.memory_space<vmem>>, vector<8x32xbf16>
    %238 = arith.truncf %136 : vector<32x16xf32> to vector<32x16xbf16>
    %cst_200 = arith.constant dense<0.000000e+00> : vector<8x16xf32>
    %239 = tpu.matmul %237, %238, %cst_200 {dimension_numbers = #tpu.dot_dimension_numbers<[1], [0], [0], [1], [0, 0, 1, 1], [], []>} : vector<8x32xbf16>, vector<32x16xbf16>, vector<8x16xf32> -> vector<8x16xf32>
    %c0_201 = arith.constant 0 : index
    %c0_202 = arith.constant 0 : index
    %240 = vector.load %arg19[%c0_201, %c0_202] : memref<8x1xf32, #tpu.memory_space<vmem>>, vector<8x1xf32>
    %241 = vector.broadcast %240 : vector<8x1xf32> to vector<8x16xf32>
    %242 = arith.addf %239, %241 : vector<8x16xf32>
    %cst_203 = arith.constant 0.000000e+00 : f32
    %243 = vector.broadcast %cst_203 : f32 to vector<8x16xf32>
    %244 = arith.maximumf %242, %243 : vector<8x16xf32>
    %245 = arith.truncf %236 : vector<32x4xf32> to vector<32x4xbf16>
    %c0_204 = arith.constant 0 : index
    %c0_205 = arith.constant 0 : index
    %246 = vector.load %arg20[%c0_204, %c0_205] : memref<4x16xbf16, #tpu.memory_space<vmem>>, vector<4x16xbf16>
    %cst_206 = arith.constant dense<0.000000e+00> : vector<32x16xf32>
    %247 = tpu.matmul %245, %246, %cst_206 {dimension_numbers = #tpu.dot_dimension_numbers<[1], [0], [0], [1], [0, 0, 1, 1], [], []>} : vector<32x4xbf16>, vector<4x16xbf16>, vector<32x16xf32> -> vector<32x16xf32>
    %248 = tpu.concatenate %247, %244 in 0 : vector<32x16xf32>, vector<8x16xf32> -> vector<40x16xf32>
    %c0_207 = arith.constant 0 : index
    %c0_208 = arith.constant 0 : index
    %249 = vector.load %arg23[%c0_207, %c0_208] : memref<32x1xf32, #tpu.memory_space<vmem>>, vector<32x1xf32>
    %250 = arith.truncf %248 : vector<40x16xf32> to vector<40x16xbf16>
    %c0_209 = arith.constant 0 : index
    %c0_210 = arith.constant 0 : index
    %c0_211 = arith.constant 0 : index
    %251 = vector.load %arg21[%c0_209, %c0_210, %c0_211] : memref<9x16x16xbf16, #tpu.memory_space<vmem>>, vector<1x16x16xbf16>
    %252 = vector.shape_cast %251 : vector<1x16x16xbf16> to vector<16x16xbf16>
    %cst_212 = arith.constant dense<0.000000e+00> : vector<40x16xf32>
    %253 = tpu.matmul %250, %252, %cst_212 {dimension_numbers = #tpu.dot_dimension_numbers<[1], [0], [0], [1], [0, 0, 1, 1], [], []>} : vector<40x16xbf16>, vector<16x16xbf16>, vector<40x16xf32> -> vector<40x16xf32>
    %c0_213 = arith.constant 0 : index
    %c0_214 = arith.constant 0 : index
    %254 = vector.load %arg22[%c0_213, %c0_214] : memref<288x40xbf16, #tpu.memory_space<vmem>>, vector<32x40xbf16>
    %255 = arith.truncf %253 : vector<40x16xf32> to vector<40x16xbf16>
    %cst_215 = arith.constant dense<0.000000e+00> : vector<32x16xf32>
    %256 = tpu.matmul %254, %255, %cst_215 {dimension_numbers = #tpu.dot_dimension_numbers<[1], [0], [0], [1], [0, 0, 1, 1], [], []>} : vector<32x40xbf16>, vector<40x16xbf16>, vector<32x16xf32> -> vector<32x16xf32>
    %c1_216 = arith.constant 1 : index
    %c0_217 = arith.constant 0 : index
    %c0_218 = arith.constant 0 : index
    %257 = vector.load %arg21[%c1_216, %c0_217, %c0_218] : memref<9x16x16xbf16, #tpu.memory_space<vmem>>, vector<1x16x16xbf16>
    %258 = vector.shape_cast %257 : vector<1x16x16xbf16> to vector<16x16xbf16>
    %cst_219 = arith.constant dense<0.000000e+00> : vector<40x16xf32>
    %259 = tpu.matmul %250, %258, %cst_219 {dimension_numbers = #tpu.dot_dimension_numbers<[1], [0], [0], [1], [0, 0, 1, 1], [], []>} : vector<40x16xbf16>, vector<16x16xbf16>, vector<40x16xf32> -> vector<40x16xf32>
    %c32_220 = arith.constant 32 : index
    %c0_221 = arith.constant 0 : index
    %260 = vector.load %arg22[%c32_220, %c0_221] : memref<288x40xbf16, #tpu.memory_space<vmem>>, vector<32x40xbf16>
    %261 = arith.truncf %259 : vector<40x16xf32> to vector<40x16xbf16>
    %cst_222 = arith.constant dense<0.000000e+00> : vector<32x16xf32>
    %262 = tpu.matmul %260, %261, %cst_222 {dimension_numbers = #tpu.dot_dimension_numbers<[1], [0], [0], [1], [0, 0, 1, 1], [], []>} : vector<32x40xbf16>, vector<40x16xbf16>, vector<32x16xf32> -> vector<32x16xf32>
    %263 = arith.addf %256, %262 : vector<32x16xf32>
    %c2_223 = arith.constant 2 : index
    %c0_224 = arith.constant 0 : index
    %c0_225 = arith.constant 0 : index
    %264 = vector.load %arg21[%c2_223, %c0_224, %c0_225] : memref<9x16x16xbf16, #tpu.memory_space<vmem>>, vector<1x16x16xbf16>
    %265 = vector.shape_cast %264 : vector<1x16x16xbf16> to vector<16x16xbf16>
    %cst_226 = arith.constant dense<0.000000e+00> : vector<40x16xf32>
    %266 = tpu.matmul %250, %265, %cst_226 {dimension_numbers = #tpu.dot_dimension_numbers<[1], [0], [0], [1], [0, 0, 1, 1], [], []>} : vector<40x16xbf16>, vector<16x16xbf16>, vector<40x16xf32> -> vector<40x16xf32>
    %c64_227 = arith.constant 64 : index
    %c0_228 = arith.constant 0 : index
    %267 = vector.load %arg22[%c64_227, %c0_228] : memref<288x40xbf16, #tpu.memory_space<vmem>>, vector<32x40xbf16>
    %268 = arith.truncf %266 : vector<40x16xf32> to vector<40x16xbf16>
    %cst_229 = arith.constant dense<0.000000e+00> : vector<32x16xf32>
    %269 = tpu.matmul %267, %268, %cst_229 {dimension_numbers = #tpu.dot_dimension_numbers<[1], [0], [0], [1], [0, 0, 1, 1], [], []>} : vector<32x40xbf16>, vector<40x16xbf16>, vector<32x16xf32> -> vector<32x16xf32>
    %270 = arith.addf %263, %269 : vector<32x16xf32>
    %c3_230 = arith.constant 3 : index
    %c0_231 = arith.constant 0 : index
    %c0_232 = arith.constant 0 : index
    %271 = vector.load %arg21[%c3_230, %c0_231, %c0_232] : memref<9x16x16xbf16, #tpu.memory_space<vmem>>, vector<1x16x16xbf16>
    %272 = vector.shape_cast %271 : vector<1x16x16xbf16> to vector<16x16xbf16>
    %cst_233 = arith.constant dense<0.000000e+00> : vector<40x16xf32>
    %273 = tpu.matmul %250, %272, %cst_233 {dimension_numbers = #tpu.dot_dimension_numbers<[1], [0], [0], [1], [0, 0, 1, 1], [], []>} : vector<40x16xbf16>, vector<16x16xbf16>, vector<40x16xf32> -> vector<40x16xf32>
    %c96_234 = arith.constant 96 : index
    %c0_235 = arith.constant 0 : index
    %274 = vector.load %arg22[%c96_234, %c0_235] : memref<288x40xbf16, #tpu.memory_space<vmem>>, vector<32x40xbf16>
    %275 = arith.truncf %273 : vector<40x16xf32> to vector<40x16xbf16>
    %cst_236 = arith.constant dense<0.000000e+00> : vector<32x16xf32>
    %276 = tpu.matmul %274, %275, %cst_236 {dimension_numbers = #tpu.dot_dimension_numbers<[1], [0], [0], [1], [0, 0, 1, 1], [], []>} : vector<32x40xbf16>, vector<40x16xbf16>, vector<32x16xf32> -> vector<32x16xf32>
    %277 = arith.addf %270, %276 : vector<32x16xf32>
    %c4_237 = arith.constant 4 : index
    %c0_238 = arith.constant 0 : index
    %c0_239 = arith.constant 0 : index
    %278 = vector.load %arg21[%c4_237, %c0_238, %c0_239] : memref<9x16x16xbf16, #tpu.memory_space<vmem>>, vector<1x16x16xbf16>
    %279 = vector.shape_cast %278 : vector<1x16x16xbf16> to vector<16x16xbf16>
    %cst_240 = arith.constant dense<0.000000e+00> : vector<40x16xf32>
    %280 = tpu.matmul %250, %279, %cst_240 {dimension_numbers = #tpu.dot_dimension_numbers<[1], [0], [0], [1], [0, 0, 1, 1], [], []>} : vector<40x16xbf16>, vector<16x16xbf16>, vector<40x16xf32> -> vector<40x16xf32>
    %c128_241 = arith.constant 128 : index
    %c0_242 = arith.constant 0 : index
    %281 = vector.load %arg22[%c128_241, %c0_242] : memref<288x40xbf16, #tpu.memory_space<vmem>>, vector<32x40xbf16>
    %282 = arith.truncf %280 : vector<40x16xf32> to vector<40x16xbf16>
    %cst_243 = arith.constant dense<0.000000e+00> : vector<32x16xf32>
    %283 = tpu.matmul %281, %282, %cst_243 {dimension_numbers = #tpu.dot_dimension_numbers<[1], [0], [0], [1], [0, 0, 1, 1], [], []>} : vector<32x40xbf16>, vector<40x16xbf16>, vector<32x16xf32> -> vector<32x16xf32>
    %284 = arith.addf %277, %283 : vector<32x16xf32>
    %c5_244 = arith.constant 5 : index
    %c0_245 = arith.constant 0 : index
    %c0_246 = arith.constant 0 : index
    %285 = vector.load %arg21[%c5_244, %c0_245, %c0_246] : memref<9x16x16xbf16, #tpu.memory_space<vmem>>, vector<1x16x16xbf16>
    %286 = vector.shape_cast %285 : vector<1x16x16xbf16> to vector<16x16xbf16>
    %cst_247 = arith.constant dense<0.000000e+00> : vector<40x16xf32>
    %287 = tpu.matmul %250, %286, %cst_247 {dimension_numbers = #tpu.dot_dimension_numbers<[1], [0], [0], [1], [0, 0, 1, 1], [], []>} : vector<40x16xbf16>, vector<16x16xbf16>, vector<40x16xf32> -> vector<40x16xf32>
    %c160_248 = arith.constant 160 : index
    %c0_249 = arith.constant 0 : index
    %288 = vector.load %arg22[%c160_248, %c0_249] : memref<288x40xbf16, #tpu.memory_space<vmem>>, vector<32x40xbf16>
    %289 = arith.truncf %287 : vector<40x16xf32> to vector<40x16xbf16>
    %cst_250 = arith.constant dense<0.000000e+00> : vector<32x16xf32>
    %290 = tpu.matmul %288, %289, %cst_250 {dimension_numbers = #tpu.dot_dimension_numbers<[1], [0], [0], [1], [0, 0, 1, 1], [], []>} : vector<32x40xbf16>, vector<40x16xbf16>, vector<32x16xf32> -> vector<32x16xf32>
    %291 = arith.addf %284, %290 : vector<32x16xf32>
    %c6_251 = arith.constant 6 : index
    %c0_252 = arith.constant 0 : index
    %c0_253 = arith.constant 0 : index
    %292 = vector.load %arg21[%c6_251, %c0_252, %c0_253] : memref<9x16x16xbf16, #tpu.memory_space<vmem>>, vector<1x16x16xbf16>
    %293 = vector.shape_cast %292 : vector<1x16x16xbf16> to vector<16x16xbf16>
    %cst_254 = arith.constant dense<0.000000e+00> : vector<40x16xf32>
    %294 = tpu.matmul %250, %293, %cst_254 {dimension_numbers = #tpu.dot_dimension_numbers<[1], [0], [0], [1], [0, 0, 1, 1], [], []>} : vector<40x16xbf16>, vector<16x16xbf16>, vector<40x16xf32> -> vector<40x16xf32>
    %c192_255 = arith.constant 192 : index
    %c0_256 = arith.constant 0 : index
    %295 = vector.load %arg22[%c192_255, %c0_256] : memref<288x40xbf16, #tpu.memory_space<vmem>>, vector<32x40xbf16>
    %296 = arith.truncf %294 : vector<40x16xf32> to vector<40x16xbf16>
    %cst_257 = arith.constant dense<0.000000e+00> : vector<32x16xf32>
    %297 = tpu.matmul %295, %296, %cst_257 {dimension_numbers = #tpu.dot_dimension_numbers<[1], [0], [0], [1], [0, 0, 1, 1], [], []>} : vector<32x40xbf16>, vector<40x16xbf16>, vector<32x16xf32> -> vector<32x16xf32>
    %298 = arith.addf %291, %297 : vector<32x16xf32>
    %c7_258 = arith.constant 7 : index
    %c0_259 = arith.constant 0 : index
    %c0_260 = arith.constant 0 : index
    %299 = vector.load %arg21[%c7_258, %c0_259, %c0_260] : memref<9x16x16xbf16, #tpu.memory_space<vmem>>, vector<1x16x16xbf16>
    %300 = vector.shape_cast %299 : vector<1x16x16xbf16> to vector<16x16xbf16>
    %cst_261 = arith.constant dense<0.000000e+00> : vector<40x16xf32>
    %301 = tpu.matmul %250, %300, %cst_261 {dimension_numbers = #tpu.dot_dimension_numbers<[1], [0], [0], [1], [0, 0, 1, 1], [], []>} : vector<40x16xbf16>, vector<16x16xbf16>, vector<40x16xf32> -> vector<40x16xf32>
    %c224_262 = arith.constant 224 : index
    %c0_263 = arith.constant 0 : index
    %302 = vector.load %arg22[%c224_262, %c0_263] : memref<288x40xbf16, #tpu.memory_space<vmem>>, vector<32x40xbf16>
    %303 = arith.truncf %301 : vector<40x16xf32> to vector<40x16xbf16>
    %cst_264 = arith.constant dense<0.000000e+00> : vector<32x16xf32>
    %304 = tpu.matmul %302, %303, %cst_264 {dimension_numbers = #tpu.dot_dimension_numbers<[1], [0], [0], [1], [0, 0, 1, 1], [], []>} : vector<32x40xbf16>, vector<40x16xbf16>, vector<32x16xf32> -> vector<32x16xf32>
    %305 = arith.addf %298, %304 : vector<32x16xf32>
    %c8_265 = arith.constant 8 : index
    %c0_266 = arith.constant 0 : index
    %c0_267 = arith.constant 0 : index
    %306 = vector.load %arg21[%c8_265, %c0_266, %c0_267] : memref<9x16x16xbf16, #tpu.memory_space<vmem>>, vector<1x16x16xbf16>
    %307 = vector.shape_cast %306 : vector<1x16x16xbf16> to vector<16x16xbf16>
    %cst_268 = arith.constant dense<0.000000e+00> : vector<40x16xf32>
    %308 = tpu.matmul %250, %307, %cst_268 {dimension_numbers = #tpu.dot_dimension_numbers<[1], [0], [0], [1], [0, 0, 1, 1], [], []>} : vector<40x16xbf16>, vector<16x16xbf16>, vector<40x16xf32> -> vector<40x16xf32>
    %c256_269 = arith.constant 256 : index
    %c0_270 = arith.constant 0 : index
    %309 = vector.load %arg22[%c256_269, %c0_270] : memref<288x40xbf16, #tpu.memory_space<vmem>>, vector<32x40xbf16>
    %310 = arith.truncf %308 : vector<40x16xf32> to vector<40x16xbf16>
    %cst_271 = arith.constant dense<0.000000e+00> : vector<32x16xf32>
    %311 = tpu.matmul %309, %310, %cst_271 {dimension_numbers = #tpu.dot_dimension_numbers<[1], [0], [0], [1], [0, 0, 1, 1], [], []>} : vector<32x40xbf16>, vector<40x16xbf16>, vector<32x16xf32> -> vector<32x16xf32>
    %312 = arith.addf %305, %311 : vector<32x16xf32>
    %313 = vector.broadcast %249 : vector<32x1xf32> to vector<32x16xf32>
    %314 = arith.addf %312, %313 : vector<32x16xf32>
    %cst_272 = arith.constant 0.000000e+00 : f32
    %315 = vector.broadcast %cst_272 : f32 to vector<32x16xf32>
    %316 = arith.maximumf %314, %315 : vector<32x16xf32>
    %c0_273 = arith.constant 0 : index
    %c0_274 = arith.constant 0 : index
    %317 = vector.load %arg24[%c0_273, %c0_274] : memref<19x32xbf16, #tpu.memory_space<vmem>>, vector<19x32xbf16>
    %318 = arith.truncf %316 : vector<32x16xf32> to vector<32x16xbf16>
    %cst_275 = arith.constant dense<0.000000e+00> : vector<19x16xf32>
    %319 = tpu.matmul %317, %318, %cst_275 {dimension_numbers = #tpu.dot_dimension_numbers<[1], [0], [0], [1], [0, 0, 1, 1], [], []>} : vector<19x32xbf16>, vector<32x16xbf16>, vector<19x16xf32> -> vector<19x16xf32>
    %c0_276 = arith.constant 0 : index
    %c0_277 = arith.constant 0 : index
    %320 = vector.load %arg25[%c0_276, %c0_277] : memref<19x1xf32, #tpu.memory_space<vmem>>, vector<19x1xf32>
    %321 = vector.broadcast %320 : vector<19x1xf32> to vector<19x16xf32>
    %322 = arith.addf %319, %321 : vector<19x16xf32>
    %323 = tpu.iota {dimensions = array<i32: 0>} : vector<19x16xi32>
    %324 = arith.sitofp %323 : vector<19x16xi32> to vector<19x16xf32>
    %cst_278 = arith.constant dense<0xFF800000> : vector<16xf32>
    %325 = vector.multi_reduction <maximumf>, %322, %cst_278 [0] : vector<19x16xf32> to vector<16xf32>
    %326 = vector.shape_cast %325 : vector<16xf32> to vector<1x16xf32>
    %327 = vector.broadcast %326 : vector<1x16xf32> to vector<19x16xf32>
    %328 = arith.cmpf oeq, %322, %327 : vector<19x16xf32>
    %cst_279 = arith.constant 1.900000e+01 : f32
    %329 = vector.broadcast %cst_279 : f32 to vector<19x16xf32>
    %330 = arith.select %328, %324, %329 : vector<19x16xi1>, vector<19x16xf32>
    %cst_280 = arith.constant dense<0x7F800000> : vector<16xf32>
    %331 = vector.multi_reduction <minimumf>, %330, %cst_280 [0] : vector<19x16xf32> to vector<16xf32>
    %332 = vector.shape_cast %331 : vector<16xf32> to vector<1x16xf32>
    %333 = vector.broadcast %332 : vector<1x16xf32> to vector<19x16xf32>
    %334 = arith.cmpf oeq, %324, %333 : vector<19x16xf32>
    %335 = arith.extui %334 : vector<19x16xi1> to vector<19x16xi32>
    %336 = arith.sitofp %335 : vector<19x16xi32> to vector<19x16xf32>
    %337 = arith.truncf %336 : vector<19x16xf32> to vector<19x16xbf16>
    %c0_281 = arith.constant 0 : index
    %c0_282 = arith.constant 0 : index
    %338 = vector.load %arg26[%c0_281, %c0_282] : memref<3x19xbf16, #tpu.memory_space<vmem>>, vector<3x19xbf16>
    %cst_283 = arith.constant dense<0.000000e+00> : vector<3x16xf32>
    %339 = tpu.matmul %338, %337, %cst_283 {dimension_numbers = #tpu.dot_dimension_numbers<[1], [0], [0], [1], [0, 0, 1, 1], [], []>} : vector<3x19xbf16>, vector<19x16xbf16>, vector<3x16xf32> -> vector<3x16xf32>
    %340 = arith.truncf %332 : vector<1x16xf32> to vector<1x16xbf16>
    %c0_284 = arith.constant 0 : index
    %c0_285 = arith.constant 0 : index
    %341 = vector.load %arg27[%c0_284, %c0_285] : memref<16x256xbf16, #tpu.memory_space<vmem>>, vector<16x256xbf16>
    %cst_286 = arith.constant dense<0.000000e+00> : vector<1x256xf32>
    %342 = tpu.matmul %340, %341, %cst_286 {dimension_numbers = #tpu.dot_dimension_numbers<[1], [0], [0], [1], [0, 0, 1, 1], [], []>} : vector<1x16xbf16>, vector<16x256xbf16>, vector<1x256xf32> -> vector<1x256xf32>
    %cst_287 = arith.constant 5.000000e-01 : f32
    %343 = vector.broadcast %cst_287 : f32 to vector<1x256xf32>
    %344 = arith.addf %342, %343 : vector<1x256xf32>
    %345 = arith.fptosi %344 : vector<1x256xf32> to vector<1x256xi32>
    %c0_288 = arith.constant 0 : index
    %c0_289 = arith.constant 0 : index
    %c0_290 = arith.constant 0 : index
    %346 = vector.load %arg28[%c0_288, %c0_289, %c0_290] : memref<1x1x256xi32, #tpu.memory_space<vmem>>, vector<1x1x256xi32>
    %347 = vector.shape_cast %346 : vector<1x1x256xi32> to vector<1x256xi32>
    %348 = vector.shape_cast %345 : vector<1x256xi32> to vector<1x1x256xi32>
    tpu.vector_store %arg28[%c0_288, %c0_289, %c0_290], %348 {strides = array<i32>} : memref<1x1x256xi32, #tpu.memory_space<vmem>>, vector<1x1x256xi32>,
    %349 = arith.truncf %339 : vector<3x16xf32> to vector<3x16xbf16>
    %c0_291 = arith.constant 0 : index
    %c0_292 = arith.constant 0 : index
    %350 = vector.load %arg27[%c0_291, %c0_292] : memref<16x256xbf16, #tpu.memory_space<vmem>>, vector<16x256xbf16>
    %cst_293 = arith.constant dense<0.000000e+00> : vector<3x256xf32>
    %351 = tpu.matmul %349, %350, %cst_293 {dimension_numbers = #tpu.dot_dimension_numbers<[1], [0], [0], [1], [0, 0, 1, 1], [], []>} : vector<3x16xbf16>, vector<16x256xbf16>, vector<3x256xf32> -> vector<3x256xf32>
    %c0_294 = arith.constant 0 : index
    %c0_295 = arith.constant 0 : index
    %c0_296 = arith.constant 0 : index
    %352 = vector.load %arg29[%c0_294, %c0_295, %c0_296] : memref<1x3x256xf32, #tpu.memory_space<vmem>>, vector<1x3x256xf32>
    %353 = vector.shape_cast %352 : vector<1x3x256xf32> to vector<3x256xf32>
    %354 = vector.shape_cast %351 : vector<3x256xf32> to vector<1x3x256xf32>
    tpu.vector_store %arg29[%c0_294, %c0_295, %c0_296], %354 {strides = array<i32>} : memref<1x3x256xf32, #tpu.memory_space<vmem>>, vector<1x3x256xf32>,
    return
  }
  func.func @transform_0(%arg0: i32) -> (i32, i32, i32) {
    %c0_i32 = arith.constant 0 : i32
    %c0_i32_0 = arith.constant 0 : i32
    %c0_i32_1 = arith.constant 0 : i32
    return %arg0, %c0_i32, %c0_i32_0 : i32, i32, i32
  }
  func.func @transform_1(%arg0: i32) -> (i32, i32, i32) {
    %c0_i32 = arith.constant 0 : i32
    %c0_i32_0 = arith.constant 0 : i32
    %c0_i32_1 = arith.constant 0 : i32
    %c0_i32_2 = arith.constant 0 : i32
    return %c0_i32, %c0_i32_0, %c0_i32_1 : i32, i32, i32
  }
  func.func @transform_2(%arg0: i32) -> (i32, i32) {
    %c0_i32 = arith.constant 0 : i32
    %c0_i32_0 = arith.constant 0 : i32
    %c0_i32_1 = arith.constant 0 : i32
    return %c0_i32, %c0_i32_0 : i32, i32
  }
  func.func @transform_3(%arg0: i32) -> (i32, i32) {
    %c0_i32 = arith.constant 0 : i32
    %c0_i32_0 = arith.constant 0 : i32
    %c0_i32_1 = arith.constant 0 : i32
    return %c0_i32, %c0_i32_0 : i32, i32
  }
  func.func @transform_4(%arg0: i32) -> (i32, i32, i32) {
    %c0_i32 = arith.constant 0 : i32
    %c0_i32_0 = arith.constant 0 : i32
    %c0_i32_1 = arith.constant 0 : i32
    %c0_i32_2 = arith.constant 0 : i32
    return %c0_i32, %c0_i32_0, %c0_i32_1 : i32, i32, i32
  }
  func.func @transform_5(%arg0: i32) -> (i32, i32) {
    %c0_i32 = arith.constant 0 : i32
    %c0_i32_0 = arith.constant 0 : i32
    %c0_i32_1 = arith.constant 0 : i32
    return %c0_i32, %c0_i32_0 : i32, i32
  }
  func.func @transform_6(%arg0: i32) -> (i32, i32) {
    %c0_i32 = arith.constant 0 : i32
    %c0_i32_0 = arith.constant 0 : i32
    %c0_i32_1 = arith.constant 0 : i32
    return %c0_i32, %c0_i32_0 : i32, i32
  }
  func.func @transform_7(%arg0: i32) -> (i32, i32, i32) {
    %c0_i32 = arith.constant 0 : i32
    %c0_i32_0 = arith.constant 0 : i32
    %c0_i32_1 = arith.constant 0 : i32
    %c0_i32_2 = arith.constant 0 : i32
    return %c0_i32, %c0_i32_0, %c0_i32_1 : i32, i32, i32
  }
  func.func @transform_8(%arg0: i32) -> (i32, i32) {
    %c0_i32 = arith.constant 0 : i32
    %c0_i32_0 = arith.constant 0 : i32
    %c0_i32_1 = arith.constant 0 : i32
    return %c0_i32, %c0_i32_0 : i32, i32
  }
  func.func @transform_9(%arg0: i32) -> (i32, i32) {
    %c0_i32 = arith.constant 0 : i32
    %c0_i32_0 = arith.constant 0 : i32
    %c0_i32_1 = arith.constant 0 : i32
    return %c0_i32, %c0_i32_0 : i32, i32
  }
  func.func @transform_10(%arg0: i32) -> (i32, i32) {
    %c0_i32 = arith.constant 0 : i32
    %c0_i32_0 = arith.constant 0 : i32
    %c0_i32_1 = arith.constant 0 : i32
    return %c0_i32, %c0_i32_0 : i32, i32
  }
  func.func @transform_11(%arg0: i32) -> (i32, i32) {
    %c0_i32 = arith.constant 0 : i32
    %c0_i32_0 = arith.constant 0 : i32
    %c0_i32_1 = arith.constant 0 : i32
    return %c0_i32, %c0_i32_0 : i32, i32
  }
  func.func @transform_12(%arg0: i32) -> (i32, i32) {
    %c0_i32 = arith.constant 0 : i32
    %c0_i32_0 = arith.constant 0 : i32
    %c0_i32_1 = arith.constant 0 : i32
    return %c0_i32, %c0_i32_0 : i32, i32
  }
  func.func @transform_13(%arg0: i32) -> (i32, i32) {
    %c0_i32 = arith.constant 0 : i32
    %c0_i32_0 = arith.constant 0 : i32
    %c0_i32_1 = arith.constant 0 : i32
    return %c0_i32, %c0_i32_0 : i32, i32
  }
  func.func @transform_14(%arg0: i32) -> (i32, i32) {
    %c0_i32 = arith.constant 0 : i32
    %c0_i32_0 = arith.constant 0 : i32
    %c0_i32_1 = arith.constant 0 : i32
    return %c0_i32, %c0_i32_0 : i32, i32
  }
  func.func @transform_15(%arg0: i32) -> (i32, i32) {
    %c0_i32 = arith.constant 0 : i32
    %c0_i32_0 = arith.constant 0 : i32
    %c0_i32_1 = arith.constant 0 : i32
    return %c0_i32, %c0_i32_0 : i32, i32
  }
  func.func @transform_16(%arg0: i32) -> (i32, i32) {
    %c0_i32 = arith.constant 0 : i32
    %c0_i32_0 = arith.constant 0 : i32
    %c0_i32_1 = arith.constant 0 : i32
    return %c0_i32, %c0_i32_0 : i32, i32
  }
  func.func @transform_17(%arg0: i32) -> (i32, i32) {
    %c0_i32 = arith.constant 0 : i32
    %c0_i32_0 = arith.constant 0 : i32
    %c0_i32_1 = arith.constant 0 : i32
    return %c0_i32, %c0_i32_0 : i32, i32
  }
  func.func @transform_18(%arg0: i32) -> (i32, i32) {
    %c0_i32 = arith.constant 0 : i32
    %c0_i32_0 = arith.constant 0 : i32
    %c0_i32_1 = arith.constant 0 : i32
    return %c0_i32, %c0_i32_0 : i32, i32
  }
  func.func @transform_19(%arg0: i32) -> (i32, i32) {
    %c0_i32 = arith.constant 0 : i32
    %c0_i32_0 = arith.constant 0 : i32
    %c0_i32_1 = arith.constant 0 : i32
    return %c0_i32, %c0_i32_0 : i32, i32
  }
  func.func @transform_20(%arg0: i32) -> (i32, i32, i32) {
    %c0_i32 = arith.constant 0 : i32
    %c0_i32_0 = arith.constant 0 : i32
    %c0_i32_1 = arith.constant 0 : i32
    %c0_i32_2 = arith.constant 0 : i32
    return %c0_i32, %c0_i32_0, %c0_i32_1 : i32, i32, i32
  }
  func.func @transform_21(%arg0: i32) -> (i32, i32) {
    %c0_i32 = arith.constant 0 : i32
    %c0_i32_0 = arith.constant 0 : i32
    %c0_i32_1 = arith.constant 0 : i32
    return %c0_i32, %c0_i32_0 : i32, i32
  }
  func.func @transform_22(%arg0: i32) -> (i32, i32) {
    %c0_i32 = arith.constant 0 : i32
    %c0_i32_0 = arith.constant 0 : i32
    %c0_i32_1 = arith.constant 0 : i32
    return %c0_i32, %c0_i32_0 : i32, i32
  }
  func.func @transform_23(%arg0: i32) -> (i32, i32) {
    %c0_i32 = arith.constant 0 : i32
    %c0_i32_0 = arith.constant 0 : i32
    %c0_i32_1 = arith.constant 0 : i32
    return %c0_i32, %c0_i32_0 : i32, i32
  }
  func.func @transform_24(%arg0: i32) -> (i32, i32) {
    %c0_i32 = arith.constant 0 : i32
    %c0_i32_0 = arith.constant 0 : i32
    %c0_i32_1 = arith.constant 0 : i32
    return %c0_i32, %c0_i32_0 : i32, i32
  }
  func.func @transform_25(%arg0: i32) -> (i32, i32) {
    %c0_i32 = arith.constant 0 : i32
    %c0_i32_0 = arith.constant 0 : i32
    %c0_i32_1 = arith.constant 0 : i32
    return %c0_i32, %c0_i32_0 : i32, i32
  }
  func.func @transform_26(%arg0: i32) -> (i32, i32) {
    %c0_i32 = arith.constant 0 : i32
    %c0_i32_0 = arith.constant 0 : i32
    %c0_i32_1 = arith.constant 0 : i32
    return %c0_i32, %c0_i32_0 : i32, i32
  }
  func.func @transform_27(%arg0: i32) -> (i32, i32, i32) {
    %c0_i32 = arith.constant 0 : i32
    %c0_i32_0 = arith.constant 0 : i32
    %c0_i32_1 = arith.constant 0 : i32
    return %arg0, %c0_i32, %c0_i32_0 : i32, i32, i32
  }
  func.func @transform_28(%arg0: i32) -> (i32, i32, i32) {
    %c0_i32 = arith.constant 0 : i32
    %c0_i32_0 = arith.constant 0 : i32
    %c0_i32_1 = arith.constant 0 : i32
    return %arg0, %c0_i32, %c0_i32_0 : i32, i32, i32
  }
}

</mosaic_0001>

<llo_original>
// kernel: dlv3p_forward.1
$region0: #{dlv3p_forward.1}
  #allocation0 [shape = 'u32[]', space=smem, size = 0x4, offset = 0x4, fixed_abs, tag = 'smem constant byte address 0x4 - core index']
  #allocation1 [shape = 'u32[72,128]{1,0:T(1,128)}', space=vmem, size = 0x9000, scoped, tag = 'internal scratch']
  %s0 = inlined_call_operand.vmem [shape: f32[2,3,256], index: 0, kind: input, shape index: {}]
  %s1 = inlined_call_operand.hbm [shape: bf16[9,256,64], index: 1, kind: input, shape index: {}]
  %s2 = inlined_call_operand.vmem [shape: bf16[144,3], index: 2, kind: input, shape index: {}]
  %s3 = inlined_call_operand.hbm [shape: f32[16,64], index: 3, kind: input, shape index: {}]
  %s4 = inlined_call_operand.hbm [shape: bf16[9,64,16], index: 4, kind: input, shape index: {}]
  %s5 = inlined_call_operand.hbm [shape: bf16[288,16], index: 5, kind: input, shape index: {}]
  %s6 = inlined_call_operand.hbm [shape: f32[32,1], index: 6, kind: input, shape index: {}]
  %s7 = inlined_call_operand.hbm [shape: bf16[9,16,4], index: 7, kind: input, shape index: {}]
  %s8 = inlined_call_operand.hbm [shape: bf16[576,32], index: 8, kind: input, shape index: {}]
  %s9 = inlined_call_operand.vmem [shape: f32[64,1], index: 9, kind: input, shape index: {}]
  %s10 = inlined_call_operand.hbm [shape: bf16[32,64], index: 10, kind: input, shape index: {}]
  %s11 = inlined_call_operand.hbm [shape: f32[32,1], index: 11, kind: input, shape index: {}]
  %s12 = inlined_call_operand.hbm [shape: bf16[32,64], index: 12, kind: input, shape index: {}]
  %s13 = inlined_call_operand.hbm [shape: f32[32,1], index: 13, kind: input, shape index: {}]
  %s14 = inlined_call_operand.hbm [shape: bf16[32,32], index: 14, kind: input, shape index: {}]
  %s15 = inlined_call_operand.hbm [shape: bf16[32,32], index: 15, kind: input, shape index: {}]
  %s16 = inlined_call_operand.hbm [shape: f32[32,1], index: 16, kind: input, shape index: {}]
  %s17 = inlined_call_operand.hbm [shape: bf16[8,32], index: 17, kind: input, shape index: {}]
  %s18 = inlined_call_operand.hbm [shape: f32[8,1], index: 18, kind: input, shape index: {}]
  %s19 = inlined_call_operand.hbm [shape: bf16[4,16], index: 19, kind: input, shape index: {}]
  %s20 = inlined_call_operand.hbm [shape: bf16[9,16,16], index: 20, kind: input, shape index: {}]
  %s21 = inlined_call_operand.hbm [shape: bf16[288,40], index: 21, kind: input, shape index: {}]
  %s22 = inlined_call_operand.hbm [shape: f32[32,1], index: 22, kind: input, shape index: {}]
  %s23 = inlined_call_operand.hbm [shape: bf16[19,32], index: 23, kind: input, shape index: {}]
  %s24 = inlined_call_operand.hbm [shape: f32[19,1], index: 24, kind: input, shape index: {}]
  %s25 = inlined_call_operand.hbm [shape: bf16[3,19], index: 25, kind: input, shape index: {}]
  %s26 = inlined_call_operand.hbm [shape: bf16[16,256], index: 26, kind: input, shape index: {}]
  %s27 = inlined_call_operand.vmem [shape: s32[2,1,256], index: 27, kind: output, shape index: {0}]
  %s28 = inlined_call_operand.vmem [shape: f32[2,3,256], index: 28, kind: output, shape index: {1}]
  %29 = xla_tuple %s27, %s28
  %s30 = sld [smem:[#allocation0]]
  $region245: #{dlv3p_forward.1} parent=0
    _
  %s32 = ssub.s32 1, %s30
  %s33 = scalar_select 0, %s32, %s30
  $region1: #{dlv3p_forward.1} parent=0
    #allocation2 [shape = 'u8[589824]{0}', space=vmem, size = 0x90000, scoped, tag = 'input window, operand 1, single buffered']
    #allocation3 [shape = 's32[2]{0}', space=sflag, size = 0x8, scoped, tag = 'scoped memory for dlv3p_forward.1']
    #allocation4 [shape = 'u8[8192]{0}', space=vmem, size = 0x2000, scoped, tag = 'input window, operand 3, single buffered']
    #allocation5 [shape = 's32[1]{0}', space=sflag, size = 0x4, scoped, tag = 'scoped memory for dlv3p_forward.1']
    #allocation6 [shape = 'u8[147456]{0}', space=vmem, size = 0x24000, scoped, tag = 'input window, operand 4, single buffered']
    #allocation7 [shape = 'u8[73728]{0}', space=vmem, size = 0x12000, scoped, tag = 'input window, operand 5, single buffered']
    #allocation8 [shape = 's32[1]{0}', space=sflag, size = 0x4, scoped, tag = 'scoped memory for dlv3p_forward.1']
    #allocation9 [shape = 'u8[16384]{0}', space=vmem, size = 0x4000, scoped, tag = 'input window, operand 6, single buffered']
    #allocation10 [shape = 'u8[36864]{0}', space=vmem, size = 0x9000, scoped, tag = 'input window, operand 7, single buffered']
    #allocation11 [shape = 's32[1]{0}', space=sflag, size = 0x4, scoped, tag = 'scoped memory for dlv3p_forward.1']
    #allocation12 [shape = 'u8[147456]{0}', space=vmem, size = 0x24000, scoped, tag = 'input window, operand 8, single buffered']
    #allocation13 [shape = 'u8[8192]{0}', space=vmem, size = 0x2000, scoped, tag = 'input window, operand 10, single buffered']
    #allocation14 [shape = 's32[1]{0}', space=sflag, size = 0x4, scoped, tag = 'scoped memory for dlv3p_forward.1']
    #allocation15 [shape = 'u8[16384]{0}', space=vmem, size = 0x4000, scoped, tag = 'input window, operand 11, single buffered']
    #allocation16 [shape = 'u8[8192]{0}', space=vmem, size = 0x2000, scoped, tag = 'input window, operand 12, single buffered']
    #allocation17 [shape = 's32[1]{0}', space=sflag, size = 0x4, scoped, tag = 'scoped memory for dlv3p_forward.1']
    #allocation18 [shape = 'u8[16384]{0}', space=vmem, size = 0x4000, scoped, tag = 'input window, operand 13, single buffered']
    #allocation19 [shape = 'u8[8192]{0}', space=vmem, size = 0x2000, scoped, tag = 'input window, operand 14, single buffered']
    #allocation20 [shape = 's32[1]{0}', space=sflag, size = 0x4, scoped, tag = 'scoped memory for dlv3p_forward.1']
    #allocation21 [shape = 'u8[8192]{0}', space=vmem, size = 0x2000, scoped, tag = 'input window, operand 15, single buffered']
    #allocation22 [shape = 'u8[16384]{0}', space=vmem, size = 0x4000, scoped, tag = 'input window, operand 16, single buffered']
    #allocation23 [shape = 's32[1]{0}', space=sflag, size = 0x4, scoped, tag = 'scoped memory for dlv3p_forward.1']
    #allocation24 [shape = 'u8[2048]{0}', space=vmem, size = 0x800, scoped, tag = 'input window, operand 17, single buffered']
    #allocation25 [shape = 'u8[4096]{0}', space=vmem, size = 0x1000, scoped, tag = 'input window, operand 18, single buffered']
    #allocation26 [shape = 's32[1]{0}', space=sflag, size = 0x4, scoped, tag = 'scoped memory for dlv3p_forward.1']
    #allocation27 [shape = 'u8[1024]{0}', space=vmem, size = 0x400, scoped, tag = 'input window, operand 19, single buffered']
    #allocation28 [shape = 'u8[36864]{0}', space=vmem, size = 0x9000, scoped, tag = 'input window, operand 20, single buffered']
    #allocation29 [shape = 's32[1]{0}', space=sflag, size = 0x4, scoped, tag = 'scoped memory for dlv3p_forward.1']
    #allocation30 [shape = 'u8[73728]{0}', space=vmem, size = 0x12000, scoped, tag = 'input window, operand 21, single buffered']
    #allocation31 [shape = 'u8[16384]{0}', space=vmem, size = 0x4000, scoped, tag = 'input window, operand 22, single buffered']
    #allocation32 [shape = 's32[1]{0}', space=sflag, size = 0x4, scoped, tag = 'scoped memory for dlv3p_forward.1']
    #allocation33 [shape = 'u8[6144]{0}', space=vmem, size = 0x1800, scoped, tag = 'input window, operand 23, single buffered']
    #allocation34 [shape = 'u8[12288]{0}', space=vmem, size = 0x3000, scoped, tag = 'input window, operand 24, single buffered']
    #allocation35 [shape = 's32[1]{0}', space=sflag, size = 0x4, scoped, tag = 'scoped memory for dlv3p_forward.1']
    #allocation36 [shape = 'u8[1024]{0}', space=vmem, size = 0x400, scoped, tag = 'input window, operand 25, single buffered']
    #allocation37 [shape = 'u8[8192]{0}', space=vmem, size = 0x2000, scoped, tag = 'input window, operand 26, single buffered']
    #allocation38 [shape = 's32[1]{0}', space=sflag, size = 0x4, scoped, tag = 'scoped memory for dlv3p_forward.1']
    %34 = vsyncpa [#allocation3], 0
    %35 = vsyncpa [#allocation5], 0
    %36 = vsyncpa [#allocation8], 0
    %37 = vsyncpa [#allocation11], 0
    %38 = vsyncpa [#allocation14], 0
    %39 = vsyncpa [#allocation17], 0
    %40 = vsyncpa [#allocation20], 0
    %41 = vsyncpa [#allocation23], 0
    %42 = vsyncpa [#allocation26], 0
    %43 = vsyncpa [#allocation29], 0
    %44 = vsyncpa [#allocation32], 0
    %45 = vsyncpa [#allocation35], 0
    %46 = vsyncpa [#allocation38], 0
    loop: start=0, step=1, limit=4
    $region2: #{dlv3p_forward.1} parent=1 // loop_pre_header
      _
    $region3: #{dlv3p_forward.1} parent=1 // loop_header
      %s48 = sphi 0, %s52
      %p49 = scmp.ge.s32.totalorder %s48, 4
      %s58 = sphi 0, %s60
      %s61 = sphi 0, %s58
      %s62 = sphi 0, %s61
      %s78 = sphi 0, %s62
      %s82 = sphi 0, %s82
      %s84 = sphi 0, %s82
      %s85 = sphi 0, %s84
      %s99 = sphi 0, %s85
      %s103 = sphi 0, %s103
      %s105 = sphi 0, %s103
      %s106 = sphi 0, %s105
      %s120 = sphi 0, %s106
      %s124 = sphi 0, %s124
      %s126 = sphi 0, %s124
      %s127 = sphi 0, %s126
      %s141 = sphi 0, %s127
      %s145 = sphi 0, %s145
      %s147 = sphi 0, %s145
      %s148 = sphi 0, %s147
      %s162 = sphi 0, %s148
      %s166 = sphi 0, %s166
      %s168 = sphi 0, %s166
      %s169 = sphi 0, %s168
      %s183 = sphi 0, %s169
      %s187 = sphi 0, %s187
      %s189 = sphi 0, %s187
      %s190 = sphi 0, %s189
      %s204 = sphi 0, %s190
      %s208 = sphi 0, %s208
      %s210 = sphi 0, %s208
      %s211 = sphi 0, %s210
      %s225 = sphi 0, %s211
      %s229 = sphi 0, %s229
      %s231 = sphi 0, %s229
      %s232 = sphi 0, %s231
      %s246 = sphi 0, %s232
      %s250 = sphi 0, %s250
      %s252 = sphi 0, %s250
      %s253 = sphi 0, %s252
      %s267 = sphi 0, %s253
      %s271 = sphi 0, %s271
      %s273 = sphi 0, %s271
      %s274 = sphi 0, %s273
      %s288 = sphi 0, %s274
      %s292 = sphi 0, %s292
      %s294 = sphi 0, %s292
      %s295 = sphi 0, %s294
      %s309 = sphi 0, %s295
      %s313 = sphi 0, %s313
      %s315 = sphi 0, %s313
      %s316 = sphi 0, %s315
      %s330 = sphi 0, %s316
      %s334 = sphi 0, %s334
      %s336 = sphi 0, %s334
      %s337 = sphi 0, %s336
      %s351 = sphi 0, %s337
      %s355 = sphi 0, %s355
      %s357 = sphi 0, %s355
      %s358 = sphi 0, %s357
      %s372 = sphi 0, %s358
      %s376 = sphi 0, %s376
      %s378 = sphi 0, %s376
      %s379 = sphi 0, %s378
      %s393 = sphi 0, %s379
      %s397 = sphi 0, %s397
      %s399 = sphi 0, %s397
      %s400 = sphi 0, %s399
      %s414 = sphi 0, %s400
      %s418 = sphi 0, %s418
      %s420 = sphi 0, %s418
      %s421 = sphi 0, %s420
      %s435 = sphi 0, %s421
      %s439 = sphi 0, %s439
      %s441 = sphi 0, %s439
      %s442 = sphi 0, %s441
      %s456 = sphi 0, %s442
      %s460 = sphi 0, %s460
      %s462 = sphi 0, %s460
      %s463 = sphi 0, %s462
      %s477 = sphi 0, %s463
      %s481 = sphi 0, %s481
      %s483 = sphi 0, %s481
      %s484 = sphi 0, %s483
      %s498 = sphi 0, %s484
      %s502 = sphi 0, %s502
      %s504 = sphi 0, %s502
      %s505 = sphi 0, %s504
      %s519 = sphi 0, %s505
      %s523 = sphi 0, %s523
      %s525 = sphi 0, %s523
      %s526 = sphi 0, %s525
      %s540 = sphi 0, %s526
      %s544 = sphi 0, %s544
      %s546 = sphi 0, %s544
      %s547 = sphi 0, %s546
      %s561 = sphi 0, %s547
      %s565 = sphi 0, %s565
      %s567 = sphi 0, %s565
      %s568 = sphi 0, %s567
      %s582 = sphi 0, %s568
      %s586 = sphi 0, %s586
      %s588 = sphi 0, %s586
      %s589 = sphi 0, %s588
      %s603 = sphi 0, %s589
      %s607 = sphi 0, %s607
      %s609 = sphi 0, %s607
      %s610 = sphi 0, %s609
      %s624 = sphi 0, %s610
      %s630 = sphi 0, %s632
      %s633 = sphi 0, %s630
      %s634 = sphi 0, %s633
      %s650 = sphi 0, %s634
      %s656 = sphi 0, %s658
      %s659 = sphi 0, %s656
      %s660 = sphi 0, %s659
      %s676 = sphi 0, %s660
    $region4: #{dlv3p_forward.1} parent=1 // loop_header_branch
      %51 = sbr.rel (%p49) target = $region8
    $region5: #{dlv3p_forward.1} parent=1 // loop_body
      %s53 = ssub.s32 %s48, 1
      %s54 = ssub.s32 %s48, 2
      %s55 = sadd.s32 %s48, 1
      %s56 = ssub.s32 %s48, %s55
      %p57 = scmp.eq.s32.totalorder %s56, 0
      %s59 = sadd.s32 %s58, 1
      %s60 = scalar_select %p57, %s58, %s59
      %p63 = pneg %p57
      %p64 = scmp.eq.s32.totalorder %s48, 1
      %p65 = por %p63, %p64
      %p66 = scmp.ne.s32.totalorder %s58, %s61
      %p67 = scmp.eq.s32.totalorder %s48, 0
      %p68 = por %p66, %p67
      %p69 = scmp.ne.s32.totalorder %s58, %s61
      %p70 = scmp.eq.s32.totalorder %s53, 1
      %p71 = por %p69, %p70
      %p72 = scmp.ne.s32.totalorder %s61, %s62
      %p73 = scmp.eq.s32.totalorder %s53, 0
      %p74 = por %p72, %p73
      %p75 = scmp.ne.s32.totalorder %s61, %s62
      %p76 = scmp.eq.s32.totalorder %s54, 1
      %p77 = por %p75, %p76
      %p79 = scmp.ne.s32.totalorder %s62, %s78
      %p80 = scmp.eq.s32.totalorder %s54, 0
      %p81 = por %p79, %p80
      %s83 = sadd.s32 %s82, 1
      %p86 = scmp.eq.s32.totalorder %s48, 1
      %p87 = scmp.ne.s32.totalorder %s82, %s84
      %p88 = scmp.eq.s32.totalorder %s48, 0
      %p89 = por %p87, %p88
      %p90 = scmp.ne.s32.totalorder %s82, %s84
      %p91 = scmp.eq.s32.totalorder %s53, 1
      %p92 = por %p90, %p91
      %p93 = scmp.ne.s32.totalorder %s84, %s85
      %p94 = scmp.eq.s32.totalorder %s53, 0
      %p95 = por %p93, %p94
      %p96 = scmp.ne.s32.totalorder %s84, %s85
      %p97 = scmp.eq.s32.totalorder %s54, 1
      %p98 = por %p96, %p97
      %p100 = scmp.ne.s32.totalorder %s85, %s99
      %p101 = scmp.eq.s32.totalorder %s54, 0
      %p102 = por %p100, %p101
      %s104 = sadd.s32 %s103, 1
      %p107 = scmp.eq.s32.totalorder %s48, 1
      %p108 = scmp.ne.s32.totalorder %s103, %s105
      %p109 = scmp.eq.s32.totalorder %s48, 0
      %p110 = por %p108, %p109
      %p111 = scmp.ne.s32.totalorder %s103, %s105
      %p112 = scmp.eq.s32.totalorder %s53, 1
      %p113 = por %p111, %p112
      %p114 = scmp.ne.s32.totalorder %s105, %s106
      %p115 = scmp.eq.s32.totalorder %s53, 0
      %p116 = por %p114, %p115
      %p117 = scmp.ne.s32.totalorder %s105, %s106
      %p118 = scmp.eq.s32.totalorder %s54, 1
      %p119 = por %p117, %p118
      %p121 = scmp.ne.s32.totalorder %s106, %s120
      %p122 = scmp.eq.s32.totalorder %s54, 0
      %p123 = por %p121, %p122
      %s125 = sadd.s32 %s124, 1
      %p128 = scmp.eq.s32.totalorder %s48, 1
      %p129 = scmp.ne.s32.totalorder %s124, %s126
      %p130 = scmp.eq.s32.totalorder %s48, 0
      %p131 = por %p129, %p130
      %p132 = scmp.ne.s32.totalorder %s124, %s126
      %p133 = scmp.eq.s32.totalorder %s53, 1
      %p134 = por %p132, %p133
      %p135 = scmp.ne.s32.totalorder %s126, %s127
      %p136 = scmp.eq.s32.totalorder %s53, 0
      %p137 = por %p135, %p136
      %p138 = scmp.ne.s32.totalorder %s126, %s127
      %p139 = scmp.eq.s32.totalorder %s54, 1
      %p140 = por %p138, %p139
      %p142 = scmp.ne.s32.totalorder %s127, %s141
      %p143 = scmp.eq.s32.totalorder %s54, 0
      %p144 = por %p142, %p143
      %s146 = sadd.s32 %s145, 1
      %p149 = scmp.eq.s32.totalorder %s48, 1
      %p150 = scmp.ne.s32.totalorder %s145, %s147
      %p151 = scmp.eq.s32.totalorder %s48, 0
      %p152 = por %p150, %p151
      %p153 = scmp.ne.s32.totalorder %s145, %s147
      %p154 = scmp.eq.s32.totalorder %s53, 1
      %p155 = por %p153, %p154
      %p156 = scmp.ne.s32.totalorder %s147, %s148
      %p157 = scmp.eq.s32.totalorder %s53, 0
      %p158 = por %p156, %p157
      %p159 = scmp.ne.s32.totalorder %s147, %s148
      %p160 = scmp.eq.s32.totalorder %s54, 1
      %p161 = por %p159, %p160
      %p163 = scmp.ne.s32.totalorder %s148, %s162
      %p164 = scmp.eq.s32.totalorder %s54, 0
      %p165 = por %p163, %p164
      %s167 = sadd.s32 %s166, 1
      %p170 = scmp.eq.s32.totalorder %s48, 1
      %p171 = scmp.ne.s32.totalorder %s166, %s168
      %p172 = scmp.eq.s32.totalorder %s48, 0
      %p173 = por %p171, %p172
      %p174 = scmp.ne.s32.totalorder %s166, %s168
      %p175 = scmp.eq.s32.totalorder %s53, 1
      %p176 = por %p174, %p175
      %p177 = scmp.ne.s32.totalorder %s168, %s169
      %p178 = scmp.eq.s32.totalorder %s53, 0
      %p179 = por %p177, %p178
      %p180 = scmp.ne.s32.totalorder %s168, %s169
      %p181 = scmp.eq.s32.totalorder %s54, 1
      %p182 = por %p180, %p181
      %p184 = scmp.ne.s32.totalorder %s169, %s183
      %p185 = scmp.eq.s32.totalorder %s54, 0
      %p186 = por %p184, %p185
      %s188 = sadd.s32 %s187, 1
      %p191 = scmp.eq.s32.totalorder %s48, 1
      %p192 = scmp.ne.s32.totalorder %s187, %s189
      %p193 = scmp.eq.s32.totalorder %s48, 0
      %p194 = por %p192, %p193
      %p195 = scmp.ne.s32.totalorder %s187, %s189
      %p196 = scmp.eq.s32.totalorder %s53, 1
      %p197 = por %p195, %p196
      %p198 = scmp.ne.s32.totalorder %s189, %s190
      %p199 = scmp.eq.s32.totalorder %s53, 0
      %p200 = por %p198, %p199
      %p201 = scmp.ne.s32.totalorder %s189, %s190
      %p202 = scmp.eq.s32.totalorder %s54, 1
      %p203 = por %p201, %p202
      %p205 = scmp.ne.s32.totalorder %s190, %s204
      %p206 = scmp.eq.s32.totalorder %s54, 0
      %p207 = por %p205, %p206
      %s209 = sadd.s32 %s208, 1
      %p212 = scmp.eq.s32.totalorder %s48, 1
      %p213 = scmp.ne.s32.totalorder %s208, %s210
      %p214 = scmp.eq.s32.totalorder %s48, 0
      %p215 = por %p213, %p214
      %p216 = scmp.ne.s32.totalorder %s208, %s210
      %p217 = scmp.eq.s32.totalorder %s53, 1
      %p218 = por %p216, %p217
      %p219 = scmp.ne.s32.totalorder %s210, %s211
      %p220 = scmp.eq.s32.totalorder %s53, 0
      %p221 = por %p219, %p220
      %p222 = scmp.ne.s32.totalorder %s210, %s211
      %p223 = scmp.eq.s32.totalorder %s54, 1
      %p224 = por %p222, %p223
      %p226 = scmp.ne.s32.totalorder %s211, %s225
      %p227 = scmp.eq.s32.totalorder %s54, 0
      %p228 = por %p226, %p227
      %s230 = sadd.s32 %s229, 1
      %p233 = scmp.eq.s32.totalorder %s48, 1
      %p234 = scmp.ne.s32.totalorder %s229, %s231
      %p235 = scmp.eq.s32.totalorder %s48, 0
      %p236 = por %p234, %p235
      %p237 = scmp.ne.s32.totalorder %s229, %s231
      %p238 = scmp.eq.s32.totalorder %s53, 1
      %p239 = por %p237, %p238
      %p240 = scmp.ne.s32.totalorder %s231, %s232
      %p241 = scmp.eq.s32.totalorder %s53, 0
      %p242 = por %p240, %p241
      %p243 = scmp.ne.s32.totalorder %s231, %s232
      %p244 = scmp.eq.s32.totalorder %s54, 1
      %p245 = por %p243, %p244
      %p247 = scmp.ne.s32.totalorder %s232, %s246
      %p248 = scmp.eq.s32.totalorder %s54, 0
      %p249 = por %p247, %p248
      %s251 = sadd.s32 %s250, 1
      %p254 = scmp.eq.s32.totalorder %s48, 1
      %p255 = scmp.ne.s32.totalorder %s250, %s252
      %p256 = scmp.eq.s32.totalorder %s48, 0
      %p257 = por %p255, %p256
      %p258 = scmp.ne.s32.totalorder %s250, %s252
      %p259 = scmp.eq.s32.totalorder %s53, 1
      %p260 = por %p258, %p259
      %p261 = scmp.ne.s32.totalorder %s252, %s253
      %p262 = scmp.eq.s32.totalorder %s53, 0
      %p263 = por %p261, %p262
      %p264 = scmp.ne.s32.totalorder %s252, %s253
      %p265 = scmp.eq.s32.totalorder %s54, 1
      %p266 = por %p264, %p265
      %p268 = scmp.ne.s32.totalorder %s253, %s267
      %p269 = scmp.eq.s32.totalorder %s54, 0
      %p270 = por %p268, %p269
      %s272 = sadd.s32 %s271, 1
      %p275 = scmp.eq.s32.totalorder %s48, 1
      %p276 = scmp.ne.s32.totalorder %s271, %s273
      %p277 = scmp.eq.s32.totalorder %s48, 0
      %p278 = por %p276, %p277
      %p279 = scmp.ne.s32.totalorder %s271, %s273
      %p280 = scmp.eq.s32.totalorder %s53, 1
      %p281 = por %p279, %p280
      %p282 = scmp.ne.s32.totalorder %s273, %s274
      %p283 = scmp.eq.s32.totalorder %s53, 0
      %p284 = por %p282, %p283
      %p285 = scmp.ne.s32.totalorder %s273, %s274
      %p286 = scmp.eq.s32.totalorder %s54, 1
      %p287 = por %p285, %p286
      %p289 = scmp.ne.s32.totalorder %s274, %s288
      %p290 = scmp.eq.s32.totalorder %s54, 0
      %p291 = por %p289, %p290
      %s293 = sadd.s32 %s292, 1
      %p296 = scmp.eq.s32.totalorder %s48, 1
      %p297 = scmp.ne.s32.totalorder %s292, %s294
      %p298 = scmp.eq.s32.totalorder %s48, 0
      %p299 = por %p297, %p298
      %p300 = scmp.ne.s32.totalorder %s292, %s294
      %p301 = scmp.eq.s32.totalorder %s53, 1
      %p302 = por %p300, %p301
      %p303 = scmp.ne.s32.totalorder %s294, %s295
      %p304 = scmp.eq.s32.totalorder %s53, 0
      %p305 = por %p303, %p304
      %p306 = scmp.ne.s32.totalorder %s294, %s295
      %p307 = scmp.eq.s32.totalorder %s54, 1
      %p308 = por %p306, %p307
      %p310 = scmp.ne.s32.totalorder %s295, %s309
      %p311 = scmp.eq.s32.totalorder %s54, 0
      %p312 = por %p310, %p311
      %s314 = sadd.s32 %s313, 1
      %p317 = scmp.eq.s32.totalorder %s48, 1
      %p318 = scmp.ne.s32.totalorder %s313, %s315
      %p319 = scmp.eq.s32.totalorder %s48, 0
      %p320 = por %p318, %p319
      %p321 = scmp.ne.s32.totalorder %s313, %s315
      %p322 = scmp.eq.s32.totalorder %s53, 1
      %p323 = por %p321, %p322
      %p324 = scmp.ne.s32.totalorder %s315, %s316
      %p325 = scmp.eq.s32.totalorder %s53, 0
      %p326 = por %p324, %p325
      %p327 = scmp.ne.s32.totalorder %s315, %s316
      %p328 = scmp.eq.s32.totalorder %s54, 1
      %p329 = por %p327, %p328
      %p331 = scmp.ne.s32.totalorder %s316, %s330
      %p332 = scmp.eq.s32.totalorder %s54, 0
      %p333 = por %p331, %p332
      %s335 = sadd.s32 %s334, 1
      %p338 = scmp.eq.s32.totalorder %s48, 1
      %p339 = scmp.ne.s32.totalorder %s334, %s336
      %p340 = scmp.eq.s32.totalorder %s48, 0
      %p341 = por %p339, %p340
      %p342 = scmp.ne.s32.totalorder %s334, %s336
      %p343 = scmp.eq.s32.totalorder %s53, 1
      %p344 = por %p342, %p343
      %p345 = scmp.ne.s32.totalorder %s336, %s337
      %p346 = scmp.eq.s32.totalorder %s53, 0
      %p347 = por %p345, %p346
      %p348 = scmp.ne.s32.totalorder %s336, %s337
      %p349 = scmp.eq.s32.totalorder %s54, 1
      %p350 = por %p348, %p349
      %p352 = scmp.ne.s32.totalorder %s337, %s351
      %p353 = scmp.eq.s32.totalorder %s54, 0
      %p354 = por %p352, %p353
      %s356 = sadd.s32 %s355, 1
      %p359 = scmp.eq.s32.totalorder %s48, 1
      %p360 = scmp.ne.s32.totalorder %s355, %s357
      %p361 = scmp.eq.s32.totalorder %s48, 0
      %p362 = por %p360, %p361
      %p363 = scmp.ne.s32.totalorder %s355, %s357
      %p364 = scmp.eq.s32.totalorder %s53, 1
      %p365 = por %p363, %p364
      %p366 = scmp.ne.s32.totalorder %s357, %s358
      %p367 = scmp.eq.s32.totalorder %s53, 0
      %p368 = por %p366, %p367
      %p369 = scmp.ne.s32.totalorder %s357, %s358
      %p370 = scmp.eq.s32.totalorder %s54, 1
      %p371 = por %p369, %p370
      %p373 = scmp.ne.s32.totalorder %s358, %s372
      %p374 = scmp.eq.s32.totalorder %s54, 0
      %p375 = por %p373, %p374
      %s377 = sadd.s32 %s376, 1
      %p380 = scmp.eq.s32.totalorder %s48, 1
      %p381 = scmp.ne.s32.totalorder %s376, %s378
      %p382 = scmp.eq.s32.totalorder %s48, 0
      %p383 = por %p381, %p382
      %p384 = scmp.ne.s32.totalorder %s376, %s378
      %p385 = scmp.eq.s32.totalorder %s53, 1
      %p386 = por %p384, %p385
      %p387 = scmp.ne.s32.totalorder %s378, %s379
      %p388 = scmp.eq.s32.totalorder %s53, 0
      %p389 = por %p387, %p388
      %p390 = scmp.ne.s32.totalorder %s378, %s379
      %p391 = scmp.eq.s32.totalorder %s54, 1
      %p392 = por %p390, %p391
      %p394 = scmp.ne.s32.totalorder %s379, %s393
      %p395 = scmp.eq.s32.totalorder %s54, 0
      %p396 = por %p394, %p395
      %s398 = sadd.s32 %s397, 1
      %p401 = scmp.eq.s32.totalorder %s48, 1
      %p402 = scmp.ne.s32.totalorder %s397, %s399
      %p403 = scmp.eq.s32.totalorder %s48, 0
      %p404 = por %p402, %p403
      %p405 = scmp.ne.s32.totalorder %s397, %s399
      %p406 = scmp.eq.s32.totalorder %s53, 1
      %p407 = por %p405, %p406
      %p408 = scmp.ne.s32.totalorder %s399, %s400
      %p409 = scmp.eq.s32.totalorder %s53, 0
      %p410 = por %p408, %p409
      %p411 = scmp.ne.s32.totalorder %s399, %s400
      %p412 = scmp.eq.s32.totalorder %s54, 1
      %p413 = por %p411, %p412
      %p415 = scmp.ne.s32.totalorder %s400, %s414
      %p416 = scmp.eq.s32.totalorder %s54, 0
      %p417 = por %p415, %p416
      %s419 = sadd.s32 %s418, 1
      %p422 = scmp.eq.s32.totalorder %s48, 1
      %p423 = scmp.ne.s32.totalorder %s418, %s420
      %p424 = scmp.eq.s32.totalorder %s48, 0
      %p425 = por %p423, %p424
      %p426 = scmp.ne.s32.totalorder %s418, %s420
      %p427 = scmp.eq.s32.totalorder %s53, 1
      %p428 = por %p426, %p427
      %p429 = scmp.ne.s32.totalorder %s420, %s421
      %p430 = scmp.eq.s32.totalorder %s53, 0
      %p431 = por %p429, %p430
      %p432 = scmp.ne.s32.totalorder %s420, %s421
      %p433 = scmp.eq.s32.totalorder %s54, 1
      %p434 = por %p432, %p433
      %p436 = scmp.ne.s32.totalorder %s421, %s435
      %p437 = scmp.eq.s32.totalorder %s54, 0
      %p438 = por %p436, %p437
      %s440 = sadd.s32 %s439, 1
      %p443 = scmp.eq.s32.totalorder %s48, 1
      %p444 = scmp.ne.s32.totalorder %s439, %s441
      %p445 = scmp.eq.s32.totalorder %s48, 0
      %p446 = por %p444, %p445
      %p447 = scmp.ne.s32.totalorder %s439, %s441
      %p448 = scmp.eq.s32.totalorder %s53, 1
      %p449 = por %p447, %p448
      %p450 = scmp.ne.s32.totalorder %s441, %s442
      %p451 = scmp.eq.s32.totalorder %s53, 0
      %p452 = por %p450, %p451
      %p453 = scmp.ne.s32.totalorder %s441, %s442
      %p454 = scmp.eq.s32.totalorder %s54, 1
      %p455 = por %p453, %p454
      %p457 = scmp.ne.s32.totalorder %s442, %s456
      %p458 = scmp.eq.s32.totalorder %s54, 0
      %p459 = por %p457, %p458
      %s461 = sadd.s32 %s460, 1
      %p464 = scmp.eq.s32.totalorder %s48, 1
      %p465 = scmp.ne.s32.totalorder %s460, %s462
      %p466 = scmp.eq.s32.totalorder %s48, 0
      %p467 = por %p465, %p466
      %p468 = scmp.ne.s32.totalorder %s460, %s462
      %p469 = scmp.eq.s32.totalorder %s53, 1
      %p470 = por %p468, %p469
      %p471 = scmp.ne.s32.totalorder %s462, %s463
      %p472 = scmp.eq.s32.totalorder %s53, 0
      %p473 = por %p471, %p472
      %p474 = scmp.ne.s32.totalorder %s462, %s463
      %p475 = scmp.eq.s32.totalorder %s54, 1
      %p476 = por %p474, %p475
      %p478 = scmp.ne.s32.totalorder %s463, %s477
      %p479 = scmp.eq.s32.totalorder %s54, 0
      %p480 = por %p478, %p479
      %s482 = sadd.s32 %s481, 1
      %p485 = scmp.eq.s32.totalorder %s48, 1
      %p486 = scmp.ne.s32.totalorder %s481, %s483
      %p487 = scmp.eq.s32.totalorder %s48, 0
      %p488 = por %p486, %p487
      %p489 = scmp.ne.s32.totalorder %s481, %s483
      %p490 = scmp.eq.s32.totalorder %s53, 1
      %p491 = por %p489, %p490
      %p492 = scmp.ne.s32.totalorder %s483, %s484
      %p493 = scmp.eq.s32.totalorder %s53, 0
      %p494 = por %p492, %p493
      %p495 = scmp.ne.s32.totalorder %s483, %s484
      %p496 = scmp.eq.s32.totalorder %s54, 1
      %p497 = por %p495, %p496
      %p499 = scmp.ne.s32.totalorder %s484, %s498
      %p500 = scmp.eq.s32.totalorder %s54, 0
      %p501 = por %p499, %p500
      %s503 = sadd.s32 %s502, 1
      %p506 = scmp.eq.s32.totalorder %s48, 1
      %p507 = scmp.ne.s32.totalorder %s502, %s504
      %p508 = scmp.eq.s32.totalorder %s48, 0
      %p509 = por %p507, %p508
      %p510 = scmp.ne.s32.totalorder %s502, %s504
      %p511 = scmp.eq.s32.totalorder %s53, 1
      %p512 = por %p510, %p511
      %p513 = scmp.ne.s32.totalorder %s504, %s505
      %p514 = scmp.eq.s32.totalorder %s53, 0
      %p515 = por %p513, %p514
      %p516 = scmp.ne.s32.totalorder %s504, %s505
      %p517 = scmp.eq.s32.totalorder %s54, 1
      %p518 = por %p516, %p517
      %p520 = scmp.ne.s32.totalorder %s505, %s519
      %p521 = scmp.eq.s32.totalorder %s54, 0
      %p522 = por %p520, %p521
      %s524 = sadd.s32 %s523, 1
      %p527 = scmp.eq.s32.totalorder %s48, 1
      %p528 = scmp.ne.s32.totalorder %s523, %s525
      %p529 = scmp.eq.s32.totalorder %s48, 0
      %p530 = por %p528, %p529
      %p531 = scmp.ne.s32.totalorder %s523, %s525
      %p532 = scmp.eq.s32.totalorder %s53, 1
      %p533 = por %p531, %p532
      %p534 = scmp.ne.s32.totalorder %s525, %s526
      %p535 = scmp.eq.s32.totalorder %s53, 0
      %p536 = por %p534, %p535
      %p537 = scmp.ne.s32.totalorder %s525, %s526
      %p538 = scmp.eq.s32.totalorder %s54, 1
      %p539 = por %p537, %p538
      %p541 = scmp.ne.s32.totalorder %s526, %s540
      %p542 = scmp.eq.s32.totalorder %s54, 0
      %p543 = por %p541, %p542
      %s545 = sadd.s32 %s544, 1
      %p548 = scmp.eq.s32.totalorder %s48, 1
      %p549 = scmp.ne.s32.totalorder %s544, %s546
      %p550 = scmp.eq.s32.totalorder %s48, 0
      %p551 = por %p549, %p550
      %p552 = scmp.ne.s32.totalorder %s544, %s546
      %p553 = scmp.eq.s32.totalorder %s53, 1
      %p554 = por %p552, %p553
      %p555 = scmp.ne.s32.totalorder %s546, %s547
      %p556 = scmp.eq.s32.totalorder %s53, 0
      %p557 = por %p555, %p556
      %p558 = scmp.ne.s32.totalorder %s546, %s547
      %p559 = scmp.eq.s32.totalorder %s54, 1
      %p560 = por %p558, %p559
      %p562 = scmp.ne.s32.totalorder %s547, %s561
      %p563 = scmp.eq.s32.totalorder %s54, 0
      %p564 = por %p562, %p563
      %s566 = sadd.s32 %s565, 1
      %p569 = scmp.eq.s32.totalorder %s48, 1
      %p570 = scmp.ne.s32.totalorder %s565, %s567
      %p571 = scmp.eq.s32.totalorder %s48, 0
      %p572 = por %p570, %p571
      %p573 = scmp.ne.s32.totalorder %s565, %s567
      %p574 = scmp.eq.s32.totalorder %s53, 1
      %p575 = por %p573, %p574
      %p576 = scmp.ne.s32.totalorder %s567, %s568
      %p577 = scmp.eq.s32.totalorder %s53, 0
      %p578 = por %p576, %p577
      %p579 = scmp.ne.s32.totalorder %s567, %s568
      %p580 = scmp.eq.s32.totalorder %s54, 1
      %p581 = por %p579, %p580
      %p583 = scmp.ne.s32.totalorder %s568, %s582
      %p584 = scmp.eq.s32.totalorder %s54, 0
      %p585 = por %p583, %p584
      %s587 = sadd.s32 %s586, 1
      %p590 = scmp.eq.s32.totalorder %s48, 1
      %p591 = scmp.ne.s32.totalorder %s586, %s588
      %p592 = scmp.eq.s32.totalorder %s48, 0
      %p593 = por %p591, %p592
      %p594 = scmp.ne.s32.totalorder %s586, %s588
      %p595 = scmp.eq.s32.totalorder %s53, 1
      %p596 = por %p594, %p595
      %p597 = scmp.ne.s32.totalorder %s588, %s589
      %p598 = scmp.eq.s32.totalorder %s53, 0
      %p599 = por %p597, %p598
      %p600 = scmp.ne.s32.totalorder %s588, %s589
      %p601 = scmp.eq.s32.totalorder %s54, 1
      %p602 = por %p600, %p601
      %p604 = scmp.ne.s32.totalorder %s589, %s603
      %p605 = scmp.eq.s32.totalorder %s54, 0
      %p606 = por %p604, %p605
      %s608 = sadd.s32 %s607, 1
      %p611 = scmp.eq.s32.totalorder %s48, 1
      %p612 = scmp.ne.s32.totalorder %s607, %s609
      %p613 = scmp.eq.s32.totalorder %s48, 0
      %p614 = por %p612, %p613
      %p615 = scmp.ne.s32.totalorder %s607, %s609
      %p616 = scmp.eq.s32.totalorder %s53, 1
      %p617 = por %p615, %p616
      %p618 = scmp.ne.s32.totalorder %s609, %s610
      %p619 = scmp.eq.s32.totalorder %s53, 0
      %p620 = por %p618, %p619
      %p621 = scmp.ne.s32.totalorder %s609, %s610
      %p622 = scmp.eq.s32.totalorder %s54, 1
      %p623 = por %p621, %p622
      %p625 = scmp.ne.s32.totalorder %s610, %s624
      %p626 = scmp.eq.s32.totalorder %s54, 0
      %p627 = por %p625, %p626
      %s628 = ssub.s32 %s48, %s55
      %p629 = scmp.eq.s32.totalorder %s628, 0
      %s631 = sadd.s32 %s630, 1
      %s632 = scalar_select %p629, %s630, %s631
      %p635 = pneg %p629
      %p636 = scmp.eq.s32.totalorder %s48, 1
      %p637 = por %p635, %p636
      %p638 = scmp.ne.s32.totalorder %s630, %s633
      %p639 = scmp.eq.s32.totalorder %s48, 0
      %p640 = por %p638, %p639
      %p641 = scmp.ne.s32.totalorder %s630, %s633
      %p642 = scmp.eq.s32.totalorder %s53, 1
      %p643 = por %p641, %p642
      %p644 = scmp.ne.s32.totalorder %s633, %s634
      %p645 = scmp.eq.s32.totalorder %s53, 0
      %p646 = por %p644, %p645
      %p647 = scmp.ne.s32.totalorder %s633, %s634
      %p648 = scmp.eq.s32.totalorder %s54, 1
      %p649 = por %p647, %p648
      %p651 = scmp.ne.s32.totalorder %s634, %s650
      %p652 = scmp.eq.s32.totalorder %s54, 0
      %p653 = por %p651, %p652
      %s654 = ssub.s32 %s48, %s55
      %p655 = scmp.eq.s32.totalorder %s654, 0
      %s657 = sadd.s32 %s656, 1
      %s658 = scalar_select %p655, %s656, %s657
      %p661 = pneg %p655
      %p662 = scmp.eq.s32.totalorder %s48, 1
      %p663 = por %p661, %p662
      %p664 = scmp.ne.s32.totalorder %s656, %s659
      %p665 = scmp.eq.s32.totalorder %s48, 0
      %p666 = por %p664, %p665
      %p667 = scmp.ne.s32.totalorder %s656, %s659
      %p668 = scmp.eq.s32.totalorder %s53, 1
      %p669 = por %p667, %p668
      %p670 = scmp.ne.s32.totalorder %s659, %s660
      %p671 = scmp.eq.s32.totalorder %s53, 0
      %p672 = por %p670, %p671
      %p673 = scmp.ne.s32.totalorder %s659, %s660
      %p674 = scmp.eq.s32.totalorder %s54, 1
      %p675 = por %p673, %p674
      %p677 = scmp.ne.s32.totalorder %s660, %s676
      %p678 = scmp.eq.s32.totalorder %s54, 0
      %p679 = por %p677, %p678
      %p680 = scmp.le.s32.totalorder 1, %s48
      %p681 = scmp.lt.s32.totalorder %s48, 3
      %p682 = pnand %p680, %p681
      %p683 = pneg %p682
      // Predicated region
      $region9: #{dlv3p_forward.1} parent=5 // pred_check
        _
      $region10: #{dlv3p_forward.1} parent=5 // pred_check_branch
        %685 = sbr.rel (%p682) target = $region12
      $region11: #{dlv3p_forward.1} parent=5 // pred_region
        %s686 = ssub.s32 %s48, 1
        // Predicated region
        $region13: #{dlv3p_forward.1} parent=11 // pred_check
          %p687 = pneg %p95
        $region14: #{dlv3p_forward.1} parent=11 // pred_check_branch
          %689 = sbr.rel (%p687) target = $region16
        $region15: #{dlv3p_forward.1} parent=11 // pred_region
          %691 = vsyncadd [#allocation3], 0
          %s692 = sshll.u32 %s1, 4
          %s693 = int_to_ptr.hbm [resolvable:$true] %s692
          %s694 = sshll.u32 [#allocation2], 4
          %s695 = int_to_ptr.vmem [resolvable:$true] %s694
          %700 = dma.hbm_to_vmem [thread:$0]  %s693, 18432, %s695, [#allocation3], 64, 64, 4
        $region16: #{dlv3p_forward.1} parent=11 // pred_fallthru
          _
        // Predicated region
        $region17: #{dlv3p_forward.1} parent=11 // pred_check
          %p701 = pneg %p116
        $region18: #{dlv3p_forward.1} parent=11 // pred_check_branch
          %703 = sbr.rel (%p701) target = $region20
        $region19: #{dlv3p_forward.1} parent=11 // pred_region
          _
        $region20: #{dlv3p_forward.1} parent=11 // pred_fallthru
          _
        // Predicated region
        $region21: #{dlv3p_forward.1} parent=11 // pred_check
          %p704 = pneg %p137
        $region22: #{dlv3p_forward.1} parent=11 // pred_check_branch
          %706 = sbr.rel (%p704) target = $region24
        $region23: #{dlv3p_forward.1} parent=11 // pred_region
          %708 = vsyncadd [#allocation5], 0
          %s709 = sshll.u32 %s3, 4
          %s710 = int_to_ptr.hbm [resolvable:$true] %s709
          %s711 = sshll.u32 [#allocation4], 4
          %s712 = int_to_ptr.vmem [resolvable:$true] %s711
          %717 = dma.hbm_to_vmem [thread:$0]  %s710, 256, %s712, [#allocation5], 128, 128, 8
        $region24: #{dlv3p_forward.1} parent=11 // pred_fallthru
          _
        // Predicated region
        $region25: #{dlv3p_forward.1} parent=11 // pred_check
          %p718 = pneg %p158
        $region26: #{dlv3p_forward.1} parent=11 // pred_check_branch
          %720 = sbr.rel (%p718) target = $region28
        $region27: #{dlv3p_forward.1} parent=11 // pred_region
          %722 = vsyncadd [#allocation5], 0
          %s723 = sshll.u32 %s4, 4
          %s724 = int_to_ptr.hbm [resolvable:$true] %s723
          %s725 = sshll.u32 [#allocation6], 4
          %s726 = int_to_ptr.vmem [resolvable:$true] %s725
          %731 = dma.hbm_to_vmem [thread:$0]  %s724, 4608, %s726, [#allocation5], 64, 64, 4
        $region28: #{dlv3p_forward.1} parent=11 // pred_fallthru
          _
        // Predicated region
        $region29: #{dlv3p_forward.1} parent=11 // pred_check
          %p732 = pneg %p179
        $region30: #{dlv3p_forward.1} parent=11 // pred_check_branch
          %734 = sbr.rel (%p732) target = $region32
        $region31: #{dlv3p_forward.1} parent=11 // pred_region
          %736 = vsyncadd [#allocation8], 0
          %s737 = sshll.u32 %s5, 4
          %s738 = int_to_ptr.hbm [resolvable:$true] %s737
          %s739 = sshll.u32 [#allocation7], 4
          %s740 = int_to_ptr.vmem [resolvable:$true] %s739
          %745 = dma.hbm_to_vmem [thread:$0]  %s738, 2304, %s740, [#allocation8], 64, 64, 4
        $region32: #{dlv3p_forward.1} parent=11 // pred_fallthru
          _
        // Predicated region
        $region33: #{dlv3p_forward.1} parent=11 // pred_check
          %p746 = pneg %p200
        $region34: #{dlv3p_forward.1} parent=11 // pred_check_branch
          %748 = sbr.rel (%p746) target = $region36
        $region35: #{dlv3p_forward.1} parent=11 // pred_region
          %750 = vsyncadd [#allocation8], 0
          %s751 = sshll.u32 %s6, 4
          %s752 = int_to_ptr.hbm [resolvable:$true] %s751
          %s753 = sshll.u32 [#allocation9], 4
          %s754 = int_to_ptr.vmem [resolvable:$true] %s753
          %759 = dma.hbm_to_vmem [thread:$0]  %s752, 512, %s754, [#allocation8], 128, 128, 8
        $region36: #{dlv3p_forward.1} parent=11 // pred_fallthru
          _
        // Predicated region
        $region37: #{dlv3p_forward.1} parent=11 // pred_check
          %p760 = pneg %p221
        $region38: #{dlv3p_forward.1} parent=11 // pred_check_branch
          %762 = sbr.rel (%p760) target = $region40
        $region39: #{dlv3p_forward.1} parent=11 // pred_region
          %764 = vsyncadd [#allocation11], 0
          %s765 = sshll.u32 %s7, 4
          %s766 = int_to_ptr.hbm [resolvable:$true] %s765
          %s767 = sshll.u32 [#allocation10], 4
          %s768 = int_to_ptr.vmem [resolvable:$true] %s767
          %773 = dma.hbm_to_vmem [thread:$0]  %s766, 1152, %s768, [#allocation11], 64, 64, 4
        $region40: #{dlv3p_forward.1} parent=11 // pred_fallthru
          _
        // Predicated region
        $region41: #{dlv3p_forward.1} parent=11 // pred_check
          %p774 = pneg %p242
        $region42: #{dlv3p_forward.1} parent=11 // pred_check_branch
          %776 = sbr.rel (%p774) target = $region44
        $region43: #{dlv3p_forward.1} parent=11 // pred_region
          %778 = vsyncadd [#allocation11], 0
          %s779 = sshll.u32 %s8, 4
          %s780 = int_to_ptr.hbm [resolvable:$true] %s779
          %s781 = sshll.u32 [#allocation12], 4
          %s782 = int_to_ptr.vmem [resolvable:$true] %s781
          %787 = dma.hbm_to_vmem [thread:$0]  %s780, 4608, %s782, [#allocation11], 64, 64, 4
        $region44: #{dlv3p_forward.1} parent=11 // pred_fallthru
          _
        // Predicated region
        $region45: #{dlv3p_forward.1} parent=11 // pred_check
          %p788 = pneg %p263
        $region46: #{dlv3p_forward.1} parent=11 // pred_check_branch
          %790 = sbr.rel (%p788) target = $region48
        $region47: #{dlv3p_forward.1} parent=11 // pred_region
          _
        $region48: #{dlv3p_forward.1} parent=11 // pred_fallthru
          _
        // Predicated region
        $region49: #{dlv3p_forward.1} parent=11 // pred_check
          %p791 = pneg %p284
        $region50: #{dlv3p_forward.1} parent=11 // pred_check_branch
          %793 = sbr.rel (%p791) target = $region52
        $region51: #{dlv3p_forward.1} parent=11 // pred_region
          %795 = vsyncadd [#allocation14], 0
          %s796 = sshll.u32 %s10, 4
          %s797 = int_to_ptr.hbm [resolvable:$true] %s796
          %s798 = sshll.u32 [#allocation13], 4
          %s799 = int_to_ptr.vmem [resolvable:$true] %s798
          %804 = dma.hbm_to_vmem [thread:$0]  %s797, 256, %s799, [#allocation14], 64, 64, 4
        $region52: #{dlv3p_forward.1} parent=11 // pred_fallthru
          _
        // Predicated region
        $region53: #{dlv3p_forward.1} parent=11 // pred_check
          %p805 = pneg %p305
        $region54: #{dlv3p_forward.1} parent=11 // pred_check_branch
          %807 = sbr.rel (%p805) target = $region56
        $region55: #{dlv3p_forward.1} parent=11 // pred_region
          %809 = vsyncadd [#allocation14], 0
          %s810 = sshll.u32 %s11, 4
          %s811 = int_to_ptr.hbm [resolvable:$true] %s810
          %s812 = sshll.u32 [#allocation15], 4
          %s813 = int_to_ptr.vmem [resolvable:$true] %s812
          %818 = dma.hbm_to_vmem [thread:$0]  %s811, 512, %s813, [#allocation14], 128, 128, 8
        $region56: #{dlv3p_forward.1} parent=11 // pred_fallthru
          _
        // Predicated region
        $region57: #{dlv3p_forward.1} parent=11 // pred_check
          %p819 = pneg %p326
        $region58: #{dlv3p_forward.1} parent=11 // pred_check_branch
          %821 = sbr.rel (%p819) target = $region60
        $region59: #{dlv3p_forward.1} parent=11 // pred_region
          %823 = vsyncadd [#allocation17], 0
          %s824 = sshll.u32 %s12, 4
          %s825 = int_to_ptr.hbm [resolvable:$true] %s824
          %s826 = sshll.u32 [#allocation16], 4
          %s827 = int_to_ptr.vmem [resolvable:$true] %s826
          %832 = dma.hbm_to_vmem [thread:$0]  %s825, 256, %s827, [#allocation17], 64, 64, 4
        $region60: #{dlv3p_forward.1} parent=11 // pred_fallthru
          _
        // Predicated region
        $region61: #{dlv3p_forward.1} parent=11 // pred_check
          %p833 = pneg %p347
        $region62: #{dlv3p_forward.1} parent=11 // pred_check_branch
          %835 = sbr.rel (%p833) target = $region64
        $region63: #{dlv3p_forward.1} parent=11 // pred_region
          %837 = vsyncadd [#allocation17], 0
          %s838 = sshll.u32 %s13, 4
          %s839 = int_to_ptr.hbm [resolvable:$true] %s838
          %s840 = sshll.u32 [#allocation18], 4
          %s841 = int_to_ptr.vmem [resolvable:$true] %s840
          %846 = dma.hbm_to_vmem [thread:$0]  %s839, 512, %s841, [#allocation17], 128, 128, 8
        $region64: #{dlv3p_forward.1} parent=11 // pred_fallthru
          _
        // Predicated region
        $region65: #{dlv3p_forward.1} parent=11 // pred_check
          %p847 = pneg %p368
        $region66: #{dlv3p_forward.1} parent=11 // pred_check_branch
          %849 = sbr.rel (%p847) target = $region68
        $region67: #{dlv3p_forward.1} parent=11 // pred_region
          %851 = vsyncadd [#allocation20], 0
          %s852 = sshll.u32 %s14, 4
          %s853 = int_to_ptr.hbm [resolvable:$true] %s852
          %s854 = sshll.u32 [#allocation19], 4
          %s855 = int_to_ptr.vmem [resolvable:$true] %s854
          %860 = dma.hbm_to_vmem [thread:$0]  %s853, 256, %s855, [#allocation20], 64, 64, 4
        $region68: #{dlv3p_forward.1} parent=11 // pred_fallthru
          _
        // Predicated region
        $region69: #{dlv3p_forward.1} parent=11 // pred_check
          %p861 = pneg %p389
        $region70: #{dlv3p_forward.1} parent=11 // pred_check_branch
          %863 = sbr.rel (%p861) target = $region72
        $region71: #{dlv3p_forward.1} parent=11 // pred_region
          %865 = vsyncadd [#allocation20], 0
          %s866 = sshll.u32 %s15, 4
          %s867 = int_to_ptr.hbm [resolvable:$true] %s866
          %s868 = sshll.u32 [#allocation21], 4
          %s869 = int_to_ptr.vmem [resolvable:$true] %s868
          %874 = dma.hbm_to_vmem [thread:$0]  %s867, 256, %s869, [#allocation20], 64, 64, 4
        $region72: #{dlv3p_forward.1} parent=11 // pred_fallthru
          _
        // Predicated region
        $region73: #{dlv3p_forward.1} parent=11 // pred_check
          %p875 = pneg %p410
        $region74: #{dlv3p_forward.1} parent=11 // pred_check_branch
          %877 = sbr.rel (%p875) target = $region76
        $region75: #{dlv3p_forward.1} parent=11 // pred_region
          %879 = vsyncadd [#allocation23], 0
          %s880 = sshll.u32 %s16, 4
          %s881 = int_to_ptr.hbm [resolvable:$true] %s880
          %s882 = sshll.u32 [#allocation22], 4
          %s883 = int_to_ptr.vmem [resolvable:$true] %s882
          %888 = dma.hbm_to_vmem [thread:$0]  %s881, 512, %s883, [#allocation23], 128, 128, 8
        $region76: #{dlv3p_forward.1} parent=11 // pred_fallthru
          _
        // Predicated region
        $region77: #{dlv3p_forward.1} parent=11 // pred_check
          %p889 = pneg %p431
        $region78: #{dlv3p_forward.1} parent=11 // pred_check_branch
          %891 = sbr.rel (%p889) target = $region80
        $region79: #{dlv3p_forward.1} parent=11 // pred_region
          %893 = vsyncadd [#allocation23], 0
          %s895 = sshll.u32 %s17, 4
          %s896 = int_to_ptr.hbm [resolvable:$true] %s895
          %s897 = sshll.u32 [#allocation24], 4
          %s898 = int_to_ptr.vmem [resolvable:$true] %s897
          %900 = dma.hbm_to_vmem [thread:$0]  %s896, 64, %s898, [#allocation23]
        $region80: #{dlv3p_forward.1} parent=11 // pred_fallthru
          _
        // Predicated region
        $region81: #{dlv3p_forward.1} parent=11 // pred_check
          %p901 = pneg %p452
        $region82: #{dlv3p_forward.1} parent=11 // pred_check_branch
          %903 = sbr.rel (%p901) target = $region84
        $region83: #{dlv3p_forward.1} parent=11 // pred_region
          %905 = vsyncadd [#allocation26], 0
          %s907 = sshll.u32 %s18, 4
          %s908 = int_to_ptr.hbm [resolvable:$true] %s907
          %s909 = sshll.u32 [#allocation25], 4
          %s910 = int_to_ptr.vmem [resolvable:$true] %s909
          %912 = dma.hbm_to_vmem [thread:$0]  %s908, 128, %s910, [#allocation26]
        $region84: #{dlv3p_forward.1} parent=11 // pred_fallthru
          _
        // Predicated region
        $region85: #{dlv3p_forward.1} parent=11 // pred_check
          %p913 = pneg %p473
        $region86: #{dlv3p_forward.1} parent=11 // pred_check_branch
          %915 = sbr.rel (%p913) target = $region88
        $region87: #{dlv3p_forward.1} parent=11 // pred_region
          %917 = vsyncadd [#allocation26], 0
          %s919 = sshll.u32 %s19, 4
          %s920 = int_to_ptr.hbm [resolvable:$true] %s919
          %s921 = sshll.u32 [#allocation27], 4
          %s922 = int_to_ptr.vmem [resolvable:$true] %s921
          %924 = dma.hbm_to_vmem [thread:$0]  %s920, 32, %s922, [#allocation26]
        $region88: #{dlv3p_forward.1} parent=11 // pred_fallthru
          _
        // Predicated region
        $region89: #{dlv3p_forward.1} parent=11 // pred_check
          %p925 = pneg %p494
        $region90: #{dlv3p_forward.1} parent=11 // pred_check_branch
          %927 = sbr.rel (%p925) target = $region92
        $region91: #{dlv3p_forward.1} parent=11 // pred_region
          %929 = vsyncadd [#allocation29], 0
          %s930 = sshll.u32 %s20, 4
          %s931 = int_to_ptr.hbm [resolvable:$true] %s930
          %s932 = sshll.u32 [#allocation28], 4
          %s933 = int_to_ptr.vmem [resolvable:$true] %s932
          %938 = dma.hbm_to_vmem [thread:$0]  %s931, 1152, %s933, [#allocation29], 64, 64, 4
        $region92: #{dlv3p_forward.1} parent=11 // pred_fallthru
          _
        // Predicated region
        $region93: #{dlv3p_forward.1} parent=11 // pred_check
          %p939 = pneg %p515
        $region94: #{dlv3p_forward.1} parent=11 // pred_check_branch
          %941 = sbr.rel (%p939) target = $region96
        $region95: #{dlv3p_forward.1} parent=11 // pred_region
          %943 = vsyncadd [#allocation29], 0
          %s944 = sshll.u32 %s21, 4
          %s945 = int_to_ptr.hbm [resolvable:$true] %s944
          %s946 = sshll.u32 [#allocation30], 4
          %s947 = int_to_ptr.vmem [resolvable:$true] %s946
          %952 = dma.hbm_to_vmem [thread:$0]  %s945, 2304, %s947, [#allocation29], 64, 64, 4
        $region96: #{dlv3p_forward.1} parent=11 // pred_fallthru
          _
        // Predicated region
        $region97: #{dlv3p_forward.1} parent=11 // pred_check
          %p953 = pneg %p536
        $region98: #{dlv3p_forward.1} parent=11 // pred_check_branch
          %955 = sbr.rel (%p953) target = $region100
        $region99: #{dlv3p_forward.1} parent=11 // pred_region
          %957 = vsyncadd [#allocation32], 0
          %s958 = sshll.u32 %s22, 4
          %s959 = int_to_ptr.hbm [resolvable:$true] %s958
          %s960 = sshll.u32 [#allocation31], 4
          %s961 = int_to_ptr.vmem [resolvable:$true] %s960
          %966 = dma.hbm_to_vmem [thread:$0]  %s959, 512, %s961, [#allocation32], 128, 128, 8
        $region100: #{dlv3p_forward.1} parent=11 // pred_fallthru
          _
        // Predicated region
        $region101: #{dlv3p_forward.1} parent=11 // pred_check
          %p967 = pneg %p557
        $region102: #{dlv3p_forward.1} parent=11 // pred_check_branch
          %969 = sbr.rel (%p967) target = $region104
        $region103: #{dlv3p_forward.1} parent=11 // pred_region
          %971 = vsyncadd [#allocation32], 0
          %s972 = sshll.u32 %s23, 4
          %s973 = int_to_ptr.hbm [resolvable:$true] %s972
          %s974 = sshll.u32 [#allocation33], 4
          %s975 = int_to_ptr.vmem [resolvable:$true] %s974
          %980 = dma.hbm_to_vmem [thread:$0]  %s973, 192, %s975, [#allocation32], 64, 64, 4
        $region104: #{dlv3p_forward.1} parent=11 // pred_fallthru
          _
        // Predicated region
        $region105: #{dlv3p_forward.1} parent=11 // pred_check
          %p981 = pneg %p578
        $region106: #{dlv3p_forward.1} parent=11 // pred_check_branch
          %983 = sbr.rel (%p981) target = $region108
        $region107: #{dlv3p_forward.1} parent=11 // pred_region
          %985 = vsyncadd [#allocation35], 0
          %s986 = sshll.u32 %s24, 4
          %s987 = int_to_ptr.hbm [resolvable:$true] %s986
          %s988 = sshll.u32 [#allocation34], 4
          %s989 = int_to_ptr.vmem [resolvable:$true] %s988
          %994 = dma.hbm_to_vmem [thread:$0]  %s987, 384, %s989, [#allocation35], 128, 128, 8
        $region108: #{dlv3p_forward.1} parent=11 // pred_fallthru
          _
        // Predicated region
        $region109: #{dlv3p_forward.1} parent=11 // pred_check
          %p995 = pneg %p599
        $region110: #{dlv3p_forward.1} parent=11 // pred_check_branch
          %997 = sbr.rel (%p995) target = $region112
        $region111: #{dlv3p_forward.1} parent=11 // pred_region
          %999 = vsyncadd [#allocation35], 0
          %s1001 = sshll.u32 %s25, 4
          %s1002 = int_to_ptr.hbm [resolvable:$true] %s1001
          %s1003 = sshll.u32 [#allocation36], 4
          %s1004 = int_to_ptr.vmem [resolvable:$true] %s1003
          %1006 = dma.hbm_to_vmem [thread:$0]  %s1002, 32, %s1004, [#allocation35]
        $region112: #{dlv3p_forward.1} parent=11 // pred_fallthru
          _
        // Predicated region
        $region113: #{dlv3p_forward.1} parent=11 // pred_check
          %p1007 = pneg %p620
        $region114: #{dlv3p_forward.1} parent=11 // pred_check_branch
          %1009 = sbr.rel (%p1007) target = $region116
        $region115: #{dlv3p_forward.1} parent=11 // pred_region
          %1011 = vsyncadd [#allocation38], 0
          %s1012 = sshll.u32 %s26, 4
          %s1013 = int_to_ptr.hbm [resolvable:$true] %s1012
          %s1014 = sshll.u32 [#allocation37], 4
          %s1015 = int_to_ptr.vmem [resolvable:$true] %s1014
          %1020 = dma.hbm_to_vmem [thread:$0]  %s1013, 256, %s1015, [#allocation38], 128, 128, 8
        $region116: #{dlv3p_forward.1} parent=11 // pred_fallthru
          _
      $region12: #{dlv3p_forward.1} parent=5 // pred_fallthru
        _
      %p1021 = scmp.lt.s32.totalorder %s48, 2
      // Predicated region
      $region117: #{dlv3p_forward.1} parent=5 // pred_check
        %p1022 = pneg %p1021
      $region118: #{dlv3p_forward.1} parent=5 // pred_check_branch
        %1024 = sbr.rel (%p1022) target = $region120
      $region119: #{dlv3p_forward.1} parent=5 // pred_region
        // Predicated region
        $region121: #{dlv3p_forward.1} parent=119 // pred_check
          %p1025 = pneg %p68
        $region122: #{dlv3p_forward.1} parent=119 // pred_check_branch
          %1027 = sbr.rel (%p1025) target = $region124
        $region123: #{dlv3p_forward.1} parent=119 // pred_region
          %p1028 = scmp.lt.s32.totalorder %s48, 1
          %s1029 = scalar_select %p1028, %s48, 1
          %s1030 = smul.addr %s1029, 2
          %s1031 = smul.addr %s1030, 4
          %s1032 = scalar_lea.vmem %s0, %s1031
        $region124: #{dlv3p_forward.1} parent=119 // pred_fallthru
          _
      $region120: #{dlv3p_forward.1} parent=5 // pred_fallthru
        _
      %p1033 = scmp.le.s32.totalorder 1, %s48
      %p1034 = scmp.lt.s32.totalorder %s48, 3
      %p1035 = pnand %p1033, %p1034
      %p1036 = pneg %p1035
      // Predicated region
      $region125: #{dlv3p_forward.1} parent=5 // pred_check
        _
      $region126: #{dlv3p_forward.1} parent=5 // pred_check_branch
        %1038 = sbr.rel (%p1035) target = $region128
      $region127: #{dlv3p_forward.1} parent=5 // pred_region
        %s1039 = ssub.s32 %s48, 1
        // Predicated region
        $region129: #{dlv3p_forward.1} parent=127 // pred_check
          %p1040 = pneg %p95
        $region130: #{dlv3p_forward.1} parent=127 // pred_check_branch
          %1042 = sbr.rel (%p1040) target = $region132
        $region131: #{dlv3p_forward.1} parent=127 // pred_region
          %1044 = dma.done [#allocation3], 18432
        $region132: #{dlv3p_forward.1} parent=127 // pred_fallthru
          _
        // Predicated region
        $region133: #{dlv3p_forward.1} parent=127 // pred_check
          %p1045 = pneg %p137
        $region134: #{dlv3p_forward.1} parent=127 // pred_check_branch
          %1047 = sbr.rel (%p1045) target = $region136
        $region135: #{dlv3p_forward.1} parent=127 // pred_region
          %1049 = dma.done [#allocation5], 256
        $region136: #{dlv3p_forward.1} parent=127 // pred_fallthru
          _
        // Predicated region
        $region137: #{dlv3p_forward.1} parent=127 // pred_check
          %p1050 = pneg %p158
        $region138: #{dlv3p_forward.1} parent=127 // pred_check_branch
          %1052 = sbr.rel (%p1050) target = $region140
        $region139: #{dlv3p_forward.1} parent=127 // pred_region
          %1054 = dma.done [#allocation5], 4608
        $region140: #{dlv3p_forward.1} parent=127 // pred_fallthru
          _
        // Predicated region
        $region141: #{dlv3p_forward.1} parent=127 // pred_check
          %p1055 = pneg %p179
        $region142: #{dlv3p_forward.1} parent=127 // pred_check_branch
          %1057 = sbr.rel (%p1055) target = $region144
        $region143: #{dlv3p_forward.1} parent=127 // pred_region
          %1059 = dma.done [#allocation8], 2304
        $region144: #{dlv3p_forward.1} parent=127 // pred_fallthru
          _
        // Predicated region
        $region145: #{dlv3p_forward.1} parent=127 // pred_check
          %p1060 = pneg %p200
        $region146: #{dlv3p_forward.1} parent=127 // pred_check_branch
          %1062 = sbr.rel (%p1060) target = $region148
        $region147: #{dlv3p_forward.1} parent=127 // pred_region
          %1064 = dma.done [#allocation8], 512
        $region148: #{dlv3p_forward.1} parent=127 // pred_fallthru
          _
        // Predicated region
        $region149: #{dlv3p_forward.1} parent=127 // pred_check
          %p1065 = pneg %p221
        $region150: #{dlv3p_forward.1} parent=127 // pred_check_branch
          %1067 = sbr.rel (%p1065) target = $region152
        $region151: #{dlv3p_forward.1} parent=127 // pred_region
          %1069 = dma.done [#allocation11], 1152
        $region152: #{dlv3p_forward.1} parent=127 // pred_fallthru
          _
        // Predicated region
        $region153: #{dlv3p_forward.1} parent=127 // pred_check
          %p1070 = pneg %p242
        $region154: #{dlv3p_forward.1} parent=127 // pred_check_branch
          %1072 = sbr.rel (%p1070) target = $region156
        $region155: #{dlv3p_forward.1} parent=127 // pred_region
          %1074 = dma.done [#allocation11], 4608
        $region156: #{dlv3p_forward.1} parent=127 // pred_fallthru
          _
        // Predicated region
        $region157: #{dlv3p_forward.1} parent=127 // pred_check
          %p1075 = pneg %p284
        $region158: #{dlv3p_forward.1} parent=127 // pred_check_branch
          %1077 = sbr.rel (%p1075) target = $region160
        $region159: #{dlv3p_forward.1} parent=127 // pred_region
          %1079 = dma.done [#allocation14], 256
        $region160: #{dlv3p_forward.1} parent=127 // pred_fallthru
          _
        // Predicated region
        $region161: #{dlv3p_forward.1} parent=127 // pred_check
          %p1080 = pneg %p305
        $region162: #{dlv3p_forward.1} parent=127 // pred_check_branch
          %1082 = sbr.rel (%p1080) target = $region164
        $region163: #{dlv3p_forward.1} parent=127 // pred_region
          %1084 = dma.done [#allocation14], 512
        $region164: #{dlv3p_forward.1} parent=127 // pred_fallthru
          _
        // Predicated region
        $region165: #{dlv3p_forward.1} parent=127 // pred_check
          %p1085 = pneg %p326
        $region166: #{dlv3p_forward.1} parent=127 // pred_check_branch
          %1087 = sbr.rel (%p1085) target = $region168
        $region167: #{dlv3p_forward.1} parent=127 // pred_region
          %1089 = dma.done [#allocation17], 256
        $region168: #{dlv3p_forward.1} parent=127 // pred_fallthru
          _
        // Predicated region
        $region169: #{dlv3p_forward.1} parent=127 // pred_check
          %p1090 = pneg %p347
        $region170: #{dlv3p_forward.1} parent=127 // pred_check_branch
          %1092 = sbr.rel (%p1090) target = $region172
        $region171: #{dlv3p_forward.1} parent=127 // pred_region
          %1094 = dma.done [#allocation17], 512
        $region172: #{dlv3p_forward.1} parent=127 // pred_fallthru
          _
        // Predicated region
        $region173: #{dlv3p_forward.1} parent=127 // pred_check
          %p1095 = pneg %p368
        $region174: #{dlv3p_forward.1} parent=127 // pred_check_branch
          %1097 = sbr.rel (%p1095) target = $region176
        $region175: #{dlv3p_forward.1} parent=127 // pred_region
          %1099 = dma.done [#allocation20], 256
        $region176: #{dlv3p_forward.1} parent=127 // pred_fallthru
          _
        // Predicated region
        $region177: #{dlv3p_forward.1} parent=127 // pred_check
          %p1100 = pneg %p389
        $region178: #{dlv3p_forward.1} parent=127 // pred_check_branch
          %1102 = sbr.rel (%p1100) target = $region180
        $region179: #{dlv3p_forward.1} parent=127 // pred_region
          %1104 = dma.done [#allocation20], 256
        $region180: #{dlv3p_forward.1} parent=127 // pred_fallthru
          _
        // Predicated region
        $region181: #{dlv3p_forward.1} parent=127 // pred_check
          %p1105 = pneg %p410
        $region182: #{dlv3p_forward.1} parent=127 // pred_check_branch
          %1107 = sbr.rel (%p1105) target = $region184
        $region183: #{dlv3p_forward.1} parent=127 // pred_region
          %1109 = dma.done [#allocation23], 512
        $region184: #{dlv3p_forward.1} parent=127 // pred_fallthru
          _
        // Predicated region
        $region185: #{dlv3p_forward.1} parent=127 // pred_check
          %p1110 = pneg %p431
        $region186: #{dlv3p_forward.1} parent=127 // pred_check_branch
          %1112 = sbr.rel (%p1110) target = $region188
        $region187: #{dlv3p_forward.1} parent=127 // pred_region
          %1114 = dma.done [#allocation23], 64
        $region188: #{dlv3p_forward.1} parent=127 // pred_fallthru
          _
        // Predicated region
        $region189: #{dlv3p_forward.1} parent=127 // pred_check
          %p1115 = pneg %p452
        $region190: #{dlv3p_forward.1} parent=127 // pred_check_branch
          %1117 = sbr.rel (%p1115) target = $region192
        $region191: #{dlv3p_forward.1} parent=127 // pred_region
          %1119 = dma.done [#allocation26], 128
        $region192: #{dlv3p_forward.1} parent=127 // pred_fallthru
          _
        // Predicated region
        $region193: #{dlv3p_forward.1} parent=127 // pred_check
          %p1120 = pneg %p473
        $region194: #{dlv3p_forward.1} parent=127 // pred_check_branch
          %1122 = sbr.rel (%p1120) target = $region196
        $region195: #{dlv3p_forward.1} parent=127 // pred_region
          %1124 = dma.done [#allocation26], 32
        $region196: #{dlv3p_forward.1} parent=127 // pred_fallthru
          _
        // Predicated region
        $region197: #{dlv3p_forward.1} parent=127 // pred_check
          %p1125 = pneg %p494
        $region198: #{dlv3p_forward.1} parent=127 // pred_check_branch
          %1127 = sbr.rel (%p1125) target = $region200
        $region199: #{dlv3p_forward.1} parent=127 // pred_region
          %1129 = dma.done [#allocation29], 1152
        $region200: #{dlv3p_forward.1} parent=127 // pred_fallthru
          _
        // Predicated region
        $region201: #{dlv3p_forward.1} parent=127 // pred_check
          %p1130 = pneg %p515
        $region202: #{dlv3p_forward.1} parent=127 // pred_check_branch
          %1132 = sbr.rel (%p1130) target = $region204
        $region203: #{dlv3p_forward.1} parent=127 // pred_region
          %1134 = dma.done [#allocation29], 2304
        $region204: #{dlv3p_forward.1} parent=127 // pred_fallthru
          _
        // Predicated region
        $region205: #{dlv3p_forward.1} parent=127 // pred_check
          %p1135 = pneg %p536
        $region206: #{dlv3p_forward.1} parent=127 // pred_check_branch
          %1137 = sbr.rel (%p1135) target = $region208
        $region207: #{dlv3p_forward.1} parent=127 // pred_region
          %1139 = dma.done [#allocation32], 512
        $region208: #{dlv3p_forward.1} parent=127 // pred_fallthru
          _
        // Predicated region
        $region209: #{dlv3p_forward.1} parent=127 // pred_check
          %p1140 = pneg %p557
        $region210: #{dlv3p_forward.1} parent=127 // pred_check_branch
          %1142 = sbr.rel (%p1140) target = $region212
        $region211: #{dlv3p_forward.1} parent=127 // pred_region
          %1144 = dma.done [#allocation32], 192
        $region212: #{dlv3p_forward.1} parent=127 // pred_fallthru
          _
        // Predicated region
        $region213: #{dlv3p_forward.1} parent=127 // pred_check
          %p1145 = pneg %p578
        $region214: #{dlv3p_forward.1} parent=127 // pred_check_branch
          %1147 = sbr.rel (%p1145) target = $region216
        $region215: #{dlv3p_forward.1} parent=127 // pred_region
          %1149 = dma.done [#allocation35], 384
        $region216: #{dlv3p_forward.1} parent=127 // pred_fallthru
          _
        // Predicated region
        $region217: #{dlv3p_forward.1} parent=127 // pred_check
          %p1150 = pneg %p599
        $region218: #{dlv3p_forward.1} parent=127 // pred_check_branch
          %1152 = sbr.rel (%p1150) target = $region220
        $region219: #{dlv3p_forward.1} parent=127 // pred_region
          %1154 = dma.done [#allocation35], 32
        $region220: #{dlv3p_forward.1} parent=127 // pred_fallthru
          _
        // Predicated region
        $region221: #{dlv3p_forward.1} parent=127 // pred_check
          %p1155 = pneg %p620
        $region222: #{dlv3p_forward.1} parent=127 // pred_check_branch
          %1157 = sbr.rel (%p1155) target = $region224
        $region223: #{dlv3p_forward.1} parent=127 // pred_region
          %1159 = dma.done [#allocation38], 256
        $region224: #{dlv3p_forward.1} parent=127 // pred_fallthru
          _
        %p1160 = scmp.lt.s32.totalorder %s53, 1
        %s1161 = scalar_select %p1160, %s53, 1
        %s1162 = smul.addr %s1161, 2
        %s1163 = smul.addr %s1162, 4
        %s1164 = scalar_lea.vmem %s0, %s1163
        %p1165 = pneg %p74
        %p1166 = pneg %p71
        %p1167 = pneg %p95
        %p1168 = pneg %p92
        %p1169 = pneg %p116
        %p1170 = pneg %p113
        %p1171 = pneg %p137
        %p1172 = pneg %p134
        %p1173 = pneg %p158
        %p1174 = pneg %p155
        %p1175 = pneg %p179
        %p1176 = pneg %p176
        %p1177 = pneg %p200
        %p1178 = pneg %p197
        %p1179 = pneg %p221
        %p1180 = pneg %p218
        %p1181 = pneg %p242
        %p1182 = pneg %p239
        %p1183 = pneg %p263
        %p1184 = pneg %p260
        %p1185 = pneg %p284
        %p1186 = pneg %p281
        %p1187 = pneg %p305
        %p1188 = pneg %p302
        %p1189 = pneg %p326
        %p1190 = pneg %p323
        %p1191 = pneg %p347
        %p1192 = pneg %p344
        %p1193 = pneg %p368
        %p1194 = pneg %p365
        %p1195 = pneg %p389
        %p1196 = pneg %p386
        %p1197 = pneg %p410
        %p1198 = pneg %p407
        %p1199 = pneg %p431
        %p1200 = pneg %p428
        %p1201 = pneg %p452
        %p1202 = pneg %p449
        %p1203 = pneg %p473
        %p1204 = pneg %p470
        %p1205 = pneg %p494
        %p1206 = pneg %p491
        %p1207 = pneg %p515
        %p1208 = pneg %p512
        %p1209 = pneg %p536
        %p1210 = pneg %p533
        %p1211 = pneg %p557
        %p1212 = pneg %p554
        %p1213 = pneg %p578
        %p1214 = pneg %p575
        %p1215 = pneg %p599
        %p1216 = pneg %p596
        %p1217 = pneg %p620
        %p1218 = pneg %p617
        %p1219 = pneg %p646
        %p1220 = pneg %p643
        %p1221 = scmp.lt.s32.totalorder %s53, 1
        %s1222 = scalar_select %p1221, %s53, 1
        %s1223 = smul.addr %s1222, 2
        %s1224 = scalar_lea.vmem %s27, %s1223
        %p1225 = pneg %p672
        %p1226 = pneg %p669
        %p1227 = scmp.lt.s32.totalorder %s53, 1
        %s1228 = scalar_select %p1227, %s53, 1
        %s1229 = smul.addr %s1228, 2
        %s1230 = smul.addr %s1229, 4
        %s1231 = scalar_lea.vmem %s28, %s1230
        %p1232 = scmp.lt.s32.totalorder %s53, 1
        %s1233 = scalar_select %p1232, %s53, 1
        %s1234 = smul.addr %s1233, 2
        %s1235 = smul.addr %s1234, 4
        %s1236 = scalar_lea.vmem %s0, %s1235
        %p1237 = scmp.lt.s32.totalorder %s53, 1
        %s1238 = scalar_select %p1237, %s53, 1
        %s1239 = smul.addr %s1238, 2
        %s1240 = scalar_lea.vmem %s27, %s1239
        %p1241 = scmp.lt.s32.totalorder %s53, 1
        %s1242 = scalar_select %p1241, %s53, 1
        %s1243 = smul.addr %s1242, 2
        %s1244 = smul.addr %s1243, 4
        %s1245 = scalar_lea.vmem %s28, %s1244
        %v1247 = vld [vmem:[%s1236] sm:$0x77]
        %v1248 = vld [vmem:[#allocation4] sm:$0xff]
        %v1249 = vld [vmem:[#allocation4 + $0x8] sm:$0xff]
        %1251 = vst [vmem:[#allocation1] ss:$2 sm:$0xff] %v1247
        %v1252 = vld.sshfl [vmem:[#allocation1] sm:$0xff pattern:$0x75316420]
        %v1253 = vld.sshfl [vmem:[#allocation1 + $0x8] sm:$0xff pattern:$0x75316420]
        %v1256 = vpack.c.bf16 %v1252, %v1252
        %v1257 = vpack.c.bf16 %v1253, %v1253
        %v1258 = vld [vmem:[#allocation2] sm:$0xf]
        %v1259 = vld [vmem:[#allocation2 + $0x4] sm:$0xf]
        %v1260 = vld [vmem:[#allocation2 + $0x8] sm:$0xf]
        %v1261 = vld [vmem:[#allocation2 + $0xc] sm:$0xf]
        %v1262 = vld [vmem:[#allocation2 + $0x10] sm:$0xf]
        %v1263 = vld [vmem:[#allocation2 + $0x14] sm:$0xf]
        %v1264 = vld [vmem:[#allocation2 + $0x18] sm:$0xf]
        %v1265 = vld [vmem:[#allocation2 + $0x1c] sm:$0xf]
        %v1266 = vld [vmem:[#allocation2 + $0x20] sm:$0xf]
        %v1267 = vld [vmem:[#allocation2 + $0x24] sm:$0xf]
        %v1268 = vld [vmem:[#allocation2 + $0x28] sm:$0xf]
        %v1269 = vld [vmem:[#allocation2 + $0x2c] sm:$0xf]
        %v1270 = vld [vmem:[#allocation2 + $0x30] sm:$0xf]
        %v1271 = vld [vmem:[#allocation2 + $0x34] sm:$0xf]
        %v1272 = vld [vmem:[#allocation2 + $0x38] sm:$0xf]
        %v1273 = vld [vmem:[#allocation2 + $0x3c] sm:$0xf]
        %v1274 = vld [vmem:[#allocation2 + $0x40] sm:$0xf]
        %v1275 = vld [vmem:[#allocation2 + $0x44] sm:$0xf]
        %v1276 = vld [vmem:[#allocation2 + $0x48] sm:$0xf]
        %v1277 = vld [vmem:[#allocation2 + $0x4c] sm:$0xf]
        %v1278 = vld [vmem:[#allocation2 + $0x50] sm:$0xf]
        %v1279 = vld [vmem:[#allocation2 + $0x54] sm:$0xf]
        %v1280 = vld [vmem:[#allocation2 + $0x58] sm:$0xf]
        %v1281 = vld [vmem:[#allocation2 + $0x5c] sm:$0xf]
        %v1282 = vld [vmem:[#allocation2 + $0x60] sm:$0xf]
        %v1283 = vld [vmem:[#allocation2 + $0x64] sm:$0xf]
        %v1284 = vld [vmem:[#allocation2 + $0x68] sm:$0xf]
        %v1285 = vld [vmem:[#allocation2 + $0x6c] sm:$0xf]
        %v1286 = vld [vmem:[#allocation2 + $0x70] sm:$0xf]
        %v1287 = vld [vmem:[#allocation2 + $0x74] sm:$0xf]
        %v1288 = vld [vmem:[#allocation2 + $0x78] sm:$0xf]
        %v1289 = vld [vmem:[#allocation2 + $0x7c] sm:$0xf]
        %v1322 = vunpack.c.l.b16 %v1258
        %v1323 = vunpack.c.l.b16 %v1259
        %v1324 = vunpack.c.l.b16 %v1260
        %v1325 = vunpack.c.l.b16 %v1261
        %v1326 = vunpack.c.l.b16 %v1262
        %v1327 = vunpack.c.l.b16 %v1263
        %v1328 = vunpack.c.l.b16 %v1264
        %v1329 = vunpack.c.l.b16 %v1265
        %v1330 = vunpack.c.l.b16 %v1266
        %v1331 = vunpack.c.l.b16 %v1267
        %v1332 = vunpack.c.l.b16 %v1268
        %v1333 = vunpack.c.l.b16 %v1269
        %v1334 = vunpack.c.l.b16 %v1270
        %v1335 = vunpack.c.l.b16 %v1271
        %v1336 = vunpack.c.l.b16 %v1272
        %v1337 = vunpack.c.l.b16 %v1273
        %v1338 = vunpack.c.l.b16 %v1274
        %v1339 = vunpack.c.l.b16 %v1275
        %v1340 = vunpack.c.l.b16 %v1276
        %v1341 = vunpack.c.l.b16 %v1277
        %v1342 = vunpack.c.l.b16 %v1278
        %v1343 = vunpack.c.l.b16 %v1279
        %v1344 = vunpack.c.l.b16 %v1280
        %v1345 = vunpack.c.l.b16 %v1281
        %v1346 = vunpack.c.l.b16 %v1282
        %v1347 = vunpack.c.l.b16 %v1283
        %v1348 = vunpack.c.l.b16 %v1284
        %v1349 = vunpack.c.l.b16 %v1285
        %v1350 = vunpack.c.l.b16 %v1286
        %v1351 = vunpack.c.l.b16 %v1287
        %v1352 = vunpack.c.l.b16 %v1288
        %v1353 = vunpack.c.l.b16 %v1289
        %v1354 = vpack.c.b16 %v1323, %v1322
        %v1355 = vpack.c.b16 %v1325, %v1324
        %v1356 = vpack.c.b16 %v1327, %v1326
        %v1357 = vpack.c.b16 %v1329, %v1328
        %v1358 = vpack.c.b16 %v1331, %v1330
        %v1359 = vpack.c.b16 %v1333, %v1332
        %v1360 = vpack.c.b16 %v1335, %v1334
        %v1361 = vpack.c.b16 %v1337, %v1336
        %v1362 = vpack.c.b16 %v1339, %v1338
        %v1363 = vpack.c.b16 %v1341, %v1340
        %v1364 = vpack.c.b16 %v1343, %v1342
        %v1365 = vpack.c.b16 %v1345, %v1344
        %v1366 = vpack.c.b16 %v1347, %v1346
        %v1367 = vpack.c.b16 %v1349, %v1348
        %v1368 = vpack.c.b16 %v1351, %v1350
        %v1369 = vpack.c.b16 %v1353, %v1352
        %1386 = vmatpush.bf16.msra.mxu0 %v1361
        %1387 = vmatpush.bf16.msra.mxu0 %v1360
        %1388 = vmatpush.bf16.msra.mxu0 %v1359
        %1389 = vmatpush.bf16.msra.mxu0 %v1358
        %1390 = vmatpush.bf16.msra.mxu0 %v1357
        %1391 = vmatpush.bf16.msra.mxu0 %v1356
        %1392 = vmatpush.bf16.msra.mxu0 %v1355
        %1393 = vmatpush.bf16.msra.mxu0 %v1354
        %1394 = vmatmul.bf16.gmra.mxu0 %v1256
        %v1395 = vpop.f32.mrf.mxu0
        %v1396 = vadd.f32 0.0, %v1395
        %v1397 = vpop.f32.mrf.mxu0
        %1398 = vdwg.mxu0
        %1399 = vmatpush.bf16.msra.mxu0 %v1369
        %1400 = vmatpush.bf16.msra.mxu0 %v1368
        %1401 = vmatpush.bf16.msra.mxu0 %v1367
        %1402 = vmatpush.bf16.msra.mxu0 %v1366
        %1403 = vmatpush.bf16.msra.mxu0 %v1365
        %1404 = vmatpush.bf16.msra.mxu0 %v1364
        %1405 = vmatpush.bf16.msra.mxu0 %v1363
        %1406 = vmatpush.bf16.msra.mxu0 %v1362
        %1407 = vmatmul.bf16.gmra.mxu0 %v1257
        %v1408 = vpop.f32.mrf.mxu0
        %v1409 = vadd.f32 %v1396, %v1408
        %v1410 = vpop.f32.mrf.mxu0
        %1411 = vdwg.mxu0
        %v1412 = vld [vmem:[%s2] sm:$0xf]
        %v1413 = vld [vmem:[%s2 + $0x4] sm:$0xf]
        %v1414 = vpack.c.bf16 %v1409, %v1409
        %s1415 = scalar_lea.vmem [#allocation2], 128
        %v1416 = vld [vmem:[%s1415] sm:$0xf]
        %v1417 = vld [vmem:[%s1415 + $0x4] sm:$0xf]
        %v1418 = vld [vmem:[%s1415 + $0x8] sm:$0xf]
        %v1419 = vld [vmem:[%s1415 + $0xc] sm:$0xf]
        %v1420 = vld [vmem:[%s1415 + $0x10] sm:$0xf]
        %v1421 = vld [vmem:[%s1415 + $0x14] sm:$0xf]
        %v1422 = vld [vmem:[%s1415 + $0x18] sm:$0xf]
        %v1423 = vld [vmem:[%s1415 + $0x1c] sm:$0xf]
        %v1424 = vld [vmem:[%s1415 + $0x20] sm:$0xf]
        %v1425 = vld [vmem:[%s1415 + $0x24] sm:$0xf]
        %v1426 = vld [vmem:[%s1415 + $0x28] sm:$0xf]
        %v1427 = vld [vmem:[%s1415 + $0x2c] sm:$0xf]
        %v1428 = vld [vmem:[%s1415 + $0x30] sm:$0xf]
        %v1429 = vld [vmem:[%s1415 + $0x34] sm:$0xf]
        %v1430 = vld [vmem:[%s1415 + $0x38] sm:$0xf]
        %v1431 = vld [vmem:[%s1415 + $0x3c] sm:$0xf]
        %v1432 = vld [vmem:[%s1415 + $0x40] sm:$0xf]
        %v1433 = vld [vmem:[%s1415 + $0x44] sm:$0xf]
        %v1434 = vld [vmem:[%s1415 + $0x48] sm:$0xf]
        %v1435 = vld [vmem:[%s1415 + $0x4c] sm:$0xf]
        %v1436 = vld [vmem:[%s1415 + $0x50] sm:$0xf]
        %v1437 = vld [vmem:[%s1415 + $0x54] sm:$0xf]
        %v1438 = vld [vmem:[%s1415 + $0x58] sm:$0xf]
        %v1439 = vld [vmem:[%s1415 + $0x5c] sm:$0xf]
        %v1440 = vld [vmem:[%s1415 + $0x60] sm:$0xf]
        %v1441 = vld [vmem:[%s1415 + $0x64] sm:$0xf]
        %v1442 = vld [vmem:[%s1415 + $0x68] sm:$0xf]
        %v1443 = vld [vmem:[%s1415 + $0x6c] sm:$0xf]
        %v1444 = vld [vmem:[%s1415 + $0x70] sm:$0xf]
        %v1445 = vld [vmem:[%s1415 + $0x74] sm:$0xf]
        %v1446 = vld [vmem:[%s1415 + $0x78] sm:$0xf]
        %v1447 = vld [vmem:[%s1415 + $0x7c] sm:$0xf]
        %v1480 = vunpack.c.l.b16 %v1416
        %v1481 = vunpack.c.l.b16 %v1417
        %v1482 = vunpack.c.l.b16 %v1418
        %v1483 = vunpack.c.l.b16 %v1419
        %v1484 = vunpack.c.l.b16 %v1420
        %v1485 = vunpack.c.l.b16 %v1421
        %v1486 = vunpack.c.l.b16 %v1422
        %v1487 = vunpack.c.l.b16 %v1423
        %v1488 = vunpack.c.l.b16 %v1424
        %v1489 = vunpack.c.l.b16 %v1425
        %v1490 = vunpack.c.l.b16 %v1426
        %v1491 = vunpack.c.l.b16 %v1427
        %v1492 = vunpack.c.l.b16 %v1428
        %v1493 = vunpack.c.l.b16 %v1429
        %v1494 = vunpack.c.l.b16 %v1430
        %v1495 = vunpack.c.l.b16 %v1431
        %v1496 = vunpack.c.l.b16 %v1432
        %v1497 = vunpack.c.l.b16 %v1433
        %v1498 = vunpack.c.l.b16 %v1434
        %v1499 = vunpack.c.l.b16 %v1435
        %v1500 = vunpack.c.l.b16 %v1436
        %v1501 = vunpack.c.l.b16 %v1437
        %v1502 = vunpack.c.l.b16 %v1438
        %v1503 = vunpack.c.l.b16 %v1439
        %v1504 = vunpack.c.l.b16 %v1440
        %v1505 = vunpack.c.l.b16 %v1441
        %v1506 = vunpack.c.l.b16 %v1442
        %v1507 = vunpack.c.l.b16 %v1443
        %v1508 = vunpack.c.l.b16 %v1444
        %v1509 = vunpack.c.l.b16 %v1445
        %v1510 = vunpack.c.l.b16 %v1446
        %v1511 = vunpack.c.l.b16 %v1447
        %v1512 = vpack.c.b16 %v1481, %v1480
        %v1513 = vpack.c.b16 %v1483, %v1482
        %v1514 = vpack.c.b16 %v1485, %v1484
        %v1515 = vpack.c.b16 %v1487, %v1486
        %v1516 = vpack.c.b16 %v1489, %v1488
        %v1517 = vpack.c.b16 %v1491, %v1490
        %v1518 = vpack.c.b16 %v1493, %v1492
        %v1519 = vpack.c.b16 %v1495, %v1494
        %v1520 = vpack.c.b16 %v1497, %v1496
        %v1521 = vpack.c.b16 %v1499, %v1498
        %v1522 = vpack.c.b16 %v1501, %v1500
        %v1523 = vpack.c.b16 %v1503, %v1502
        %v1524 = vpack.c.b16 %v1505, %v1504
        %v1525 = vpack.c.b16 %v1507, %v1506
        %v1526 = vpack.c.b16 %v1509, %v1508
        %v1527 = vpack.c.b16 %v1511, %v1510
        %1544 = vmatpush.bf16.msra.mxu0 %v1519
        %1545 = vmatpush.bf16.msra.mxu0 %v1518
        %1546 = vmatpush.bf16.msra.mxu0 %v1517
        %1547 = vmatpush.bf16.msra.mxu0 %v1516
        %1548 = vmatpush.bf16.msra.mxu0 %v1515
        %1549 = vmatpush.bf16.msra.mxu0 %v1514
        %1550 = vmatpush.bf16.msra.mxu0 %v1513
        %1551 = vmatpush.bf16.msra.mxu0 %v1512
        %1552 = vmatmul.bf16.gmra.mxu0 %v1256
        %v1553 = vpop.f32.mrf.mxu0
        %v1554 = vadd.f32 0.0, %v1553
        %v1555 = vpop.f32.mrf.mxu0
        %1556 = vdwg.mxu0
        %1557 = vmatpush.bf16.msra.mxu0 %v1527
        %1558 = vmatpush.bf16.msra.mxu0 %v1526
        %1559 = vmatpush.bf16.msra.mxu0 %v1525
        %1560 = vmatpush.bf16.msra.mxu0 %v1524
        %1561 = vmatpush.bf16.msra.mxu0 %v1523
        %1562 = vmatpush.bf16.msra.mxu0 %v1522
        %1563 = vmatpush.bf16.msra.mxu0 %v1521
        %1564 = vmatpush.bf16.msra.mxu0 %v1520
        %1565 = vmatmul.bf16.gmra.mxu0 %v1257
        %v1566 = vpop.f32.mrf.mxu0
        %v1567 = vadd.f32 %v1554, %v1566
        %v1568 = vpop.f32.mrf.mxu0
        %1569 = vdwg.mxu0
        %v1570 = vld [vmem:[%s2 + $0x8] sm:$0xf]
        %v1571 = vld [vmem:[%s2 + $0xc] sm:$0xf]
        %v1572 = vpack.c.bf16 %v1567, %v1567
        %v1575 = vunpack.c.l.b16 %v1570
        %v1576 = vunpack.c.l.b16 %v1571
        %v1577 = vpack.c.b16 %v1576, %v1575
        %vm1578 = vcmask 23552
        %v1580 = vsel %vm1578, %v1577, 0
        %vm1582 = vcmask 1040384
        %vm1583 = vcmask 1041408
        %v1584 = vsel %vm1582, 4294967295, 65535
        %v1585 = vsel %vm1583, %v1584, 0
        %v1587 = vand.u32 %v1572, %v1585
        %1589 = vmatpush.bf16.msra.mxu0 0
        %1590 = vmatpush.bf16.msra.mxu0 0
        %1591 = vmatpush.bf16.msra.mxu0 0
        %1592 = vmatpush.bf16.msra.mxu0 0
        %1593 = vmatpush.bf16.msra.mxu0 0
        %1594 = vmatpush.bf16.msra.mxu0 0
        %1595 = vmatpush.bf16.msra.mxu0 0
        %1596 = vmatpush.bf16.msra.mxu0 %v1587
        %1597 = vmatmul.bf16.gmra.mxu0 %v1580
        %v1598 = vpop.f32.mrf.mxu0
        %v1599 = vadd.f32 0.0, %v1598
        %v1600 = vpop.f32.mrf.mxu0
        %v1601 = vadd.f32 0.0, %v1600
        %1602 = vdwg.mxu0
        %v1605 = vunpack.c.l.b16 %v1412
        %v1606 = vunpack.c.l.b16 %v1413
        %v1607 = vpack.c.b16 %v1606, %v1605
        %v1609 = vsel %vm1578, %v1607, 0
        %v1612 = vand.u32 %v1414, %v1585
        %1614 = vmatpush.bf16.msra.mxu0 0
        %1615 = vmatpush.bf16.msra.mxu0 0
        %1616 = vmatpush.bf16.msra.mxu0 0
        %1617 = vmatpush.bf16.msra.mxu0 0
        %1618 = vmatpush.bf16.msra.mxu0 0
        %1619 = vmatpush.bf16.msra.mxu0 0
        %1620 = vmatpush.bf16.msra.mxu0 0
        %1621 = vmatpush.bf16.msra.mxu0 %v1612
        %1622 = vmatmul.bf16.gmra.mxu0 %v1609
        %v1623 = vpop.f32.mrf.mxu0
        %v1624 = vadd.f32 %v1599, %v1623
        %v1625 = vpop.f32.mrf.mxu0
        %v1626 = vadd.f32 %v1601, %v1625
        %1627 = vdwg.mxu0
        %s1628 = scalar_lea.vmem [#allocation2], 256
        %v1629 = vld [vmem:[%s1628] sm:$0xf]
        %v1630 = vld [vmem:[%s1628 + $0x4] sm:$0xf]
        %v1631 = vld [vmem:[%s1628 + $0x8] sm:$0xf]
        %v1632 = vld [vmem:[%s1628 + $0xc] sm:$0xf]
        %v1633 = vld [vmem:[%s1628 + $0x10] sm:$0xf]
        %v1634 = vld [vmem:[%s1628 + $0x14] sm:$0xf]
        %v1635 = vld [vmem:[%s1628 + $0x18] sm:$0xf]
        %v1636 = vld [vmem:[%s1628 + $0x1c] sm:$0xf]
        %v1637 = vld [vmem:[%s1628 + $0x20] sm:$0xf]
        %v1638 = vld [vmem:[%s1628 + $0x24] sm:$0xf]
        %v1639 = vld [vmem:[%s1628 + $0x28] sm:$0xf]
        %v1640 = vld [vmem:[%s1628 + $0x2c] sm:$0xf]
        %v1641 = vld [vmem:[%s1628 + $0x30] sm:$0xf]
        %v1642 = vld [vmem:[%s1628 + $0x34] sm:$0xf]
        %v1643 = vld [vmem:[%s1628 + $0x38] sm:$0xf]
        %v1644 = vld [vmem:[%s1628 + $0x3c] sm:$0xf]
        %v1645 = vld [vmem:[%s1628 + $0x40] sm:$0xf]
        %v1646 = vld [vmem:[%s1628 + $0x44] sm:$0xf]
        %v1647 = vld [vmem:[%s1628 + $0x48] sm:$0xf]
        %v1648 = vld [vmem:[%s1628 + $0x4c] sm:$0xf]
        %v1649 = vld [vmem:[%s1628 + $0x50] sm:$0xf]
        %v1650 = vld [vmem:[%s1628 + $0x54] sm:$0xf]
        %v1651 = vld [vmem:[%s1628 + $0x58] sm:$0xf]
        %v1652 = vld [vmem:[%s1628 + $0x5c] sm:$0xf]
        %v1653 = vld [vmem:[%s1628 + $0x60] sm:$0xf]
        %v1654 = vld [vmem:[%s1628 + $0x64] sm:$0xf]
        %v1655 = vld [vmem:[%s1628 + $0x68] sm:$0xf]
        %v1656 = vld [vmem:[%s1628 + $0x6c] sm:$0xf]
        %v1657 = vld [vmem:[%s1628 + $0x70] sm:$0xf]
        %v1658 = vld [vmem:[%s1628 + $0x74] sm:$0xf]
        %v1659 = vld [vmem:[%s1628 + $0x78] sm:$0xf]
        %v1660 = vld [vmem:[%s1628 + $0x7c] sm:$0xf]
        %v1693 = vunpack.c.l.b16 %v1629
        %v1694 = vunpack.c.l.b16 %v1630
        %v1695 = vunpack.c.l.b16 %v1631
        %v1696 = vunpack.c.l.b16 %v1632
        %v1697 = vunpack.c.l.b16 %v1633
        %v1698 = vunpack.c.l.b16 %v1634
        %v1699 = vunpack.c.l.b16 %v1635
        %v1700 = vunpack.c.l.b16 %v1636
        %v1701 = vunpack.c.l.b16 %v1637
        %v1702 = vunpack.c.l.b16 %v1638
        %v1703 = vunpack.c.l.b16 %v1639
        %v1704 = vunpack.c.l.b16 %v1640
        %v1705 = vunpack.c.l.b16 %v1641
        %v1706 = vunpack.c.l.b16 %v1642
        %v1707 = vunpack.c.l.b16 %v1643
        %v1708 = vunpack.c.l.b16 %v1644
        %v1709 = vunpack.c.l.b16 %v1645
        %v1710 = vunpack.c.l.b16 %v1646
        %v1711 = vunpack.c.l.b16 %v1647
        %v1712 = vunpack.c.l.b16 %v1648
        %v1713 = vunpack.c.l.b16 %v1649
        %v1714 = vunpack.c.l.b16 %v1650
        %v1715 = vunpack.c.l.b16 %v1651
        %v1716 = vunpack.c.l.b16 %v1652
        %v1717 = vunpack.c.l.b16 %v1653
        %v1718 = vunpack.c.l.b16 %v1654
        %v1719 = vunpack.c.l.b16 %v1655
        %v1720 = vunpack.c.l.b16 %v1656
        %v1721 = vunpack.c.l.b16 %v1657
        %v1722 = vunpack.c.l.b16 %v1658
        %v1723 = vunpack.c.l.b16 %v1659
        %v1724 = vunpack.c.l.b16 %v1660
        %v1725 = vpack.c.b16 %v1694, %v1693
        %v1726 = vpack.c.b16 %v1696, %v1695
        %v1727 = vpack.c.b16 %v1698, %v1697
        %v1728 = vpack.c.b16 %v1700, %v1699
        %v1729 = vpack.c.b16 %v1702, %v1701
        %v1730 = vpack.c.b16 %v1704, %v1703
        %v1731 = vpack.c.b16 %v1706, %v1705
        %v1732 = vpack.c.b16 %v1708, %v1707
        %v1733 = vpack.c.b16 %v1710, %v1709
        %v1734 = vpack.c.b16 %v1712, %v1711
        %v1735 = vpack.c.b16 %v1714, %v1713
        %v1736 = vpack.c.b16 %v1716, %v1715
        %v1737 = vpack.c.b16 %v1718, %v1717
        %v1738 = vpack.c.b16 %v1720, %v1719
        %v1739 = vpack.c.b16 %v1722, %v1721
        %v1740 = vpack.c.b16 %v1724, %v1723
        %1757 = vmatpush.bf16.msra.mxu0 %v1732
        %1758 = vmatpush.bf16.msra.mxu0 %v1731
        %1759 = vmatpush.bf16.msra.mxu0 %v1730
        %1760 = vmatpush.bf16.msra.mxu0 %v1729
        %1761 = vmatpush.bf16.msra.mxu0 %v1728
        %1762 = vmatpush.bf16.msra.mxu0 %v1727
        %1763 = vmatpush.bf16.msra.mxu0 %v1726
        %1764 = vmatpush.bf16.msra.mxu0 %v1725
        %1765 = vmatmul.bf16.gmra.mxu0 %v1256
        %v1766 = vpop.f32.mrf.mxu0
        %v1767 = vadd.f32 0.0, %v1766
        %v1768 = vpop.f32.mrf.mxu0
        %1769 = vdwg.mxu0
        %1770 = vmatpush.bf16.msra.mxu0 %v1740
        %1771 = vmatpush.bf16.msra.mxu0 %v1739
        %1772 = vmatpush.bf16.msra.mxu0 %v1738
        %1773 = vmatpush.bf16.msra.mxu0 %v1737
        %1774 = vmatpush.bf16.msra.mxu0 %v1736
        %1775 = vmatpush.bf16.msra.mxu0 %v1735
        %1776 = vmatpush.bf16.msra.mxu0 %v1734
        %1777 = vmatpush.bf16.msra.mxu0 %v1733
        %1778 = vmatmul.bf16.gmra.mxu0 %v1257
        %v1779 = vpop.f32.mrf.mxu0
        %v1780 = vadd.f32 %v1767, %v1779
        %v1781 = vpop.f32.mrf.mxu0
        %1782 = vdwg.mxu0
        %v1783 = vld [vmem:[%s2 + $0x10] sm:$0xf]
        %v1784 = vld [vmem:[%s2 + $0x14] sm:$0xf]
        %v1785 = vpack.c.bf16 %v1780, %v1780
        %v1788 = vunpack.c.l.b16 %v1783
        %v1789 = vunpack.c.l.b16 %v1784
        %v1790 = vpack.c.b16 %v1789, %v1788
        %v1792 = vsel %vm1578, %v1790, 0
        %v1795 = vand.u32 %v1785, %v1585
        %1797 = vmatpush.bf16.msra.mxu0 0
        %1798 = vmatpush.bf16.msra.mxu0 0
        %1799 = vmatpush.bf16.msra.mxu0 0
        %1800 = vmatpush.bf16.msra.mxu0 0
        %1801 = vmatpush.bf16.msra.mxu0 0
        %1802 = vmatpush.bf16.msra.mxu0 0
        %1803 = vmatpush.bf16.msra.mxu0 0
        %1804 = vmatpush.bf16.msra.mxu0 %v1795
        %1805 = vmatmul.bf16.gmra.mxu0 %v1792
        %v1806 = vpop.f32.mrf.mxu0
        %v1807 = vadd.f32 0.0, %v1806
        %v1808 = vpop.f32.mrf.mxu0
        %v1809 = vadd.f32 0.0, %v1808
        %1810 = vdwg.mxu0
        %v1811 = vadd.f32 %v1624, %v1807
        %v1812 = vadd.f32 %v1626, %v1809
        %s1813 = scalar_lea.vmem [#allocation2], 384
        %v1814 = vld [vmem:[%s1813] sm:$0xf]
        %v1815 = vld [vmem:[%s1813 + $0x4] sm:$0xf]
        %v1816 = vld [vmem:[%s1813 + $0x8] sm:$0xf]
        %v1817 = vld [vmem:[%s1813 + $0xc] sm:$0xf]
        %v1818 = vld [vmem:[%s1813 + $0x10] sm:$0xf]
        %v1819 = vld [vmem:[%s1813 + $0x14] sm:$0xf]
        %v1820 = vld [vmem:[%s1813 + $0x18] sm:$0xf]
        %v1821 = vld [vmem:[%s1813 + $0x1c] sm:$0xf]
        %v1822 = vld [vmem:[%s1813 + $0x20] sm:$0xf]
        %v1823 = vld [vmem:[%s1813 + $0x24] sm:$0xf]
        %v1824 = vld [vmem:[%s1813 + $0x28] sm:$0xf]
        %v1825 = vld [vmem:[%s1813 + $0x2c] sm:$0xf]
        %v1826 = vld [vmem:[%s1813 + $0x30] sm:$0xf]
        %v1827 = vld [vmem:[%s1813 + $0x34] sm:$0xf]
        %v1828 = vld [vmem:[%s1813 + $0x38] sm:$0xf]
        %v1829 = vld [vmem:[%s1813 + $0x3c] sm:$0xf]
        %v1830 = vld [vmem:[%s1813 + $0x40] sm:$0xf]
        %v1831 = vld [vmem:[%s1813 + $0x44] sm:$0xf]
        %v1832 = vld [vmem:[%s1813 + $0x48] sm:$0xf]
        %v1833 = vld [vmem:[%s1813 + $0x4c] sm:$0xf]
        %v1834 = vld [vmem:[%s1813 + $0x50] sm:$0xf]
        %v1835 = vld [vmem:[%s1813 + $0x54] sm:$0xf]
        %v1836 = vld [vmem:[%s1813 + $0x58] sm:$0xf]
        %v1837 = vld [vmem:[%s1813 + $0x5c] sm:$0xf]
        %v1838 = vld [vmem:[%s1813 + $0x60] sm:$0xf]
        %v1839 = vld [vmem:[%s1813 + $0x64] sm:$0xf]
        %v1840 = vld [vmem:[%s1813 + $0x68] sm:$0xf]
        %v1841 = vld [vmem:[%s1813 + $0x6c] sm:$0xf]
        %v1842 = vld [vmem:[%s1813 + $0x70] sm:$0xf]
        %v1843 = vld [vmem:[%s1813 + $0x74] sm:$0xf]
        %v1844 = vld [vmem:[%s1813 + $0x78] sm:$0xf]
        %v1845 = vld [vmem:[%s1813 + $0x7c] sm:$0xf]
        %v1878 = vunpack.c.l.b16 %v1814
        %v1879 = vunpack.c.l.b16 %v1815
        %v1880 = vunpack.c.l.b16 %v1816
        %v1881 = vunpack.c.l.b16 %v1817
        %v1882 = vunpack.c.l.b16 %v1818
        %v1883 = vunpack.c.l.b16 %v1819
        %v1884 = vunpack.c.l.b16 %v1820
        %v1885 = vunpack.c.l.b16 %v1821
        %v1886 = vunpack.c.l.b16 %v1822
        %v1887 = vunpack.c.l.b16 %v1823
        %v1888 = vunpack.c.l.b16 %v1824
        %v1889 = vunpack.c.l.b16 %v1825
        %v1890 = vunpack.c.l.b16 %v1826
        %v1891 = vunpack.c.l.b16 %v1827
        %v1892 = vunpack.c.l.b16 %v1828
        %v1893 = vunpack.c.l.b16 %v1829
        %v1894 = vunpack.c.l.b16 %v1830
        %v1895 = vunpack.c.l.b16 %v1831
        %v1896 = vunpack.c.l.b16 %v1832
        %v1897 = vunpack.c.l.b16 %v1833
        %v1898 = vunpack.c.l.b16 %v1834
        %v1899 = vunpack.c.l.b16 %v1835
        %v1900 = vunpack.c.l.b16 %v1836
        %v1901 = vunpack.c.l.b16 %v1837
        %v1902 = vunpack.c.l.b16 %v1838
        %v1903 = vunpack.c.l.b16 %v1839
        %v1904 = vunpack.c.l.b16 %v1840
        %v1905 = vunpack.c.l.b16 %v1841
        %v1906 = vunpack.c.l.b16 %v1842
        %v1907 = vunpack.c.l.b16 %v1843
        %v1908 = vunpack.c.l.b16 %v1844
        %v1909 = vunpack.c.l.b16 %v1845
        %v1910 = vpack.c.b16 %v1879, %v1878
        %v1911 = vpack.c.b16 %v1881, %v1880
        %v1912 = vpack.c.b16 %v1883, %v1882
        %v1913 = vpack.c.b16 %v1885, %v1884
        %v1914 = vpack.c.b16 %v1887, %v1886
        %v1915 = vpack.c.b16 %v1889, %v1888
        %v1916 = vpack.c.b16 %v1891, %v1890
        %v1917 = vpack.c.b16 %v1893, %v1892
        %v1918 = vpack.c.b16 %v1895, %v1894
        %v1919 = vpack.c.b16 %v1897, %v1896
        %v1920 = vpack.c.b16 %v1899, %v1898
        %v1921 = vpack.c.b16 %v1901, %v1900
        %v1922 = vpack.c.b16 %v1903, %v1902
        %v1923 = vpack.c.b16 %v1905, %v1904
        %v1924 = vpack.c.b16 %v1907, %v1906
        %v1925 = vpack.c.b16 %v1909, %v1908
        %1942 = vmatpush.bf16.msra.mxu0 %v1917
        %1943 = vmatpush.bf16.msra.mxu0 %v1916
        %1944 = vmatpush.bf16.msra.mxu0 %v1915
        %1945 = vmatpush.bf16.msra.mxu0 %v1914
        %1946 = vmatpush.bf16.msra.mxu0 %v1913
        %1947 = vmatpush.bf16.msra.mxu0 %v1912
        %1948 = vmatpush.bf16.msra.mxu0 %v1911
        %1949 = vmatpush.bf16.msra.mxu0 %v1910
        %1950 = vmatmul.bf16.gmra.mxu0 %v1256
        %v1951 = vpop.f32.mrf.mxu0
        %v1952 = vadd.f32 0.0, %v1951
        %v1953 = vpop.f32.mrf.mxu0
        %1954 = vdwg.mxu0
        %1955 = vmatpush.bf16.msra.mxu0 %v1925
        %1956 = vmatpush.bf16.msra.mxu0 %v1924
        %1957 = vmatpush.bf16.msra.mxu0 %v1923
        %1958 = vmatpush.bf16.msra.mxu0 %v1922
        %1959 = vmatpush.bf16.msra.mxu0 %v1921
        %1960 = vmatpush.bf16.msra.mxu0 %v1920
        %1961 = vmatpush.bf16.msra.mxu0 %v1919
        %1962 = vmatpush.bf16.msra.mxu0 %v1918
        %1963 = vmatmul.bf16.gmra.mxu0 %v1257
        %v1964 = vpop.f32.mrf.mxu0
        %v1965 = vadd.f32 %v1952, %v1964
        %v1966 = vpop.f32.mrf.mxu0
        %1967 = vdwg.mxu0
        %v1968 = vld [vmem:[%s2 + $0x18] sm:$0xf]
        %v1969 = vld [vmem:[%s2 + $0x1c] sm:$0xf]
        %v1970 = vpack.c.bf16 %v1965, %v1965
        %v1973 = vunpack.c.l.b16 %v1968
        %v1974 = vunpack.c.l.b16 %v1969
        %v1975 = vpack.c.b16 %v1974, %v1973
        %v1977 = vsel %vm1578, %v1975, 0
        %v1980 = vand.u32 %v1970, %v1585
        %1982 = vmatpush.bf16.msra.mxu0 0
        %1983 = vmatpush.bf16.msra.mxu0 0
        %1984 = vmatpush.bf16.msra.mxu0 0
        %1985 = vmatpush.bf16.msra.mxu0 0
        %1986 = vmatpush.bf16.msra.mxu0 0
        %1987 = vmatpush.bf16.msra.mxu0 0
        %1988 = vmatpush.bf16.msra.mxu0 0
        %1989 = vmatpush.bf16.msra.mxu0 %v1980
        %1990 = vmatmul.bf16.gmra.mxu0 %v1977
        %v1991 = vpop.f32.mrf.mxu0
        %v1992 = vadd.f32 0.0, %v1991
        %v1993 = vpop.f32.mrf.mxu0
        %v1994 = vadd.f32 0.0, %v1993
        %1995 = vdwg.mxu0
        %v1996 = vadd.f32 %v1811, %v1992
        %v1997 = vadd.f32 %v1812, %v1994
        %s1998 = scalar_lea.vmem [#allocation2], 512
        %v1999 = vld [vmem:[%s1998] sm:$0xf]
        %v2000 = vld [vmem:[%s1998 + $0x4] sm:$0xf]
        %v2001 = vld [vmem:[%s1998 + $0x8] sm:$0xf]
        %v2002 = vld [vmem:[%s1998 + $0xc] sm:$0xf]
        %v2003 = vld [vmem:[%s1998 + $0x10] sm:$0xf]
        %v2004 = vld [vmem:[%s1998 + $0x14] sm:$0xf]
        %v2005 = vld [vmem:[%s1998 + $0x18] sm:$0xf]
        %v2006 = vld [vmem:[%s1998 + $0x1c] sm:$0xf]
        %v2007 = vld [vmem:[%s1998 + $0x20] sm:$0xf]
        %v2008 = vld [vmem:[%s1998 + $0x24] sm:$0xf]
        %v2009 = vld [vmem:[%s1998 + $0x28] sm:$0xf]
        %v2010 = vld [vmem:[%s1998 + $0x2c] sm:$0xf]
        %v2011 = vld [vmem:[%s1998 + $0x30] sm:$0xf]
        %v2012 = vld [vmem:[%s1998 + $0x34] sm:$0xf]
        %v2013 = vld [vmem:[%s1998 + $0x38] sm:$0xf]
        %v2014 = vld [vmem:[%s1998 + $0x3c] sm:$0xf]
        %v2015 = vld [vmem:[%s1998 + $0x40] sm:$0xf]
        %v2016 = vld [vmem:[%s1998 + $0x44] sm:$0xf]
        %v2017 = vld [vmem:[%s1998 + $0x48] sm:$0xf]
        %v2018 = vld [vmem:[%s1998 + $0x4c] sm:$0xf]
        %v2019 = vld [vmem:[%s1998 + $0x50] sm:$0xf]
        %v2020 = vld [vmem:[%s1998 + $0x54] sm:$0xf]
        %v2021 = vld [vmem:[%s1998 + $0x58] sm:$0xf]
        %v2022 = vld [vmem:[%s1998 + $0x5c] sm:$0xf]
        %v2023 = vld [vmem:[%s1998 + $0x60] sm:$0xf]
        %v2024 = vld [vmem:[%s1998 + $0x64] sm:$0xf]
        %v2025 = vld [vmem:[%s1998 + $0x68] sm:$0xf]
        %v2026 = vld [vmem:[%s1998 + $0x6c] sm:$0xf]
        %v2027 = vld [vmem:[%s1998 + $0x70] sm:$0xf]
        %v2028 = vld [vmem:[%s1998 + $0x74] sm:$0xf]
        %v2029 = vld [vmem:[%s1998 + $0x78] sm:$0xf]
        %v2030 = vld [vmem:[%s1998 + $0x7c] sm:$0xf]
        %v2063 = vunpack.c.l.b16 %v1999
        %v2064 = vunpack.c.l.b16 %v2000
        %v2065 = vunpack.c.l.b16 %v2001
        %v2066 = vunpack.c.l.b16 %v2002
        %v2067 = vunpack.c.l.b16 %v2003
        %v2068 = vunpack.c.l.b16 %v2004
        %v2069 = vunpack.c.l.b16 %v2005
        %v2070 = vunpack.c.l.b16 %v2006
        %v2071 = vunpack.c.l.b16 %v2007
        %v2072 = vunpack.c.l.b16 %v2008
        %v2073 = vunpack.c.l.b16 %v2009
        %v2074 = vunpack.c.l.b16 %v2010
        %v2075 = vunpack.c.l.b16 %v2011
        %v2076 = vunpack.c.l.b16 %v2012
        %v2077 = vunpack.c.l.b16 %v2013
        %v2078 = vunpack.c.l.b16 %v2014
        %v2079 = vunpack.c.l.b16 %v2015
        %v2080 = vunpack.c.l.b16 %v2016
        %v2081 = vunpack.c.l.b16 %v2017
        %v2082 = vunpack.c.l.b16 %v2018
        %v2083 = vunpack.c.l.b16 %v2019
        %v2084 = vunpack.c.l.b16 %v2020
        %v2085 = vunpack.c.l.b16 %v2021
        %v2086 = vunpack.c.l.b16 %v2022
        %v2087 = vunpack.c.l.b16 %v2023
        %v2088 = vunpack.c.l.b16 %v2024
        %v2089 = vunpack.c.l.b16 %v2025
        %v2090 = vunpack.c.l.b16 %v2026
        %v2091 = vunpack.c.l.b16 %v2027
        %v2092 = vunpack.c.l.b16 %v2028
        %v2093 = vunpack.c.l.b16 %v2029
        %v2094 = vunpack.c.l.b16 %v2030
        %v2095 = vpack.c.b16 %v2064, %v2063
        %v2096 = vpack.c.b16 %v2066, %v2065
        %v2097 = vpack.c.b16 %v2068, %v2067
        %v2098 = vpack.c.b16 %v2070, %v2069
        %v2099 = vpack.c.b16 %v2072, %v2071
        %v2100 = vpack.c.b16 %v2074, %v2073
        %v2101 = vpack.c.b16 %v2076, %v2075
        %v2102 = vpack.c.b16 %v2078, %v2077
        %v2103 = vpack.c.b16 %v2080, %v2079
        %v2104 = vpack.c.b16 %v2082, %v2081
        %v2105 = vpack.c.b16 %v2084, %v2083
        %v2106 = vpack.c.b16 %v2086, %v2085
        %v2107 = vpack.c.b16 %v2088, %v2087
        %v2108 = vpack.c.b16 %v2090, %v2089
        %v2109 = vpack.c.b16 %v2092, %v2091
        %v2110 = vpack.c.b16 %v2094, %v2093
        %2127 = vmatpush.bf16.msra.mxu0 %v2102
        %2128 = vmatpush.bf16.msra.mxu0 %v2101
        %2129 = vmatpush.bf16.msra.mxu0 %v2100
        %2130 = vmatpush.bf16.msra.mxu0 %v2099
        %2131 = vmatpush.bf16.msra.mxu0 %v2098
        %2132 = vmatpush.bf16.msra.mxu0 %v2097
        %2133 = vmatpush.bf16.msra.mxu0 %v2096
        %2134 = vmatpush.bf16.msra.mxu0 %v2095
        %2135 = vmatmul.bf16.gmra.mxu0 %v1256
        %v2136 = vpop.f32.mrf.mxu0
        %v2137 = vadd.f32 0.0, %v2136
        %v2138 = vpop.f32.mrf.mxu0
        %2139 = vdwg.mxu0
        %2140 = vmatpush.bf16.msra.mxu0 %v2110
        %2141 = vmatpush.bf16.msra.mxu0 %v2109
        %2142 = vmatpush.bf16.msra.mxu0 %v2108
        %2143 = vmatpush.bf16.msra.mxu0 %v2107
        %2144 = vmatpush.bf16.msra.mxu0 %v2106
        %2145 = vmatpush.bf16.msra.mxu0 %v2105
        %2146 = vmatpush.bf16.msra.mxu0 %v2104
        %2147 = vmatpush.bf16.msra.mxu0 %v2103
        %2148 = vmatmul.bf16.gmra.mxu0 %v1257
        %v2149 = vpop.f32.mrf.mxu0
        %v2150 = vadd.f32 %v2137, %v2149
        %v2151 = vpop.f32.mrf.mxu0
        %2152 = vdwg.mxu0
        %v2153 = vld [vmem:[%s2 + $0x20] sm:$0xf]
        %v2154 = vld [vmem:[%s2 + $0x24] sm:$0xf]
        %v2155 = vpack.c.bf16 %v2150, %v2150
        %v2158 = vunpack.c.l.b16 %v2153
        %v2159 = vunpack.c.l.b16 %v2154
        %v2160 = vpack.c.b16 %v2159, %v2158
        %v2162 = vsel %vm1578, %v2160, 0
        %v2165 = vand.u32 %v2155, %v1585
        %2167 = vmatpush.bf16.msra.mxu0 0
        %2168 = vmatpush.bf16.msra.mxu0 0
        %2169 = vmatpush.bf16.msra.mxu0 0
        %2170 = vmatpush.bf16.msra.mxu0 0
        %2171 = vmatpush.bf16.msra.mxu0 0
        %2172 = vmatpush.bf16.msra.mxu0 0
        %2173 = vmatpush.bf16.msra.mxu0 0
        %2174 = vmatpush.bf16.msra.mxu0 %v2165
        %2175 = vmatmul.bf16.gmra.mxu0 %v2162
        %v2176 = vpop.f32.mrf.mxu0
        %v2177 = vadd.f32 0.0, %v2176
        %v2178 = vpop.f32.mrf.mxu0
        %v2179 = vadd.f32 0.0, %v2178
        %2180 = vdwg.mxu0
        %v2181 = vadd.f32 %v1996, %v2177
        %v2182 = vadd.f32 %v1997, %v2179
        %s2183 = scalar_lea.vmem [#allocation2], 640
        %v2184 = vld [vmem:[%s2183] sm:$0xf]
        %v2185 = vld [vmem:[%s2183 + $0x4] sm:$0xf]
        %v2186 = vld [vmem:[%s2183 + $0x8] sm:$0xf]
        %v2187 = vld [vmem:[%s2183 + $0xc] sm:$0xf]
        %v2188 = vld [vmem:[%s2183 + $0x10] sm:$0xf]
        %v2189 = vld [vmem:[%s2183 + $0x14] sm:$0xf]
        %v2190 = vld [vmem:[%s2183 + $0x18] sm:$0xf]
        %v2191 = vld [vmem:[%s2183 + $0x1c] sm:$0xf]
        %v2192 = vld [vmem:[%s2183 + $0x20] sm:$0xf]
        %v2193 = vld [vmem:[%s2183 + $0x24] sm:$0xf]
        %v2194 = vld [vmem:[%s2183 + $0x28] sm:$0xf]
        %v2195 = vld [vmem:[%s2183 + $0x2c] sm:$0xf]
        %v2196 = vld [vmem:[%s2183 + $0x30] sm:$0xf]
        %v2197 = vld [vmem:[%s2183 + $0x34] sm:$0xf]
        %v2198 = vld [vmem:[%s2183 + $0x38] sm:$0xf]
        %v2199 = vld [vmem:[%s2183 + $0x3c] sm:$0xf]
        %v2200 = vld [vmem:[%s2183 + $0x40] sm:$0xf]
        %v2201 = vld [vmem:[%s2183 + $0x44] sm:$0xf]
        %v2202 = vld [vmem:[%s2183 + $0x48] sm:$0xf]
        %v2203 = vld [vmem:[%s2183 + $0x4c] sm:$0xf]
        %v2204 = vld [vmem:[%s2183 + $0x50] sm:$0xf]
        %v2205 = vld [vmem:[%s2183 + $0x54] sm:$0xf]
        %v2206 = vld [vmem:[%s2183 + $0x58] sm:$0xf]
        %v2207 = vld [vmem:[%s2183 + $0x5c] sm:$0xf]
        %v2208 = vld [vmem:[%s2183 + $0x60] sm:$0xf]
        %v2209 = vld [vmem:[%s2183 + $0x64] sm:$0xf]
        %v2210 = vld [vmem:[%s2183 + $0x68] sm:$0xf]
        %v2211 = vld [vmem:[%s2183 + $0x6c] sm:$0xf]
        %v2212 = vld [vmem:[%s2183 + $0x70] sm:$0xf]
        %v2213 = vld [vmem:[%s2183 + $0x74] sm:$0xf]
        %v2214 = vld [vmem:[%s2183 + $0x78] sm:$0xf]
        %v2215 = vld [vmem:[%s2183 + $0x7c] sm:$0xf]
        %v2248 = vunpack.c.l.b16 %v2184
        %v2249 = vunpack.c.l.b16 %v2185
        %v2250 = vunpack.c.l.b16 %v2186
        %v2251 = vunpack.c.l.b16 %v2187
        %v2252 = vunpack.c.l.b16 %v2188
        %v2253 = vunpack.c.l.b16 %v2189
        %v2254 = vunpack.c.l.b16 %v2190
        %v2255 = vunpack.c.l.b16 %v2191
        %v2256 = vunpack.c.l.b16 %v2192
        %v2257 = vunpack.c.l.b16 %v2193
        %v2258 = vunpack.c.l.b16 %v2194
        %v2259 = vunpack.c.l.b16 %v2195
        %v2260 = vunpack.c.l.b16 %v2196
        %v2261 = vunpack.c.l.b16 %v2197
        %v2262 = vunpack.c.l.b16 %v2198
        %v2263 = vunpack.c.l.b16 %v2199
        %v2264 = vunpack.c.l.b16 %v2200
        %v2265 = vunpack.c.l.b16 %v2201
        %v2266 = vunpack.c.l.b16 %v2202
        %v2267 = vunpack.c.l.b16 %v2203
        %v2268 = vunpack.c.l.b16 %v2204
        %v2269 = vunpack.c.l.b16 %v2205
        %v2270 = vunpack.c.l.b16 %v2206
        %v2271 = vunpack.c.l.b16 %v2207
        %v2272 = vunpack.c.l.b16 %v2208
        %v2273 = vunpack.c.l.b16 %v2209
        %v2274 = vunpack.c.l.b16 %v2210
        %v2275 = vunpack.c.l.b16 %v2211
        %v2276 = vunpack.c.l.b16 %v2212
        %v2277 = vunpack.c.l.b16 %v2213
        %v2278 = vunpack.c.l.b16 %v2214
        %v2279 = vunpack.c.l.b16 %v2215
        %v2280 = vpack.c.b16 %v2249, %v2248
        %v2281 = vpack.c.b16 %v2251, %v2250
        %v2282 = vpack.c.b16 %v2253, %v2252
        %v2283 = vpack.c.b16 %v2255, %v2254
        %v2284 = vpack.c.b16 %v2257, %v2256
        %v2285 = vpack.c.b16 %v2259, %v2258
        %v2286 = vpack.c.b16 %v2261, %v2260
        %v2287 = vpack.c.b16 %v2263, %v2262
        %v2288 = vpack.c.b16 %v2265, %v2264
        %v2289 = vpack.c.b16 %v2267, %v2266
        %v2290 = vpack.c.b16 %v2269, %v2268
        %v2291 = vpack.c.b16 %v2271, %v2270
        %v2292 = vpack.c.b16 %v2273, %v2272
        %v2293 = vpack.c.b16 %v2275, %v2274
        %v2294 = vpack.c.b16 %v2277, %v2276
        %v2295 = vpack.c.b16 %v2279, %v2278
        %2312 = vmatpush.bf16.msra.mxu0 %v2287
        %2313 = vmatpush.bf16.msra.mxu0 %v2286
        %2314 = vmatpush.bf16.msra.mxu0 %v2285
        %2315 = vmatpush.bf16.msra.mxu0 %v2284
        %2316 = vmatpush.bf16.msra.mxu0 %v2283
        %2317 = vmatpush.bf16.msra.mxu0 %v2282
        %2318 = vmatpush.bf16.msra.mxu0 %v2281
        %2319 = vmatpush.bf16.msra.mxu0 %v2280
        %2320 = vmatmul.bf16.gmra.mxu0 %v1256
        %v2321 = vpop.f32.mrf.mxu0
        %v2322 = vadd.f32 0.0, %v2321
        %v2323 = vpop.f32.mrf.mxu0
        %2324 = vdwg.mxu0
        %2325 = vmatpush.bf16.msra.mxu0 %v2295
        %2326 = vmatpush.bf16.msra.mxu0 %v2294
        %2327 = vmatpush.bf16.msra.mxu0 %v2293
        %2328 = vmatpush.bf16.msra.mxu0 %v2292
        %2329 = vmatpush.bf16.msra.mxu0 %v2291
        %2330 = vmatpush.bf16.msra.mxu0 %v2290
        %2331 = vmatpush.bf16.msra.mxu0 %v2289
        %2332 = vmatpush.bf16.msra.mxu0 %v2288
        %2333 = vmatmul.bf16.gmra.mxu0 %v1257
        %v2334 = vpop.f32.mrf.mxu0
        %v2335 = vadd.f32 %v2322, %v2334
        %v2336 = vpop.f32.mrf.mxu0
        %2337 = vdwg.mxu0
        %v2338 = vld [vmem:[%s2 + $0x28] sm:$0xf]
        %v2339 = vld [vmem:[%s2 + $0x2c] sm:$0xf]
        %v2340 = vpack.c.bf16 %v2335, %v2335
        %v2343 = vunpack.c.l.b16 %v2338
        %v2344 = vunpack.c.l.b16 %v2339
        %v2345 = vpack.c.b16 %v2344, %v2343
        %v2347 = vsel %vm1578, %v2345, 0
        %v2350 = vand.u32 %v2340, %v1585
        %2352 = vmatpush.bf16.msra.mxu0 0
        %2353 = vmatpush.bf16.msra.mxu0 0
        %2354 = vmatpush.bf16.msra.mxu0 0
        %2355 = vmatpush.bf16.msra.mxu0 0
        %2356 = vmatpush.bf16.msra.mxu0 0
        %2357 = vmatpush.bf16.msra.mxu0 0
        %2358 = vmatpush.bf16.msra.mxu0 0
        %2359 = vmatpush.bf16.msra.mxu0 %v2350
        %2360 = vmatmul.bf16.gmra.mxu0 %v2347
        %v2361 = vpop.f32.mrf.mxu0
        %v2362 = vadd.f32 0.0, %v2361
        %v2363 = vpop.f32.mrf.mxu0
        %v2364 = vadd.f32 0.0, %v2363
        %2365 = vdwg.mxu0
        %v2366 = vadd.f32 %v2181, %v2362
        %v2367 = vadd.f32 %v2182, %v2364
        %s2368 = scalar_lea.vmem [#allocation2], 768
        %v2369 = vld [vmem:[%s2368] sm:$0xf]
        %v2370 = vld [vmem:[%s2368 + $0x4] sm:$0xf]
        %v2371 = vld [vmem:[%s2368 + $0x8] sm:$0xf]
        %v2372 = vld [vmem:[%s2368 + $0xc] sm:$0xf]
        %v2373 = vld [vmem:[%s2368 + $0x10] sm:$0xf]
        %v2374 = vld [vmem:[%s2368 + $0x14] sm:$0xf]
        %v2375 = vld [vmem:[%s2368 + $0x18] sm:$0xf]
        %v2376 = vld [vmem:[%s2368 + $0x1c] sm:$0xf]
        %v2377 = vld [vmem:[%s2368 + $0x20] sm:$0xf]
        %v2378 = vld [vmem:[%s2368 + $0x24] sm:$0xf]
        %v2379 = vld [vmem:[%s2368 + $0x28] sm:$0xf]
        %v2380 = vld [vmem:[%s2368 + $0x2c] sm:$0xf]
        %v2381 = vld [vmem:[%s2368 + $0x30] sm:$0xf]
        %v2382 = vld [vmem:[%s2368 + $0x34] sm:$0xf]
        %v2383 = vld [vmem:[%s2368 + $0x38] sm:$0xf]
        %v2384 = vld [vmem:[%s2368 + $0x3c] sm:$0xf]
        %v2385 = vld [vmem:[%s2368 + $0x40] sm:$0xf]
        %v2386 = vld [vmem:[%s2368 + $0x44] sm:$0xf]
        %v2387 = vld [vmem:[%s2368 + $0x48] sm:$0xf]
        %v2388 = vld [vmem:[%s2368 + $0x4c] sm:$0xf]
        %v2389 = vld [vmem:[%s2368 + $0x50] sm:$0xf]
        %v2390 = vld [vmem:[%s2368 + $0x54] sm:$0xf]
        %v2391 = vld [vmem:[%s2368 + $0x58] sm:$0xf]
        %v2392 = vld [vmem:[%s2368 + $0x5c] sm:$0xf]
        %v2393 = vld [vmem:[%s2368 + $0x60] sm:$0xf]
        %v2394 = vld [vmem:[%s2368 + $0x64] sm:$0xf]
        %v2395 = vld [vmem:[%s2368 + $0x68] sm:$0xf]
        %v2396 = vld [vmem:[%s2368 + $0x6c] sm:$0xf]
        %v2397 = vld [vmem:[%s2368 + $0x70] sm:$0xf]
        %v2398 = vld [vmem:[%s2368 + $0x74] sm:$0xf]
        %v2399 = vld [vmem:[%s2368 + $0x78] sm:$0xf]
        %v2400 = vld [vmem:[%s2368 + $0x7c] sm:$0xf]
        %v2433 = vunpack.c.l.b16 %v2369
        %v2434 = vunpack.c.l.b16 %v2370
        %v2435 = vunpack.c.l.b16 %v2371
        %v2436 = vunpack.c.l.b16 %v2372
        %v2437 = vunpack.c.l.b16 %v2373
        %v2438 = vunpack.c.l.b16 %v2374
        %v2439 = vunpack.c.l.b16 %v2375
        %v2440 = vunpack.c.l.b16 %v2376
        %v2441 = vunpack.c.l.b16 %v2377
        %v2442 = vunpack.c.l.b16 %v2378
        %v2443 = vunpack.c.l.b16 %v2379
        %v2444 = vunpack.c.l.b16 %v2380
        %v2445 = vunpack.c.l.b16 %v2381
        %v2446 = vunpack.c.l.b16 %v2382
        %v2447 = vunpack.c.l.b16 %v2383
        %v2448 = vunpack.c.l.b16 %v2384
        %v2449 = vunpack.c.l.b16 %v2385
        %v2450 = vunpack.c.l.b16 %v2386
        %v2451 = vunpack.c.l.b16 %v2387
        %v2452 = vunpack.c.l.b16 %v2388
        %v2453 = vunpack.c.l.b16 %v2389
        %v2454 = vunpack.c.l.b16 %v2390
        %v2455 = vunpack.c.l.b16 %v2391
        %v2456 = vunpack.c.l.b16 %v2392
        %v2457 = vunpack.c.l.b16 %v2393
        %v2458 = vunpack.c.l.b16 %v2394
        %v2459 = vunpack.c.l.b16 %v2395
        %v2460 = vunpack.c.l.b16 %v2396
        %v2461 = vunpack.c.l.b16 %v2397
        %v2462 = vunpack.c.l.b16 %v2398
        %v2463 = vunpack.c.l.b16 %v2399
        %v2464 = vunpack.c.l.b16 %v2400
        %v2465 = vpack.c.b16 %v2434, %v2433
        %v2466 = vpack.c.b16 %v2436, %v2435
        %v2467 = vpack.c.b16 %v2438, %v2437
        %v2468 = vpack.c.b16 %v2440, %v2439
        %v2469 = vpack.c.b16 %v2442, %v2441
        %v2470 = vpack.c.b16 %v2444, %v2443
        %v2471 = vpack.c.b16 %v2446, %v2445
        %v2472 = vpack.c.b16 %v2448, %v2447
        %v2473 = vpack.c.b16 %v2450, %v2449
        %v2474 = vpack.c.b16 %v2452, %v2451
        %v2475 = vpack.c.b16 %v2454, %v2453
        %v2476 = vpack.c.b16 %v2456, %v2455
        %v2477 = vpack.c.b16 %v2458, %v2457
        %v2478 = vpack.c.b16 %v2460, %v2459
        %v2479 = vpack.c.b16 %v2462, %v2461
        %v2480 = vpack.c.b16 %v2464, %v2463
        %2497 = vmatpush.bf16.msra.mxu0 %v2472
        %2498 = vmatpush.bf16.msra.mxu0 %v2471
        %2499 = vmatpush.bf16.msra.mxu0 %v2470
        %2500 = vmatpush.bf16.msra.mxu0 %v2469
        %2501 = vmatpush.bf16.msra.mxu0 %v2468
        %2502 = vmatpush.bf16.msra.mxu0 %v2467
        %2503 = vmatpush.bf16.msra.mxu0 %v2466
        %2504 = vmatpush.bf16.msra.mxu0 %v2465
        %2505 = vmatmul.bf16.gmra.mxu0 %v1256
        %v2506 = vpop.f32.mrf.mxu0
        %v2507 = vadd.f32 0.0, %v2506
        %v2508 = vpop.f32.mrf.mxu0
        %2509 = vdwg.mxu0
        %2510 = vmatpush.bf16.msra.mxu0 %v2480
        %2511 = vmatpush.bf16.msra.mxu0 %v2479
        %2512 = vmatpush.bf16.msra.mxu0 %v2478
        %2513 = vmatpush.bf16.msra.mxu0 %v2477
        %2514 = vmatpush.bf16.msra.mxu0 %v2476
        %2515 = vmatpush.bf16.msra.mxu0 %v2475
        %2516 = vmatpush.bf16.msra.mxu0 %v2474
        %2517 = vmatpush.bf16.msra.mxu0 %v2473
        %2518 = vmatmul.bf16.gmra.mxu0 %v1257
        %v2519 = vpop.f32.mrf.mxu0
        %v2520 = vadd.f32 %v2507, %v2519
        %v2521 = vpop.f32.mrf.mxu0
        %2522 = vdwg.mxu0
        %v2523 = vld [vmem:[%s2 + $0x30] sm:$0xf]
        %v2524 = vld [vmem:[%s2 + $0x34] sm:$0xf]
        %v2525 = vpack.c.bf16 %v2520, %v2520
        %v2528 = vunpack.c.l.b16 %v2523
        %v2529 = vunpack.c.l.b16 %v2524
        %v2530 = vpack.c.b16 %v2529, %v2528
        %v2532 = vsel %vm1578, %v2530, 0
        %v2535 = vand.u32 %v2525, %v1585
        %2537 = vmatpush.bf16.msra.mxu0 0
        %2538 = vmatpush.bf16.msra.mxu0 0
        %2539 = vmatpush.bf16.msra.mxu0 0
        %2540 = vmatpush.bf16.msra.mxu0 0
        %2541 = vmatpush.bf16.msra.mxu0 0
        %2542 = vmatpush.bf16.msra.mxu0 0
        %2543 = vmatpush.bf16.msra.mxu0 0
        %2544 = vmatpush.bf16.msra.mxu0 %v2535
        %2545 = vmatmul.bf16.gmra.mxu0 %v2532
        %v2546 = vpop.f32.mrf.mxu0
        %v2547 = vadd.f32 0.0, %v2546
        %v2548 = vpop.f32.mrf.mxu0
        %v2549 = vadd.f32 0.0, %v2548
        %2550 = vdwg.mxu0
        %v2551 = vadd.f32 %v2366, %v2547
        %v2552 = vadd.f32 %v2367, %v2549
        %s2553 = scalar_lea.vmem [#allocation2], 896
        %v2554 = vld [vmem:[%s2553] sm:$0xf]
        %v2555 = vld [vmem:[%s2553 + $0x4] sm:$0xf]
        %v2556 = vld [vmem:[%s2553 + $0x8] sm:$0xf]
        %v2557 = vld [vmem:[%s2553 + $0xc] sm:$0xf]
        %v2558 = vld [vmem:[%s2553 + $0x10] sm:$0xf]
        %v2559 = vld [vmem:[%s2553 + $0x14] sm:$0xf]
        %v2560 = vld [vmem:[%s2553 + $0x18] sm:$0xf]
        %v2561 = vld [vmem:[%s2553 + $0x1c] sm:$0xf]
        %v2562 = vld [vmem:[%s2553 + $0x20] sm:$0xf]
        %v2563 = vld [vmem:[%s2553 + $0x24] sm:$0xf]
        %v2564 = vld [vmem:[%s2553 + $0x28] sm:$0xf]
        %v2565 = vld [vmem:[%s2553 + $0x2c] sm:$0xf]
        %v2566 = vld [vmem:[%s2553 + $0x30] sm:$0xf]
        %v2567 = vld [vmem:[%s2553 + $0x34] sm:$0xf]
        %v2568 = vld [vmem:[%s2553 + $0x38] sm:$0xf]
        %v2569 = vld [vmem:[%s2553 + $0x3c] sm:$0xf]
        %v2570 = vld [vmem:[%s2553 + $0x40] sm:$0xf]
        %v2571 = vld [vmem:[%s2553 + $0x44] sm:$0xf]
        %v2572 = vld [vmem:[%s2553 + $0x48] sm:$0xf]
        %v2573 = vld [vmem:[%s2553 + $0x4c] sm:$0xf]
        %v2574 = vld [vmem:[%s2553 + $0x50] sm:$0xf]
        %v2575 = vld [vmem:[%s2553 + $0x54] sm:$0xf]
        %v2576 = vld [vmem:[%s2553 + $0x58] sm:$0xf]
        %v2577 = vld [vmem:[%s2553 + $0x5c] sm:$0xf]
        %v2578 = vld [vmem:[%s2553 + $0x60] sm:$0xf]
        %v2579 = vld [vmem:[%s2553 + $0x64] sm:$0xf]
        %v2580 = vld [vmem:[%s2553 + $0x68] sm:$0xf]
        %v2581 = vld [vmem:[%s2553 + $0x6c] sm:$0xf]
        %v2582 = vld [vmem:[%s2553 + $0x70] sm:$0xf]
        %v2583 = vld [vmem:[%s2553 + $0x74] sm:$0xf]
        %v2584 = vld [vmem:[%s2553 + $0x78] sm:$0xf]
        %v2585 = vld [vmem:[%s2553 + $0x7c] sm:$0xf]
        %v2618 = vunpack.c.l.b16 %v2554
        %v2619 = vunpack.c.l.b16 %v2555
        %v2620 = vunpack.c.l.b16 %v2556
        %v2621 = vunpack.c.l.b16 %v2557
        %v2622 = vunpack.c.l.b16 %v2558
        %v2623 = vunpack.c.l.b16 %v2559
        %v2624 = vunpack.c.l.b16 %v2560
        %v2625 = vunpack.c.l.b16 %v2561
        %v2626 = vunpack.c.l.b16 %v2562
        %v2627 = vunpack.c.l.b16 %v2563
        %v2628 = vunpack.c.l.b16 %v2564
        %v2629 = vunpack.c.l.b16 %v2565
        %v2630 = vunpack.c.l.b16 %v2566
        %v2631 = vunpack.c.l.b16 %v2567
        %v2632 = vunpack.c.l.b16 %v2568
        %v2633 = vunpack.c.l.b16 %v2569
        %v2634 = vunpack.c.l.b16 %v2570
        %v2635 = vunpack.c.l.b16 %v2571
        %v2636 = vunpack.c.l.b16 %v2572
        %v2637 = vunpack.c.l.b16 %v2573
        %v2638 = vunpack.c.l.b16 %v2574
        %v2639 = vunpack.c.l.b16 %v2575
        %v2640 = vunpack.c.l.b16 %v2576
        %v2641 = vunpack.c.l.b16 %v2577
        %v2642 = vunpack.c.l.b16 %v2578
        %v2643 = vunpack.c.l.b16 %v2579
        %v2644 = vunpack.c.l.b16 %v2580
        %v2645 = vunpack.c.l.b16 %v2581
        %v2646 = vunpack.c.l.b16 %v2582
        %v2647 = vunpack.c.l.b16 %v2583
        %v2648 = vunpack.c.l.b16 %v2584
        %v2649 = vunpack.c.l.b16 %v2585
        %v2650 = vpack.c.b16 %v2619, %v2618
        %v2651 = vpack.c.b16 %v2621, %v2620
        %v2652 = vpack.c.b16 %v2623, %v2622
        %v2653 = vpack.c.b16 %v2625, %v2624
        %v2654 = vpack.c.b16 %v2627, %v2626
        %v2655 = vpack.c.b16 %v2629, %v2628
        %v2656 = vpack.c.b16 %v2631, %v2630
        %v2657 = vpack.c.b16 %v2633, %v2632
        %v2658 = vpack.c.b16 %v2635, %v2634
        %v2659 = vpack.c.b16 %v2637, %v2636
        %v2660 = vpack.c.b16 %v2639, %v2638
        %v2661 = vpack.c.b16 %v2641, %v2640
        %v2662 = vpack.c.b16 %v2643, %v2642
        %v2663 = vpack.c.b16 %v2645, %v2644
        %v2664 = vpack.c.b16 %v2647, %v2646
        %v2665 = vpack.c.b16 %v2649, %v2648
        %2682 = vmatpush.bf16.msra.mxu0 %v2657
        %2683 = vmatpush.bf16.msra.mxu0 %v2656
        %2684 = vmatpush.bf16.msra.mxu0 %v2655
        %2685 = vmatpush.bf16.msra.mxu0 %v2654
        %2686 = vmatpush.bf16.msra.mxu0 %v2653
        %2687 = vmatpush.bf16.msra.mxu0 %v2652
        %2688 = vmatpush.bf16.msra.mxu0 %v2651
        %2689 = vmatpush.bf16.msra.mxu0 %v2650
        %2690 = vmatmul.bf16.gmra.mxu0 %v1256
        %v2691 = vpop.f32.mrf.mxu0
        %v2692 = vadd.f32 0.0, %v2691
        %v2693 = vpop.f32.mrf.mxu0
        %2694 = vdwg.mxu0
        %2695 = vmatpush.bf16.msra.mxu0 %v2665
        %2696 = vmatpush.bf16.msra.mxu0 %v2664
        %2697 = vmatpush.bf16.msra.mxu0 %v2663
        %2698 = vmatpush.bf16.msra.mxu0 %v2662
        %2699 = vmatpush.bf16.msra.mxu0 %v2661
        %2700 = vmatpush.bf16.msra.mxu0 %v2660
        %2701 = vmatpush.bf16.msra.mxu0 %v2659
        %2702 = vmatpush.bf16.msra.mxu0 %v2658
        %2703 = vmatmul.bf16.gmra.mxu0 %v1257
        %v2704 = vpop.f32.mrf.mxu0
        %v2705 = vadd.f32 %v2692, %v2704
        %v2706 = vpop.f32.mrf.mxu0
        %2707 = vdwg.mxu0
        %v2708 = vld [vmem:[%s2 + $0x38] sm:$0xf]
        %v2709 = vld [vmem:[%s2 + $0x3c] sm:$0xf]
        %v2710 = vpack.c.bf16 %v2705, %v2705
        %v2713 = vunpack.c.l.b16 %v2708
        %v2714 = vunpack.c.l.b16 %v2709
        %v2715 = vpack.c.b16 %v2714, %v2713
        %v2717 = vsel %vm1578, %v2715, 0
        %v2720 = vand.u32 %v2710, %v1585
        %2722 = vmatpush.bf16.msra.mxu0 0
        %2723 = vmatpush.bf16.msra.mxu0 0
        %2724 = vmatpush.bf16.msra.mxu0 0
        %2725 = vmatpush.bf16.msra.mxu0 0
        %2726 = vmatpush.bf16.msra.mxu0 0
        %2727 = vmatpush.bf16.msra.mxu0 0
        %2728 = vmatpush.bf16.msra.mxu0 0
        %2729 = vmatpush.bf16.msra.mxu0 %v2720
        %2730 = vmatmul.bf16.gmra.mxu0 %v2717
        %v2731 = vpop.f32.mrf.mxu0
        %v2732 = vadd.f32 0.0, %v2731
        %v2733 = vpop.f32.mrf.mxu0
        %v2734 = vadd.f32 0.0, %v2733
        %2735 = vdwg.mxu0
        %v2736 = vadd.f32 %v2551, %v2732
        %v2737 = vadd.f32 %v2552, %v2734
        %s2738 = scalar_lea.vmem [#allocation2], 1024
        %v2739 = vld [vmem:[%s2738] sm:$0xf]
        %v2740 = vld [vmem:[%s2738 + $0x4] sm:$0xf]
        %v2741 = vld [vmem:[%s2738 + $0x8] sm:$0xf]
        %v2742 = vld [vmem:[%s2738 + $0xc] sm:$0xf]
        %v2743 = vld [vmem:[%s2738 + $0x10] sm:$0xf]
        %v2744 = vld [vmem:[%s2738 + $0x14] sm:$0xf]
        %v2745 = vld [vmem:[%s2738 + $0x18] sm:$0xf]
        %v2746 = vld [vmem:[%s2738 + $0x1c] sm:$0xf]
        %v2747 = vld [vmem:[%s2738 + $0x20] sm:$0xf]
        %v2748 = vld [vmem:[%s2738 + $0x24] sm:$0xf]
        %v2749 = vld [vmem:[%s2738 + $0x28] sm:$0xf]
        %v2750 = vld [vmem:[%s2738 + $0x2c] sm:$0xf]
        %v2751 = vld [vmem:[%s2738 + $0x30] sm:$0xf]
        %v2752 = vld [vmem:[%s2738 + $0x34] sm:$0xf]
        %v2753 = vld [vmem:[%s2738 + $0x38] sm:$0xf]
        %v2754 = vld [vmem:[%s2738 + $0x3c] sm:$0xf]
        %v2755 = vld [vmem:[%s2738 + $0x40] sm:$0xf]
        %v2756 = vld [vmem:[%s2738 + $0x44] sm:$0xf]
        %v2757 = vld [vmem:[%s2738 + $0x48] sm:$0xf]
        %v2758 = vld [vmem:[%s2738 + $0x4c] sm:$0xf]
        %v2759 = vld [vmem:[%s2738 + $0x50] sm:$0xf]
        %v2760 = vld [vmem:[%s2738 + $0x54] sm:$0xf]
        %v2761 = vld [vmem:[%s2738 + $0x58] sm:$0xf]
        %v2762 = vld [vmem:[%s2738 + $0x5c] sm:$0xf]
        %v2763 = vld [vmem:[%s2738 + $0x60] sm:$0xf]
        %v2764 = vld [vmem:[%s2738 + $0x64] sm:$0xf]
        %v2765 = vld [vmem:[%s2738 + $0x68] sm:$0xf]
        %v2766 = vld [vmem:[%s2738 + $0x6c] sm:$0xf]
        %v2767 = vld [vmem:[%s2738 + $0x70] sm:$0xf]
        %v2768 = vld [vmem:[%s2738 + $0x74] sm:$0xf]
        %v2769 = vld [vmem:[%s2738 + $0x78] sm:$0xf]
        %v2770 = vld [vmem:[%s2738 + $0x7c] sm:$0xf]
        %v2803 = vunpack.c.l.b16 %v2739
        %v2804 = vunpack.c.l.b16 %v2740
        %v2805 = vunpack.c.l.b16 %v2741
        %v2806 = vunpack.c.l.b16 %v2742
        %v2807 = vunpack.c.l.b16 %v2743
        %v2808 = vunpack.c.l.b16 %v2744
        %v2809 = vunpack.c.l.b16 %v2745
        %v2810 = vunpack.c.l.b16 %v2746
        %v2811 = vunpack.c.l.b16 %v2747
        %v2812 = vunpack.c.l.b16 %v2748
        %v2813 = vunpack.c.l.b16 %v2749
        %v2814 = vunpack.c.l.b16 %v2750
        %v2815 = vunpack.c.l.b16 %v2751
        %v2816 = vunpack.c.l.b16 %v2752
        %v2817 = vunpack.c.l.b16 %v2753
        %v2818 = vunpack.c.l.b16 %v2754
        %v2819 = vunpack.c.l.b16 %v2755
        %v2820 = vunpack.c.l.b16 %v2756
        %v2821 = vunpack.c.l.b16 %v2757
        %v2822 = vunpack.c.l.b16 %v2758
        %v2823 = vunpack.c.l.b16 %v2759
        %v2824 = vunpack.c.l.b16 %v2760
        %v2825 = vunpack.c.l.b16 %v2761
        %v2826 = vunpack.c.l.b16 %v2762
        %v2827 = vunpack.c.l.b16 %v2763
        %v2828 = vunpack.c.l.b16 %v2764
        %v2829 = vunpack.c.l.b16 %v2765
        %v2830 = vunpack.c.l.b16 %v2766
        %v2831 = vunpack.c.l.b16 %v2767
        %v2832 = vunpack.c.l.b16 %v2768
        %v2833 = vunpack.c.l.b16 %v2769
        %v2834 = vunpack.c.l.b16 %v2770
        %v2835 = vpack.c.b16 %v2804, %v2803
        %v2836 = vpack.c.b16 %v2806, %v2805
        %v2837 = vpack.c.b16 %v2808, %v2807
        %v2838 = vpack.c.b16 %v2810, %v2809
        %v2839 = vpack.c.b16 %v2812, %v2811
        %v2840 = vpack.c.b16 %v2814, %v2813
        %v2841 = vpack.c.b16 %v2816, %v2815
        %v2842 = vpack.c.b16 %v2818, %v2817
        %v2843 = vpack.c.b16 %v2820, %v2819
        %v2844 = vpack.c.b16 %v2822, %v2821
        %v2845 = vpack.c.b16 %v2824, %v2823
        %v2846 = vpack.c.b16 %v2826, %v2825
        %v2847 = vpack.c.b16 %v2828, %v2827
        %v2848 = vpack.c.b16 %v2830, %v2829
        %v2849 = vpack.c.b16 %v2832, %v2831
        %v2850 = vpack.c.b16 %v2834, %v2833
        %2867 = vmatpush.bf16.msra.mxu0 %v2842
        %2868 = vmatpush.bf16.msra.mxu0 %v2841
        %2869 = vmatpush.bf16.msra.mxu0 %v2840
        %2870 = vmatpush.bf16.msra.mxu0 %v2839
        %2871 = vmatpush.bf16.msra.mxu0 %v2838
        %2872 = vmatpush.bf16.msra.mxu0 %v2837
        %2873 = vmatpush.bf16.msra.mxu0 %v2836
        %2874 = vmatpush.bf16.msra.mxu0 %v2835
        %2875 = vmatmul.bf16.gmra.mxu0 %v1256
        %v2876 = vpop.f32.mrf.mxu0
        %v2877 = vadd.f32 0.0, %v2876
        %v2878 = vpop.f32.mrf.mxu0
        %2879 = vdwg.mxu0
        %2880 = vmatpush.bf16.msra.mxu0 %v2850
        %2881 = vmatpush.bf16.msra.mxu0 %v2849
        %2882 = vmatpush.bf16.msra.mxu0 %v2848
        %2883 = vmatpush.bf16.msra.mxu0 %v2847
        %2884 = vmatpush.bf16.msra.mxu0 %v2846
        %2885 = vmatpush.bf16.msra.mxu0 %v2845
        %2886 = vmatpush.bf16.msra.mxu0 %v2844
        %2887 = vmatpush.bf16.msra.mxu0 %v2843
        %2888 = vmatmul.bf16.gmra.mxu0 %v1257
        %v2889 = vpop.f32.mrf.mxu0
        %v2890 = vadd.f32 %v2877, %v2889
        %v2891 = vpop.f32.mrf.mxu0
        %2892 = vdwg.mxu0
        %v2893 = vld [vmem:[%s2 + $0x40] sm:$0xf]
        %v2894 = vld [vmem:[%s2 + $0x44] sm:$0xf]
        %v2895 = vpack.c.bf16 %v2890, %v2890
        %v2898 = vunpack.c.l.b16 %v2893
        %v2899 = vunpack.c.l.b16 %v2894
        %v2900 = vpack.c.b16 %v2899, %v2898
        %v2902 = vsel %vm1578, %v2900, 0
        %v2905 = vand.u32 %v2895, %v1585
        %2907 = vmatpush.bf16.msra.mxu0 0
        %2908 = vmatpush.bf16.msra.mxu0 0
        %2909 = vmatpush.bf16.msra.mxu0 0
        %2910 = vmatpush.bf16.msra.mxu0 0
        %2911 = vmatpush.bf16.msra.mxu0 0
        %2912 = vmatpush.bf16.msra.mxu0 0
        %2913 = vmatpush.bf16.msra.mxu0 0
        %2914 = vmatpush.bf16.msra.mxu0 %v2905
        %2915 = vmatmul.bf16.gmra.mxu0 %v2902
        %v2916 = vpop.f32.mrf.mxu0
        %v2917 = vadd.f32 0.0, %v2916
        %v2918 = vpop.f32.mrf.mxu0
        %v2919 = vadd.f32 0.0, %v2918
        %2920 = vdwg.mxu0
        %v2921 = vadd.f32 %v2736, %v2917
        %v2922 = vadd.f32 %v2737, %v2919
        %v2923 = vadd.f32 %v2921, %v1248
        %v2924 = vadd.f32 %v2922, %v1249
        %v2925 = vmax.f32 %v2923, 0.0
        %v2926 = vmax.f32 %v2924, 0.0
        %v2927 = vld [vmem:[#allocation9] sm:$0xff]
        %v2928 = vld [vmem:[#allocation9 + $0x8] sm:$0xff]
        %v2929 = vld [vmem:[#allocation9 + $0x10] sm:$0xff]
        %v2930 = vld [vmem:[#allocation9 + $0x18] sm:$0xff]
        %v2931 = vpack.c.bf16 %v2926, %v2925
        %v2932 = vld [vmem:[#allocation6] sm:$0xf]
        %v2933 = vld [vmem:[#allocation6 + $0x4] sm:$0xf]
        %v2934 = vld [vmem:[#allocation6 + $0x8] sm:$0xf]
        %v2935 = vld [vmem:[#allocation6 + $0xc] sm:$0xf]
        %v2936 = vld [vmem:[#allocation6 + $0x10] sm:$0xf]
        %v2937 = vld [vmem:[#allocation6 + $0x14] sm:$0xf]
        %v2938 = vld [vmem:[#allocation6 + $0x18] sm:$0xf]
        %v2939 = vld [vmem:[#allocation6 + $0x1c] sm:$0xf]
        %v2948 = vunpack.c.l.b16 %v2932
        %v2949 = vunpack.c.l.b16 %v2933
        %v2950 = vunpack.c.l.b16 %v2934
        %v2951 = vunpack.c.l.b16 %v2935
        %v2952 = vunpack.c.l.b16 %v2936
        %v2953 = vunpack.c.l.b16 %v2937
        %v2954 = vunpack.c.l.b16 %v2938
        %v2955 = vunpack.c.l.b16 %v2939
        %v2956 = vpack.c.b16 %v2949, %v2948
        %v2957 = vpack.c.b16 %v2951, %v2950
        %v2958 = vpack.c.b16 %v2953, %v2952
        %v2959 = vpack.c.b16 %v2955, %v2954
        %vm2964 = vcmask 523264
        %v2966 = vsel %vm2964, %v2931, 0
        %2968 = vmatpush.bf16.msra.mxu0 0
        %2969 = vmatpush.bf16.msra.mxu0 0
        %2970 = vmatpush.bf16.msra.mxu0 0
        %2971 = vmatpush.bf16.msra.mxu0 0
        %2972 = vmatpush.bf16.msra.mxu0 %v2959
        %2973 = vmatpush.bf16.msra.mxu0 %v2958
        %2974 = vmatpush.bf16.msra.mxu0 %v2957
        %2975 = vmatpush.bf16.msra.mxu0 %v2956
        %2976 = vmatmul.bf16.gmra.mxu0 %v2966
        %v2977 = vpop.f32.mrf.mxu0
        %v2978 = vadd.f32 0.0, %v2977
        %v2979 = vpop.f32.mrf.mxu0
        %v2980 = vadd.f32 0.0, %v2979
        %2981 = vdwg.mxu0
        %v2982 = vld [vmem:[#allocation7] sm:$0xf]
        %v2983 = vld [vmem:[#allocation7 + $0x4] sm:$0xf]
        %v2984 = vld [vmem:[#allocation7 + $0x8] sm:$0xf]
        %v2985 = vld [vmem:[#allocation7 + $0xc] sm:$0xf]
        %v2986 = vpack.c.bf16 %v2980, %v2978
        %s2987 = scalar_lea.vmem [#allocation6], 32
        %v2988 = vld [vmem:[%s2987] sm:$0xf]
        %v2989 = vld [vmem:[%s2987 + $0x4] sm:$0xf]
        %v2990 = vld [vmem:[%s2987 + $0x8] sm:$0xf]
        %v2991 = vld [vmem:[%s2987 + $0xc] sm:$0xf]
        %v2992 = vld [vmem:[%s2987 + $0x10] sm:$0xf]
        %v2993 = vld [vmem:[%s2987 + $0x14] sm:$0xf]
        %v2994 = vld [vmem:[%s2987 + $0x18] sm:$0xf]
        %v2995 = vld [vmem:[%s2987 + $0x1c] sm:$0xf]
        %v3004 = vunpack.c.l.b16 %v2988
        %v3005 = vunpack.c.l.b16 %v2989
        %v3006 = vunpack.c.l.b16 %v2990
        %v3007 = vunpack.c.l.b16 %v2991
        %v3008 = vunpack.c.l.b16 %v2992
        %v3009 = vunpack.c.l.b16 %v2993
        %v3010 = vunpack.c.l.b16 %v2994
        %v3011 = vunpack.c.l.b16 %v2995
        %v3012 = vpack.c.b16 %v3005, %v3004
        %v3013 = vpack.c.b16 %v3007, %v3006
        %v3014 = vpack.c.b16 %v3009, %v3008
        %v3015 = vpack.c.b16 %v3011, %v3010
        %3020 = vmatpush.bf16.msra.mxu0 0
        %3021 = vmatpush.bf16.msra.mxu0 0
        %3022 = vmatpush.bf16.msra.mxu0 0
        %3023 = vmatpush.bf16.msra.mxu0 0
        %3024 = vmatpush.bf16.msra.mxu0 %v3015
        %3025 = vmatpush.bf16.msra.mxu0 %v3014
        %3026 = vmatpush.bf16.msra.mxu0 %v3013
        %3027 = vmatpush.bf16.msra.mxu0 %v3012
        %3028 = vmatmul.bf16.gmra.mxu0 %v2966
        %v3029 = vpop.f32.mrf.mxu0
        %v3030 = vadd.f32 0.0, %v3029
        %v3031 = vpop.f32.mrf.mxu0
        %v3032 = vadd.f32 0.0, %v3031
        %3033 = vdwg.mxu0
        %v3034 = vld [vmem:[#allocation7 + $0x10] sm:$0xf]
        %v3035 = vld [vmem:[#allocation7 + $0x14] sm:$0xf]
        %v3036 = vld [vmem:[#allocation7 + $0x18] sm:$0xf]
        %v3037 = vld [vmem:[#allocation7 + $0x1c] sm:$0xf]
        %v3038 = vpack.c.bf16 %v3032, %v3030
        %v3043 = vunpack.c.l.b16 %v3034
        %v3044 = vunpack.c.l.b16 %v3035
        %v3045 = vunpack.c.l.b16 %v3036
        %v3046 = vunpack.c.l.b16 %v3037
        %v3047 = vpack.c.b16 %v3044, %v3043
        %v3048 = vpack.c.b16 %v3046, %v3045
        %vm3049 = vcmask 130048
        %v3051 = vsel %vm3049, %v3047, 0
        %v3054 = vsel %vm3049, %v3048, 0
        %3056 = vmatpush.bf16.msra.mxu0 0
        %3057 = vmatpush.bf16.msra.mxu0 0
        %3058 = vmatpush.bf16.msra.mxu0 0
        %3059 = vmatpush.bf16.msra.mxu0 0
        %3060 = vmatpush.bf16.msra.mxu0 0
        %3061 = vmatpush.bf16.msra.mxu0 0
        %3062 = vmatpush.bf16.msra.mxu0 0
        %3063 = vmatpush.bf16.msra.mxu0 %v3038
        %3064 = vmatmul.bf16.gmra.mxu0 %v3051
        %v3065 = vpop.f32.mrf.mxu0
        %v3066 = vadd.f32 0.0, %v3065
        %v3067 = vpop.f32.mrf.mxu0
        %v3068 = vadd.f32 0.0, %v3067
        %3069 = vmatmul.bf16.gmra.mxu0 %v3054
        %v3070 = vpop.f32.mrf.mxu0
        %v3071 = vadd.f32 0.0, %v3070
        %v3072 = vpop.f32.mrf.mxu0
        %v3073 = vadd.f32 0.0, %v3072
        %3074 = vdwg.mxu0
        %v3079 = vunpack.c.l.b16 %v2982
        %v3080 = vunpack.c.l.b16 %v2983
        %v3081 = vunpack.c.l.b16 %v2984
        %v3082 = vunpack.c.l.b16 %v2985
        %v3083 = vpack.c.b16 %v3080, %v3079
        %v3084 = vpack.c.b16 %v3082, %v3081
        %v3086 = vsel %vm3049, %v3083, 0
        %v3089 = vsel %vm3049, %v3084, 0
        %3091 = vmatpush.bf16.msra.mxu0 0
        %3092 = vmatpush.bf16.msra.mxu0 0
        %3093 = vmatpush.bf16.msra.mxu0 0
        %3094 = vmatpush.bf16.msra.mxu0 0
        %3095 = vmatpush.bf16.msra.mxu0 0
        %3096 = vmatpush.bf16.msra.mxu0 0
        %3097 = vmatpush.bf16.msra.mxu0 0
        %3098 = vmatpush.bf16.msra.mxu0 %v2986
        %3099 = vmatmul.bf16.gmra.mxu0 %v3086
        %v3100 = vpop.f32.mrf.mxu0
        %v3101 = vadd.f32 %v3066, %v3100
        %v3102 = vpop.f32.mrf.mxu0
        %v3103 = vadd.f32 %v3068, %v3102
        %3104 = vmatmul.bf16.gmra.mxu0 %v3089
        %v3105 = vpop.f32.mrf.mxu0
        %v3106 = vadd.f32 %v3071, %v3105
        %v3107 = vpop.f32.mrf.mxu0
        %v3108 = vadd.f32 %v3073, %v3107
        %3109 = vdwg.mxu0
        %s3110 = scalar_lea.vmem [#allocation6], 64
        %v3111 = vld [vmem:[%s3110] sm:$0xf]
        %v3112 = vld [vmem:[%s3110 + $0x4] sm:$0xf]
        %v3113 = vld [vmem:[%s3110 + $0x8] sm:$0xf]
        %v3114 = vld [vmem:[%s3110 + $0xc] sm:$0xf]
        %v3115 = vld [vmem:[%s3110 + $0x10] sm:$0xf]
        %v3116 = vld [vmem:[%s3110 + $0x14] sm:$0xf]
        %v3117 = vld [vmem:[%s3110 + $0x18] sm:$0xf]
        %v3118 = vld [vmem:[%s3110 + $0x1c] sm:$0xf]
        %v3127 = vunpack.c.l.b16 %v3111
        %v3128 = vunpack.c.l.b16 %v3112
        %v3129 = vunpack.c.l.b16 %v3113
        %v3130 = vunpack.c.l.b16 %v3114
        %v3131 = vunpack.c.l.b16 %v3115
        %v3132 = vunpack.c.l.b16 %v3116
        %v3133 = vunpack.c.l.b16 %v3117
        %v3134 = vunpack.c.l.b16 %v3118
        %v3135 = vpack.c.b16 %v3128, %v3127
        %v3136 = vpack.c.b16 %v3130, %v3129
        %v3137 = vpack.c.b16 %v3132, %v3131
        %v3138 = vpack.c.b16 %v3134, %v3133
        %3143 = vmatpush.bf16.msra.mxu0 0
        %3144 = vmatpush.bf16.msra.mxu0 0
        %3145 = vmatpush.bf16.msra.mxu0 0
        %3146 = vmatpush.bf16.msra.mxu0 0
        %3147 = vmatpush.bf16.msra.mxu0 %v3138
        %3148 = vmatpush.bf16.msra.mxu0 %v3137
        %3149 = vmatpush.bf16.msra.mxu0 %v3136
        %3150 = vmatpush.bf16.msra.mxu0 %v3135
        %3151 = vmatmul.bf16.gmra.mxu0 %v2966
        %v3152 = vpop.f32.mrf.mxu0
        %v3153 = vadd.f32 0.0, %v3152
        %v3154 = vpop.f32.mrf.mxu0
        %v3155 = vadd.f32 0.0, %v3154
        %3156 = vdwg.mxu0
        %v3157 = vld [vmem:[#allocation7 + $0x20] sm:$0xf]
        %v3158 = vld [vmem:[#allocation7 + $0x24] sm:$0xf]
        %v3159 = vld [vmem:[#allocation7 + $0x28] sm:$0xf]
        %v3160 = vld [vmem:[#allocation7 + $0x2c] sm:$0xf]
        %v3161 = vpack.c.bf16 %v3155, %v3153
        %v3166 = vunpack.c.l.b16 %v3157
        %v3167 = vunpack.c.l.b16 %v3158
        %v3168 = vunpack.c.l.b16 %v3159
        %v3169 = vunpack.c.l.b16 %v3160
        %v3170 = vpack.c.b16 %v3167, %v3166
        %v3171 = vpack.c.b16 %v3169, %v3168
        %v3173 = vsel %vm3049, %v3170, 0
        %v3176 = vsel %vm3049, %v3171, 0
        %3178 = vmatpush.bf16.msra.mxu0 0
        %3179 = vmatpush.bf16.msra.mxu0 0
        %3180 = vmatpush.bf16.msra.mxu0 0
        %3181 = vmatpush.bf16.msra.mxu0 0
        %3182 = vmatpush.bf16.msra.mxu0 0
        %3183 = vmatpush.bf16.msra.mxu0 0
        %3184 = vmatpush.bf16.msra.mxu0 0
        %3185 = vmatpush.bf16.msra.mxu0 %v3161
        %3186 = vmatmul.bf16.gmra.mxu0 %v3173
        %v3187 = vpop.f32.mrf.mxu0
        %v3188 = vadd.f32 0.0, %v3187
        %v3189 = vpop.f32.mrf.mxu0
        %v3190 = vadd.f32 0.0, %v3189
        %3191 = vmatmul.bf16.gmra.mxu0 %v3176
        %v3192 = vpop.f32.mrf.mxu0
        %v3193 = vadd.f32 0.0, %v3192
        %v3194 = vpop.f32.mrf.mxu0
        %v3195 = vadd.f32 0.0, %v3194
        %3196 = vdwg.mxu0
        %v3197 = vadd.f32 %v3101, %v3188
        %v3198 = vadd.f32 %v3103, %v3190
        %v3199 = vadd.f32 %v3106, %v3193
        %v3200 = vadd.f32 %v3108, %v3195
        %s3201 = scalar_lea.vmem [#allocation6], 96
        %v3202 = vld [vmem:[%s3201] sm:$0xf]
        %v3203 = vld [vmem:[%s3201 + $0x4] sm:$0xf]
        %v3204 = vld [vmem:[%s3201 + $0x8] sm:$0xf]
        %v3205 = vld [vmem:[%s3201 + $0xc] sm:$0xf]
        %v3206 = vld [vmem:[%s3201 + $0x10] sm:$0xf]
        %v3207 = vld [vmem:[%s3201 + $0x14] sm:$0xf]
        %v3208 = vld [vmem:[%s3201 + $0x18] sm:$0xf]
        %v3209 = vld [vmem:[%s3201 + $0x1c] sm:$0xf]
        %v3218 = vunpack.c.l.b16 %v3202
        %v3219 = vunpack.c.l.b16 %v3203
        %v3220 = vunpack.c.l.b16 %v3204
        %v3221 = vunpack.c.l.b16 %v3205
        %v3222 = vunpack.c.l.b16 %v3206
        %v3223 = vunpack.c.l.b16 %v3207
        %v3224 = vunpack.c.l.b16 %v3208
        %v3225 = vunpack.c.l.b16 %v3209
        %v3226 = vpack.c.b16 %v3219, %v3218
        %v3227 = vpack.c.b16 %v3221, %v3220
        %v3228 = vpack.c.b16 %v3223, %v3222
        %v3229 = vpack.c.b16 %v3225, %v3224
        %3234 = vmatpush.bf16.msra.mxu0 0
        %3235 = vmatpush.bf16.msra.mxu0 0
        %3236 = vmatpush.bf16.msra.mxu0 0
        %3237 = vmatpush.bf16.msra.mxu0 0
        %3238 = vmatpush.bf16.msra.mxu0 %v3229
        %3239 = vmatpush.bf16.msra.mxu0 %v3228
        %3240 = vmatpush.bf16.msra.mxu0 %v3227
        %3241 = vmatpush.bf16.msra.mxu0 %v3226
        %3242 = vmatmul.bf16.gmra.mxu0 %v2966
        %v3243 = vpop.f32.mrf.mxu0
        %v3244 = vadd.f32 0.0, %v3243
        %v3245 = vpop.f32.mrf.mxu0
        %v3246 = vadd.f32 0.0, %v3245
        %3247 = vdwg.mxu0
        %v3248 = vld [vmem:[#allocation7 + $0x30] sm:$0xf]
        %v3249 = vld [vmem:[#allocation7 + $0x34] sm:$0xf]
        %v3250 = vld [vmem:[#allocation7 + $0x38] sm:$0xf]
        %v3251 = vld [vmem:[#allocation7 + $0x3c] sm:$0xf]
        %v3252 = vpack.c.bf16 %v3246, %v3244
        %v3257 = vunpack.c.l.b16 %v3248
        %v3258 = vunpack.c.l.b16 %v3249
        %v3259 = vunpack.c.l.b16 %v3250
        %v3260 = vunpack.c.l.b16 %v3251
        %v3261 = vpack.c.b16 %v3258, %v3257
        %v3262 = vpack.c.b16 %v3260, %v3259
        %v3264 = vsel %vm3049, %v3261, 0
        %v3267 = vsel %vm3049, %v3262, 0
        %3269 = vmatpush.bf16.msra.mxu0 0
        %3270 = vmatpush.bf16.msra.mxu0 0
        %3271 = vmatpush.bf16.msra.mxu0 0
        %3272 = vmatpush.bf16.msra.mxu0 0
        %3273 = vmatpush.bf16.msra.mxu0 0
        %3274 = vmatpush.bf16.msra.mxu0 0
        %3275 = vmatpush.bf16.msra.mxu0 0
        %3276 = vmatpush.bf16.msra.mxu0 %v3252
        %3277 = vmatmul.bf16.gmra.mxu0 %v3264
        %v3278 = vpop.f32.mrf.mxu0
        %v3279 = vadd.f32 0.0, %v3278
        %v3280 = vpop.f32.mrf.mxu0
        %v3281 = vadd.f32 0.0, %v3280
        %3282 = vmatmul.bf16.gmra.mxu0 %v3267
        %v3283 = vpop.f32.mrf.mxu0
        %v3284 = vadd.f32 0.0, %v3283
        %v3285 = vpop.f32.mrf.mxu0
        %v3286 = vadd.f32 0.0, %v3285
        %3287 = vdwg.mxu0
        %v3288 = vadd.f32 %v3197, %v3279
        %v3289 = vadd.f32 %v3198, %v3281
        %v3290 = vadd.f32 %v3199, %v3284
        %v3291 = vadd.f32 %v3200, %v3286
        %s3292 = scalar_lea.vmem [#allocation6], 128
        %v3293 = vld [vmem:[%s3292] sm:$0xf]
        %v3294 = vld [vmem:[%s3292 + $0x4] sm:$0xf]
        %v3295 = vld [vmem:[%s3292 + $0x8] sm:$0xf]
        %v3296 = vld [vmem:[%s3292 + $0xc] sm:$0xf]
        %v3297 = vld [vmem:[%s3292 + $0x10] sm:$0xf]
        %v3298 = vld [vmem:[%s3292 + $0x14] sm:$0xf]
        %v3299 = vld [vmem:[%s3292 + $0x18] sm:$0xf]
        %v3300 = vld [vmem:[%s3292 + $0x1c] sm:$0xf]
        %v3309 = vunpack.c.l.b16 %v3293
        %v3310 = vunpack.c.l.b16 %v3294
        %v3311 = vunpack.c.l.b16 %v3295
        %v3312 = vunpack.c.l.b16 %v3296
        %v3313 = vunpack.c.l.b16 %v3297
        %v3314 = vunpack.c.l.b16 %v3298
        %v3315 = vunpack.c.l.b16 %v3299
        %v3316 = vunpack.c.l.b16 %v3300
        %v3317 = vpack.c.b16 %v3310, %v3309
        %v3318 = vpack.c.b16 %v3312, %v3311
        %v3319 = vpack.c.b16 %v3314, %v3313
        %v3320 = vpack.c.b16 %v3316, %v3315
        %3325 = vmatpush.bf16.msra.mxu0 0
        %3326 = vmatpush.bf16.msra.mxu0 0
        %3327 = vmatpush.bf16.msra.mxu0 0
        %3328 = vmatpush.bf16.msra.mxu0 0
        %3329 = vmatpush.bf16.msra.mxu0 %v3320
        %3330 = vmatpush.bf16.msra.mxu0 %v3319
        %3331 = vmatpush.bf16.msra.mxu0 %v3318
        %3332 = vmatpush.bf16.msra.mxu0 %v3317
        %3333 = vmatmul.bf16.gmra.mxu0 %v2966
        %v3334 = vpop.f32.mrf.mxu0
        %v3335 = vadd.f32 0.0, %v3334
        %v3336 = vpop.f32.mrf.mxu0
        %v3337 = vadd.f32 0.0, %v3336
        %3338 = vdwg.mxu0
        %v3339 = vld [vmem:[#allocation7 + $0x40] sm:$0xf]
        %v3340 = vld [vmem:[#allocation7 + $0x44] sm:$0xf]
        %v3341 = vld [vmem:[#allocation7 + $0x48] sm:$0xf]
        %v3342 = vld [vmem:[#allocation7 + $0x4c] sm:$0xf]
        %v3343 = vpack.c.bf16 %v3337, %v3335
        %v3348 = vunpack.c.l.b16 %v3339
        %v3349 = vunpack.c.l.b16 %v3340
        %v3350 = vunpack.c.l.b16 %v3341
        %v3351 = vunpack.c.l.b16 %v3342
        %v3352 = vpack.c.b16 %v3349, %v3348
        %v3353 = vpack.c.b16 %v3351, %v3350
        %v3355 = vsel %vm3049, %v3352, 0
        %v3358 = vsel %vm3049, %v3353, 0
        %3360 = vmatpush.bf16.msra.mxu0 0
        %3361 = vmatpush.bf16.msra.mxu0 0
        %3362 = vmatpush.bf16.msra.mxu0 0
        %3363 = vmatpush.bf16.msra.mxu0 0
        %3364 = vmatpush.bf16.msra.mxu0 0
        %3365 = vmatpush.bf16.msra.mxu0 0
        %3366 = vmatpush.bf16.msra.mxu0 0
        %3367 = vmatpush.bf16.msra.mxu0 %v3343
        %3368 = vmatmul.bf16.gmra.mxu0 %v3355
        %v3369 = vpop.f32.mrf.mxu0
        %v3370 = vadd.f32 0.0, %v3369
        %v3371 = vpop.f32.mrf.mxu0
        %v3372 = vadd.f32 0.0, %v3371
        %3373 = vmatmul.bf16.gmra.mxu0 %v3358
        %v3374 = vpop.f32.mrf.mxu0
        %v3375 = vadd.f32 0.0, %v3374
        %v3376 = vpop.f32.mrf.mxu0
        %v3377 = vadd.f32 0.0, %v3376
        %3378 = vdwg.mxu0
        %v3379 = vadd.f32 %v3288, %v3370
        %v3380 = vadd.f32 %v3289, %v3372
        %v3381 = vadd.f32 %v3290, %v3375
        %v3382 = vadd.f32 %v3291, %v3377
        %s3383 = scalar_lea.vmem [#allocation6], 160
        %v3384 = vld [vmem:[%s3383] sm:$0xf]
        %v3385 = vld [vmem:[%s3383 + $0x4] sm:$0xf]
        %v3386 = vld [vmem:[%s3383 + $0x8] sm:$0xf]
        %v3387 = vld [vmem:[%s3383 + $0xc] sm:$0xf]
        %v3388 = vld [vmem:[%s3383 + $0x10] sm:$0xf]
        %v3389 = vld [vmem:[%s3383 + $0x14] sm:$0xf]
        %v3390 = vld [vmem:[%s3383 + $0x18] sm:$0xf]
        %v3391 = vld [vmem:[%s3383 + $0x1c] sm:$0xf]
        %v3400 = vunpack.c.l.b16 %v3384
        %v3401 = vunpack.c.l.b16 %v3385
        %v3402 = vunpack.c.l.b16 %v3386
        %v3403 = vunpack.c.l.b16 %v3387
        %v3404 = vunpack.c.l.b16 %v3388
        %v3405 = vunpack.c.l.b16 %v3389
        %v3406 = vunpack.c.l.b16 %v3390
        %v3407 = vunpack.c.l.b16 %v3391
        %v3408 = vpack.c.b16 %v3401, %v3400
        %v3409 = vpack.c.b16 %v3403, %v3402
        %v3410 = vpack.c.b16 %v3405, %v3404
        %v3411 = vpack.c.b16 %v3407, %v3406
        %3416 = vmatpush.bf16.msra.mxu0 0
        %3417 = vmatpush.bf16.msra.mxu0 0
        %3418 = vmatpush.bf16.msra.mxu0 0
        %3419 = vmatpush.bf16.msra.mxu0 0
        %3420 = vmatpush.bf16.msra.mxu0 %v3411
        %3421 = vmatpush.bf16.msra.mxu0 %v3410
        %3422 = vmatpush.bf16.msra.mxu0 %v3409
        %3423 = vmatpush.bf16.msra.mxu0 %v3408
        %3424 = vmatmul.bf16.gmra.mxu0 %v2966
        %v3425 = vpop.f32.mrf.mxu0
        %v3426 = vadd.f32 0.0, %v3425
        %v3427 = vpop.f32.mrf.mxu0
        %v3428 = vadd.f32 0.0, %v3427
        %3429 = vdwg.mxu0
        %v3430 = vld [vmem:[#allocation7 + $0x50] sm:$0xf]
        %v3431 = vld [vmem:[#allocation7 + $0x54] sm:$0xf]
        %v3432 = vld [vmem:[#allocation7 + $0x58] sm:$0xf]
        %v3433 = vld [vmem:[#allocation7 + $0x5c] sm:$0xf]
        %v3434 = vpack.c.bf16 %v3428, %v3426
        %v3439 = vunpack.c.l.b16 %v3430
        %v3440 = vunpack.c.l.b16 %v3431
        %v3441 = vunpack.c.l.b16 %v3432
        %v3442 = vunpack.c.l.b16 %v3433
        %v3443 = vpack.c.b16 %v3440, %v3439
        %v3444 = vpack.c.b16 %v3442, %v3441
        %v3446 = vsel %vm3049, %v3443, 0
        %v3449 = vsel %vm3049, %v3444, 0
        %3451 = vmatpush.bf16.msra.mxu0 0
        %3452 = vmatpush.bf16.msra.mxu0 0
        %3453 = vmatpush.bf16.msra.mxu0 0
        %3454 = vmatpush.bf16.msra.mxu0 0
        %3455 = vmatpush.bf16.msra.mxu0 0
        %3456 = vmatpush.bf16.msra.mxu0 0
        %3457 = vmatpush.bf16.msra.mxu0 0
        %3458 = vmatpush.bf16.msra.mxu0 %v3434
        %3459 = vmatmul.bf16.gmra.mxu0 %v3446
        %v3460 = vpop.f32.mrf.mxu0
        %v3461 = vadd.f32 0.0, %v3460
        %v3462 = vpop.f32.mrf.mxu0
        %v3463 = vadd.f32 0.0, %v3462
        %3464 = vmatmul.bf16.gmra.mxu0 %v3449
        %v3465 = vpop.f32.mrf.mxu0
        %v3466 = vadd.f32 0.0, %v3465
        %v3467 = vpop.f32.mrf.mxu0
        %v3468 = vadd.f32 0.0, %v3467
        %3469 = vdwg.mxu0
        %v3470 = vadd.f32 %v3379, %v3461
        %v3471 = vadd.f32 %v3380, %v3463
        %v3472 = vadd.f32 %v3381, %v3466
        %v3473 = vadd.f32 %v3382, %v3468
        %s3474 = scalar_lea.vmem [#allocation6], 192
        %v3475 = vld [vmem:[%s3474] sm:$0xf]
        %v3476 = vld [vmem:[%s3474 + $0x4] sm:$0xf]
        %v3477 = vld [vmem:[%s3474 + $0x8] sm:$0xf]
        %v3478 = vld [vmem:[%s3474 + $0xc] sm:$0xf]
        %v3479 = vld [vmem:[%s3474 + $0x10] sm:$0xf]
        %v3480 = vld [vmem:[%s3474 + $0x14] sm:$0xf]
        %v3481 = vld [vmem:[%s3474 + $0x18] sm:$0xf]
        %v3482 = vld [vmem:[%s3474 + $0x1c] sm:$0xf]
        %v3491 = vunpack.c.l.b16 %v3475
        %v3492 = vunpack.c.l.b16 %v3476
        %v3493 = vunpack.c.l.b16 %v3477
        %v3494 = vunpack.c.l.b16 %v3478
        %v3495 = vunpack.c.l.b16 %v3479
        %v3496 = vunpack.c.l.b16 %v3480
        %v3497 = vunpack.c.l.b16 %v3481
        %v3498 = vunpack.c.l.b16 %v3482
        %v3499 = vpack.c.b16 %v3492, %v3491
        %v3500 = vpack.c.b16 %v3494, %v3493
        %v3501 = vpack.c.b16 %v3496, %v3495
        %v3502 = vpack.c.b16 %v3498, %v3497
        %3507 = vmatpush.bf16.msra.mxu0 0
        %3508 = vmatpush.bf16.msra.mxu0 0
        %3509 = vmatpush.bf16.msra.mxu0 0
        %3510 = vmatpush.bf16.msra.mxu0 0
        %3511 = vmatpush.bf16.msra.mxu0 %v3502
        %3512 = vmatpush.bf16.msra.mxu0 %v3501
        %3513 = vmatpush.bf16.msra.mxu0 %v3500
        %3514 = vmatpush.bf16.msra.mxu0 %v3499
        %3515 = vmatmul.bf16.gmra.mxu0 %v2966
        %v3516 = vpop.f32.mrf.mxu0
        %v3517 = vadd.f32 0.0, %v3516
        %v3518 = vpop.f32.mrf.mxu0
        %v3519 = vadd.f32 0.0, %v3518
        %3520 = vdwg.mxu0
        %v3521 = vld [vmem:[#allocation7 + $0x60] sm:$0xf]
        %v3522 = vld [vmem:[#allocation7 + $0x64] sm:$0xf]
        %v3523 = vld [vmem:[#allocation7 + $0x68] sm:$0xf]
        %v3524 = vld [vmem:[#allocation7 + $0x6c] sm:$0xf]
        %v3525 = vpack.c.bf16 %v3519, %v3517
        %v3530 = vunpack.c.l.b16 %v3521
        %v3531 = vunpack.c.l.b16 %v3522
        %v3532 = vunpack.c.l.b16 %v3523
        %v3533 = vunpack.c.l.b16 %v3524
        %v3534 = vpack.c.b16 %v3531, %v3530
        %v3535 = vpack.c.b16 %v3533, %v3532
        %v3537 = vsel %vm3049, %v3534, 0
        %v3540 = vsel %vm3049, %v3535, 0
        %3542 = vmatpush.bf16.msra.mxu0 0
        %3543 = vmatpush.bf16.msra.mxu0 0
        %3544 = vmatpush.bf16.msra.mxu0 0
        %3545 = vmatpush.bf16.msra.mxu0 0
        %3546 = vmatpush.bf16.msra.mxu0 0
        %3547 = vmatpush.bf16.msra.mxu0 0
        %3548 = vmatpush.bf16.msra.mxu0 0
        %3549 = vmatpush.bf16.msra.mxu0 %v3525
        %3550 = vmatmul.bf16.gmra.mxu0 %v3537
        %v3551 = vpop.f32.mrf.mxu0
        %v3552 = vadd.f32 0.0, %v3551
        %v3553 = vpop.f32.mrf.mxu0
        %v3554 = vadd.f32 0.0, %v3553
        %3555 = vmatmul.bf16.gmra.mxu0 %v3540
        %v3556 = vpop.f32.mrf.mxu0
        %v3557 = vadd.f32 0.0, %v3556
        %v3558 = vpop.f32.mrf.mxu0
        %v3559 = vadd.f32 0.0, %v3558
        %3560 = vdwg.mxu0
        %v3561 = vadd.f32 %v3470, %v3552
        %v3562 = vadd.f32 %v3471, %v3554
        %v3563 = vadd.f32 %v3472, %v3557
        %v3564 = vadd.f32 %v3473, %v3559
        %s3565 = scalar_lea.vmem [#allocation6], 224
        %v3566 = vld [vmem:[%s3565] sm:$0xf]
        %v3567 = vld [vmem:[%s3565 + $0x4] sm:$0xf]
        %v3568 = vld [vmem:[%s3565 + $0x8] sm:$0xf]
        %v3569 = vld [vmem:[%s3565 + $0xc] sm:$0xf]
        %v3570 = vld [vmem:[%s3565 + $0x10] sm:$0xf]
        %v3571 = vld [vmem:[%s3565 + $0x14] sm:$0xf]
        %v3572 = vld [vmem:[%s3565 + $0x18] sm:$0xf]
        %v3573 = vld [vmem:[%s3565 + $0x1c] sm:$0xf]
        %v3582 = vunpack.c.l.b16 %v3566
        %v3583 = vunpack.c.l.b16 %v3567
        %v3584 = vunpack.c.l.b16 %v3568
        %v3585 = vunpack.c.l.b16 %v3569
        %v3586 = vunpack.c.l.b16 %v3570
        %v3587 = vunpack.c.l.b16 %v3571
        %v3588 = vunpack.c.l.b16 %v3572
        %v3589 = vunpack.c.l.b16 %v3573
        %v3590 = vpack.c.b16 %v3583, %v3582
        %v3591 = vpack.c.b16 %v3585, %v3584
        %v3592 = vpack.c.b16 %v3587, %v3586
        %v3593 = vpack.c.b16 %v3589, %v3588
        %3598 = vmatpush.bf16.msra.mxu0 0
        %3599 = vmatpush.bf16.msra.mxu0 0
        %3600 = vmatpush.bf16.msra.mxu0 0
        %3601 = vmatpush.bf16.msra.mxu0 0
        %3602 = vmatpush.bf16.msra.mxu0 %v3593
        %3603 = vmatpush.bf16.msra.mxu0 %v3592
        %3604 = vmatpush.bf16.msra.mxu0 %v3591
        %3605 = vmatpush.bf16.msra.mxu0 %v3590
        %3606 = vmatmul.bf16.gmra.mxu0 %v2966
        %v3607 = vpop.f32.mrf.mxu0
        %v3608 = vadd.f32 0.0, %v3607
        %v3609 = vpop.f32.mrf.mxu0
        %v3610 = vadd.f32 0.0, %v3609
        %3611 = vdwg.mxu0
        %v3612 = vld [vmem:[#allocation7 + $0x70] sm:$0xf]
        %v3613 = vld [vmem:[#allocation7 + $0x74] sm:$0xf]
        %v3614 = vld [vmem:[#allocation7 + $0x78] sm:$0xf]
        %v3615 = vld [vmem:[#allocation7 + $0x7c] sm:$0xf]
        %v3616 = vpack.c.bf16 %v3610, %v3608
        %v3621 = vunpack.c.l.b16 %v3612
        %v3622 = vunpack.c.l.b16 %v3613
        %v3623 = vunpack.c.l.b16 %v3614
        %v3624 = vunpack.c.l.b16 %v3615
        %v3625 = vpack.c.b16 %v3622, %v3621
        %v3626 = vpack.c.b16 %v3624, %v3623
        %v3628 = vsel %vm3049, %v3625, 0
        %v3631 = vsel %vm3049, %v3626, 0
        %3633 = vmatpush.bf16.msra.mxu0 0
        %3634 = vmatpush.bf16.msra.mxu0 0
        %3635 = vmatpush.bf16.msra.mxu0 0
        %3636 = vmatpush.bf16.msra.mxu0 0
        %3637 = vmatpush.bf16.msra.mxu0 0
        %3638 = vmatpush.bf16.msra.mxu0 0
        %3639 = vmatpush.bf16.msra.mxu0 0
        %3640 = vmatpush.bf16.msra.mxu0 %v3616
        %3641 = vmatmul.bf16.gmra.mxu0 %v3628
        %v3642 = vpop.f32.mrf.mxu0
        %v3643 = vadd.f32 0.0, %v3642
        %v3644 = vpop.f32.mrf.mxu0
        %v3645 = vadd.f32 0.0, %v3644
        %3646 = vmatmul.bf16.gmra.mxu0 %v3631
        %v3647 = vpop.f32.mrf.mxu0
        %v3648 = vadd.f32 0.0, %v3647
        %v3649 = vpop.f32.mrf.mxu0
        %v3650 = vadd.f32 0.0, %v3649
        %3651 = vdwg.mxu0
        %v3652 = vadd.f32 %v3561, %v3643
        %v3653 = vadd.f32 %v3562, %v3645
        %v3654 = vadd.f32 %v3563, %v3648
        %v3655 = vadd.f32 %v3564, %v3650
        %s3656 = scalar_lea.vmem [#allocation6], 256
        %v3657 = vld [vmem:[%s3656] sm:$0xf]
        %v3658 = vld [vmem:[%s3656 + $0x4] sm:$0xf]
        %v3659 = vld [vmem:[%s3656 + $0x8] sm:$0xf]
        %v3660 = vld [vmem:[%s3656 + $0xc] sm:$0xf]
        %v3661 = vld [vmem:[%s3656 + $0x10] sm:$0xf]
        %v3662 = vld [vmem:[%s3656 + $0x14] sm:$0xf]
        %v3663 = vld [vmem:[%s3656 + $0x18] sm:$0xf]
        %v3664 = vld [vmem:[%s3656 + $0x1c] sm:$0xf]
        %v3673 = vunpack.c.l.b16 %v3657
        %v3674 = vunpack.c.l.b16 %v3658
        %v3675 = vunpack.c.l.b16 %v3659
        %v3676 = vunpack.c.l.b16 %v3660
        %v3677 = vunpack.c.l.b16 %v3661
        %v3678 = vunpack.c.l.b16 %v3662
        %v3679 = vunpack.c.l.b16 %v3663
        %v3680 = vunpack.c.l.b16 %v3664
        %v3681 = vpack.c.b16 %v3674, %v3673
        %v3682 = vpack.c.b16 %v3676, %v3675
        %v3683 = vpack.c.b16 %v3678, %v3677
        %v3684 = vpack.c.b16 %v3680, %v3679
        %3689 = vmatpush.bf16.msra.mxu0 0
        %3690 = vmatpush.bf16.msra.mxu0 0
        %3691 = vmatpush.bf16.msra.mxu0 0
        %3692 = vmatpush.bf16.msra.mxu0 0
        %3693 = vmatpush.bf16.msra.mxu0 %v3684
        %3694 = vmatpush.bf16.msra.mxu0 %v3683
        %3695 = vmatpush.bf16.msra.mxu0 %v3682
        %3696 = vmatpush.bf16.msra.mxu0 %v3681
        %3697 = vmatmul.bf16.gmra.mxu0 %v2966
        %v3698 = vpop.f32.mrf.mxu0
        %v3699 = vadd.f32 0.0, %v3698
        %v3700 = vpop.f32.mrf.mxu0
        %v3701 = vadd.f32 0.0, %v3700
        %3702 = vdwg.mxu0
        %v3703 = vld [vmem:[#allocation7 + $0x80] sm:$0xf]
        %v3704 = vld [vmem:[#allocation7 + $0x84] sm:$0xf]
        %v3705 = vld [vmem:[#allocation7 + $0x88] sm:$0xf]
        %v3706 = vld [vmem:[#allocation7 + $0x8c] sm:$0xf]
        %v3707 = vpack.c.bf16 %v3701, %v3699
        %v3712 = vunpack.c.l.b16 %v3703
        %v3713 = vunpack.c.l.b16 %v3704
        %v3714 = vunpack.c.l.b16 %v3705
        %v3715 = vunpack.c.l.b16 %v3706
        %v3716 = vpack.c.b16 %v3713, %v3712
        %v3717 = vpack.c.b16 %v3715, %v3714
        %v3719 = vsel %vm3049, %v3716, 0
        %v3722 = vsel %vm3049, %v3717, 0
        %3724 = vmatpush.bf16.msra.mxu0 0
        %3725 = vmatpush.bf16.msra.mxu0 0
        %3726 = vmatpush.bf16.msra.mxu0 0
        %3727 = vmatpush.bf16.msra.mxu0 0
        %3728 = vmatpush.bf16.msra.mxu0 0
        %3729 = vmatpush.bf16.msra.mxu0 0
        %3730 = vmatpush.bf16.msra.mxu0 0
        %3731 = vmatpush.bf16.msra.mxu0 %v3707
        %3732 = vmatmul.bf16.gmra.mxu0 %v3719
        %v3733 = vpop.f32.mrf.mxu0
        %v3734 = vadd.f32 0.0, %v3733
        %v3735 = vpop.f32.mrf.mxu0
        %v3736 = vadd.f32 0.0, %v3735
        %3737 = vmatmul.bf16.gmra.mxu0 %v3722
        %v3738 = vpop.f32.mrf.mxu0
        %v3739 = vadd.f32 0.0, %v3738
        %v3740 = vpop.f32.mrf.mxu0
        %v3741 = vadd.f32 0.0, %v3740
        %3742 = vdwg.mxu0
        %v3743 = vadd.f32 %v3652, %v3734
        %v3744 = vadd.f32 %v3653, %v3736
        %v3745 = vadd.f32 %v3654, %v3739
        %v3746 = vadd.f32 %v3655, %v3741
        %3748 = vset.pattern.permute.xlu0 0
        %3749 = vperm.xlu0 %3748, %v2927
        %v3750 = vpop.permute.xlu0 %3749
        %3753 = vset.pattern.permute.xlu0 0
        %3754 = vperm.xlu0 %3753, %v2928
        %v3755 = vpop.permute.xlu0 %3754
        %3758 = vset.pattern.permute.xlu0 0
        %3759 = vperm.xlu0 %3758, %v2929
        %v3760 = vpop.permute.xlu0 %3759
        %3763 = vset.pattern.permute.xlu0 0
        %3764 = vperm.xlu0 %3763, %v2930
        %v3765 = vpop.permute.xlu0 %3764
        %v3767 = vadd.f32 %v3743, %v3750
        %v3768 = vadd.f32 %v3744, %v3755
        %v3769 = vadd.f32 %v3745, %v3760
        %v3770 = vadd.f32 %v3746, %v3765
        %v3771 = vmax.f32 %v3767, 0.0
        %v3772 = vmax.f32 %v3768, 0.0
        %v3773 = vmax.f32 %v3769, 0.0
        %v3774 = vmax.f32 %v3770, 0.0
        %v3775 = vld [vmem:[%s9] sm:$0xff]
        %v3776 = vld [vmem:[%s9 + $0x8] sm:$0xff]
        %v3777 = vld [vmem:[%s9 + $0x10] sm:$0xff]
        %v3778 = vld [vmem:[%s9 + $0x18] sm:$0xff]
        %v3779 = vld [vmem:[%s9 + $0x20] sm:$0xff]
        %v3780 = vld [vmem:[%s9 + $0x28] sm:$0xff]
        %v3781 = vld [vmem:[%s9 + $0x30] sm:$0xff]
        %v3782 = vld [vmem:[%s9 + $0x38] sm:$0xff]
        %v3783 = vpack.c.bf16 %v3772, %v3771
        %v3784 = vpack.c.bf16 %v3774, %v3773
        %v3785 = vld [vmem:[#allocation10] sm:$0xf]
        %v3786 = vld [vmem:[#allocation10 + $0x4] sm:$0xf]
        %v3789 = vunpack.c.l.b16 %v3785
        %v3790 = vunpack.c.l.b16 %v3786
        %v3791 = vpack.c.b16 %v3790, %v3789
        %v3794 = vsel %vm3049, %v3783, 0
        %v3797 = vsel %vm3049, %v3784, 0
        %3799 = vmatpush.bf16.msra.mxu0 0
        %3800 = vmatpush.bf16.msra.mxu0 0
        %3801 = vmatpush.bf16.msra.mxu0 0
        %3802 = vmatpush.bf16.msra.mxu0 0
        %3803 = vmatpush.bf16.msra.mxu0 0
        %3804 = vmatpush.bf16.msra.mxu0 0
        %3805 = vmatpush.bf16.msra.mxu0 0
        %3806 = vmatpush.bf16.msra.mxu0 %v3791
        %3807 = vmatmul.bf16.gmra.mxu0 %v3794
        %v3808 = vpop.f32.mrf.mxu0
        %v3809 = vadd.f32 0.0, %v3808
        %v3810 = vpop.f32.mrf.mxu0
        %v3811 = vadd.f32 0.0, %v3810
        %3812 = vmatmul.bf16.gmra.mxu0 %v3797
        %v3813 = vpop.f32.mrf.mxu0
        %v3814 = vadd.f32 0.0, %v3813
        %v3815 = vpop.f32.mrf.mxu0
        %v3816 = vadd.f32 0.0, %v3815
        %3817 = vdwg.mxu0
        %v3818 = vld [vmem:[#allocation12] sm:$0xf]
        %v3819 = vld [vmem:[#allocation12 + $0x4] sm:$0xf]
        %v3820 = vld [vmem:[#allocation12 + $0x8] sm:$0xf]
        %v3821 = vld [vmem:[#allocation12 + $0xc] sm:$0xf]
        %v3822 = vld [vmem:[#allocation12 + $0x10] sm:$0xf]
        %v3823 = vld [vmem:[#allocation12 + $0x14] sm:$0xf]
        %v3824 = vld [vmem:[#allocation12 + $0x18] sm:$0xf]
        %v3825 = vld [vmem:[#allocation12 + $0x1c] sm:$0xf]
        %v3826 = vpack.c.bf16 %v3811, %v3809
        %v3827 = vpack.c.bf16 %v3816, %v3814
        %s3828 = scalar_lea.vmem [#allocation10], 8
        %v3829 = vld [vmem:[%s3828] sm:$0xf]
        %v3830 = vld [vmem:[%s3828 + $0x4] sm:$0xf]
        %v3833 = vunpack.c.l.b16 %v3829
        %v3834 = vunpack.c.l.b16 %v3830
        %v3835 = vpack.c.b16 %v3834, %v3833
        %3837 = vmatpush.bf16.msra.mxu0 0
        %3838 = vmatpush.bf16.msra.mxu0 0
        %3839 = vmatpush.bf16.msra.mxu0 0
        %3840 = vmatpush.bf16.msra.mxu0 0
        %3841 = vmatpush.bf16.msra.mxu0 0
        %3842 = vmatpush.bf16.msra.mxu0 0
        %3843 = vmatpush.bf16.msra.mxu0 0
        %3844 = vmatpush.bf16.msra.mxu0 %v3835
        %3845 = vmatmul.bf16.gmra.mxu0 %v3794
        %v3846 = vpop.f32.mrf.mxu0
        %v3847 = vadd.f32 0.0, %v3846
        %v3848 = vpop.f32.mrf.mxu0
        %v3849 = vadd.f32 0.0, %v3848
        %3850 = vmatmul.bf16.gmra.mxu0 %v3797
        %v3851 = vpop.f32.mrf.mxu0
        %v3852 = vadd.f32 0.0, %v3851
        %v3853 = vpop.f32.mrf.mxu0
        %v3854 = vadd.f32 0.0, %v3853
        %3855 = vdwg.mxu0
        %v3856 = vld [vmem:[#allocation12 + $0x20] sm:$0xf]
        %v3857 = vld [vmem:[#allocation12 + $0x24] sm:$0xf]
        %v3858 = vld [vmem:[#allocation12 + $0x28] sm:$0xf]
        %v3859 = vld [vmem:[#allocation12 + $0x2c] sm:$0xf]
        %v3860 = vld [vmem:[#allocation12 + $0x30] sm:$0xf]
        %v3861 = vld [vmem:[#allocation12 + $0x34] sm:$0xf]
        %v3862 = vld [vmem:[#allocation12 + $0x38] sm:$0xf]
        %v3863 = vld [vmem:[#allocation12 + $0x3c] sm:$0xf]
        %v3864 = vpack.c.bf16 %v3849, %v3847
        %v3865 = vpack.c.bf16 %v3854, %v3852
        %v3874 = vunpack.c.l.b16 %v3856
        %v3875 = vunpack.c.l.b16 %v3857
        %v3876 = vunpack.c.l.b16 %v3858
        %v3877 = vunpack.c.l.b16 %v3859
        %v3878 = vunpack.c.l.b16 %v3860
        %v3879 = vunpack.c.l.b16 %v3861
        %v3880 = vunpack.c.l.b16 %v3862
        %v3881 = vunpack.c.l.b16 %v3863
        %v3882 = vpack.c.b16 %v3875, %v3874
        %v3883 = vpack.c.b16 %v3877, %v3876
        %v3884 = vpack.c.b16 %v3879, %v3878
        %v3885 = vpack.c.b16 %v3881, %v3880
        %vm3886 = vcmask 261120
        %v3888 = vsel %vm3886, %v3882, 0
        %v3891 = vsel %vm3886, %v3883, 0
        %v3894 = vsel %vm3886, %v3884, 0
        %v3897 = vsel %vm3886, %v3885, 0
        %3899 = vmatpush.bf16.msra.mxu0 0
        %3900 = vmatpush.bf16.msra.mxu0 0
        %3901 = vmatpush.bf16.msra.mxu0 0
        %3902 = vmatpush.bf16.msra.mxu0 0
        %3903 = vmatpush.bf16.msra.mxu0 0
        %3904 = vmatpush.bf16.msra.mxu0 0
        %3905 = vmatpush.bf16.msra.mxu0 %v3865
        %3906 = vmatpush.bf16.msra.mxu0 %v3864
        %3907 = vmatmul.bf16.gmra.mxu0 %v3888
        %v3908 = vpop.f32.mrf.mxu0
        %v3909 = vadd.f32 0.0, %v3908
        %v3910 = vpop.f32.mrf.mxu0
        %v3911 = vadd.f32 0.0, %v3910
        %3912 = vmatmul.bf16.gmra.mxu0 %v3891
        %v3913 = vpop.f32.mrf.mxu0
        %v3914 = vadd.f32 0.0, %v3913
        %v3915 = vpop.f32.mrf.mxu0
        %v3916 = vadd.f32 0.0, %v3915
        %3917 = vmatmul.bf16.gmra.mxu0 %v3894
        %v3918 = vpop.f32.mrf.mxu0
        %v3919 = vadd.f32 0.0, %v3918
        %v3920 = vpop.f32.mrf.mxu0
        %v3921 = vadd.f32 0.0, %v3920
        %3922 = vmatmul.bf16.gmra.mxu0 %v3897
        %v3923 = vpop.f32.mrf.mxu0
        %v3924 = vadd.f32 0.0, %v3923
        %v3925 = vpop.f32.mrf.mxu0
        %v3926 = vadd.f32 0.0, %v3925
        %3927 = vdwg.mxu0
        %v3936 = vunpack.c.l.b16 %v3818
        %v3937 = vunpack.c.l.b16 %v3819
        %v3938 = vunpack.c.l.b16 %v3820
        %v3939 = vunpack.c.l.b16 %v3821
        %v3940 = vunpack.c.l.b16 %v3822
        %v3941 = vunpack.c.l.b16 %v3823
        %v3942 = vunpack.c.l.b16 %v3824
        %v3943 = vunpack.c.l.b16 %v3825
        %v3944 = vpack.c.b16 %v3937, %v3936
        %v3945 = vpack.c.b16 %v3939, %v3938
        %v3946 = vpack.c.b16 %v3941, %v3940
        %v3947 = vpack.c.b16 %v3943, %v3942
        %v3949 = vsel %vm3886, %v3944, 0
        %v3952 = vsel %vm3886, %v3945, 0
        %v3955 = vsel %vm3886, %v3946, 0
        %v3958 = vsel %vm3886, %v3947, 0
        %3960 = vmatpush.bf16.msra.mxu0 0
        %3961 = vmatpush.bf16.msra.mxu0 0
        %3962 = vmatpush.bf16.msra.mxu0 0
        %3963 = vmatpush.bf16.msra.mxu0 0
        %3964 = vmatpush.bf16.msra.mxu0 0
        %3965 = vmatpush.bf16.msra.mxu0 0
        %3966 = vmatpush.bf16.msra.mxu0 %v3827
        %3967 = vmatpush.bf16.msra.mxu0 %v3826
        %3968 = vmatmul.bf16.gmra.mxu0 %v3949
        %v3969 = vpop.f32.mrf.mxu0
        %v3970 = vadd.f32 %v3909, %v3969
        %v3971 = vpop.f32.mrf.mxu0
        %v3972 = vadd.f32 %v3911, %v3971
        %3973 = vmatmul.bf16.gmra.mxu0 %v3952
        %v3974 = vpop.f32.mrf.mxu0
        %v3975 = vadd.f32 %v3914, %v3974
        %v3976 = vpop.f32.mrf.mxu0
        %v3977 = vadd.f32 %v3916, %v3976
        %3978 = vmatmul.bf16.gmra.mxu0 %v3955
        %v3979 = vpop.f32.mrf.mxu0
        %v3980 = vadd.f32 %v3919, %v3979
        %v3981 = vpop.f32.mrf.mxu0
        %v3982 = vadd.f32 %v3921, %v3981
        %3983 = vmatmul.bf16.gmra.mxu0 %v3958
        %v3984 = vpop.f32.mrf.mxu0
        %v3985 = vadd.f32 %v3924, %v3984
        %v3986 = vpop.f32.mrf.mxu0
        %v3987 = vadd.f32 %v3926, %v3986
        %3988 = vdwg.mxu0
        %s3989 = scalar_lea.vmem [#allocation10], 16
        %v3990 = vld [vmem:[%s3989] sm:$0xf]
        %v3991 = vld [vmem:[%s3989 + $0x4] sm:$0xf]
        %v3994 = vunpack.c.l.b16 %v3990
        %v3995 = vunpack.c.l.b16 %v3991
        %v3996 = vpack.c.b16 %v3995, %v3994
        %3998 = vmatpush.bf16.msra.mxu0 0
        %3999 = vmatpush.bf16.msra.mxu0 0
        %4000 = vmatpush.bf16.msra.mxu0 0
        %4001 = vmatpush.bf16.msra.mxu0 0
        %4002 = vmatpush.bf16.msra.mxu0 0
        %4003 = vmatpush.bf16.msra.mxu0 0
        %4004 = vmatpush.bf16.msra.mxu0 0
        %4005 = vmatpush.bf16.msra.mxu0 %v3996
        %4006 = vmatmul.bf16.gmra.mxu0 %v3794
        %v4007 = vpop.f32.mrf.mxu0
        %v4008 = vadd.f32 0.0, %v4007
        %v4009 = vpop.f32.mrf.mxu0
        %v4010 = vadd.f32 0.0, %v4009
        %4011 = vmatmul.bf16.gmra.mxu0 %v3797
        %v4012 = vpop.f32.mrf.mxu0
        %v4013 = vadd.f32 0.0, %v4012
        %v4014 = vpop.f32.mrf.mxu0
        %v4015 = vadd.f32 0.0, %v4014
        %4016 = vdwg.mxu0
        %v4017 = vld [vmem:[#allocation12 + $0x40] sm:$0xf]
        %v4018 = vld [vmem:[#allocation12 + $0x44] sm:$0xf]
        %v4019 = vld [vmem:[#allocation12 + $0x48] sm:$0xf]
        %v4020 = vld [vmem:[#allocation12 + $0x4c] sm:$0xf]
        %v4021 = vld [vmem:[#allocation12 + $0x50] sm:$0xf]
        %v4022 = vld [vmem:[#allocation12 + $0x54] sm:$0xf]
        %v4023 = vld [vmem:[#allocation12 + $0x58] sm:$0xf]
        %v4024 = vld [vmem:[#allocation12 + $0x5c] sm:$0xf]
        %v4025 = vpack.c.bf16 %v4010, %v4008
        %v4026 = vpack.c.bf16 %v4015, %v4013
        %v4035 = vunpack.c.l.b16 %v4017
        %v4036 = vunpack.c.l.b16 %v4018
        %v4037 = vunpack.c.l.b16 %v4019
        %v4038 = vunpack.c.l.b16 %v4020
        %v4039 = vunpack.c.l.b16 %v4021
        %v4040 = vunpack.c.l.b16 %v4022
        %v4041 = vunpack.c.l.b16 %v4023
        %v4042 = vunpack.c.l.b16 %v4024
        %v4043 = vpack.c.b16 %v4036, %v4035
        %v4044 = vpack.c.b16 %v4038, %v4037
        %v4045 = vpack.c.b16 %v4040, %v4039
        %v4046 = vpack.c.b16 %v4042, %v4041
        %v4048 = vsel %vm3886, %v4043, 0
        %v4051 = vsel %vm3886, %v4044, 0
        %v4054 = vsel %vm3886, %v4045, 0
        %v4057 = vsel %vm3886, %v4046, 0
        %4059 = vmatpush.bf16.msra.mxu0 0
        %4060 = vmatpush.bf16.msra.mxu0 0
        %4061 = vmatpush.bf16.msra.mxu0 0
        %4062 = vmatpush.bf16.msra.mxu0 0
        %4063 = vmatpush.bf16.msra.mxu0 0
        %4064 = vmatpush.bf16.msra.mxu0 0
        %4065 = vmatpush.bf16.msra.mxu0 %v4026
        %4066 = vmatpush.bf16.msra.mxu0 %v4025
        %4067 = vmatmul.bf16.gmra.mxu0 %v4048
        %v4068 = vpop.f32.mrf.mxu0
        %v4069 = vadd.f32 0.0, %v4068
        %v4070 = vpop.f32.mrf.mxu0
        %v4071 = vadd.f32 0.0, %v4070
        %4072 = vmatmul.bf16.gmra.mxu0 %v4051
        %v4073 = vpop.f32.mrf.mxu0
        %v4074 = vadd.f32 0.0, %v4073
        %v4075 = vpop.f32.mrf.mxu0
        %v4076 = vadd.f32 0.0, %v4075
        %4077 = vmatmul.bf16.gmra.mxu0 %v4054
        %v4078 = vpop.f32.mrf.mxu0
        %v4079 = vadd.f32 0.0, %v4078
        %v4080 = vpop.f32.mrf.mxu0
        %v4081 = vadd.f32 0.0, %v4080
        %4082 = vmatmul.bf16.gmra.mxu0 %v4057
        %v4083 = vpop.f32.mrf.mxu0
        %v4084 = vadd.f32 0.0, %v4083
        %v4085 = vpop.f32.mrf.mxu0
        %v4086 = vadd.f32 0.0, %v4085
        %4087 = vdwg.mxu0
        %v4088 = vadd.f32 %v3970, %v4069
        %v4089 = vadd.f32 %v3972, %v4071
        %v4090 = vadd.f32 %v3975, %v4074
        %v4091 = vadd.f32 %v3977, %v4076
        %v4092 = vadd.f32 %v3980, %v4079
        %v4093 = vadd.f32 %v3982, %v4081
        %v4094 = vadd.f32 %v3985, %v4084
        %v4095 = vadd.f32 %v3987, %v4086
        %s4096 = scalar_lea.vmem [#allocation10], 24
        %v4097 = vld [vmem:[%s4096] sm:$0xf]
        %v4098 = vld [vmem:[%s4096 + $0x4] sm:$0xf]
        %v4101 = vunpack.c.l.b16 %v4097
        %v4102 = vunpack.c.l.b16 %v4098
        %v4103 = vpack.c.b16 %v4102, %v4101
        %4105 = vmatpush.bf16.msra.mxu0 0
        %4106 = vmatpush.bf16.msra.mxu0 0
        %4107 = vmatpush.bf16.msra.mxu0 0
        %4108 = vmatpush.bf16.msra.mxu0 0
        %4109 = vmatpush.bf16.msra.mxu0 0
        %4110 = vmatpush.bf16.msra.mxu0 0
        %4111 = vmatpush.bf16.msra.mxu0 0
        %4112 = vmatpush.bf16.msra.mxu0 %v4103
        %4113 = vmatmul.bf16.gmra.mxu0 %v3794
        %v4114 = vpop.f32.mrf.mxu0
        %v4115 = vadd.f32 0.0, %v4114
        %v4116 = vpop.f32.mrf.mxu0
        %v4117 = vadd.f32 0.0, %v4116
        %4118 = vmatmul.bf16.gmra.mxu0 %v3797
        %v4119 = vpop.f32.mrf.mxu0
        %v4120 = vadd.f32 0.0, %v4119
        %v4121 = vpop.f32.mrf.mxu0
        %v4122 = vadd.f32 0.0, %v4121
        %4123 = vdwg.mxu0
        %v4124 = vld [vmem:[#allocation12 + $0x60] sm:$0xf]
        %v4125 = vld [vmem:[#allocation12 + $0x64] sm:$0xf]
        %v4126 = vld [vmem:[#allocation12 + $0x68] sm:$0xf]
        %v4127 = vld [vmem:[#allocation12 + $0x6c] sm:$0xf]
        %v4128 = vld [vmem:[#allocation12 + $0x70] sm:$0xf]
        %v4129 = vld [vmem:[#allocation12 + $0x74] sm:$0xf]
        %v4130 = vld [vmem:[#allocation12 + $0x78] sm:$0xf]
        %v4131 = vld [vmem:[#allocation12 + $0x7c] sm:$0xf]
        %v4132 = vpack.c.bf16 %v4117, %v4115
        %v4133 = vpack.c.bf16 %v4122, %v4120
        %v4142 = vunpack.c.l.b16 %v4124
        %v4143 = vunpack.c.l.b16 %v4125
        %v4144 = vunpack.c.l.b16 %v4126
        %v4145 = vunpack.c.l.b16 %v4127
        %v4146 = vunpack.c.l.b16 %v4128
        %v4147 = vunpack.c.l.b16 %v4129
        %v4148 = vunpack.c.l.b16 %v4130
        %v4149 = vunpack.c.l.b16 %v4131
        %v4150 = vpack.c.b16 %v4143, %v4142
        %v4151 = vpack.c.b16 %v4145, %v4144
        %v4152 = vpack.c.b16 %v4147, %v4146
        %v4153 = vpack.c.b16 %v4149, %v4148
        %v4155 = vsel %vm3886, %v4150, 0
        %v4158 = vsel %vm3886, %v4151, 0
        %v4161 = vsel %vm3886, %v4152, 0
        %v4164 = vsel %vm3886, %v4153, 0
        %4166 = vmatpush.bf16.msra.mxu0 0
        %4167 = vmatpush.bf16.msra.mxu0 0
        %4168 = vmatpush.bf16.msra.mxu0 0
        %4169 = vmatpush.bf16.msra.mxu0 0
        %4170 = vmatpush.bf16.msra.mxu0 0
        %4171 = vmatpush.bf16.msra.mxu0 0
        %4172 = vmatpush.bf16.msra.mxu0 %v4133
        %4173 = vmatpush.bf16.msra.mxu0 %v4132
        %4174 = vmatmul.bf16.gmra.mxu0 %v4155
        %v4175 = vpop.f32.mrf.mxu0
        %v4176 = vadd.f32 0.0, %v4175
        %v4177 = vpop.f32.mrf.mxu0
        %v4178 = vadd.f32 0.0, %v4177
        %4179 = vmatmul.bf16.gmra.mxu0 %v4158
        %v4180 = vpop.f32.mrf.mxu0
        %v4181 = vadd.f32 0.0, %v4180
        %v4182 = vpop.f32.mrf.mxu0
        %v4183 = vadd.f32 0.0, %v4182
        %4184 = vmatmul.bf16.gmra.mxu0 %v4161
        %v4185 = vpop.f32.mrf.mxu0
        %v4186 = vadd.f32 0.0, %v4185
        %v4187 = vpop.f32.mrf.mxu0
        %v4188 = vadd.f32 0.0, %v4187
        %4189 = vmatmul.bf16.gmra.mxu0 %v4164
        %v4190 = vpop.f32.mrf.mxu0
        %v4191 = vadd.f32 0.0, %v4190
        %v4192 = vpop.f32.mrf.mxu0
        %v4193 = vadd.f32 0.0, %v4192
        %4194 = vdwg.mxu0
        %v4195 = vadd.f32 %v4088, %v4176
        %v4196 = vadd.f32 %v4089, %v4178
        %v4197 = vadd.f32 %v4090, %v4181
        %v4198 = vadd.f32 %v4091, %v4183
        %v4199 = vadd.f32 %v4092, %v4186
        %v4200 = vadd.f32 %v4093, %v4188
        %v4201 = vadd.f32 %v4094, %v4191
        %v4202 = vadd.f32 %v4095, %v4193
        %s4203 = scalar_lea.vmem [#allocation10], 32
        %v4204 = vld [vmem:[%s4203] sm:$0xf]
        %v4205 = vld [vmem:[%s4203 + $0x4] sm:$0xf]
        %v4208 = vunpack.c.l.b16 %v4204
        %v4209 = vunpack.c.l.b16 %v4205
        %v4210 = vpack.c.b16 %v4209, %v4208
        %4212 = vmatpush.bf16.msra.mxu0 0
        %4213 = vmatpush.bf16.msra.mxu0 0
        %4214 = vmatpush.bf16.msra.mxu0 0
        %4215 = vmatpush.bf16.msra.mxu0 0
        %4216 = vmatpush.bf16.msra.mxu0 0
        %4217 = vmatpush.bf16.msra.mxu0 0
        %4218 = vmatpush.bf16.msra.mxu0 0
        %4219 = vmatpush.bf16.msra.mxu0 %v4210
        %4220 = vmatmul.bf16.gmra.mxu0 %v3794
        %v4221 = vpop.f32.mrf.mxu0
        %v4222 = vadd.f32 0.0, %v4221
        %v4223 = vpop.f32.mrf.mxu0
        %v4224 = vadd.f32 0.0, %v4223
        %4225 = vmatmul.bf16.gmra.mxu0 %v3797
        %v4226 = vpop.f32.mrf.mxu0
        %v4227 = vadd.f32 0.0, %v4226
        %v4228 = vpop.f32.mrf.mxu0
        %v4229 = vadd.f32 0.0, %v4228
        %4230 = vdwg.mxu0
        %v4231 = vld [vmem:[#allocation12 + $0x80] sm:$0xf]
        %v4232 = vld [vmem:[#allocation12 + $0x84] sm:$0xf]
        %v4233 = vld [vmem:[#allocation12 + $0x88] sm:$0xf]
        %v4234 = vld [vmem:[#allocation12 + $0x8c] sm:$0xf]
        %v4235 = vld [vmem:[#allocation12 + $0x90] sm:$0xf]
        %v4236 = vld [vmem:[#allocation12 + $0x94] sm:$0xf]
        %v4237 = vld [vmem:[#allocation12 + $0x98] sm:$0xf]
        %v4238 = vld [vmem:[#allocation12 + $0x9c] sm:$0xf]
        %v4239 = vpack.c.bf16 %v4224, %v4222
        %v4240 = vpack.c.bf16 %v4229, %v4227
        %v4249 = vunpack.c.l.b16 %v4231
        %v4250 = vunpack.c.l.b16 %v4232
        %v4251 = vunpack.c.l.b16 %v4233
        %v4252 = vunpack.c.l.b16 %v4234
        %v4253 = vunpack.c.l.b16 %v4235
        %v4254 = vunpack.c.l.b16 %v4236
        %v4255 = vunpack.c.l.b16 %v4237
        %v4256 = vunpack.c.l.b16 %v4238
        %v4257 = vpack.c.b16 %v4250, %v4249
        %v4258 = vpack.c.b16 %v4252, %v4251
        %v4259 = vpack.c.b16 %v4254, %v4253
        %v4260 = vpack.c.b16 %v4256, %v4255
        %v4262 = vsel %vm3886, %v4257, 0
        %v4265 = vsel %vm3886, %v4258, 0
        %v4268 = vsel %vm3886, %v4259, 0
        %v4271 = vsel %vm3886, %v4260, 0
        %4273 = vmatpush.bf16.msra.mxu0 0
        %4274 = vmatpush.bf16.msra.mxu0 0
        %4275 = vmatpush.bf16.msra.mxu0 0
        %4276 = vmatpush.bf16.msra.mxu0 0
        %4277 = vmatpush.bf16.msra.mxu0 0
        %4278 = vmatpush.bf16.msra.mxu0 0
        %4279 = vmatpush.bf16.msra.mxu0 %v4240
        %4280 = vmatpush.bf16.msra.mxu0 %v4239
        %4281 = vmatmul.bf16.gmra.mxu0 %v4262
        %v4282 = vpop.f32.mrf.mxu0
        %v4283 = vadd.f32 0.0, %v4282
        %v4284 = vpop.f32.mrf.mxu0
        %v4285 = vadd.f32 0.0, %v4284
        %4286 = vmatmul.bf16.gmra.mxu0 %v4265
        %v4287 = vpop.f32.mrf.mxu0
        %v4288 = vadd.f32 0.0, %v4287
        %v4289 = vpop.f32.mrf.mxu0
        %v4290 = vadd.f32 0.0, %v4289
        %4291 = vmatmul.bf16.gmra.mxu0 %v4268
        %v4292 = vpop.f32.mrf.mxu0
        %v4293 = vadd.f32 0.0, %v4292
        %v4294 = vpop.f32.mrf.mxu0
        %v4295 = vadd.f32 0.0, %v4294
        %4296 = vmatmul.bf16.gmra.mxu0 %v4271
        %v4297 = vpop.f32.mrf.mxu0
        %v4298 = vadd.f32 0.0, %v4297
        %v4299 = vpop.f32.mrf.mxu0
        %v4300 = vadd.f32 0.0, %v4299
        %4301 = vdwg.mxu0
        %v4302 = vadd.f32 %v4195, %v4283
        %v4303 = vadd.f32 %v4196, %v4285
        %v4304 = vadd.f32 %v4197, %v4288
        %v4305 = vadd.f32 %v4198, %v4290
        %v4306 = vadd.f32 %v4199, %v4293
        %v4307 = vadd.f32 %v4200, %v4295
        %v4308 = vadd.f32 %v4201, %v4298
        %v4309 = vadd.f32 %v4202, %v4300
        %s4310 = scalar_lea.vmem [#allocation10], 40
        %v4311 = vld [vmem:[%s4310] sm:$0xf]
        %v4312 = vld [vmem:[%s4310 + $0x4] sm:$0xf]
        %v4315 = vunpack.c.l.b16 %v4311
        %v4316 = vunpack.c.l.b16 %v4312
        %v4317 = vpack.c.b16 %v4316, %v4315
        %4319 = vmatpush.bf16.msra.mxu0 0
        %4320 = vmatpush.bf16.msra.mxu0 0
        %4321 = vmatpush.bf16.msra.mxu0 0
        %4322 = vmatpush.bf16.msra.mxu0 0
        %4323 = vmatpush.bf16.msra.mxu0 0
        %4324 = vmatpush.bf16.msra.mxu0 0
        %4325 = vmatpush.bf16.msra.mxu0 0
        %4326 = vmatpush.bf16.msra.mxu0 %v4317
        %4327 = vmatmul.bf16.gmra.mxu0 %v3794
        %v4328 = vpop.f32.mrf.mxu0
        %v4329 = vadd.f32 0.0, %v4328
        %v4330 = vpop.f32.mrf.mxu0
        %v4331 = vadd.f32 0.0, %v4330
        %4332 = vmatmul.bf16.gmra.mxu0 %v3797
        %v4333 = vpop.f32.mrf.mxu0
        %v4334 = vadd.f32 0.0, %v4333
        %v4335 = vpop.f32.mrf.mxu0
        %v4336 = vadd.f32 0.0, %v4335
        %4337 = vdwg.mxu0
        %v4338 = vld [vmem:[#allocation12 + $0xa0] sm:$0xf]
        %v4339 = vld [vmem:[#allocation12 + $0xa4] sm:$0xf]
        %v4340 = vld [vmem:[#allocation12 + $0xa8] sm:$0xf]
        %v4341 = vld [vmem:[#allocation12 + $0xac] sm:$0xf]
        %v4342 = vld [vmem:[#allocation12 + $0xb0] sm:$0xf]
        %v4343 = vld [vmem:[#allocation12 + $0xb4] sm:$0xf]
        %v4344 = vld [vmem:[#allocation12 + $0xb8] sm:$0xf]
        %v4345 = vld [vmem:[#allocation12 + $0xbc] sm:$0xf]
        %v4346 = vpack.c.bf16 %v4331, %v4329
        %v4347 = vpack.c.bf16 %v4336, %v4334
        %v4356 = vunpack.c.l.b16 %v4338
        %v4357 = vunpack.c.l.b16 %v4339
        %v4358 = vunpack.c.l.b16 %v4340
        %v4359 = vunpack.c.l.b16 %v4341
        %v4360 = vunpack.c.l.b16 %v4342
        %v4361 = vunpack.c.l.b16 %v4343
        %v4362 = vunpack.c.l.b16 %v4344
        %v4363 = vunpack.c.l.b16 %v4345
        %v4364 = vpack.c.b16 %v4357, %v4356
        %v4365 = vpack.c.b16 %v4359, %v4358
        %v4366 = vpack.c.b16 %v4361, %v4360
        %v4367 = vpack.c.b16 %v4363, %v4362
        %v4369 = vsel %vm3886, %v4364, 0
        %v4372 = vsel %vm3886, %v4365, 0
        %v4375 = vsel %vm3886, %v4366, 0
        %v4378 = vsel %vm3886, %v4367, 0
        %4380 = vmatpush.bf16.msra.mxu0 0
        %4381 = vmatpush.bf16.msra.mxu0 0
        %4382 = vmatpush.bf16.msra.mxu0 0
        %4383 = vmatpush.bf16.msra.mxu0 0
        %4384 = vmatpush.bf16.msra.mxu0 0
        %4385 = vmatpush.bf16.msra.mxu0 0
        %4386 = vmatpush.bf16.msra.mxu0 %v4347
        %4387 = vmatpush.bf16.msra.mxu0 %v4346
        %4388 = vmatmul.bf16.gmra.mxu0 %v4369
        %v4389 = vpop.f32.mrf.mxu0
        %v4390 = vadd.f32 0.0, %v4389
        %v4391 = vpop.f32.mrf.mxu0
        %v4392 = vadd.f32 0.0, %v4391
        %4393 = vmatmul.bf16.gmra.mxu0 %v4372
        %v4394 = vpop.f32.mrf.mxu0
        %v4395 = vadd.f32 0.0, %v4394
        %v4396 = vpop.f32.mrf.mxu0
        %v4397 = vadd.f32 0.0, %v4396
        %4398 = vmatmul.bf16.gmra.mxu0 %v4375
        %v4399 = vpop.f32.mrf.mxu0
        %v4400 = vadd.f32 0.0, %v4399
        %v4401 = vpop.f32.mrf.mxu0
        %v4402 = vadd.f32 0.0, %v4401
        %4403 = vmatmul.bf16.gmra.mxu0 %v4378
        %v4404 = vpop.f32.mrf.mxu0
        %v4405 = vadd.f32 0.0, %v4404
        %v4406 = vpop.f32.mrf.mxu0
        %v4407 = vadd.f32 0.0, %v4406
        %4408 = vdwg.mxu0
        %v4409 = vadd.f32 %v4302, %v4390
        %v4410 = vadd.f32 %v4303, %v4392
        %v4411 = vadd.f32 %v4304, %v4395
        %v4412 = vadd.f32 %v4305, %v4397
        %v4413 = vadd.f32 %v4306, %v4400
        %v4414 = vadd.f32 %v4307, %v4402
        %v4415 = vadd.f32 %v4308, %v4405
        %v4416 = vadd.f32 %v4309, %v4407
        %s4417 = scalar_lea.vmem [#allocation10], 48
        %v4418 = vld [vmem:[%s4417] sm:$0xf]
        %v4419 = vld [vmem:[%s4417 + $0x4] sm:$0xf]
        %v4422 = vunpack.c.l.b16 %v4418
        %v4423 = vunpack.c.l.b16 %v4419
        %v4424 = vpack.c.b16 %v4423, %v4422
        %4426 = vmatpush.bf16.msra.mxu0 0
        %4427 = vmatpush.bf16.msra.mxu0 0
        %4428 = vmatpush.bf16.msra.mxu0 0
        %4429 = vmatpush.bf16.msra.mxu0 0
        %4430 = vmatpush.bf16.msra.mxu0 0
        %4431 = vmatpush.bf16.msra.mxu0 0
        %4432 = vmatpush.bf16.msra.mxu0 0
        %4433 = vmatpush.bf16.msra.mxu0 %v4424
        %4434 = vmatmul.bf16.gmra.mxu0 %v3794
        %v4435 = vpop.f32.mrf.mxu0
        %v4436 = vadd.f32 0.0, %v4435
        %v4437 = vpop.f32.mrf.mxu0
        %v4438 = vadd.f32 0.0, %v4437
        %4439 = vmatmul.bf16.gmra.mxu0 %v3797
        %v4440 = vpop.f32.mrf.mxu0
        %v4441 = vadd.f32 0.0, %v4440
        %v4442 = vpop.f32.mrf.mxu0
        %v4443 = vadd.f32 0.0, %v4442
        %4444 = vdwg.mxu0
        %v4445 = vld [vmem:[#allocation12 + $0xc0] sm:$0xf]
        %v4446 = vld [vmem:[#allocation12 + $0xc4] sm:$0xf]
        %v4447 = vld [vmem:[#allocation12 + $0xc8] sm:$0xf]
        %v4448 = vld [vmem:[#allocation12 + $0xcc] sm:$0xf]
        %v4449 = vld [vmem:[#allocation12 + $0xd0] sm:$0xf]
        %v4450 = vld [vmem:[#allocation12 + $0xd4] sm:$0xf]
        %v4451 = vld [vmem:[#allocation12 + $0xd8] sm:$0xf]
        %v4452 = vld [vmem:[#allocation12 + $0xdc] sm:$0xf]
        %v4453 = vpack.c.bf16 %v4438, %v4436
        %v4454 = vpack.c.bf16 %v4443, %v4441
        %v4463 = vunpack.c.l.b16 %v4445
        %v4464 = vunpack.c.l.b16 %v4446
        %v4465 = vunpack.c.l.b16 %v4447
        %v4466 = vunpack.c.l.b16 %v4448
        %v4467 = vunpack.c.l.b16 %v4449
        %v4468 = vunpack.c.l.b16 %v4450
        %v4469 = vunpack.c.l.b16 %v4451
        %v4470 = vunpack.c.l.b16 %v4452
        %v4471 = vpack.c.b16 %v4464, %v4463
        %v4472 = vpack.c.b16 %v4466, %v4465
        %v4473 = vpack.c.b16 %v4468, %v4467
        %v4474 = vpack.c.b16 %v4470, %v4469
        %v4476 = vsel %vm3886, %v4471, 0
        %v4479 = vsel %vm3886, %v4472, 0
        %v4482 = vsel %vm3886, %v4473, 0
        %v4485 = vsel %vm3886, %v4474, 0
        %4487 = vmatpush.bf16.msra.mxu0 0
        %4488 = vmatpush.bf16.msra.mxu0 0
        %4489 = vmatpush.bf16.msra.mxu0 0
        %4490 = vmatpush.bf16.msra.mxu0 0
        %4491 = vmatpush.bf16.msra.mxu0 0
        %4492 = vmatpush.bf16.msra.mxu0 0
        %4493 = vmatpush.bf16.msra.mxu0 %v4454
        %4494 = vmatpush.bf16.msra.mxu0 %v4453
        %4495 = vmatmul.bf16.gmra.mxu0 %v4476
        %v4496 = vpop.f32.mrf.mxu0
        %v4497 = vadd.f32 0.0, %v4496
        %v4498 = vpop.f32.mrf.mxu0
        %v4499 = vadd.f32 0.0, %v4498
        %4500 = vmatmul.bf16.gmra.mxu0 %v4479
        %v4501 = vpop.f32.mrf.mxu0
        %v4502 = vadd.f32 0.0, %v4501
        %v4503 = vpop.f32.mrf.mxu0
        %v4504 = vadd.f32 0.0, %v4503
        %4505 = vmatmul.bf16.gmra.mxu0 %v4482
        %v4506 = vpop.f32.mrf.mxu0
        %v4507 = vadd.f32 0.0, %v4506
        %v4508 = vpop.f32.mrf.mxu0
        %v4509 = vadd.f32 0.0, %v4508
        %4510 = vmatmul.bf16.gmra.mxu0 %v4485
        %v4511 = vpop.f32.mrf.mxu0
        %v4512 = vadd.f32 0.0, %v4511
        %v4513 = vpop.f32.mrf.mxu0
        %v4514 = vadd.f32 0.0, %v4513
        %4515 = vdwg.mxu0
        %v4516 = vadd.f32 %v4409, %v4497
        %v4517 = vadd.f32 %v4410, %v4499
        %v4518 = vadd.f32 %v4411, %v4502
        %v4519 = vadd.f32 %v4412, %v4504
        %v4520 = vadd.f32 %v4413, %v4507
        %v4521 = vadd.f32 %v4414, %v4509
        %v4522 = vadd.f32 %v4415, %v4512
        %v4523 = vadd.f32 %v4416, %v4514
        %s4524 = scalar_lea.vmem [#allocation10], 56
        %v4525 = vld [vmem:[%s4524] sm:$0xf]
        %v4526 = vld [vmem:[%s4524 + $0x4] sm:$0xf]
        %v4529 = vunpack.c.l.b16 %v4525
        %v4530 = vunpack.c.l.b16 %v4526
        %v4531 = vpack.c.b16 %v4530, %v4529
        %4533 = vmatpush.bf16.msra.mxu0 0
        %4534 = vmatpush.bf16.msra.mxu0 0
        %4535 = vmatpush.bf16.msra.mxu0 0
        %4536 = vmatpush.bf16.msra.mxu0 0
        %4537 = vmatpush.bf16.msra.mxu0 0
        %4538 = vmatpush.bf16.msra.mxu0 0
        %4539 = vmatpush.bf16.msra.mxu0 0
        %4540 = vmatpush.bf16.msra.mxu0 %v4531
        %4541 = vmatmul.bf16.gmra.mxu0 %v3794
        %v4542 = vpop.f32.mrf.mxu0
        %v4543 = vadd.f32 0.0, %v4542
        %v4544 = vpop.f32.mrf.mxu0
        %v4545 = vadd.f32 0.0, %v4544
        %4546 = vmatmul.bf16.gmra.mxu0 %v3797
        %v4547 = vpop.f32.mrf.mxu0
        %v4548 = vadd.f32 0.0, %v4547
        %v4549 = vpop.f32.mrf.mxu0
        %v4550 = vadd.f32 0.0, %v4549
        %4551 = vdwg.mxu0
        %v4552 = vld [vmem:[#allocation12 + $0xe0] sm:$0xf]
        %v4553 = vld [vmem:[#allocation12 + $0xe4] sm:$0xf]
        %v4554 = vld [vmem:[#allocation12 + $0xe8] sm:$0xf]
        %v4555 = vld [vmem:[#allocation12 + $0xec] sm:$0xf]
        %v4556 = vld [vmem:[#allocation12 + $0xf0] sm:$0xf]
        %v4557 = vld [vmem:[#allocation12 + $0xf4] sm:$0xf]
        %v4558 = vld [vmem:[#allocation12 + $0xf8] sm:$0xf]
        %v4559 = vld [vmem:[#allocation12 + $0xfc] sm:$0xf]
        %v4560 = vpack.c.bf16 %v4545, %v4543
        %v4561 = vpack.c.bf16 %v4550, %v4548
        %v4570 = vunpack.c.l.b16 %v4552
        %v4571 = vunpack.c.l.b16 %v4553
        %v4572 = vunpack.c.l.b16 %v4554
        %v4573 = vunpack.c.l.b16 %v4555
        %v4574 = vunpack.c.l.b16 %v4556
        %v4575 = vunpack.c.l.b16 %v4557
        %v4576 = vunpack.c.l.b16 %v4558
        %v4577 = vunpack.c.l.b16 %v4559
        %v4578 = vpack.c.b16 %v4571, %v4570
        %v4579 = vpack.c.b16 %v4573, %v4572
        %v4580 = vpack.c.b16 %v4575, %v4574
        %v4581 = vpack.c.b16 %v4577, %v4576
        %v4583 = vsel %vm3886, %v4578, 0
        %v4586 = vsel %vm3886, %v4579, 0
        %v4589 = vsel %vm3886, %v4580, 0
        %v4592 = vsel %vm3886, %v4581, 0
        %4594 = vmatpush.bf16.msra.mxu0 0
        %4595 = vmatpush.bf16.msra.mxu0 0
        %4596 = vmatpush.bf16.msra.mxu0 0
        %4597 = vmatpush.bf16.msra.mxu0 0
        %4598 = vmatpush.bf16.msra.mxu0 0
        %4599 = vmatpush.bf16.msra.mxu0 0
        %4600 = vmatpush.bf16.msra.mxu0 %v4561
        %4601 = vmatpush.bf16.msra.mxu0 %v4560
        %4602 = vmatmul.bf16.gmra.mxu0 %v4583
        %v4603 = vpop.f32.mrf.mxu0
        %v4604 = vadd.f32 0.0, %v4603
        %v4605 = vpop.f32.mrf.mxu0
        %v4606 = vadd.f32 0.0, %v4605
        %4607 = vmatmul.bf16.gmra.mxu0 %v4586
        %v4608 = vpop.f32.mrf.mxu0
        %v4609 = vadd.f32 0.0, %v4608
        %v4610 = vpop.f32.mrf.mxu0
        %v4611 = vadd.f32 0.0, %v4610
        %4612 = vmatmul.bf16.gmra.mxu0 %v4589
        %v4613 = vpop.f32.mrf.mxu0
        %v4614 = vadd.f32 0.0, %v4613
        %v4615 = vpop.f32.mrf.mxu0
        %v4616 = vadd.f32 0.0, %v4615
        %4617 = vmatmul.bf16.gmra.mxu0 %v4592
        %v4618 = vpop.f32.mrf.mxu0
        %v4619 = vadd.f32 0.0, %v4618
        %v4620 = vpop.f32.mrf.mxu0
        %v4621 = vadd.f32 0.0, %v4620
        %4622 = vdwg.mxu0
        %v4623 = vadd.f32 %v4516, %v4604
        %v4624 = vadd.f32 %v4517, %v4606
        %v4625 = vadd.f32 %v4518, %v4609
        %v4626 = vadd.f32 %v4519, %v4611
        %v4627 = vadd.f32 %v4520, %v4614
        %v4628 = vadd.f32 %v4521, %v4616
        %v4629 = vadd.f32 %v4522, %v4619
        %v4630 = vadd.f32 %v4523, %v4621
        %s4631 = scalar_lea.vmem [#allocation10], 64
        %v4632 = vld [vmem:[%s4631] sm:$0xf]
        %v4633 = vld [vmem:[%s4631 + $0x4] sm:$0xf]
        %v4636 = vunpack.c.l.b16 %v4632
        %v4637 = vunpack.c.l.b16 %v4633
        %v4638 = vpack.c.b16 %v4637, %v4636
        %4640 = vmatpush.bf16.msra.mxu0 0
        %4641 = vmatpush.bf16.msra.mxu0 0
        %4642 = vmatpush.bf16.msra.mxu0 0
        %4643 = vmatpush.bf16.msra.mxu0 0
        %4644 = vmatpush.bf16.msra.mxu0 0
        %4645 = vmatpush.bf16.msra.mxu0 0
        %4646 = vmatpush.bf16.msra.mxu0 0
        %4647 = vmatpush.bf16.msra.mxu0 %v4638
        %4648 = vmatmul.bf16.gmra.mxu0 %v3794
        %v4649 = vpop.f32.mrf.mxu0
        %v4650 = vadd.f32 0.0, %v4649
        %v4651 = vpop.f32.mrf.mxu0
        %v4652 = vadd.f32 0.0, %v4651
        %4653 = vmatmul.bf16.gmra.mxu0 %v3797
        %v4654 = vpop.f32.mrf.mxu0
        %v4655 = vadd.f32 0.0, %v4654
        %v4656 = vpop.f32.mrf.mxu0
        %v4657 = vadd.f32 0.0, %v4656
        %4658 = vdwg.mxu0
        %v4659 = vld [vmem:[#allocation12 + $0x100] sm:$0xf]
        %v4660 = vld [vmem:[#allocation12 + $0x104] sm:$0xf]
        %v4661 = vld [vmem:[#allocation12 + $0x108] sm:$0xf]
        %v4662 = vld [vmem:[#allocation12 + $0x10c] sm:$0xf]
        %v4663 = vld [vmem:[#allocation12 + $0x110] sm:$0xf]
        %v4664 = vld [vmem:[#allocation12 + $0x114] sm:$0xf]
        %v4665 = vld [vmem:[#allocation12 + $0x118] sm:$0xf]
        %v4666 = vld [vmem:[#allocation12 + $0x11c] sm:$0xf]
        %v4667 = vpack.c.bf16 %v4652, %v4650
        %v4668 = vpack.c.bf16 %v4657, %v4655
        %v4677 = vunpack.c.l.b16 %v4659
        %v4678 = vunpack.c.l.b16 %v4660
        %v4679 = vunpack.c.l.b16 %v4661
        %v4680 = vunpack.c.l.b16 %v4662
        %v4681 = vunpack.c.l.b16 %v4663
        %v4682 = vunpack.c.l.b16 %v4664
        %v4683 = vunpack.c.l.b16 %v4665
        %v4684 = vunpack.c.l.b16 %v4666
        %v4685 = vpack.c.b16 %v4678, %v4677
        %v4686 = vpack.c.b16 %v4680, %v4679
        %v4687 = vpack.c.b16 %v4682, %v4681
        %v4688 = vpack.c.b16 %v4684, %v4683
        %v4690 = vsel %vm3886, %v4685, 0
        %v4693 = vsel %vm3886, %v4686, 0
        %v4696 = vsel %vm3886, %v4687, 0
        %v4699 = vsel %vm3886, %v4688, 0
        %4701 = vmatpush.bf16.msra.mxu0 0
        %4702 = vmatpush.bf16.msra.mxu0 0
        %4703 = vmatpush.bf16.msra.mxu0 0
        %4704 = vmatpush.bf16.msra.mxu0 0
        %4705 = vmatpush.bf16.msra.mxu0 0
        %4706 = vmatpush.bf16.msra.mxu0 0
        %4707 = vmatpush.bf16.msra.mxu0 %v4668
        %4708 = vmatpush.bf16.msra.mxu0 %v4667
        %4709 = vmatmul.bf16.gmra.mxu0 %v4690
        %v4710 = vpop.f32.mrf.mxu0
        %v4711 = vadd.f32 0.0, %v4710
        %v4712 = vpop.f32.mrf.mxu0
        %v4713 = vadd.f32 0.0, %v4712
        %4714 = vmatmul.bf16.gmra.mxu0 %v4693
        %v4715 = vpop.f32.mrf.mxu0
        %v4716 = vadd.f32 0.0, %v4715
        %v4717 = vpop.f32.mrf.mxu0
        %v4718 = vadd.f32 0.0, %v4717
        %4719 = vmatmul.bf16.gmra.mxu0 %v4696
        %v4720 = vpop.f32.mrf.mxu0
        %v4721 = vadd.f32 0.0, %v4720
        %v4722 = vpop.f32.mrf.mxu0
        %v4723 = vadd.f32 0.0, %v4722
        %4724 = vmatmul.bf16.gmra.mxu0 %v4699
        %v4725 = vpop.f32.mrf.mxu0
        %v4726 = vadd.f32 0.0, %v4725
        %v4727 = vpop.f32.mrf.mxu0
        %v4728 = vadd.f32 0.0, %v4727
        %4729 = vdwg.mxu0
        %v4730 = vadd.f32 %v4623, %v4711
        %v4731 = vadd.f32 %v4624, %v4713
        %v4732 = vadd.f32 %v4625, %v4716
        %v4733 = vadd.f32 %v4626, %v4718
        %v4734 = vadd.f32 %v4627, %v4721
        %v4735 = vadd.f32 %v4628, %v4723
        %v4736 = vadd.f32 %v4629, %v4726
        %v4737 = vadd.f32 %v4630, %v4728
        %4739 = vset.pattern.permute.xlu0 0
        %4740 = vperm.xlu0 %4739, %v3775
        %v4741 = vpop.permute.xlu0 %4740
        %4744 = vset.pattern.permute.xlu0 0
        %4745 = vperm.xlu0 %4744, %v3776
        %v4746 = vpop.permute.xlu0 %4745
        %4749 = vset.pattern.permute.xlu0 0
        %4750 = vperm.xlu0 %4749, %v3777
        %v4751 = vpop.permute.xlu0 %4750
        %4754 = vset.pattern.permute.xlu0 0
        %4755 = vperm.xlu0 %4754, %v3778
        %v4756 = vpop.permute.xlu0 %4755
        %4759 = vset.pattern.permute.xlu0 0
        %4760 = vperm.xlu0 %4759, %v3779
        %v4761 = vpop.permute.xlu0 %4760
        %4764 = vset.pattern.permute.xlu0 0
        %4765 = vperm.xlu0 %4764, %v3780
        %v4766 = vpop.permute.xlu0 %4765
        %4769 = vset.pattern.permute.xlu0 0
        %4770 = vperm.xlu0 %4769, %v3781
        %v4771 = vpop.permute.xlu0 %4770
        %4774 = vset.pattern.permute.xlu0 0
        %4775 = vperm.xlu0 %4774, %v3782
        %v4776 = vpop.permute.xlu0 %4775
        %v4778 = vadd.f32 %v4730, %v4741
        %v4779 = vadd.f32 %v4731, %v4746
        %v4780 = vadd.f32 %v4732, %v4751
        %v4781 = vadd.f32 %v4733, %v4756
        %v4782 = vadd.f32 %v4734, %v4761
        %v4783 = vadd.f32 %v4735, %v4766
        %v4784 = vadd.f32 %v4736, %v4771
        %v4785 = vadd.f32 %v4737, %v4776
        %v4786 = vmax.f32 %v4778, 0.0
        %v4787 = vmax.f32 %v4779, 0.0
        %v4788 = vmax.f32 %v4780, 0.0
        %v4789 = vmax.f32 %v4781, 0.0
        %v4790 = vmax.f32 %v4782, 0.0
        %v4791 = vmax.f32 %v4783, 0.0
        %v4792 = vmax.f32 %v4784, 0.0
        %v4793 = vmax.f32 %v4785, 0.0
        %v4794 = vld [vmem:[#allocation13] sm:$0xf]
        %v4795 = vld [vmem:[#allocation13 + $0x4] sm:$0xf]
        %v4796 = vld [vmem:[#allocation13 + $0x8] sm:$0xf]
        %v4797 = vld [vmem:[#allocation13 + $0xc] sm:$0xf]
        %v4798 = vpack.c.bf16 %v4787, %v4786
        %v4799 = vpack.c.bf16 %v4789, %v4788
        %v4800 = vpack.c.bf16 %v4791, %v4790
        %v4801 = vpack.c.bf16 %v4793, %v4792
        %v4802 = vld [vmem:[#allocation15] sm:$0xff]
        %v4803 = vld [vmem:[#allocation15 + $0x8] sm:$0xff]
        %v4804 = vld [vmem:[#allocation15 + $0x10] sm:$0xff]
        %v4805 = vld [vmem:[#allocation15 + $0x18] sm:$0xff]
        %4807 = vset.pattern.permute.xlu0 0
        %4808 = vperm.xlu0 %4807, %v4802
        %v4809 = vpop.permute.xlu0 %4808
        %4812 = vset.pattern.permute.xlu0 0
        %4813 = vperm.xlu0 %4812, %v4803
        %v4814 = vpop.permute.xlu0 %4813
        %4817 = vset.pattern.permute.xlu0 0
        %4818 = vperm.xlu0 %4817, %v4804
        %v4819 = vpop.permute.xlu0 %4818
        %4822 = vset.pattern.permute.xlu0 0
        %4823 = vperm.xlu0 %4822, %v4805
        %v4824 = vpop.permute.xlu0 %4823
        %v4830 = vunpack.c.l.b16 %v4794
        %v4831 = vunpack.c.l.b16 %v4795
        %v4832 = vunpack.c.l.b16 %v4796
        %v4833 = vunpack.c.l.b16 %v4797
        %v4834 = vpack.c.b16 %v4831, %v4830
        %v4835 = vpack.c.b16 %v4833, %v4832
        %v4837 = vsel %vm2964, %v4834, 0
        %v4840 = vsel %vm2964, %v4835, 0
        %4842 = vmatpush.bf16.msra.mxu0 0
        %4843 = vmatpush.bf16.msra.mxu0 0
        %4844 = vmatpush.bf16.msra.mxu0 0
        %4845 = vmatpush.bf16.msra.mxu0 0
        %4846 = vmatpush.bf16.msra.mxu0 %v4801
        %4847 = vmatpush.bf16.msra.mxu0 %v4800
        %4848 = vmatpush.bf16.msra.mxu0 %v4799
        %4849 = vmatpush.bf16.msra.mxu0 %v4798
        %4850 = vmatmul.bf16.gmra.mxu0 %v4837
        %v4851 = vpop.f32.mrf.mxu0
        %v4852 = vadd.f32 %v4809, %v4851
        %v4853 = vpop.f32.mrf.mxu0
        %v4854 = vadd.f32 %v4814, %v4853
        %4855 = vmatmul.bf16.gmra.mxu0 %v4840
        %v4856 = vpop.f32.mrf.mxu0
        %v4857 = vadd.f32 %v4819, %v4856
        %v4858 = vpop.f32.mrf.mxu0
        %v4859 = vadd.f32 %v4824, %v4858
        %4860 = vdwg.mxu0
        %v4861 = vmax.f32 %v4852, 0.0
        %v4862 = vmax.f32 %v4854, 0.0
        %v4863 = vmax.f32 %v4857, 0.0
        %v4864 = vmax.f32 %v4859, 0.0
        %vm4865 = vcmask 31744
        %v4866 = vsel %vm4865, %v4786, 0.0
        %4867 = vadd.xlane.f32.xlu0 %v4866
        %v4868 = vpop.xlane.xlu0 %4867
        %v4869 = vsel %vm4865, %v4787, 0.0
        %4870 = vadd.xlane.f32.xlu0 %v4869
        %v4871 = vpop.xlane.xlu0 %4870
        %v4872 = vsel %vm4865, %v4788, 0.0
        %4873 = vadd.xlane.f32.xlu0 %v4872
        %v4874 = vpop.xlane.xlu0 %4873
        %v4875 = vsel %vm4865, %v4789, 0.0
        %4876 = vadd.xlane.f32.xlu0 %v4875
        %v4877 = vpop.xlane.xlu0 %4876
        %v4878 = vsel %vm4865, %v4790, 0.0
        %4879 = vadd.xlane.f32.xlu0 %v4878
        %v4880 = vpop.xlane.xlu0 %4879
        %v4881 = vsel %vm4865, %v4791, 0.0
        %4882 = vadd.xlane.f32.xlu0 %v4881
        %v4883 = vpop.xlane.xlu0 %4882
        %v4884 = vsel %vm4865, %v4792, 0.0
        %4885 = vadd.xlane.f32.xlu0 %v4884
        %v4886 = vpop.xlane.xlu0 %4885
        %v4887 = vsel %vm4865, %v4793, 0.0
        %4888 = vadd.xlane.f32.xlu0 %v4887
        %v4889 = vpop.xlane.xlu0 %4888
        %v4890 = vrcp.pop 4.0
        %v4891 = vmul.f32 4.0, %v4890
        %v4892 = vsub.f32 1.0, %v4891
        %v4893 = vmul.f32 %v4890, %v4892
        %v4894 = vadd.f32 %v4890, %v4893
        %vm4895 = vweird.f32 %v4890
        %v4896 = vsel %vm4895, %v4890, %v4894
        %v4897 = vmul.f32 %v4868, %v4896
        %v4898 = vmul.f32 %v4871, %v4896
        %v4899 = vmul.f32 %v4874, %v4896
        %v4900 = vmul.f32 %v4877, %v4896
        %v4901 = vmul.f32 %v4880, %v4896
        %v4902 = vmul.f32 %v4883, %v4896
        %v4903 = vmul.f32 %v4886, %v4896
        %v4904 = vmul.f32 %v4889, %v4896
        %v4905 = vld [vmem:[#allocation16] sm:$0xf]
        %v4906 = vld [vmem:[#allocation16 + $0x4] sm:$0xf]
        %v4907 = vld [vmem:[#allocation16 + $0x8] sm:$0xf]
        %v4908 = vld [vmem:[#allocation16 + $0xc] sm:$0xf]
        %v4909 = vpack.c.bf16 %v4898, %v4897
        %v4910 = vpack.c.bf16 %v4900, %v4899
        %v4911 = vpack.c.bf16 %v4902, %v4901
        %v4912 = vpack.c.bf16 %v4904, %v4903
        %v4913 = vld [vmem:[#allocation18] sm:$0xff]
        %v4914 = vld [vmem:[#allocation18 + $0x8] sm:$0xff]
        %v4915 = vld [vmem:[#allocation18 + $0x10] sm:$0xff]
        %v4916 = vld [vmem:[#allocation18 + $0x18] sm:$0xff]
        %v4921 = vunpack.c.l.b16 %v4905
        %v4922 = vunpack.c.l.b16 %v4906
        %v4923 = vunpack.c.l.b16 %v4907
        %v4924 = vunpack.c.l.b16 %v4908
        %v4925 = vpack.c.b16 %v4922, %v4921
        %v4926 = vpack.c.b16 %v4924, %v4923
        %v4928 = vsel %vm2964, %v4925, 0
        %v4931 = vsel %vm2964, %v4926, 0
        %4933 = vmatpush.bf16.msra.mxu0 0
        %4934 = vmatpush.bf16.msra.mxu0 0
        %4935 = vmatpush.bf16.msra.mxu0 0
        %4936 = vmatpush.bf16.msra.mxu0 0
        %4937 = vmatpush.bf16.msra.mxu0 %v4912
        %4938 = vmatpush.bf16.msra.mxu0 %v4911
        %4939 = vmatpush.bf16.msra.mxu0 %v4910
        %4940 = vmatpush.bf16.msra.mxu0 %v4909
        %4941 = vmatmul.bf16.gmra.mxu0 %v4928
        %v4942 = vpop.f32.mrf.mxu0
        %v4943 = vadd.f32 %v4913, %v4942
        %v4944 = vpop.f32.mrf.mxu0
        %v4945 = vadd.f32 %v4914, %v4944
        %4946 = vmatmul.bf16.gmra.mxu0 %v4931
        %v4947 = vpop.f32.mrf.mxu0
        %v4948 = vadd.f32 %v4915, %v4947
        %v4949 = vpop.f32.mrf.mxu0
        %v4950 = vadd.f32 %v4916, %v4949
        %4951 = vdwg.mxu0
        %v4952 = vmax.f32 %v4943, 0.0
        %v4953 = vmax.f32 %v4945, 0.0
        %v4954 = vmax.f32 %v4948, 0.0
        %v4955 = vmax.f32 %v4950, 0.0
        %v4956 = vld [vmem:[#allocation19] sm:$0xf]
        %v4957 = vld [vmem:[#allocation19 + $0x4] sm:$0xf]
        %v4958 = vld [vmem:[#allocation19 + $0x8] sm:$0xf]
        %v4959 = vld [vmem:[#allocation19 + $0xc] sm:$0xf]
        %v4960 = vpack.c.bf16 %v4862, %v4861
        %v4961 = vpack.c.bf16 %v4864, %v4863
        %v4962 = vld [vmem:[#allocation21] sm:$0xf]
        %v4963 = vld [vmem:[#allocation21 + $0x4] sm:$0xf]
        %v4964 = vld [vmem:[#allocation21 + $0x8] sm:$0xf]
        %v4965 = vld [vmem:[#allocation21 + $0xc] sm:$0xf]
        %v4966 = vpack.c.bf16 %v4953, %v4952
        %v4967 = vpack.c.bf16 %v4955, %v4954
        %v4972 = vunpack.c.l.b16 %v4962
        %v4973 = vunpack.c.l.b16 %v4963
        %v4974 = vunpack.c.l.b16 %v4964
        %v4975 = vunpack.c.l.b16 %v4965
        %v4976 = vpack.c.b16 %v4973, %v4972
        %v4977 = vpack.c.b16 %v4975, %v4974
        %v4979 = vsel %vm3886, %v4976, 0
        %v4982 = vsel %vm3886, %v4977, 0
        %4984 = vmatpush.bf16.msra.mxu0 0
        %4985 = vmatpush.bf16.msra.mxu0 0
        %4986 = vmatpush.bf16.msra.mxu0 0
        %4987 = vmatpush.bf16.msra.mxu0 0
        %4988 = vmatpush.bf16.msra.mxu0 0
        %4989 = vmatpush.bf16.msra.mxu0 0
        %4990 = vmatpush.bf16.msra.mxu0 %v4967
        %4991 = vmatpush.bf16.msra.mxu0 %v4966
        %4992 = vmatmul.bf16.gmra.mxu0 %v4979
        %v4993 = vpop.f32.mrf.mxu0
        %v4994 = vadd.f32 0.0, %v4993
        %v4995 = vpop.f32.mrf.mxu0
        %v4996 = vadd.f32 0.0, %v4995
        %4997 = vmatmul.bf16.gmra.mxu0 %v4982
        %v4998 = vpop.f32.mrf.mxu0
        %v4999 = vadd.f32 0.0, %v4998
        %v5000 = vpop.f32.mrf.mxu0
        %v5001 = vadd.f32 0.0, %v5000
        %5002 = vdwg.mxu0
        %5004 = vset.pattern.permute.xlu0 0
        %5005 = vperm.xlu0 %5004, %v4994
        %v5006 = vpop.permute.xlu0 %5005
        %5009 = vset.pattern.permute.xlu0 0
        %5010 = vperm.xlu0 %5009, %v4996
        %v5011 = vpop.permute.xlu0 %5010
        %5014 = vset.pattern.permute.xlu0 0
        %5015 = vperm.xlu0 %5014, %v4999
        %v5016 = vpop.permute.xlu0 %5015
        %5019 = vset.pattern.permute.xlu0 0
        %5020 = vperm.xlu0 %5019, %v5001
        %v5021 = vpop.permute.xlu0 %5020
        %v5027 = vunpack.c.l.b16 %v4956
        %v5028 = vunpack.c.l.b16 %v4957
        %v5029 = vunpack.c.l.b16 %v4958
        %v5030 = vunpack.c.l.b16 %v4959
        %v5031 = vpack.c.b16 %v5028, %v5027
        %v5032 = vpack.c.b16 %v5030, %v5029
        %v5034 = vsel %vm3886, %v5031, 0
        %v5037 = vsel %vm3886, %v5032, 0
        %5039 = vmatpush.bf16.msra.mxu0 0
        %5040 = vmatpush.bf16.msra.mxu0 0
        %5041 = vmatpush.bf16.msra.mxu0 0
        %5042 = vmatpush.bf16.msra.mxu0 0
        %5043 = vmatpush.bf16.msra.mxu0 0
        %5044 = vmatpush.bf16.msra.mxu0 0
        %5045 = vmatpush.bf16.msra.mxu0 %v4961
        %5046 = vmatpush.bf16.msra.mxu0 %v4960
        %5047 = vmatmul.bf16.gmra.mxu0 %v5034
        %v5048 = vpop.f32.mrf.mxu0
        %v5049 = vadd.f32 %v5006, %v5048
        %v5050 = vpop.f32.mrf.mxu0
        %v5051 = vadd.f32 %v5011, %v5050
        %5052 = vmatmul.bf16.gmra.mxu0 %v5037
        %v5053 = vpop.f32.mrf.mxu0
        %v5054 = vadd.f32 %v5016, %v5053
        %v5055 = vpop.f32.mrf.mxu0
        %v5056 = vadd.f32 %v5021, %v5055
        %5057 = vdwg.mxu0
        %v5058 = vld [vmem:[#allocation22] sm:$0xff]
        %v5059 = vld [vmem:[#allocation22 + $0x8] sm:$0xff]
        %v5060 = vld [vmem:[#allocation22 + $0x10] sm:$0xff]
        %v5061 = vld [vmem:[#allocation22 + $0x18] sm:$0xff]
        %5063 = vset.pattern.permute.xlu0 0
        %5064 = vperm.xlu0 %5063, %v5058
        %v5065 = vpop.permute.xlu0 %5064
        %5068 = vset.pattern.permute.xlu0 0
        %5069 = vperm.xlu0 %5068, %v5059
        %v5070 = vpop.permute.xlu0 %5069
        %5073 = vset.pattern.permute.xlu0 0
        %5074 = vperm.xlu0 %5073, %v5060
        %v5075 = vpop.permute.xlu0 %5074
        %5078 = vset.pattern.permute.xlu0 0
        %5079 = vperm.xlu0 %5078, %v5061
        %v5080 = vpop.permute.xlu0 %5079
        %v5082 = vadd.f32 %v5049, %v5065
        %v5083 = vadd.f32 %v5051, %v5070
        %v5084 = vadd.f32 %v5054, %v5075
        %v5085 = vadd.f32 %v5056, %v5080
        %v5086 = vmax.f32 %v5082, 0.0
        %v5087 = vmax.f32 %v5083, 0.0
        %v5088 = vmax.f32 %v5084, 0.0
        %v5089 = vmax.f32 %v5085, 0.0
        %v5090 = vld [vmem:[#allocation24] sm:$0xf]
        %v5091 = vld [vmem:[#allocation25] sm:$0xff]
        %5093 = vset.pattern.permute.xlu0 0
        %5094 = vperm.xlu0 %5093, %v5091
        %v5095 = vpop.permute.xlu0 %5094
        %v5098 = vsel %vm3886, %v5090, 0
        %5100 = vmatpush.bf16.msra.mxu0 0
        %5101 = vmatpush.bf16.msra.mxu0 0
        %5102 = vmatpush.bf16.msra.mxu0 0
        %5103 = vmatpush.bf16.msra.mxu0 0
        %5104 = vmatpush.bf16.msra.mxu0 0
        %5105 = vmatpush.bf16.msra.mxu0 0
        %5106 = vmatpush.bf16.msra.mxu0 %v3784
        %5107 = vmatpush.bf16.msra.mxu0 %v3783
        %5108 = vmatmul.bf16.gmra.mxu0 %v5098
        %v5109 = vpop.f32.mrf.mxu0
        %v5110 = vadd.f32 %v5095, %v5109
        %v5111 = vpop.f32.mrf.mxu0
        %5112 = vdwg.mxu0
        %v5113 = vmax.f32 %v5110, 0.0
        %v5114 = vpack.c.bf16 %v5087, %v5086
        %v5115 = vpack.c.bf16 %v5089, %v5088
        %v5116 = vld [vmem:[#allocation27] sm:$0x3]
        %v5118 = vsel %vm4865, %v5114, 0
        %v5121 = vsel %vm4865, %v5115, 0
        %v5124 = vsel %vm1583, %v5116, 0
        %5126 = vmatpush.bf16.msra.mxu0 0
        %5127 = vmatpush.bf16.msra.mxu0 0
        %5128 = vmatpush.bf16.msra.mxu0 0
        %5129 = vmatpush.bf16.msra.mxu0 0
        %5130 = vmatpush.bf16.msra.mxu0 0
        %5131 = vmatpush.bf16.msra.mxu0 0
        %5132 = vmatpush.bf16.msra.mxu0 0
        %5133 = vmatpush.bf16.msra.mxu0 %v5124
        %5134 = vmatmul.bf16.gmra.mxu0 %v5118
        %v5135 = vpop.f32.mrf.mxu0
        %v5136 = vadd.f32 0.0, %v5135
        %v5137 = vpop.f32.mrf.mxu0
        %v5138 = vadd.f32 0.0, %v5137
        %5139 = vmatmul.bf16.gmra.mxu0 %v5121
        %v5140 = vpop.f32.mrf.mxu0
        %v5141 = vadd.f32 0.0, %v5140
        %v5142 = vpop.f32.mrf.mxu0
        %v5143 = vadd.f32 0.0, %v5142
        %5144 = vdwg.mxu0
        %v5145 = vld [vmem:[#allocation31] sm:$0xff]
        %v5146 = vld [vmem:[#allocation31 + $0x8] sm:$0xff]
        %v5147 = vld [vmem:[#allocation31 + $0x10] sm:$0xff]
        %v5148 = vld [vmem:[#allocation31 + $0x18] sm:$0xff]
        %v5149 = vpack.c.bf16 %v5138, %v5136
        %v5150 = vpack.c.bf16 %v5143, %v5141
        %v5151 = vpack.c.bf16 %v5113, %v5113
        %v5152 = vld [vmem:[#allocation28] sm:$0xf]
        %v5153 = vld [vmem:[#allocation28 + $0x4] sm:$0xf]
        %v5156 = vunpack.c.l.b16 %v5152
        %v5157 = vunpack.c.l.b16 %v5153
        %v5158 = vpack.c.b16 %v5157, %v5156
        %v5161 = vsel %vm3049, %v5149, 0
        %v5164 = vsel %vm3049, %v5150, 0
        %v5167 = vsel %vm3049, %v5151, 0
        %5169 = vmatpush.bf16.msra.mxu0 0
        %5170 = vmatpush.bf16.msra.mxu0 0
        %5171 = vmatpush.bf16.msra.mxu0 0
        %5172 = vmatpush.bf16.msra.mxu0 0
        %5173 = vmatpush.bf16.msra.mxu0 0
        %5174 = vmatpush.bf16.msra.mxu0 0
        %5175 = vmatpush.bf16.msra.mxu0 0
        %5176 = vmatpush.bf16.msra.mxu0 %v5158
        %5177 = vmatmul.bf16.gmra.mxu0 %v5161
        %v5178 = vpop.f32.mrf.mxu0
        %v5179 = vadd.f32 0.0, %v5178
        %v5180 = vpop.f32.mrf.mxu0
        %v5181 = vadd.f32 0.0, %v5180
        %5182 = vmatmul.bf16.gmra.mxu0 %v5164
        %v5183 = vpop.f32.mrf.mxu0
        %v5184 = vadd.f32 0.0, %v5183
        %v5185 = vpop.f32.mrf.mxu0
        %v5186 = vadd.f32 0.0, %v5185
        %5187 = vmatmul.bf16.gmra.mxu0 %v5167
        %v5188 = vpop.f32.mrf.mxu0
        %v5189 = vadd.f32 0.0, %v5188
        %v5190 = vpop.f32.mrf.mxu0
        %5191 = vdwg.mxu0
        %v5192 = vld [vmem:[#allocation30] sm:$0xf]
        %v5193 = vld [vmem:[#allocation30 + $0x4] sm:$0xf]
        %v5194 = vld [vmem:[#allocation30 + $0x8] sm:$0xf]
        %v5195 = vld [vmem:[#allocation30 + $0xc] sm:$0xf]
        %v5196 = vpack.c.bf16 %v5181, %v5179
        %v5197 = vpack.c.bf16 %v5186, %v5184
        %v5198 = vpack.c.bf16 %v5189, %v5189
        %s5199 = scalar_lea.vmem [#allocation28], 8
        %v5200 = vld [vmem:[%s5199] sm:$0xf]
        %v5201 = vld [vmem:[%s5199 + $0x4] sm:$0xf]
        %v5204 = vunpack.c.l.b16 %v5200
        %v5205 = vunpack.c.l.b16 %v5201
        %v5206 = vpack.c.b16 %v5205, %v5204
        %5208 = vmatpush.bf16.msra.mxu0 0
        %5209 = vmatpush.bf16.msra.mxu0 0
        %5210 = vmatpush.bf16.msra.mxu0 0
        %5211 = vmatpush.bf16.msra.mxu0 0
        %5212 = vmatpush.bf16.msra.mxu0 0
        %5213 = vmatpush.bf16.msra.mxu0 0
        %5214 = vmatpush.bf16.msra.mxu0 0
        %5215 = vmatpush.bf16.msra.mxu0 %v5206
        %5216 = vmatmul.bf16.gmra.mxu0 %v5161
        %v5217 = vpop.f32.mrf.mxu0
        %v5218 = vadd.f32 0.0, %v5217
        %v5219 = vpop.f32.mrf.mxu0
        %v5220 = vadd.f32 0.0, %v5219
        %5221 = vmatmul.bf16.gmra.mxu0 %v5164
        %v5222 = vpop.f32.mrf.mxu0
        %v5223 = vadd.f32 0.0, %v5222
        %v5224 = vpop.f32.mrf.mxu0
        %v5225 = vadd.f32 0.0, %v5224
        %5226 = vmatmul.bf16.gmra.mxu0 %v5167
        %v5227 = vpop.f32.mrf.mxu0
        %v5228 = vadd.f32 0.0, %v5227
        %v5229 = vpop.f32.mrf.mxu0
        %5230 = vdwg.mxu0
        %v5231 = vld [vmem:[#allocation30 + $0x10] sm:$0xf]
        %v5232 = vld [vmem:[#allocation30 + $0x14] sm:$0xf]
        %v5233 = vld [vmem:[#allocation30 + $0x18] sm:$0xf]
        %v5234 = vld [vmem:[#allocation30 + $0x1c] sm:$0xf]
        %v5235 = vpack.c.bf16 %v5220, %v5218
        %v5236 = vpack.c.bf16 %v5225, %v5223
        %v5237 = vpack.c.bf16 %v5228, %v5228
        %v5242 = vunpack.c.l.b16 %v5231
        %v5243 = vunpack.c.l.b16 %v5232
        %v5244 = vunpack.c.l.b16 %v5233
        %v5245 = vunpack.c.l.b16 %v5234
        %v5246 = vpack.c.b16 %v5243, %v5242
        %v5247 = vpack.c.b16 %v5245, %v5244
        %vm5248 = vcmask 326656
        %v5250 = vsel %vm5248, %v5246, 0
        %v5253 = vsel %vm5248, %v5247, 0
        %vm5255 = vcmask 1043456
        %v5257 = vsel %vm5255, %v5237, 0
        %5259 = vmatpush.bf16.msra.mxu0 0
        %5260 = vmatpush.bf16.msra.mxu0 0
        %5261 = vmatpush.bf16.msra.mxu0 0
        %5262 = vmatpush.bf16.msra.mxu0 0
        %5263 = vmatpush.bf16.msra.mxu0 0
        %5264 = vmatpush.bf16.msra.mxu0 %v5257
        %5265 = vmatpush.bf16.msra.mxu0 %v5236
        %5266 = vmatpush.bf16.msra.mxu0 %v5235
        %5267 = vmatmul.bf16.gmra.mxu0 %v5250
        %v5268 = vpop.f32.mrf.mxu0
        %v5269 = vadd.f32 0.0, %v5268
        %v5270 = vpop.f32.mrf.mxu0
        %v5271 = vadd.f32 0.0, %v5270
        %5272 = vmatmul.bf16.gmra.mxu0 %v5253
        %v5273 = vpop.f32.mrf.mxu0
        %v5274 = vadd.f32 0.0, %v5273
        %v5275 = vpop.f32.mrf.mxu0
        %v5276 = vadd.f32 0.0, %v5275
        %5277 = vdwg.mxu0
        %v5282 = vunpack.c.l.b16 %v5192
        %v5283 = vunpack.c.l.b16 %v5193
        %v5284 = vunpack.c.l.b16 %v5194
        %v5285 = vunpack.c.l.b16 %v5195
        %v5286 = vpack.c.b16 %v5283, %v5282
        %v5287 = vpack.c.b16 %v5285, %v5284
        %v5289 = vsel %vm5248, %v5286, 0
        %v5292 = vsel %vm5248, %v5287, 0
        %v5295 = vsel %vm5255, %v5198, 0
        %5297 = vmatpush.bf16.msra.mxu0 0
        %5298 = vmatpush.bf16.msra.mxu0 0
        %5299 = vmatpush.bf16.msra.mxu0 0
        %5300 = vmatpush.bf16.msra.mxu0 0
        %5301 = vmatpush.bf16.msra.mxu0 0
        %5302 = vmatpush.bf16.msra.mxu0 %v5295
        %5303 = vmatpush.bf16.msra.mxu0 %v5197
        %5304 = vmatpush.bf16.msra.mxu0 %v5196
        %5305 = vmatmul.bf16.gmra.mxu0 %v5289
        %v5306 = vpop.f32.mrf.mxu0
        %v5307 = vadd.f32 %v5269, %v5306
        %v5308 = vpop.f32.mrf.mxu0
        %v5309 = vadd.f32 %v5271, %v5308
        %5310 = vmatmul.bf16.gmra.mxu0 %v5292
        %v5311 = vpop.f32.mrf.mxu0
        %v5312 = vadd.f32 %v5274, %v5311
        %v5313 = vpop.f32.mrf.mxu0
        %v5314 = vadd.f32 %v5276, %v5313
        %5315 = vdwg.mxu0
        %s5316 = scalar_lea.vmem [#allocation28], 16
        %v5317 = vld [vmem:[%s5316] sm:$0xf]
        %v5318 = vld [vmem:[%s5316 + $0x4] sm:$0xf]
        %v5321 = vunpack.c.l.b16 %v5317
        %v5322 = vunpack.c.l.b16 %v5318
        %v5323 = vpack.c.b16 %v5322, %v5321
        %5325 = vmatpush.bf16.msra.mxu0 0
        %5326 = vmatpush.bf16.msra.mxu0 0
        %5327 = vmatpush.bf16.msra.mxu0 0
        %5328 = vmatpush.bf16.msra.mxu0 0
        %5329 = vmatpush.bf16.msra.mxu0 0
        %5330 = vmatpush.bf16.msra.mxu0 0
        %5331 = vmatpush.bf16.msra.mxu0 0
        %5332 = vmatpush.bf16.msra.mxu0 %v5323
        %5333 = vmatmul.bf16.gmra.mxu0 %v5161
        %v5334 = vpop.f32.mrf.mxu0
        %v5335 = vadd.f32 0.0, %v5334
        %v5336 = vpop.f32.mrf.mxu0
        %v5337 = vadd.f32 0.0, %v5336
        %5338 = vmatmul.bf16.gmra.mxu0 %v5164
        %v5339 = vpop.f32.mrf.mxu0
        %v5340 = vadd.f32 0.0, %v5339
        %v5341 = vpop.f32.mrf.mxu0
        %v5342 = vadd.f32 0.0, %v5341
        %5343 = vmatmul.bf16.gmra.mxu0 %v5167
        %v5344 = vpop.f32.mrf.mxu0
        %v5345 = vadd.f32 0.0, %v5344
        %v5346 = vpop.f32.mrf.mxu0
        %5347 = vdwg.mxu0
        %v5348 = vld [vmem:[#allocation30 + $0x20] sm:$0xf]
        %v5349 = vld [vmem:[#allocation30 + $0x24] sm:$0xf]
        %v5350 = vld [vmem:[#allocation30 + $0x28] sm:$0xf]
        %v5351 = vld [vmem:[#allocation30 + $0x2c] sm:$0xf]
        %v5352 = vpack.c.bf16 %v5337, %v5335
        %v5353 = vpack.c.bf16 %v5342, %v5340
        %v5354 = vpack.c.bf16 %v5345, %v5345
        %v5359 = vunpack.c.l.b16 %v5348
        %v5360 = vunpack.c.l.b16 %v5349
        %v5361 = vunpack.c.l.b16 %v5350
        %v5362 = vunpack.c.l.b16 %v5351
        %v5363 = vpack.c.b16 %v5360, %v5359
        %v5364 = vpack.c.b16 %v5362, %v5361
        %v5366 = vsel %vm5248, %v5363, 0
        %v5369 = vsel %vm5248, %v5364, 0
        %v5372 = vsel %vm5255, %v5354, 0
        %5374 = vmatpush.bf16.msra.mxu0 0
        %5375 = vmatpush.bf16.msra.mxu0 0
        %5376 = vmatpush.bf16.msra.mxu0 0
        %5377 = vmatpush.bf16.msra.mxu0 0
        %5378 = vmatpush.bf16.msra.mxu0 0
        %5379 = vmatpush.bf16.msra.mxu0 %v5372
        %5380 = vmatpush.bf16.msra.mxu0 %v5353
        %5381 = vmatpush.bf16.msra.mxu0 %v5352
        %5382 = vmatmul.bf16.gmra.mxu0 %v5366
        %v5383 = vpop.f32.mrf.mxu0
        %v5384 = vadd.f32 0.0, %v5383
        %v5385 = vpop.f32.mrf.mxu0
        %v5386 = vadd.f32 0.0, %v5385
        %5387 = vmatmul.bf16.gmra.mxu0 %v5369
        %v5388 = vpop.f32.mrf.mxu0
        %v5389 = vadd.f32 0.0, %v5388
        %v5390 = vpop.f32.mrf.mxu0
        %v5391 = vadd.f32 0.0, %v5390
        %5392 = vdwg.mxu0
        %v5393 = vadd.f32 %v5307, %v5384
        %v5394 = vadd.f32 %v5309, %v5386
        %v5395 = vadd.f32 %v5312, %v5389
        %v5396 = vadd.f32 %v5314, %v5391
        %s5397 = scalar_lea.vmem [#allocation28], 24
        %v5398 = vld [vmem:[%s5397] sm:$0xf]
        %v5399 = vld [vmem:[%s5397 + $0x4] sm:$0xf]
        %v5402 = vunpack.c.l.b16 %v5398
        %v5403 = vunpack.c.l.b16 %v5399
        %v5404 = vpack.c.b16 %v5403, %v5402
        %5406 = vmatpush.bf16.msra.mxu0 0
        %5407 = vmatpush.bf16.msra.mxu0 0
        %5408 = vmatpush.bf16.msra.mxu0 0
        %5409 = vmatpush.bf16.msra.mxu0 0
        %5410 = vmatpush.bf16.msra.mxu0 0
        %5411 = vmatpush.bf16.msra.mxu0 0
        %5412 = vmatpush.bf16.msra.mxu0 0
        %5413 = vmatpush.bf16.msra.mxu0 %v5404
        %5414 = vmatmul.bf16.gmra.mxu0 %v5161
        %v5415 = vpop.f32.mrf.mxu0
        %v5416 = vadd.f32 0.0, %v5415
        %v5417 = vpop.f32.mrf.mxu0
        %v5418 = vadd.f32 0.0, %v5417
        %5419 = vmatmul.bf16.gmra.mxu0 %v5164
        %v5420 = vpop.f32.mrf.mxu0
        %v5421 = vadd.f32 0.0, %v5420
        %v5422 = vpop.f32.mrf.mxu0
        %v5423 = vadd.f32 0.0, %v5422
        %5424 = vmatmul.bf16.gmra.mxu0 %v5167
        %v5425 = vpop.f32.mrf.mxu0
        %v5426 = vadd.f32 0.0, %v5425
        %v5427 = vpop.f32.mrf.mxu0
        %5428 = vdwg.mxu0
        %v5429 = vld [vmem:[#allocation30 + $0x30] sm:$0xf]
        %v5430 = vld [vmem:[#allocation30 + $0x34] sm:$0xf]
        %v5431 = vld [vmem:[#allocation30 + $0x38] sm:$0xf]
        %v5432 = vld [vmem:[#allocation30 + $0x3c] sm:$0xf]
        %v5433 = vpack.c.bf16 %v5418, %v5416
        %v5434 = vpack.c.bf16 %v5423, %v5421
        %v5435 = vpack.c.bf16 %v5426, %v5426
        %v5440 = vunpack.c.l.b16 %v5429
        %v5441 = vunpack.c.l.b16 %v5430
        %v5442 = vunpack.c.l.b16 %v5431
        %v5443 = vunpack.c.l.b16 %v5432
        %v5444 = vpack.c.b16 %v5441, %v5440
        %v5445 = vpack.c.b16 %v5443, %v5442
        %v5447 = vsel %vm5248, %v5444, 0
        %v5450 = vsel %vm5248, %v5445, 0
        %v5453 = vsel %vm5255, %v5435, 0
        %5455 = vmatpush.bf16.msra.mxu0 0
        %5456 = vmatpush.bf16.msra.mxu0 0
        %5457 = vmatpush.bf16.msra.mxu0 0
        %5458 = vmatpush.bf16.msra.mxu0 0
        %5459 = vmatpush.bf16.msra.mxu0 0
        %5460 = vmatpush.bf16.msra.mxu0 %v5453
        %5461 = vmatpush.bf16.msra.mxu0 %v5434
        %5462 = vmatpush.bf16.msra.mxu0 %v5433
        %5463 = vmatmul.bf16.gmra.mxu0 %v5447
        %v5464 = vpop.f32.mrf.mxu0
        %v5465 = vadd.f32 0.0, %v5464
        %v5466 = vpop.f32.mrf.mxu0
        %v5467 = vadd.f32 0.0, %v5466
        %5468 = vmatmul.bf16.gmra.mxu0 %v5450
        %v5469 = vpop.f32.mrf.mxu0
        %v5470 = vadd.f32 0.0, %v5469
        %v5471 = vpop.f32.mrf.mxu0
        %v5472 = vadd.f32 0.0, %v5471
        %5473 = vdwg.mxu0
        %v5474 = vadd.f32 %v5393, %v5465
        %v5475 = vadd.f32 %v5394, %v5467
        %v5476 = vadd.f32 %v5395, %v5470
        %v5477 = vadd.f32 %v5396, %v5472
        %s5478 = scalar_lea.vmem [#allocation28], 32
        %v5479 = vld [vmem:[%s5478] sm:$0xf]
        %v5480 = vld [vmem:[%s5478 + $0x4] sm:$0xf]
        %v5483 = vunpack.c.l.b16 %v5479
        %v5484 = vunpack.c.l.b16 %v5480
        %v5485 = vpack.c.b16 %v5484, %v5483
        %5487 = vmatpush.bf16.msra.mxu0 0
        %5488 = vmatpush.bf16.msra.mxu0 0
        %5489 = vmatpush.bf16.msra.mxu0 0
        %5490 = vmatpush.bf16.msra.mxu0 0
        %5491 = vmatpush.bf16.msra.mxu0 0
        %5492 = vmatpush.bf16.msra.mxu0 0
        %5493 = vmatpush.bf16.msra.mxu0 0
        %5494 = vmatpush.bf16.msra.mxu0 %v5485
        %5495 = vmatmul.bf16.gmra.mxu0 %v5161
        %v5496 = vpop.f32.mrf.mxu0
        %v5497 = vadd.f32 0.0, %v5496
        %v5498 = vpop.f32.mrf.mxu0
        %v5499 = vadd.f32 0.0, %v5498
        %5500 = vmatmul.bf16.gmra.mxu0 %v5164
        %v5501 = vpop.f32.mrf.mxu0
        %v5502 = vadd.f32 0.0, %v5501
        %v5503 = vpop.f32.mrf.mxu0
        %v5504 = vadd.f32 0.0, %v5503
        %5505 = vmatmul.bf16.gmra.mxu0 %v5167
        %v5506 = vpop.f32.mrf.mxu0
        %v5507 = vadd.f32 0.0, %v5506
        %v5508 = vpop.f32.mrf.mxu0
        %5509 = vdwg.mxu0
        %v5510 = vld [vmem:[#allocation30 + $0x40] sm:$0xf]
        %v5511 = vld [vmem:[#allocation30 + $0x44] sm:$0xf]
        %v5512 = vld [vmem:[#allocation30 + $0x48] sm:$0xf]
        %v5513 = vld [vmem:[#allocation30 + $0x4c] sm:$0xf]
        %v5514 = vpack.c.bf16 %v5499, %v5497
        %v5515 = vpack.c.bf16 %v5504, %v5502
        %v5516 = vpack.c.bf16 %v5507, %v5507
        %v5521 = vunpack.c.l.b16 %v5510
        %v5522 = vunpack.c.l.b16 %v5511
        %v5523 = vunpack.c.l.b16 %v5512
        %v5524 = vunpack.c.l.b16 %v5513
        %v5525 = vpack.c.b16 %v5522, %v5521
        %v5526 = vpack.c.b16 %v5524, %v5523
        %v5528 = vsel %vm5248, %v5525, 0
        %v5531 = vsel %vm5248, %v5526, 0
        %v5534 = vsel %vm5255, %v5516, 0
        %5536 = vmatpush.bf16.msra.mxu0 0
        %5537 = vmatpush.bf16.msra.mxu0 0
        %5538 = vmatpush.bf16.msra.mxu0 0
        %5539 = vmatpush.bf16.msra.mxu0 0
        %5540 = vmatpush.bf16.msra.mxu0 0
        %5541 = vmatpush.bf16.msra.mxu0 %v5534
        %5542 = vmatpush.bf16.msra.mxu0 %v5515
        %5543 = vmatpush.bf16.msra.mxu0 %v5514
        %5544 = vmatmul.bf16.gmra.mxu0 %v5528
        %v5545 = vpop.f32.mrf.mxu0
        %v5546 = vadd.f32 0.0, %v5545
        %v5547 = vpop.f32.mrf.mxu0
        %v5548 = vadd.f32 0.0, %v5547
        %5549 = vmatmul.bf16.gmra.mxu0 %v5531
        %v5550 = vpop.f32.mrf.mxu0
        %v5551 = vadd.f32 0.0, %v5550
        %v5552 = vpop.f32.mrf.mxu0
        %v5553 = vadd.f32 0.0, %v5552
        %5554 = vdwg.mxu0
        %v5555 = vadd.f32 %v5474, %v5546
        %v5556 = vadd.f32 %v5475, %v5548
        %v5557 = vadd.f32 %v5476, %v5551
        %v5558 = vadd.f32 %v5477, %v5553
        %s5559 = scalar_lea.vmem [#allocation28], 40
        %v5560 = vld [vmem:[%s5559] sm:$0xf]
        %v5561 = vld [vmem:[%s5559 + $0x4] sm:$0xf]
        %v5564 = vunpack.c.l.b16 %v5560
        %v5565 = vunpack.c.l.b16 %v5561
        %v5566 = vpack.c.b16 %v5565, %v5564
        %5568 = vmatpush.bf16.msra.mxu0 0
        %5569 = vmatpush.bf16.msra.mxu0 0
        %5570 = vmatpush.bf16.msra.mxu0 0
        %5571 = vmatpush.bf16.msra.mxu0 0
        %5572 = vmatpush.bf16.msra.mxu0 0
        %5573 = vmatpush.bf16.msra.mxu0 0
        %5574 = vmatpush.bf16.msra.mxu0 0
        %5575 = vmatpush.bf16.msra.mxu0 %v5566
        %5576 = vmatmul.bf16.gmra.mxu0 %v5161
        %v5577 = vpop.f32.mrf.mxu0
        %v5578 = vadd.f32 0.0, %v5577
        %v5579 = vpop.f32.mrf.mxu0
        %v5580 = vadd.f32 0.0, %v5579
        %5581 = vmatmul.bf16.gmra.mxu0 %v5164
        %v5582 = vpop.f32.mrf.mxu0
        %v5583 = vadd.f32 0.0, %v5582
        %v5584 = vpop.f32.mrf.mxu0
        %v5585 = vadd.f32 0.0, %v5584
        %5586 = vmatmul.bf16.gmra.mxu0 %v5167
        %v5587 = vpop.f32.mrf.mxu0
        %v5588 = vadd.f32 0.0, %v5587
        %v5589 = vpop.f32.mrf.mxu0
        %5590 = vdwg.mxu0
        %v5591 = vld [vmem:[#allocation30 + $0x50] sm:$0xf]
        %v5592 = vld [vmem:[#allocation30 + $0x54] sm:$0xf]
        %v5593 = vld [vmem:[#allocation30 + $0x58] sm:$0xf]
        %v5594 = vld [vmem:[#allocation30 + $0x5c] sm:$0xf]
        %v5595 = vpack.c.bf16 %v5580, %v5578
        %v5596 = vpack.c.bf16 %v5585, %v5583
        %v5597 = vpack.c.bf16 %v5588, %v5588
        %v5602 = vunpack.c.l.b16 %v5591
        %v5603 = vunpack.c.l.b16 %v5592
        %v5604 = vunpack.c.l.b16 %v5593
        %v5605 = vunpack.c.l.b16 %v5594
        %v5606 = vpack.c.b16 %v5603, %v5602
        %v5607 = vpack.c.b16 %v5605, %v5604
        %v5609 = vsel %vm5248, %v5606, 0
        %v5612 = vsel %vm5248, %v5607, 0
        %v5615 = vsel %vm5255, %v5597, 0
        %5617 = vmatpush.bf16.msra.mxu0 0
        %5618 = vmatpush.bf16.msra.mxu0 0
        %5619 = vmatpush.bf16.msra.mxu0 0
        %5620 = vmatpush.bf16.msra.mxu0 0
        %5621 = vmatpush.bf16.msra.mxu0 0
        %5622 = vmatpush.bf16.msra.mxu0 %v5615
        %5623 = vmatpush.bf16.msra.mxu0 %v5596
        %5624 = vmatpush.bf16.msra.mxu0 %v5595
        %5625 = vmatmul.bf16.gmra.mxu0 %v5609
        %v5626 = vpop.f32.mrf.mxu0
        %v5627 = vadd.f32 0.0, %v5626
        %v5628 = vpop.f32.mrf.mxu0
        %v5629 = vadd.f32 0.0, %v5628
        %5630 = vmatmul.bf16.gmra.mxu0 %v5612
        %v5631 = vpop.f32.mrf.mxu0
        %v5632 = vadd.f32 0.0, %v5631
        %v5633 = vpop.f32.mrf.mxu0
        %v5634 = vadd.f32 0.0, %v5633
        %5635 = vdwg.mxu0
        %v5636 = vadd.f32 %v5555, %v5627
        %v5637 = vadd.f32 %v5556, %v5629
        %v5638 = vadd.f32 %v5557, %v5632
        %v5639 = vadd.f32 %v5558, %v5634
        %s5640 = scalar_lea.vmem [#allocation28], 48
        %v5641 = vld [vmem:[%s5640] sm:$0xf]
        %v5642 = vld [vmem:[%s5640 + $0x4] sm:$0xf]
        %v5645 = vunpack.c.l.b16 %v5641
        %v5646 = vunpack.c.l.b16 %v5642
        %v5647 = vpack.c.b16 %v5646, %v5645
        %5649 = vmatpush.bf16.msra.mxu0 0
        %5650 = vmatpush.bf16.msra.mxu0 0
        %5651 = vmatpush.bf16.msra.mxu0 0
        %5652 = vmatpush.bf16.msra.mxu0 0
        %5653 = vmatpush.bf16.msra.mxu0 0
        %5654 = vmatpush.bf16.msra.mxu0 0
        %5655 = vmatpush.bf16.msra.mxu0 0
        %5656 = vmatpush.bf16.msra.mxu0 %v5647
        %5657 = vmatmul.bf16.gmra.mxu0 %v5161
        %v5658 = vpop.f32.mrf.mxu0
        %v5659 = vadd.f32 0.0, %v5658
        %v5660 = vpop.f32.mrf.mxu0
        %v5661 = vadd.f32 0.0, %v5660
        %5662 = vmatmul.bf16.gmra.mxu0 %v5164
        %v5663 = vpop.f32.mrf.mxu0
        %v5664 = vadd.f32 0.0, %v5663
        %v5665 = vpop.f32.mrf.mxu0
        %v5666 = vadd.f32 0.0, %v5665
        %5667 = vmatmul.bf16.gmra.mxu0 %v5167
        %v5668 = vpop.f32.mrf.mxu0
        %v5669 = vadd.f32 0.0, %v5668
        %v5670 = vpop.f32.mrf.mxu0
        %5671 = vdwg.mxu0
        %v5672 = vld [vmem:[#allocation30 + $0x60] sm:$0xf]
        %v5673 = vld [vmem:[#allocation30 + $0x64] sm:$0xf]
        %v5674 = vld [vmem:[#allocation30 + $0x68] sm:$0xf]
        %v5675 = vld [vmem:[#allocation30 + $0x6c] sm:$0xf]
        %v5676 = vpack.c.bf16 %v5661, %v5659
        %v5677 = vpack.c.bf16 %v5666, %v5664
        %v5678 = vpack.c.bf16 %v5669, %v5669
        %v5683 = vunpack.c.l.b16 %v5672
        %v5684 = vunpack.c.l.b16 %v5673
        %v5685 = vunpack.c.l.b16 %v5674
        %v5686 = vunpack.c.l.b16 %v5675
        %v5687 = vpack.c.b16 %v5684, %v5683
        %v5688 = vpack.c.b16 %v5686, %v5685
        %v5690 = vsel %vm5248, %v5687, 0
        %v5693 = vsel %vm5248, %v5688, 0
        %v5696 = vsel %vm5255, %v5678, 0
        %5698 = vmatpush.bf16.msra.mxu0 0
        %5699 = vmatpush.bf16.msra.mxu0 0
        %5700 = vmatpush.bf16.msra.mxu0 0
        %5701 = vmatpush.bf16.msra.mxu0 0
        %5702 = vmatpush.bf16.msra.mxu0 0
        %5703 = vmatpush.bf16.msra.mxu0 %v5696
        %5704 = vmatpush.bf16.msra.mxu0 %v5677
        %5705 = vmatpush.bf16.msra.mxu0 %v5676
        %5706 = vmatmul.bf16.gmra.mxu0 %v5690
        %v5707 = vpop.f32.mrf.mxu0
        %v5708 = vadd.f32 0.0, %v5707
        %v5709 = vpop.f32.mrf.mxu0
        %v5710 = vadd.f32 0.0, %v5709
        %5711 = vmatmul.bf16.gmra.mxu0 %v5693
        %v5712 = vpop.f32.mrf.mxu0
        %v5713 = vadd.f32 0.0, %v5712
        %v5714 = vpop.f32.mrf.mxu0
        %v5715 = vadd.f32 0.0, %v5714
        %5716 = vdwg.mxu0
        %v5717 = vadd.f32 %v5636, %v5708
        %v5718 = vadd.f32 %v5637, %v5710
        %v5719 = vadd.f32 %v5638, %v5713
        %v5720 = vadd.f32 %v5639, %v5715
        %s5721 = scalar_lea.vmem [#allocation28], 56
        %v5722 = vld [vmem:[%s5721] sm:$0xf]
        %v5723 = vld [vmem:[%s5721 + $0x4] sm:$0xf]
        %v5726 = vunpack.c.l.b16 %v5722
        %v5727 = vunpack.c.l.b16 %v5723
        %v5728 = vpack.c.b16 %v5727, %v5726
        %5730 = vmatpush.bf16.msra.mxu0 0
        %5731 = vmatpush.bf16.msra.mxu0 0
        %5732 = vmatpush.bf16.msra.mxu0 0
        %5733 = vmatpush.bf16.msra.mxu0 0
        %5734 = vmatpush.bf16.msra.mxu0 0
        %5735 = vmatpush.bf16.msra.mxu0 0
        %5736 = vmatpush.bf16.msra.mxu0 0
        %5737 = vmatpush.bf16.msra.mxu0 %v5728
        %5738 = vmatmul.bf16.gmra.mxu0 %v5161
        %v5739 = vpop.f32.mrf.mxu0
        %v5740 = vadd.f32 0.0, %v5739
        %v5741 = vpop.f32.mrf.mxu0
        %v5742 = vadd.f32 0.0, %v5741
        %5743 = vmatmul.bf16.gmra.mxu0 %v5164
        %v5744 = vpop.f32.mrf.mxu0
        %v5745 = vadd.f32 0.0, %v5744
        %v5746 = vpop.f32.mrf.mxu0
        %v5747 = vadd.f32 0.0, %v5746
        %5748 = vmatmul.bf16.gmra.mxu0 %v5167
        %v5749 = vpop.f32.mrf.mxu0
        %v5750 = vadd.f32 0.0, %v5749
        %v5751 = vpop.f32.mrf.mxu0
        %5752 = vdwg.mxu0
        %v5753 = vld [vmem:[#allocation30 + $0x70] sm:$0xf]
        %v5754 = vld [vmem:[#allocation30 + $0x74] sm:$0xf]
        %v5755 = vld [vmem:[#allocation30 + $0x78] sm:$0xf]
        %v5756 = vld [vmem:[#allocation30 + $0x7c] sm:$0xf]
        %v5757 = vpack.c.bf16 %v5742, %v5740
        %v5758 = vpack.c.bf16 %v5747, %v5745
        %v5759 = vpack.c.bf16 %v5750, %v5750
        %v5764 = vunpack.c.l.b16 %v5753
        %v5765 = vunpack.c.l.b16 %v5754
        %v5766 = vunpack.c.l.b16 %v5755
        %v5767 = vunpack.c.l.b16 %v5756
        %v5768 = vpack.c.b16 %v5765, %v5764
        %v5769 = vpack.c.b16 %v5767, %v5766
        %v5771 = vsel %vm5248, %v5768, 0
        %v5774 = vsel %vm5248, %v5769, 0
        %v5777 = vsel %vm5255, %v5759, 0
        %5779 = vmatpush.bf16.msra.mxu0 0
        %5780 = vmatpush.bf16.msra.mxu0 0
        %5781 = vmatpush.bf16.msra.mxu0 0
        %5782 = vmatpush.bf16.msra.mxu0 0
        %5783 = vmatpush.bf16.msra.mxu0 0
        %5784 = vmatpush.bf16.msra.mxu0 %v5777
        %5785 = vmatpush.bf16.msra.mxu0 %v5758
        %5786 = vmatpush.bf16.msra.mxu0 %v5757
        %5787 = vmatmul.bf16.gmra.mxu0 %v5771
        %v5788 = vpop.f32.mrf.mxu0
        %v5789 = vadd.f32 0.0, %v5788
        %v5790 = vpop.f32.mrf.mxu0
        %v5791 = vadd.f32 0.0, %v5790
        %5792 = vmatmul.bf16.gmra.mxu0 %v5774
        %v5793 = vpop.f32.mrf.mxu0
        %v5794 = vadd.f32 0.0, %v5793
        %v5795 = vpop.f32.mrf.mxu0
        %v5796 = vadd.f32 0.0, %v5795
        %5797 = vdwg.mxu0
        %v5798 = vadd.f32 %v5717, %v5789
        %v5799 = vadd.f32 %v5718, %v5791
        %v5800 = vadd.f32 %v5719, %v5794
        %v5801 = vadd.f32 %v5720, %v5796
        %s5802 = scalar_lea.vmem [#allocation28], 64
        %v5803 = vld [vmem:[%s5802] sm:$0xf]
        %v5804 = vld [vmem:[%s5802 + $0x4] sm:$0xf]
        %v5807 = vunpack.c.l.b16 %v5803
        %v5808 = vunpack.c.l.b16 %v5804
        %v5809 = vpack.c.b16 %v5808, %v5807
        %5811 = vmatpush.bf16.msra.mxu0 0
        %5812 = vmatpush.bf16.msra.mxu0 0
        %5813 = vmatpush.bf16.msra.mxu0 0
        %5814 = vmatpush.bf16.msra.mxu0 0
        %5815 = vmatpush.bf16.msra.mxu0 0
        %5816 = vmatpush.bf16.msra.mxu0 0
        %5817 = vmatpush.bf16.msra.mxu0 0
        %5818 = vmatpush.bf16.msra.mxu0 %v5809
        %5819 = vmatmul.bf16.gmra.mxu0 %v5161
        %v5820 = vpop.f32.mrf.mxu0
        %v5821 = vadd.f32 0.0, %v5820
        %v5822 = vpop.f32.mrf.mxu0
        %v5823 = vadd.f32 0.0, %v5822
        %5824 = vmatmul.bf16.gmra.mxu0 %v5164
        %v5825 = vpop.f32.mrf.mxu0
        %v5826 = vadd.f32 0.0, %v5825
        %v5827 = vpop.f32.mrf.mxu0
        %v5828 = vadd.f32 0.0, %v5827
        %5829 = vmatmul.bf16.gmra.mxu0 %v5167
        %v5830 = vpop.f32.mrf.mxu0
        %v5831 = vadd.f32 0.0, %v5830
        %v5832 = vpop.f32.mrf.mxu0
        %5833 = vdwg.mxu0
        %v5834 = vld [vmem:[#allocation30 + $0x80] sm:$0xf]
        %v5835 = vld [vmem:[#allocation30 + $0x84] sm:$0xf]
        %v5836 = vld [vmem:[#allocation30 + $0x88] sm:$0xf]
        %v5837 = vld [vmem:[#allocation30 + $0x8c] sm:$0xf]
        %v5838 = vpack.c.bf16 %v5823, %v5821
        %v5839 = vpack.c.bf16 %v5828, %v5826
        %v5840 = vpack.c.bf16 %v5831, %v5831
        %v5845 = vunpack.c.l.b16 %v5834
        %v5846 = vunpack.c.l.b16 %v5835
        %v5847 = vunpack.c.l.b16 %v5836
        %v5848 = vunpack.c.l.b16 %v5837
        %v5849 = vpack.c.b16 %v5846, %v5845
        %v5850 = vpack.c.b16 %v5848, %v5847
        %v5852 = vsel %vm5248, %v5849, 0
        %v5855 = vsel %vm5248, %v5850, 0
        %v5858 = vsel %vm5255, %v5840, 0
        %5860 = vmatpush.bf16.msra.mxu0 0
        %5861 = vmatpush.bf16.msra.mxu0 0
        %5862 = vmatpush.bf16.msra.mxu0 0
        %5863 = vmatpush.bf16.msra.mxu0 0
        %5864 = vmatpush.bf16.msra.mxu0 0
        %5865 = vmatpush.bf16.msra.mxu0 %v5858
        %5866 = vmatpush.bf16.msra.mxu0 %v5839
        %5867 = vmatpush.bf16.msra.mxu0 %v5838
        %5868 = vmatmul.bf16.gmra.mxu0 %v5852
        %v5869 = vpop.f32.mrf.mxu0
        %v5870 = vadd.f32 0.0, %v5869
        %v5871 = vpop.f32.mrf.mxu0
        %v5872 = vadd.f32 0.0, %v5871
        %5873 = vmatmul.bf16.gmra.mxu0 %v5855
        %v5874 = vpop.f32.mrf.mxu0
        %v5875 = vadd.f32 0.0, %v5874
        %v5876 = vpop.f32.mrf.mxu0
        %v5877 = vadd.f32 0.0, %v5876
        %5878 = vdwg.mxu0
        %v5879 = vadd.f32 %v5798, %v5870
        %v5880 = vadd.f32 %v5799, %v5872
        %v5881 = vadd.f32 %v5800, %v5875
        %v5882 = vadd.f32 %v5801, %v5877
        %5884 = vset.pattern.permute.xlu0 0
        %5885 = vperm.xlu0 %5884, %v5145
        %v5886 = vpop.permute.xlu0 %5885
        %5889 = vset.pattern.permute.xlu0 0
        %5890 = vperm.xlu0 %5889, %v5146
        %v5891 = vpop.permute.xlu0 %5890
        %5894 = vset.pattern.permute.xlu0 0
        %5895 = vperm.xlu0 %5894, %v5147
        %v5896 = vpop.permute.xlu0 %5895
        %5899 = vset.pattern.permute.xlu0 0
        %5900 = vperm.xlu0 %5899, %v5148
        %v5901 = vpop.permute.xlu0 %5900
        %v5903 = vadd.f32 %v5879, %v5886
        %v5904 = vadd.f32 %v5880, %v5891
        %v5905 = vadd.f32 %v5881, %v5896
        %v5906 = vadd.f32 %v5882, %v5901
        %v5907 = vmax.f32 %v5903, 0.0
        %v5908 = vmax.f32 %v5904, 0.0
        %v5909 = vmax.f32 %v5905, 0.0
        %v5910 = vmax.f32 %v5906, 0.0
        %v5911 = vld [vmem:[#allocation33] sm:$0xf]
        %v5912 = vld [vmem:[#allocation33 + $0x4] sm:$0xf]
        %v5913 = vld [vmem:[#allocation33 + $0x8] sm:$0x3]
        %v5914 = vpack.c.bf16 %v5908, %v5907
        %v5915 = vpack.c.bf16 %v5910, %v5909
        %v5916 = vld [vmem:[#allocation34] sm:$0xff]
        %v5917 = vld [vmem:[#allocation34 + $0x8] sm:$0xff]
        %v5918 = vld [vmem:[#allocation34 + $0x10] sm:$0x7]
        %5920 = vset.pattern.permute.xlu0 0
        %5921 = vperm.xlu0 %5920, %v5916
        %v5922 = vpop.permute.xlu0 %5921
        %5925 = vset.pattern.permute.xlu0 0
        %5926 = vperm.xlu0 %5925, %v5917
        %v5927 = vpop.permute.xlu0 %5926
        %5930 = vset.pattern.permute.xlu0 0
        %5931 = vperm.xlu0 %5930, %v5918
        %v5932 = vpop.permute.xlu0 %5931
        %v5937 = vunpack.c.l.b16 %v5911
        %v5938 = vunpack.c.l.b16 %v5912
        %v5939 = vunpack.c.l.b16 %v5913
        %v5940 = vpack.c.b16 %v5938, %v5937
        %v5941 = vpack.c.b16 %v5939, %v5939
        %v5943 = vsel %vm3886, %v5940, 0
        %v5946 = vsel %vm3886, %v5941, 0
        %5948 = vmatpush.bf16.msra.mxu0 0
        %5949 = vmatpush.bf16.msra.mxu0 0
        %5950 = vmatpush.bf16.msra.mxu0 0
        %5951 = vmatpush.bf16.msra.mxu0 0
        %5952 = vmatpush.bf16.msra.mxu0 0
        %5953 = vmatpush.bf16.msra.mxu0 0
        %5954 = vmatpush.bf16.msra.mxu0 %v5915
        %5955 = vmatpush.bf16.msra.mxu0 %v5914
        %5956 = vmatmul.bf16.gmra.mxu0 %v5943
        %v5957 = vpop.f32.mrf.mxu0
        %v5958 = vadd.f32 %v5922, %v5957
        %v5959 = vpop.f32.mrf.mxu0
        %v5960 = vadd.f32 %v5927, %v5959
        %5961 = vmatmul.bf16.gmra.mxu0 %v5946
        %v5962 = vpop.f32.mrf.mxu0
        %v5963 = vadd.f32 %v5932, %v5962
        %v5964 = vpop.f32.mrf.mxu0
        %5965 = vdwg.mxu0
        %v5966 = vlaneseq
        %v5967 = vshrl.u32 %v5966, 7
        %v5968 = vadd.s32 %v5967, 8
        %v5969 = vadd.s32 %v5967, 16
        %v5970 = vcvt.s32.f32 %v5967
        %v5971 = vcvt.s32.f32 %v5968
        %v5972 = vcvt.s32.f32 %v5969
        %v5973 = vsel %vm3049, %v5958, -inf
        %v5974 = vsel %vm3049, %v5960, -inf
        %vm5975 = vcmask 124928
        %v5976 = vsel %vm5975, %v5963, -inf
        %v5977 = vmax.f32 %v5973, %v5974
        %v5978 = vmax.f32 %v5977, %v5976
        %v5979 = vrot.slane %v5978, 4
        %v5980 = vmax.f32 %v5978, %v5979
        %v5981 = vrot.slane %v5980, 2
        %v5982 = vmax.f32 %v5980, %v5981
        %v5983 = vrot.slane %v5982, 1
        %v5984 = vmax.f32 %v5982, %v5983
        %vm5985 = vcmp.eq.f32.partialorder %v5958, %v5984
        %vm5986 = vcmp.eq.f32.partialorder %v5960, %v5984
        %vm5987 = vcmp.eq.f32.partialorder %v5963, %v5984
        %v5988 = vsel %vm5985, %v5970, 19.0
        %v5989 = vsel %vm5986, %v5971, 19.0
        %v5990 = vsel %vm5987, %v5972, 19.0
        %v5991 = vsel %vm3049, %v5988, inf
        %v5992 = vsel %vm3049, %v5989, inf
        %v5993 = vsel %vm5975, %v5990, inf
        %v5994 = vmin.f32 %v5991, %v5992
        %v5995 = vmin.f32 %v5994, %v5993
        %v5996 = vrot.slane %v5995, 4
        %v5997 = vmin.f32 %v5995, %v5996
        %v5998 = vrot.slane %v5997, 2
        %v5999 = vmin.f32 %v5997, %v5998
        %v6000 = vrot.slane %v5999, 1
        %v6001 = vmin.f32 %v5999, %v6000
        %vm6002 = vcmp.eq.f32.partialorder %v5970, %v6001
        %vm6003 = vcmp.eq.f32.partialorder %v5971, %v6001
        %vm6004 = vcmp.eq.f32.partialorder %v5972, %v6001
        %v6005 = vsel %vm6002, 1, 0
        %v6006 = vsel %vm6003, 1, 0
        %v6007 = vsel %vm6004, 1, 0
        %v6008 = vcvt.s32.f32 %v6005
        %v6009 = vcvt.s32.f32 %v6006
        %v6010 = vcvt.s32.f32 %v6007
        %v6011 = vpack.c.bf16 %v6009, %v6008
        %v6012 = vpack.c.bf16 %v6010, %v6010
        %v6013 = vld [vmem:[#allocation36] sm:$0x3]
        %vm6014 = vcmask 154624
        %v6016 = vsel %vm6014, %v6013, 0
        %v6019 = vand.u32 %v6012, %v1585
        %6021 = vmatpush.bf16.msra.mxu0 0
        %6022 = vmatpush.bf16.msra.mxu0 0
        %6023 = vmatpush.bf16.msra.mxu0 0
        %6024 = vmatpush.bf16.msra.mxu0 0
        %6025 = vmatpush.bf16.msra.mxu0 0
        %6026 = vmatpush.bf16.msra.mxu0 0
        %6027 = vmatpush.bf16.msra.mxu0 %v6019
        %6028 = vmatpush.bf16.msra.mxu0 %v6011
        %6029 = vmatmul.bf16.gmra.mxu0 %v6016
        %v6030 = vpop.f32.mrf.mxu0
        %v6031 = vadd.f32 0.0, %v6030
        %v6032 = vpop.f32.mrf.mxu0
        %6033 = vdwg.mxu0
        %v6034 = vpack.c.bf16 %v6001, %v6001
        %v6035 = vld [vmem:[#allocation37] sm:$0xff]
        %v6036 = vld [vmem:[#allocation37 + $0x8] sm:$0xff]
        %v6039 = vunpack.c.l.b16 %v6035
        %v6040 = vunpack.c.h.b16 %v6035
        %v6041 = vunpack.c.l.b16 %v6036
        %v6042 = vunpack.c.h.b16 %v6036
        %v6043 = vpack.c.b16 %v6041, %v6039
        %v6044 = vpack.c.b16 %v6042, %v6040
        %v6048 = vsel %vm3049, %v6034, 0
        %6050 = vmatpush.bf16.msra.mxu0 0
        %6051 = vmatpush.bf16.msra.mxu0 0
        %6052 = vmatpush.bf16.msra.mxu0 0
        %6053 = vmatpush.bf16.msra.mxu0 0
        %6054 = vmatpush.bf16.msra.mxu0 0
        %6055 = vmatpush.bf16.msra.mxu0 0
        %6056 = vmatpush.bf16.msra.mxu0 0
        %6057 = vmatpush.bf16.msra.mxu0 %v6043
        %6058 = vmatmul.bf16.gmra.mxu0 %v6048
        %v6059 = vpop.f32.mrf.mxu0
        %v6060 = vadd.f32 0.5, %v6059
        %v6061 = vpop.f32.mrf.mxu0
        %6062 = vdwg.mxu0
        %6063 = vmatpush.bf16.msra.mxu0 0
        %6064 = vmatpush.bf16.msra.mxu0 0
        %6065 = vmatpush.bf16.msra.mxu0 0
        %6066 = vmatpush.bf16.msra.mxu0 0
        %6067 = vmatpush.bf16.msra.mxu0 0
        %6068 = vmatpush.bf16.msra.mxu0 0
        %6069 = vmatpush.bf16.msra.mxu0 0
        %6070 = vmatpush.bf16.msra.mxu0 %v6044
        %6071 = vmatmul.bf16.gmra.mxu0 %v6048
        %v6072 = vpop.f32.mrf.mxu0
        %v6073 = vadd.f32 0.5, %v6072
        %v6074 = vpop.f32.mrf.mxu0
        %6075 = vdwg.mxu0
        %v6076 = vcvt.f32.s32.to.zero.pseudo %v6060
        %v6077 = vcvt.f32.s32.to.zero.pseudo %v6073
        %v6078 = vrot.slane %v6077, 7
        %v6079 = vsel %vm1582, %v6076, %v6078
        %v6080 = vlaneseq
        %vm6081 = vcmp.ge.s32.totalorder %v6080, 0
        %vm6082 = vcmp.lt.s32.totalorder %v6080, 256
        %vm6083 = vmand %vm6081, %vm6082
        %6084 = vst.msk [vmem:[%s1240] sm:$0x3] %vm6083, %v6079
        %v6085 = vpack.c.bf16 %v6031, %v6031
        %v6086 = vld [vmem:[#allocation37] sm:$0xff]
        %v6087 = vld [vmem:[#allocation37 + $0x8] sm:$0xff]
        %v6090 = vunpack.c.l.b16 %v6086
        %v6091 = vunpack.c.h.b16 %v6086
        %v6092 = vunpack.c.l.b16 %v6087
        %v6093 = vunpack.c.h.b16 %v6087
        %v6094 = vpack.c.b16 %v6092, %v6090
        %v6095 = vpack.c.b16 %v6093, %v6091
        %v6099 = vsel %vm3049, %v6085, 0
        %6101 = vmatpush.bf16.msra.mxu0 0
        %6102 = vmatpush.bf16.msra.mxu0 0
        %6103 = vmatpush.bf16.msra.mxu0 0
        %6104 = vmatpush.bf16.msra.mxu0 0
        %6105 = vmatpush.bf16.msra.mxu0 0
        %6106 = vmatpush.bf16.msra.mxu0 0
        %6107 = vmatpush.bf16.msra.mxu0 0
        %6108 = vmatpush.bf16.msra.mxu0 %v6094
        %6109 = vmatmul.bf16.gmra.mxu0 %v6099
        %v6110 = vpop.f32.mrf.mxu0
        %v6111 = vadd.f32 0.0, %v6110
        %v6112 = vpop.f32.mrf.mxu0
        %6113 = vdwg.mxu0
        %6114 = vmatpush.bf16.msra.mxu0 0
        %6115 = vmatpush.bf16.msra.mxu0 0
        %6116 = vmatpush.bf16.msra.mxu0 0
        %6117 = vmatpush.bf16.msra.mxu0 0
        %6118 = vmatpush.bf16.msra.mxu0 0
        %6119 = vmatpush.bf16.msra.mxu0 0
        %6120 = vmatpush.bf16.msra.mxu0 0
        %6121 = vmatpush.bf16.msra.mxu0 %v6095
        %6122 = vmatmul.bf16.gmra.mxu0 %v6099
        %v6123 = vpop.f32.mrf.mxu0
        %v6124 = vadd.f32 0.0, %v6123
        %v6125 = vpop.f32.mrf.mxu0
        %6126 = vdwg.mxu0
        %v6129 = vrot.slane %v6124, 4
        %v6130 = vsel %vm5255, %v6111, %v6129
        %6132 = vst [vmem:[%s1245] sm:$0x77] %v6130
        %p6133 = scmp.lt.s32.totalorder %s53, 1
        %s6134 = scalar_select %p6133, %s53, 1
        %s6135 = smul.addr %s6134, 2
        %s6136 = scalar_lea.vmem %s27, %s6135
        %p6137 = scmp.lt.s32.totalorder %s53, 1
        %s6138 = scalar_select %p6137, %s53, 1
        %s6139 = smul.addr %s6138, 2
        %s6140 = smul.addr %s6139, 4
        %s6141 = scalar_lea.vmem %s28, %s6140
        // Predicated region
        $region225: #{dlv3p_forward.1} parent=127 // pred_check
          %p6142 = pneg %p643
        $region226: #{dlv3p_forward.1} parent=127 // pred_check_branch
          %6144 = sbr.rel (%p6142) target = $region228
        $region227: #{dlv3p_forward.1} parent=127 // pred_region
          _
        $region228: #{dlv3p_forward.1} parent=127 // pred_fallthru
          _
        // Predicated region
        $region229: #{dlv3p_forward.1} parent=127 // pred_check
          %p6145 = pneg %p669
        $region230: #{dlv3p_forward.1} parent=127 // pred_check_branch
          %6147 = sbr.rel (%p6145) target = $region232
        $region231: #{dlv3p_forward.1} parent=127 // pred_region
          _
        $region232: #{dlv3p_forward.1} parent=127 // pred_fallthru
          _
      $region128: #{dlv3p_forward.1} parent=5 // pred_fallthru
        _
      %p6148 = scmp.le.s32.totalorder 2, %s48
      // Predicated region
      $region233: #{dlv3p_forward.1} parent=5 // pred_check
        %p6149 = pneg %p6148
      $region234: #{dlv3p_forward.1} parent=5 // pred_check_branch
        %6151 = sbr.rel (%p6149) target = $region236
      $region235: #{dlv3p_forward.1} parent=5 // pred_region
        %s6152 = ssub.s32 %s48, 2
        // Predicated region
        $region237: #{dlv3p_forward.1} parent=235 // pred_check
          %p6153 = pneg %p649
        $region238: #{dlv3p_forward.1} parent=235 // pred_check_branch
          %6155 = sbr.rel (%p6153) target = $region240
        $region239: #{dlv3p_forward.1} parent=235 // pred_region
          %p6156 = scmp.lt.s32.totalorder %s54, 1
          %s6157 = scalar_select %p6156, %s54, 1
          %s6158 = smul.addr %s6157, 2
          %s6159 = scalar_lea.vmem %s27, %s6158
        $region240: #{dlv3p_forward.1} parent=235 // pred_fallthru
          _
        // Predicated region
        $region241: #{dlv3p_forward.1} parent=235 // pred_check
          %p6160 = pneg %p675
        $region242: #{dlv3p_forward.1} parent=235 // pred_check_branch
          %6162 = sbr.rel (%p6160) target = $region244
        $region243: #{dlv3p_forward.1} parent=235 // pred_region
          %p6163 = scmp.lt.s32.totalorder %s54, 1
          %s6164 = scalar_select %p6163, %s54, 1
          %s6165 = smul.addr %s6164, 2
          %s6166 = smul.addr %s6165, 4
          %s6167 = scalar_lea.vmem %s28, %s6166
        $region244: #{dlv3p_forward.1} parent=235 // pred_fallthru
          _
      $region236: #{dlv3p_forward.1} parent=5 // pred_fallthru
        _
    $region6: #{dlv3p_forward.1} parent=1 // loop_footer
      %s52 = sadd.s32 1, %s48
    $region7: #{dlv3p_forward.1} parent=1 // loop_footer_branch
      %47 = sbr.rel target = $region3
    $region8: #{dlv3p_forward.1} parent=1 // loop_exit
      _
    %6168 = vsyncpa [#allocation3], 1
    %s6169 = scalar_lea.sflag [#allocation3], 1
    %6170 = vsyncpa %s6169, 1
    %6171 = vsyncpa [#allocation5], 1
    %6172 = vsyncpa [#allocation8], 1
    %6173 = vsyncpa [#allocation11], 1
    %6174 = vsyncpa [#allocation14], 1
    %6175 = vsyncpa [#allocation17], 1
    %6176 = vsyncpa [#allocation20], 1
    %6177 = vsyncpa [#allocation23], 1
    %6178 = vsyncpa [#allocation26], 1
    %6179 = vsyncpa [#allocation29], 1
    %6180 = vsyncpa [#allocation32], 1
    %6181 = vsyncpa [#allocation35], 1
    %6182 = vsyncpa [#allocation38], 1

</llo_original>
